<compile_context>
chip_gen: v7x
topology: tpu7x:2x2x1
jax: 0.10.0
libtpu: 0.0.40
codegen_flags: <defaults>
</compile_context>

<pallas_src>
import math

import jax
import jax.numpy as jnp
from jax.experimental import pallas as pl
from jax.experimental.pallas import tpu as pltpu

EPS = 1e-5  # nn.InstanceNorm2d default


def _resnet_block_kernel(x_ref, w1_ref, g1_ref, be1_ref,
                         w2_ref, g2_ref, be2_ref, o_ref, pad_ref, acc_ref):
    """One grid step == one batch element (batch axis is 'parallel').

    x_ref   : (1, H, W, C)    f32   unpadded input (also the residual branch)
    w*_ref  : (3, 3, C, C)    bf16  conv weights, [ky, kx, cin, cout]
    g*/be*  : (1, C)          f32   InstanceNorm affine gamma / beta
    o_ref   : (1, H, W, C)    f32   output
    pad_ref : (H+2, W+32, C)  bf16  zero-padded conv-input scratch; interior at
              sublane-aligned column offset 16, zero border at rows 0 / H+1 and
              columns 15 / W+16 (other columns are never read).
    acc_ref : (H*W, C)        f32   conv accumulator (explicit, not SSA).
    """
    _, H, W, C = o_ref.shape
    HW = H * W
    inv_hw = 1.0 / float(HW)
    bf16 = jnp.bfloat16

    # ---- zero only the border of the pad scratch (interior fully rewritten;
    #      2-wide strips keep packed bf16 stores cheap) ----------------------
    pad_ref[0:1, :, :] = jnp.zeros((1, W + 32, C), bf16)              # top row
    pad_ref[H + 1:H + 2, :, :] = jnp.zeros((1, W + 32, C), bf16)      # bottom row
    pad_ref[1:H + 1, 14:16, :] = jnp.zeros((H, 2, C), bf16)           # left  (col 15)
    pad_ref[1:H + 1, W + 16:W + 18, :] = jnp.zeros((H, 2, C), bf16)   # right (col W+16)

    def conv3x3(w_ref):
        """3x3 / stride-1 / pad-1 conv of the image currently in pad_ref.

        Nine (HW, C)bf16 @ (C, C)bf16 -> f32 matmuls accumulated into the
        explicit acc_ref scratch; first tap stores directly (no zero-fill)."""
        first = True
        for ky in range(3):          # static unroll
            for kx in range(3):      # static unroll
                patch = pad_ref[ky:ky + H, 15 + kx:15 + kx + W, :].reshape(HW, C)
                t = jnp.dot(patch, w_ref[ky, kx],
                            preferred_element_type=jnp.float32)
                if first:
                    acc_ref[...] = t
                    first = False
                else:
                    acc_ref[...] += t

    def inst_norm(g_ref, be_ref):
        """InstanceNorm2d(affine=True), biased variance, eps=1e-5.

        Single traversal for sum / sum-of-squares (f32); conv bias omitted
        upstream (mean subtraction cancels it), gamma folded into the scale,
        mean folded into the shift -> one mul+add pass over y."""
        y = acc_ref[...]
        s1 = jnp.sum(y, axis=0, keepdims=True)            # (1, C)
        s2 = jnp.sum(y * y, axis=0, keepdims=True)        # (1, C)
        m = s1 * inv_hw
        v = jnp.maximum(s2 * inv_hw - m * m, 0.0)
        scale = g_ref[...] * jax.lax.rsqrt(v + EPS)
        shift = be_ref[...] - m * scale
        return y * scale + shift

    # ---------------- conv1 -> IN1 -> ReLU ----------------
    pad_ref[1:H + 1, 16:16 + W, :] = x_ref[0].astype(bf16)
    conv3x3(w1_ref)
    h = jnp.maximum(inst_norm(g1_ref, be1_ref), 0.0)

    # ---------------- conv2 -> IN2 (pad scratch reused for the intermediate) --
    pad_ref[1:H + 1, 16:16 + W, :] = h.reshape(H, W, C).astype(bf16)
    conv3x3(w2_ref)
    h = inst_norm(g2_ref, be2_ref)

    # ---------------- residual add ----------------
    o_ref[0] = x_ref[0] + h.reshape(H, W, C)


@jax.jit
def resnet_block_forward(x_nchw, params):
    """PyTorch-compatible entry point: x is NCHW float32, returns NCHW."""
    N, C, H, W = x_nchw.shape
    x = jnp.transpose(x_nchw, (0, 2, 3, 1)).astype(jnp.float32)   # NHWC

    def prep_w(w_oihw):
        # OIHW -> (ky, kx, Cin, Cout), bf16 (MXU-native operands, f32 accum).
        return jnp.transpose(w_oihw, (2, 3, 1, 0)).astype(jnp.bfloat16)

    w1 = prep_w(params["w1"])
    w2 = prep_w(params["w2"])
    g1 = params["g1"].reshape(1, C)
    be1 = params["be1"].reshape(1, C)
    g2 = params["g2"].reshape(1, C)
    be2 = params["be2"].reshape(1, C)
    # NOTE: conv biases b1/b2 are deliberately NOT passed: a per-channel
    # constant added right before InstanceNorm is cancelled exactly by the
    # mean subtraction, so they are dead work.

    vec_spec = pl.BlockSpec((1, C), lambda n: (0, 0))
    w_spec = pl.BlockSpec((3, 3, C, C), lambda n: (0, 0, 0, 0))

    # VMEM budget: double-buffered f32 in/out blocks, weights/affine, scratch.
    blk_io = H * W * C * 4
    w_bytes = 2 * 9 * C * C * 2 + 4 * C * 4
    scratch_bytes = (H + 2) * (W + 32) * C * 2 + H * W * C * 4
    need = 4 * blk_io + 2 * w_bytes + scratch_bytes
    # Raise above the 32 MiB scoped default when needed (v5e/v6e have 128 MiB
    # physical); cap at 100 MiB.  On v7x the real fix at big sizes is row
    # tiling (see TODO at top), not a bigger limit.
    vmem_limit = int(min(max(2 * need, 32 << 20), 100 << 20))

    flops = N * 2 * (2 * 9 * H * W * C * C)            # two 3x3 convs
    bytes_accessed = (2 * N * H * W * C * 4            # x in + out (f32)
                      + 2 * 9 * C * C * 2              # bf16 weights
                      + 4 * C * 4)                     # IN affine params
    cost = pl.CostEstimate(flops=flops, transcendentals=2 * N * C,
                           bytes_accessed=bytes_accessed)

    out_nhwc = pl.pallas_call(
        _resnet_block_kernel,
        out_shape=jax.ShapeDtypeStruct((N, H, W, C), jnp.float32),
        grid_spec=pltpu.PrefetchScalarGridSpec(
            num_scalar_prefetch=0,
            grid=(N,),
            in_specs=[
                pl.BlockSpec((1, H, W, C), lambda n: (n, 0, 0, 0)),
                w_spec, vec_spec, vec_spec,
                w_spec, vec_spec, vec_spec,
            ],
            out_specs=pl.BlockSpec((1, H, W, C), lambda n: (n, 0, 0, 0)),
            scratch_shapes=[
                pltpu.VMEM((H + 2, W + 32, C), jnp.bfloat16),   # padded image
                pltpu.VMEM((H * W, C), jnp.float32),            # conv accumulator
            ],
        ),
        compiler_params=pltpu.CompilerParams(
            dimension_semantics=("parallel",),
            vmem_limit_bytes=vmem_limit),
        cost_estimate=cost,
    )(x, w1, g1, be1, w2, g2, be2)

    return jnp.transpose(out_nhwc, (0, 3, 1, 2))


def make_params(dim, key):
    """Deterministic synthetic parameters matching the PyTorch shapes."""
    ks = jax.random.split(key, 8)
    fan_in = dim * 3 * 3
    bound = 1.0 / math.sqrt(fan_in)  # PyTorch Conv2d default init range
    return {
        "w1": jax.random.uniform(ks[0], (dim, dim, 3, 3), jnp.float32, -bound, bound),
        "b1": jax.random.uniform(ks[1], (dim,), jnp.float32, -bound, bound),
        "w2": jax.random.uniform(ks[2], (dim, dim, 3, 3), jnp.float32, -bound, bound),
        "b2": jax.random.uniform(ks[3], (dim,), jnp.float32, -bound, bound),
        # InstanceNorm affine params (nominally ones/zeros; perturb so the
        # affine path is actually exercised, still deterministic).
        "g1": 1.0 + 0.1 * jax.random.normal(ks[4], (dim,), jnp.float32),
        "be1": 0.1 * jax.random.normal(ks[5], (dim,), jnp.float32),
        "g2": 1.0 + 0.1 * jax.random.normal(ks[6], (dim,), jnp.float32),
        "be2": 0.1 * jax.random.normal(ks[7], (dim,), jnp.float32),
    }


def reference_forward(x_nchw, params, mixed=False):
    """Pure-JAX (XLA) reference mirroring the PyTorch forward.

    mixed=True mirrors the kernel's precision (bf16 conv operands, f32 accum);
    mixed=False is the exact f32 PyTorch-style reference.
    """
    cdt = jnp.bfloat16 if mixed else jnp.float32

    def conv(h, w, b):
        y = jax.lax.conv_general_dilated(
            h.astype(cdt), w.astype(cdt), window_strides=(1, 1),
            padding=((1, 1), (1, 1)),
            dimension_numbers=("NCHW", "OIHW", "NCHW"),
            preferred_element_type=jnp.float32)
        return y + b[None, :, None, None]

    def inorm(y, g, be):
        m = y.mean(axis=(2, 3), keepdims=True)
        v = ((y - m) ** 2).mean(axis=(2, 3), keepdims=True)
        yh = (y - m) * jax.lax.rsqrt(v + EPS)
        return yh * g[None, :, None, None] + be[None, :, None, None]

    h = jax.nn.relu(inorm(conv(x_nchw, params["w1"], params["b1"]),
                          params["g1"], params["be1"]))
    h = inorm(conv(h, params["w2"], params["b2"]), params["g2"], params["be2"])
    return x_nchw + h


if __name__ == "__main__":
    key = jax.random.PRNGKey(0)
    k_x, k_p = jax.random.split(key)

    N, C, H, W = 2, 4, 16, 16           # NCHW, as in the PyTorch module
    x = jax.random.normal(k_x, (N, C, H, W), jnp.float32)
    params = make_params(C, k_p)

    out = jax.block_until_ready(resnet_block_forward(x, params))
    assert out.shape == (N, C, H, W)

    # Tight check vs. a reference with the same mixed precision as the kernel
    # (bf16 MXU operands, f32 accumulation) -> proves the kernel structure.
    ref_mixed = jax.block_until_ready(reference_forward(x, params, mixed=True))
    err_mixed = float(jnp.max(jnp.abs(out - ref_mixed)))
    assert err_mixed < 1e-3, f"mixed-precision max abs err = {err_mixed}"

    # Loose check vs. the exact f32 reference (bounds the bf16 operand error).
    ref_f32 = jax.block_until_ready(reference_forward(x, params, mixed=False))
    err_f32 = float(jnp.max(jnp.abs(out - ref_f32)))
    assert err_f32 < 5e-2, f"f32 reference max abs err = {err_f32}"

    print("KERNEL_OK")
</pallas_src>

<mosaic_0001>
module attributes {stable_mosaic.version = 11 : i64} {
  func.func @_resnet_block_kernel(%arg0: i32, %arg1: memref<1x16x16x4xf32, #tpu.memory_space<vmem>>, %arg2: memref<3x3x4x4xbf16, #tpu.memory_space<vmem>>, %arg3: memref<1x4xf32, #tpu.memory_space<vmem>>, %arg4: memref<1x4xf32, #tpu.memory_space<vmem>>, %arg5: memref<3x3x4x4xbf16, #tpu.memory_space<vmem>>, %arg6: memref<1x4xf32, #tpu.memory_space<vmem>>, %arg7: memref<1x4xf32, #tpu.memory_space<vmem>>, %arg8: memref<1x16x16x4xf32, #tpu.memory_space<vmem>>, %arg9: memref<18x48x4xbf16, #tpu.memory_space<vmem>>, %arg10: memref<256x4xf32, #tpu.memory_space<vmem>>) attributes {dimension_semantics = [#tpu.dimension_semantics<parallel>], iteration_bounds = array<i64: 2>, scalar_prefetch = 0 : i64, scratch_operands = 2 : i64, tpu.core_type = #tpu.core_type<tc>, window_params = [{transform_indices = @transform_0, window_bounds = array<i64: 1, 16, 16, 4>}, {pipeline_mode = #tpu.pipeline_mode<synchronous>, transform_indices = @transform_1, window_bounds = array<i64: 3, 3, 4, 4>}, {pipeline_mode = #tpu.pipeline_mode<synchronous>, transform_indices = @transform_2, window_bounds = array<i64: 1, 4>}, {pipeline_mode = #tpu.pipeline_mode<synchronous>, transform_indices = @transform_3, window_bounds = array<i64: 1, 4>}, {pipeline_mode = #tpu.pipeline_mode<synchronous>, transform_indices = @transform_4, window_bounds = array<i64: 3, 3, 4, 4>}, {pipeline_mode = #tpu.pipeline_mode<synchronous>, transform_indices = @transform_5, window_bounds = array<i64: 1, 4>}, {pipeline_mode = #tpu.pipeline_mode<synchronous>, transform_indices = @transform_6, window_bounds = array<i64: 1, 4>}, {transform_indices = @transform_7, window_bounds = array<i64: 1, 16, 16, 4>}]} {
    %cst = arith.constant 0.000000e+00 : bf16
    %0 = vector.broadcast %cst : bf16 to vector<1x48x4xbf16>
    %c0 = arith.constant 0 : index
    %c0_0 = arith.constant 0 : index
    %c0_1 = arith.constant 0 : index
    %1 = vector.load %arg9[%c0, %c0_0, %c0_1] : memref<18x48x4xbf16, #tpu.memory_space<vmem>>, vector<1x48x4xbf16>
    tpu.vector_store %arg9[%c0, %c0_0, %c0_1], %0 {strides = array<i32>} : memref<18x48x4xbf16, #tpu.memory_space<vmem>>, vector<1x48x4xbf16>,
    %cst_2 = arith.constant 0.000000e+00 : bf16
    %2 = vector.broadcast %cst_2 : bf16 to vector<1x48x4xbf16>
    %c17 = arith.constant 17 : index
    %c0_3 = arith.constant 0 : index
    %c0_4 = arith.constant 0 : index
    %3 = vector.load %arg9[%c17, %c0_3, %c0_4] : memref<18x48x4xbf16, #tpu.memory_space<vmem>>, vector<1x48x4xbf16>
    tpu.vector_store %arg9[%c17, %c0_3, %c0_4], %2 {strides = array<i32>} : memref<18x48x4xbf16, #tpu.memory_space<vmem>>, vector<1x48x4xbf16>,
    %cst_5 = arith.constant 0.000000e+00 : bf16
    %4 = vector.broadcast %cst_5 : bf16 to vector<16x2x4xbf16>
    %c1 = arith.constant 1 : index
    %c14 = arith.constant 14 : index
    %c0_6 = arith.constant 0 : index
    %5 = vector.load %arg9[%c1, %c14, %c0_6] : memref<18x48x4xbf16, #tpu.memory_space<vmem>>, vector<16x2x4xbf16>
    tpu.vector_store %arg9[%c1, %c14, %c0_6], %4 {strides = array<i32>} : memref<18x48x4xbf16, #tpu.memory_space<vmem>>, vector<16x2x4xbf16>,
    %cst_7 = arith.constant 0.000000e+00 : bf16
    %6 = vector.broadcast %cst_7 : bf16 to vector<16x2x4xbf16>
    %c1_8 = arith.constant 1 : index
    %c32 = arith.constant 32 : index
    %c0_9 = arith.constant 0 : index
    %7 = vector.load %arg9[%c1_8, %c32, %c0_9] : memref<18x48x4xbf16, #tpu.memory_space<vmem>>, vector<16x2x4xbf16>
    tpu.vector_store %arg9[%c1_8, %c32, %c0_9], %6 {strides = array<i32>} : memref<18x48x4xbf16, #tpu.memory_space<vmem>>, vector<16x2x4xbf16>,
    %c0_10 = arith.constant 0 : index
    %c0_11 = arith.constant 0 : index
    %c0_12 = arith.constant 0 : index
    %c0_13 = arith.constant 0 : index
    %8 = vector.load %arg1[%c0_10, %c0_11, %c0_12, %c0_13] : memref<1x16x16x4xf32, #tpu.memory_space<vmem>>, vector<1x16x16x4xf32>
    %9 = vector.shape_cast %8 : vector<1x16x16x4xf32> to vector<16x16x4xf32>
    %10 = arith.truncf %9 : vector<16x16x4xf32> to vector<16x16x4xbf16>
    %c1_14 = arith.constant 1 : index
    %c16 = arith.constant 16 : index
    %c0_15 = arith.constant 0 : index
    %11 = vector.load %arg9[%c1_14, %c16, %c0_15] : memref<18x48x4xbf16, #tpu.memory_space<vmem>>, vector<16x16x4xbf16>
    tpu.vector_store %arg9[%c1_14, %c16, %c0_15], %10 {strides = array<i32>} : memref<18x48x4xbf16, #tpu.memory_space<vmem>>, vector<16x16x4xbf16>,
    %c0_16 = arith.constant 0 : index
    %c15 = arith.constant 15 : index
    %c0_17 = arith.constant 0 : index
    %12 = vector.load %arg9[%c0_16, %c15, %c0_17] : memref<18x48x4xbf16, #tpu.memory_space<vmem>>, vector<16x16x4xbf16>
    %13 = vector.shape_cast %12 : vector<16x16x4xbf16> to vector<256x4xbf16>
    %c0_18 = arith.constant 0 : index
    %c0_19 = arith.constant 0 : index
    %c0_20 = arith.constant 0 : index
    %c0_21 = arith.constant 0 : index
    %14 = vector.load %arg2[%c0_18, %c0_19, %c0_20, %c0_21] : memref<3x3x4x4xbf16, #tpu.memory_space<vmem>>, vector<1x1x4x4xbf16>
    %15 = vector.shape_cast %14 : vector<1x1x4x4xbf16> to vector<4x4xbf16>
    %cst_22 = arith.constant dense<0.000000e+00> : vector<256x4xf32>
    %16 = tpu.matmul %13, %15, %cst_22 {dimension_numbers = #tpu.dot_dimension_numbers<[1], [0], [0], [1], [0, 0, 1, 1], [], []>} : vector<256x4xbf16>, vector<4x4xbf16>, vector<256x4xf32> -> vector<256x4xf32>
    %c0_23 = arith.constant 0 : index
    %c0_24 = arith.constant 0 : index
    %17 = vector.load %arg10[%c0_23, %c0_24] : memref<256x4xf32, #tpu.memory_space<vmem>>, vector<256x4xf32>
    tpu.vector_store %arg10[%c0_23, %c0_24], %16 {strides = array<i32>} : memref<256x4xf32, #tpu.memory_space<vmem>>, vector<256x4xf32>,
    %c0_25 = arith.constant 0 : index
    %c16_26 = arith.constant 16 : index
    %c0_27 = arith.constant 0 : index
    %18 = vector.load %arg9[%c0_25, %c16_26, %c0_27] : memref<18x48x4xbf16, #tpu.memory_space<vmem>>, vector<16x16x4xbf16>
    %19 = vector.shape_cast %18 : vector<16x16x4xbf16> to vector<256x4xbf16>
    %c0_28 = arith.constant 0 : index
    %c1_29 = arith.constant 1 : index
    %c0_30 = arith.constant 0 : index
    %c0_31 = arith.constant 0 : index
    %20 = vector.load %arg2[%c0_28, %c1_29, %c0_30, %c0_31] : memref<3x3x4x4xbf16, #tpu.memory_space<vmem>>, vector<1x1x4x4xbf16>
    %21 = vector.shape_cast %20 : vector<1x1x4x4xbf16> to vector<4x4xbf16>
    %cst_32 = arith.constant dense<0.000000e+00> : vector<256x4xf32>
    %22 = tpu.matmul %19, %21, %cst_32 {dimension_numbers = #tpu.dot_dimension_numbers<[1], [0], [0], [1], [0, 0, 1, 1], [], []>} : vector<256x4xbf16>, vector<4x4xbf16>, vector<256x4xf32> -> vector<256x4xf32>
    %c0_33 = arith.constant 0 : index
    %c0_34 = arith.constant 0 : index
    %23 = vector.load %arg10[%c0_33, %c0_34] : memref<256x4xf32, #tpu.memory_space<vmem>>, vector<256x4xf32>
    %24 = arith.addf %23, %22 : vector<256x4xf32>
    %c0_35 = arith.constant 0 : index
    %c0_36 = arith.constant 0 : index
    %25 = vector.load %arg10[%c0_35, %c0_36] : memref<256x4xf32, #tpu.memory_space<vmem>>, vector<256x4xf32>
    tpu.vector_store %arg10[%c0_35, %c0_36], %24 {strides = array<i32>} : memref<256x4xf32, #tpu.memory_space<vmem>>, vector<256x4xf32>,
    %c0_37 = arith.constant 0 : index
    %c17_38 = arith.constant 17 : index
    %c0_39 = arith.constant 0 : index
    %26 = vector.load %arg9[%c0_37, %c17_38, %c0_39] : memref<18x48x4xbf16, #tpu.memory_space<vmem>>, vector<16x16x4xbf16>
    %27 = vector.shape_cast %26 : vector<16x16x4xbf16> to vector<256x4xbf16>
    %c0_40 = arith.constant 0 : index
    %c2 = arith.constant 2 : index
    %c0_41 = arith.constant 0 : index
    %c0_42 = arith.constant 0 : index
    %28 = vector.load %arg2[%c0_40, %c2, %c0_41, %c0_42] : memref<3x3x4x4xbf16, #tpu.memory_space<vmem>>, vector<1x1x4x4xbf16>
    %29 = vector.shape_cast %28 : vector<1x1x4x4xbf16> to vector<4x4xbf16>
    %cst_43 = arith.constant dense<0.000000e+00> : vector<256x4xf32>
    %30 = tpu.matmul %27, %29, %cst_43 {dimension_numbers = #tpu.dot_dimension_numbers<[1], [0], [0], [1], [0, 0, 1, 1], [], []>} : vector<256x4xbf16>, vector<4x4xbf16>, vector<256x4xf32> -> vector<256x4xf32>
    %c0_44 = arith.constant 0 : index
    %c0_45 = arith.constant 0 : index
    %31 = vector.load %arg10[%c0_44, %c0_45] : memref<256x4xf32, #tpu.memory_space<vmem>>, vector<256x4xf32>
    %32 = arith.addf %31, %30 : vector<256x4xf32>
    %c0_46 = arith.constant 0 : index
    %c0_47 = arith.constant 0 : index
    %33 = vector.load %arg10[%c0_46, %c0_47] : memref<256x4xf32, #tpu.memory_space<vmem>>, vector<256x4xf32>
    tpu.vector_store %arg10[%c0_46, %c0_47], %32 {strides = array<i32>} : memref<256x4xf32, #tpu.memory_space<vmem>>, vector<256x4xf32>,
    %c1_48 = arith.constant 1 : index
    %c15_49 = arith.constant 15 : index
    %c0_50 = arith.constant 0 : index
    %34 = vector.load %arg9[%c1_48, %c15_49, %c0_50] : memref<18x48x4xbf16, #tpu.memory_space<vmem>>, vector<16x16x4xbf16>
    %35 = vector.shape_cast %34 : vector<16x16x4xbf16> to vector<256x4xbf16>
    %c1_51 = arith.constant 1 : index
    %c0_52 = arith.constant 0 : index
    %c0_53 = arith.constant 0 : index
    %c0_54 = arith.constant 0 : index
    %36 = vector.load %arg2[%c1_51, %c0_52, %c0_53, %c0_54] : memref<3x3x4x4xbf16, #tpu.memory_space<vmem>>, vector<1x1x4x4xbf16>
    %37 = vector.shape_cast %36 : vector<1x1x4x4xbf16> to vector<4x4xbf16>
    %cst_55 = arith.constant dense<0.000000e+00> : vector<256x4xf32>
    %38 = tpu.matmul %35, %37, %cst_55 {dimension_numbers = #tpu.dot_dimension_numbers<[1], [0], [0], [1], [0, 0, 1, 1], [], []>} : vector<256x4xbf16>, vector<4x4xbf16>, vector<256x4xf32> -> vector<256x4xf32>
    %c0_56 = arith.constant 0 : index
    %c0_57 = arith.constant 0 : index
    %39 = vector.load %arg10[%c0_56, %c0_57] : memref<256x4xf32, #tpu.memory_space<vmem>>, vector<256x4xf32>
    %40 = arith.addf %39, %38 : vector<256x4xf32>
    %c0_58 = arith.constant 0 : index
    %c0_59 = arith.constant 0 : index
    %41 = vector.load %arg10[%c0_58, %c0_59] : memref<256x4xf32, #tpu.memory_space<vmem>>, vector<256x4xf32>
    tpu.vector_store %arg10[%c0_58, %c0_59], %40 {strides = array<i32>} : memref<256x4xf32, #tpu.memory_space<vmem>>, vector<256x4xf32>,
    %c1_60 = arith.constant 1 : index
    %c16_61 = arith.constant 16 : index
    %c0_62 = arith.constant 0 : index
    %42 = vector.load %arg9[%c1_60, %c16_61, %c0_62] : memref<18x48x4xbf16, #tpu.memory_space<vmem>>, vector<16x16x4xbf16>
    %43 = vector.shape_cast %42 : vector<16x16x4xbf16> to vector<256x4xbf16>
    %c1_63 = arith.constant 1 : index
    %c1_64 = arith.constant 1 : index
    %c0_65 = arith.constant 0 : index
    %c0_66 = arith.constant 0 : index
    %44 = vector.load %arg2[%c1_63, %c1_64, %c0_65, %c0_66] : memref<3x3x4x4xbf16, #tpu.memory_space<vmem>>, vector<1x1x4x4xbf16>
    %45 = vector.shape_cast %44 : vector<1x1x4x4xbf16> to vector<4x4xbf16>
    %cst_67 = arith.constant dense<0.000000e+00> : vector<256x4xf32>
    %46 = tpu.matmul %43, %45, %cst_67 {dimension_numbers = #tpu.dot_dimension_numbers<[1], [0], [0], [1], [0, 0, 1, 1], [], []>} : vector<256x4xbf16>, vector<4x4xbf16>, vector<256x4xf32> -> vector<256x4xf32>
    %c0_68 = arith.constant 0 : index
    %c0_69 = arith.constant 0 : index
    %47 = vector.load %arg10[%c0_68, %c0_69] : memref<256x4xf32, #tpu.memory_space<vmem>>, vector<256x4xf32>
    %48 = arith.addf %47, %46 : vector<256x4xf32>
    %c0_70 = arith.constant 0 : index
    %c0_71 = arith.constant 0 : index
    %49 = vector.load %arg10[%c0_70, %c0_71] : memref<256x4xf32, #tpu.memory_space<vmem>>, vector<256x4xf32>
    tpu.vector_store %arg10[%c0_70, %c0_71], %48 {strides = array<i32>} : memref<256x4xf32, #tpu.memory_space<vmem>>, vector<256x4xf32>,
    %c1_72 = arith.constant 1 : index
    %c17_73 = arith.constant 17 : index
    %c0_74 = arith.constant 0 : index
    %50 = vector.load %arg9[%c1_72, %c17_73, %c0_74] : memref<18x48x4xbf16, #tpu.memory_space<vmem>>, vector<16x16x4xbf16>
    %51 = vector.shape_cast %50 : vector<16x16x4xbf16> to vector<256x4xbf16>
    %c1_75 = arith.constant 1 : index
    %c2_76 = arith.constant 2 : index
    %c0_77 = arith.constant 0 : index
    %c0_78 = arith.constant 0 : index
    %52 = vector.load %arg2[%c1_75, %c2_76, %c0_77, %c0_78] : memref<3x3x4x4xbf16, #tpu.memory_space<vmem>>, vector<1x1x4x4xbf16>
    %53 = vector.shape_cast %52 : vector<1x1x4x4xbf16> to vector<4x4xbf16>
    %cst_79 = arith.constant dense<0.000000e+00> : vector<256x4xf32>
    %54 = tpu.matmul %51, %53, %cst_79 {dimension_numbers = #tpu.dot_dimension_numbers<[1], [0], [0], [1], [0, 0, 1, 1], [], []>} : vector<256x4xbf16>, vector<4x4xbf16>, vector<256x4xf32> -> vector<256x4xf32>
    %c0_80 = arith.constant 0 : index
    %c0_81 = arith.constant 0 : index
    %55 = vector.load %arg10[%c0_80, %c0_81] : memref<256x4xf32, #tpu.memory_space<vmem>>, vector<256x4xf32>
    %56 = arith.addf %55, %54 : vector<256x4xf32>
    %c0_82 = arith.constant 0 : index
    %c0_83 = arith.constant 0 : index
    %57 = vector.load %arg10[%c0_82, %c0_83] : memref<256x4xf32, #tpu.memory_space<vmem>>, vector<256x4xf32>
    tpu.vector_store %arg10[%c0_82, %c0_83], %56 {strides = array<i32>} : memref<256x4xf32, #tpu.memory_space<vmem>>, vector<256x4xf32>,
    %c2_84 = arith.constant 2 : index
    %c15_85 = arith.constant 15 : index
    %c0_86 = arith.constant 0 : index
    %58 = vector.load %arg9[%c2_84, %c15_85, %c0_86] : memref<18x48x4xbf16, #tpu.memory_space<vmem>>, vector<16x16x4xbf16>
    %59 = vector.shape_cast %58 : vector<16x16x4xbf16> to vector<256x4xbf16>
    %c2_87 = arith.constant 2 : index
    %c0_88 = arith.constant 0 : index
    %c0_89 = arith.constant 0 : index
    %c0_90 = arith.constant 0 : index
    %60 = vector.load %arg2[%c2_87, %c0_88, %c0_89, %c0_90] : memref<3x3x4x4xbf16, #tpu.memory_space<vmem>>, vector<1x1x4x4xbf16>
    %61 = vector.shape_cast %60 : vector<1x1x4x4xbf16> to vector<4x4xbf16>
    %cst_91 = arith.constant dense<0.000000e+00> : vector<256x4xf32>
    %62 = tpu.matmul %59, %61, %cst_91 {dimension_numbers = #tpu.dot_dimension_numbers<[1], [0], [0], [1], [0, 0, 1, 1], [], []>} : vector<256x4xbf16>, vector<4x4xbf16>, vector<256x4xf32> -> vector<256x4xf32>
    %c0_92 = arith.constant 0 : index
    %c0_93 = arith.constant 0 : index
    %63 = vector.load %arg10[%c0_92, %c0_93] : memref<256x4xf32, #tpu.memory_space<vmem>>, vector<256x4xf32>
    %64 = arith.addf %63, %62 : vector<256x4xf32>
    %c0_94 = arith.constant 0 : index
    %c0_95 = arith.constant 0 : index
    %65 = vector.load %arg10[%c0_94, %c0_95] : memref<256x4xf32, #tpu.memory_space<vmem>>, vector<256x4xf32>
    tpu.vector_store %arg10[%c0_94, %c0_95], %64 {strides = array<i32>} : memref<256x4xf32, #tpu.memory_space<vmem>>, vector<256x4xf32>,
    %c2_96 = arith.constant 2 : index
    %c16_97 = arith.constant 16 : index
    %c0_98 = arith.constant 0 : index
    %66 = vector.load %arg9[%c2_96, %c16_97, %c0_98] : memref<18x48x4xbf16, #tpu.memory_space<vmem>>, vector<16x16x4xbf16>
    %67 = vector.shape_cast %66 : vector<16x16x4xbf16> to vector<256x4xbf16>
    %c2_99 = arith.constant 2 : index
    %c1_100 = arith.constant 1 : index
    %c0_101 = arith.constant 0 : index
    %c0_102 = arith.constant 0 : index
    %68 = vector.load %arg2[%c2_99, %c1_100, %c0_101, %c0_102] : memref<3x3x4x4xbf16, #tpu.memory_space<vmem>>, vector<1x1x4x4xbf16>
    %69 = vector.shape_cast %68 : vector<1x1x4x4xbf16> to vector<4x4xbf16>
    %cst_103 = arith.constant dense<0.000000e+00> : vector<256x4xf32>
    %70 = tpu.matmul %67, %69, %cst_103 {dimension_numbers = #tpu.dot_dimension_numbers<[1], [0], [0], [1], [0, 0, 1, 1], [], []>} : vector<256x4xbf16>, vector<4x4xbf16>, vector<256x4xf32> -> vector<256x4xf32>
    %c0_104 = arith.constant 0 : index
    %c0_105 = arith.constant 0 : index
    %71 = vector.load %arg10[%c0_104, %c0_105] : memref<256x4xf32, #tpu.memory_space<vmem>>, vector<256x4xf32>
    %72 = arith.addf %71, %70 : vector<256x4xf32>
    %c0_106 = arith.constant 0 : index
    %c0_107 = arith.constant 0 : index
    %73 = vector.load %arg10[%c0_106, %c0_107] : memref<256x4xf32, #tpu.memory_space<vmem>>, vector<256x4xf32>
    tpu.vector_store %arg10[%c0_106, %c0_107], %72 {strides = array<i32>} : memref<256x4xf32, #tpu.memory_space<vmem>>, vector<256x4xf32>,
    %c2_108 = arith.constant 2 : index
    %c17_109 = arith.constant 17 : index
    %c0_110 = arith.constant 0 : index
    %74 = vector.load %arg9[%c2_108, %c17_109, %c0_110] : memref<18x48x4xbf16, #tpu.memory_space<vmem>>, vector<16x16x4xbf16>
    %75 = vector.shape_cast %74 : vector<16x16x4xbf16> to vector<256x4xbf16>
    %c2_111 = arith.constant 2 : index
    %c2_112 = arith.constant 2 : index
    %c0_113 = arith.constant 0 : index
    %c0_114 = arith.constant 0 : index
    %76 = vector.load %arg2[%c2_111, %c2_112, %c0_113, %c0_114] : memref<3x3x4x4xbf16, #tpu.memory_space<vmem>>, vector<1x1x4x4xbf16>
    %77 = vector.shape_cast %76 : vector<1x1x4x4xbf16> to vector<4x4xbf16>
    %cst_115 = arith.constant dense<0.000000e+00> : vector<256x4xf32>
    %78 = tpu.matmul %75, %77, %cst_115 {dimension_numbers = #tpu.dot_dimension_numbers<[1], [0], [0], [1], [0, 0, 1, 1], [], []>} : vector<256x4xbf16>, vector<4x4xbf16>, vector<256x4xf32> -> vector<256x4xf32>
    %c0_116 = arith.constant 0 : index
    %c0_117 = arith.constant 0 : index
    %79 = vector.load %arg10[%c0_116, %c0_117] : memref<256x4xf32, #tpu.memory_space<vmem>>, vector<256x4xf32>
    %80 = arith.addf %79, %78 : vector<256x4xf32>
    %c0_118 = arith.constant 0 : index
    %c0_119 = arith.constant 0 : index
    %81 = vector.load %arg10[%c0_118, %c0_119] : memref<256x4xf32, #tpu.memory_space<vmem>>, vector<256x4xf32>
    tpu.vector_store %arg10[%c0_118, %c0_119], %80 {strides = array<i32>} : memref<256x4xf32, #tpu.memory_space<vmem>>, vector<256x4xf32>,
    %c0_120 = arith.constant 0 : index
    %c0_121 = arith.constant 0 : index
    %82 = vector.load %arg10[%c0_120, %c0_121] : memref<256x4xf32, #tpu.memory_space<vmem>>, vector<256x4xf32>
    %cst_122 = arith.constant dense<0.000000e+00> : vector<4xf32>
    %83 = vector.multi_reduction <add>, %82, %cst_122 [0] : vector<256x4xf32> to vector<4xf32>
    %84 = vector.shape_cast %83 : vector<4xf32> to vector<1x4xf32>
    %85 = arith.mulf %82, %82 : vector<256x4xf32>
    %cst_123 = arith.constant dense<0.000000e+00> : vector<4xf32>
    %86 = vector.multi_reduction <add>, %85, %cst_123 [0] : vector<256x4xf32> to vector<4xf32>
    %87 = vector.shape_cast %86 : vector<4xf32> to vector<1x4xf32>
    %cst_124 = arith.constant 3.906250e-03 : f32
    %88 = vector.broadcast %cst_124 : f32 to vector<1x4xf32>
    %89 = arith.mulf %84, %88 : vector<1x4xf32>
    %cst_125 = arith.constant 3.906250e-03 : f32
    %90 = vector.broadcast %cst_125 : f32 to vector<1x4xf32>
    %91 = arith.mulf %87, %90 : vector<1x4xf32>
    %92 = arith.mulf %89, %89 : vector<1x4xf32>
    %93 = arith.subf %91, %92 : vector<1x4xf32>
    %cst_126 = arith.constant 0.000000e+00 : f32
    %94 = vector.broadcast %cst_126 : f32 to vector<1x4xf32>
    %95 = arith.maximumf %93, %94 : vector<1x4xf32>
    %c0_127 = arith.constant 0 : index
    %c0_128 = arith.constant 0 : index
    %96 = vector.load %arg3[%c0_127, %c0_128] : memref<1x4xf32, #tpu.memory_space<vmem>>, vector<1x4xf32>
    %cst_129 = arith.constant 9.99999974E-6 : f32
    %97 = vector.broadcast %cst_129 : f32 to vector<1x4xf32>
    %98 = arith.addf %95, %97 : vector<1x4xf32>
    %99 = math.rsqrt %98 : vector<1x4xf32>
    %100 = arith.mulf %96, %99 : vector<1x4xf32>
    %c0_130 = arith.constant 0 : index
    %c0_131 = arith.constant 0 : index
    %101 = vector.load %arg4[%c0_130, %c0_131] : memref<1x4xf32, #tpu.memory_space<vmem>>, vector<1x4xf32>
    %102 = arith.mulf %89, %100 : vector<1x4xf32>
    %103 = arith.subf %101, %102 : vector<1x4xf32>
    %104 = vector.broadcast %100 : vector<1x4xf32> to vector<256x4xf32>
    %105 = arith.mulf %82, %104 : vector<256x4xf32>
    %106 = vector.broadcast %103 : vector<1x4xf32> to vector<256x4xf32>
    %107 = arith.addf %105, %106 : vector<256x4xf32>
    %cst_132 = arith.constant 0.000000e+00 : f32
    %108 = vector.broadcast %cst_132 : f32 to vector<256x4xf32>
    %109 = arith.maximumf %107, %108 : vector<256x4xf32>
    %110 = vector.shape_cast %109 : vector<256x4xf32> to vector<16x16x4xf32>
    %111 = arith.truncf %110 : vector<16x16x4xf32> to vector<16x16x4xbf16>
    %c1_133 = arith.constant 1 : index
    %c16_134 = arith.constant 16 : index
    %c0_135 = arith.constant 0 : index
    %112 = vector.load %arg9[%c1_133, %c16_134, %c0_135] : memref<18x48x4xbf16, #tpu.memory_space<vmem>>, vector<16x16x4xbf16>
    tpu.vector_store %arg9[%c1_133, %c16_134, %c0_135], %111 {strides = array<i32>} : memref<18x48x4xbf16, #tpu.memory_space<vmem>>, vector<16x16x4xbf16>,
    %c0_136 = arith.constant 0 : index
    %c15_137 = arith.constant 15 : index
    %c0_138 = arith.constant 0 : index
    %113 = vector.load %arg9[%c0_136, %c15_137, %c0_138] : memref<18x48x4xbf16, #tpu.memory_space<vmem>>, vector<16x16x4xbf16>
    %114 = vector.shape_cast %113 : vector<16x16x4xbf16> to vector<256x4xbf16>
    %c0_139 = arith.constant 0 : index
    %c0_140 = arith.constant 0 : index
    %c0_141 = arith.constant 0 : index
    %c0_142 = arith.constant 0 : index
    %115 = vector.load %arg5[%c0_139, %c0_140, %c0_141, %c0_142] : memref<3x3x4x4xbf16, #tpu.memory_space<vmem>>, vector<1x1x4x4xbf16>
    %116 = vector.shape_cast %115 : vector<1x1x4x4xbf16> to vector<4x4xbf16>
    %cst_143 = arith.constant dense<0.000000e+00> : vector<256x4xf32>
    %117 = tpu.matmul %114, %116, %cst_143 {dimension_numbers = #tpu.dot_dimension_numbers<[1], [0], [0], [1], [0, 0, 1, 1], [], []>} : vector<256x4xbf16>, vector<4x4xbf16>, vector<256x4xf32> -> vector<256x4xf32>
    %c0_144 = arith.constant 0 : index
    %c0_145 = arith.constant 0 : index
    %118 = vector.load %arg10[%c0_144, %c0_145] : memref<256x4xf32, #tpu.memory_space<vmem>>, vector<256x4xf32>
    tpu.vector_store %arg10[%c0_144, %c0_145], %117 {strides = array<i32>} : memref<256x4xf32, #tpu.memory_space<vmem>>, vector<256x4xf32>,
    %c0_146 = arith.constant 0 : index
    %c16_147 = arith.constant 16 : index
    %c0_148 = arith.constant 0 : index
    %119 = vector.load %arg9[%c0_146, %c16_147, %c0_148] : memref<18x48x4xbf16, #tpu.memory_space<vmem>>, vector<16x16x4xbf16>
    %120 = vector.shape_cast %119 : vector<16x16x4xbf16> to vector<256x4xbf16>
    %c0_149 = arith.constant 0 : index
    %c1_150 = arith.constant 1 : index
    %c0_151 = arith.constant 0 : index
    %c0_152 = arith.constant 0 : index
    %121 = vector.load %arg5[%c0_149, %c1_150, %c0_151, %c0_152] : memref<3x3x4x4xbf16, #tpu.memory_space<vmem>>, vector<1x1x4x4xbf16>
    %122 = vector.shape_cast %121 : vector<1x1x4x4xbf16> to vector<4x4xbf16>
    %cst_153 = arith.constant dense<0.000000e+00> : vector<256x4xf32>
    %123 = tpu.matmul %120, %122, %cst_153 {dimension_numbers = #tpu.dot_dimension_numbers<[1], [0], [0], [1], [0, 0, 1, 1], [], []>} : vector<256x4xbf16>, vector<4x4xbf16>, vector<256x4xf32> -> vector<256x4xf32>
    %c0_154 = arith.constant 0 : index
    %c0_155 = arith.constant 0 : index
    %124 = vector.load %arg10[%c0_154, %c0_155] : memref<256x4xf32, #tpu.memory_space<vmem>>, vector<256x4xf32>
    %125 = arith.addf %124, %123 : vector<256x4xf32>
    %c0_156 = arith.constant 0 : index
    %c0_157 = arith.constant 0 : index
    %126 = vector.load %arg10[%c0_156, %c0_157] : memref<256x4xf32, #tpu.memory_space<vmem>>, vector<256x4xf32>
    tpu.vector_store %arg10[%c0_156, %c0_157], %125 {strides = array<i32>} : memref<256x4xf32, #tpu.memory_space<vmem>>, vector<256x4xf32>,
    %c0_158 = arith.constant 0 : index
    %c17_159 = arith.constant 17 : index
    %c0_160 = arith.constant 0 : index
    %127 = vector.load %arg9[%c0_158, %c17_159, %c0_160] : memref<18x48x4xbf16, #tpu.memory_space<vmem>>, vector<16x16x4xbf16>
    %128 = vector.shape_cast %127 : vector<16x16x4xbf16> to vector<256x4xbf16>
    %c0_161 = arith.constant 0 : index
    %c2_162 = arith.constant 2 : index
    %c0_163 = arith.constant 0 : index
    %c0_164 = arith.constant 0 : index
    %129 = vector.load %arg5[%c0_161, %c2_162, %c0_163, %c0_164] : memref<3x3x4x4xbf16, #tpu.memory_space<vmem>>, vector<1x1x4x4xbf16>
    %130 = vector.shape_cast %129 : vector<1x1x4x4xbf16> to vector<4x4xbf16>
    %cst_165 = arith.constant dense<0.000000e+00> : vector<256x4xf32>
    %131 = tpu.matmul %128, %130, %cst_165 {dimension_numbers = #tpu.dot_dimension_numbers<[1], [0], [0], [1], [0, 0, 1, 1], [], []>} : vector<256x4xbf16>, vector<4x4xbf16>, vector<256x4xf32> -> vector<256x4xf32>
    %c0_166 = arith.constant 0 : index
    %c0_167 = arith.constant 0 : index
    %132 = vector.load %arg10[%c0_166, %c0_167] : memref<256x4xf32, #tpu.memory_space<vmem>>, vector<256x4xf32>
    %133 = arith.addf %132, %131 : vector<256x4xf32>
    %c0_168 = arith.constant 0 : index
    %c0_169 = arith.constant 0 : index
    %134 = vector.load %arg10[%c0_168, %c0_169] : memref<256x4xf32, #tpu.memory_space<vmem>>, vector<256x4xf32>
    tpu.vector_store %arg10[%c0_168, %c0_169], %133 {strides = array<i32>} : memref<256x4xf32, #tpu.memory_space<vmem>>, vector<256x4xf32>,
    %c1_170 = arith.constant 1 : index
    %c15_171 = arith.constant 15 : index
    %c0_172 = arith.constant 0 : index
    %135 = vector.load %arg9[%c1_170, %c15_171, %c0_172] : memref<18x48x4xbf16, #tpu.memory_space<vmem>>, vector<16x16x4xbf16>
    %136 = vector.shape_cast %135 : vector<16x16x4xbf16> to vector<256x4xbf16>
    %c1_173 = arith.constant 1 : index
    %c0_174 = arith.constant 0 : index
    %c0_175 = arith.constant 0 : index
    %c0_176 = arith.constant 0 : index
    %137 = vector.load %arg5[%c1_173, %c0_174, %c0_175, %c0_176] : memref<3x3x4x4xbf16, #tpu.memory_space<vmem>>, vector<1x1x4x4xbf16>
    %138 = vector.shape_cast %137 : vector<1x1x4x4xbf16> to vector<4x4xbf16>
    %cst_177 = arith.constant dense<0.000000e+00> : vector<256x4xf32>
    %139 = tpu.matmul %136, %138, %cst_177 {dimension_numbers = #tpu.dot_dimension_numbers<[1], [0], [0], [1], [0, 0, 1, 1], [], []>} : vector<256x4xbf16>, vector<4x4xbf16>, vector<256x4xf32> -> vector<256x4xf32>
    %c0_178 = arith.constant 0 : index
    %c0_179 = arith.constant 0 : index
    %140 = vector.load %arg10[%c0_178, %c0_179] : memref<256x4xf32, #tpu.memory_space<vmem>>, vector<256x4xf32>
    %141 = arith.addf %140, %139 : vector<256x4xf32>
    %c0_180 = arith.constant 0 : index
    %c0_181 = arith.constant 0 : index
    %142 = vector.load %arg10[%c0_180, %c0_181] : memref<256x4xf32, #tpu.memory_space<vmem>>, vector<256x4xf32>
    tpu.vector_store %arg10[%c0_180, %c0_181], %141 {strides = array<i32>} : memref<256x4xf32, #tpu.memory_space<vmem>>, vector<256x4xf32>,
    %c1_182 = arith.constant 1 : index
    %c16_183 = arith.constant 16 : index
    %c0_184 = arith.constant 0 : index
    %143 = vector.load %arg9[%c1_182, %c16_183, %c0_184] : memref<18x48x4xbf16, #tpu.memory_space<vmem>>, vector<16x16x4xbf16>
    %144 = vector.shape_cast %143 : vector<16x16x4xbf16> to vector<256x4xbf16>
    %c1_185 = arith.constant 1 : index
    %c1_186 = arith.constant 1 : index
    %c0_187 = arith.constant 0 : index
    %c0_188 = arith.constant 0 : index
    %145 = vector.load %arg5[%c1_185, %c1_186, %c0_187, %c0_188] : memref<3x3x4x4xbf16, #tpu.memory_space<vmem>>, vector<1x1x4x4xbf16>
    %146 = vector.shape_cast %145 : vector<1x1x4x4xbf16> to vector<4x4xbf16>
    %cst_189 = arith.constant dense<0.000000e+00> : vector<256x4xf32>
    %147 = tpu.matmul %144, %146, %cst_189 {dimension_numbers = #tpu.dot_dimension_numbers<[1], [0], [0], [1], [0, 0, 1, 1], [], []>} : vector<256x4xbf16>, vector<4x4xbf16>, vector<256x4xf32> -> vector<256x4xf32>
    %c0_190 = arith.constant 0 : index
    %c0_191 = arith.constant 0 : index
    %148 = vector.load %arg10[%c0_190, %c0_191] : memref<256x4xf32, #tpu.memory_space<vmem>>, vector<256x4xf32>
    %149 = arith.addf %148, %147 : vector<256x4xf32>
    %c0_192 = arith.constant 0 : index
    %c0_193 = arith.constant 0 : index
    %150 = vector.load %arg10[%c0_192, %c0_193] : memref<256x4xf32, #tpu.memory_space<vmem>>, vector<256x4xf32>
    tpu.vector_store %arg10[%c0_192, %c0_193], %149 {strides = array<i32>} : memref<256x4xf32, #tpu.memory_space<vmem>>, vector<256x4xf32>,
    %c1_194 = arith.constant 1 : index
    %c17_195 = arith.constant 17 : index
    %c0_196 = arith.constant 0 : index
    %151 = vector.load %arg9[%c1_194, %c17_195, %c0_196] : memref<18x48x4xbf16, #tpu.memory_space<vmem>>, vector<16x16x4xbf16>
    %152 = vector.shape_cast %151 : vector<16x16x4xbf16> to vector<256x4xbf16>
    %c1_197 = arith.constant 1 : index
    %c2_198 = arith.constant 2 : index
    %c0_199 = arith.constant 0 : index
    %c0_200 = arith.constant 0 : index
    %153 = vector.load %arg5[%c1_197, %c2_198, %c0_199, %c0_200] : memref<3x3x4x4xbf16, #tpu.memory_space<vmem>>, vector<1x1x4x4xbf16>
    %154 = vector.shape_cast %153 : vector<1x1x4x4xbf16> to vector<4x4xbf16>
    %cst_201 = arith.constant dense<0.000000e+00> : vector<256x4xf32>
    %155 = tpu.matmul %152, %154, %cst_201 {dimension_numbers = #tpu.dot_dimension_numbers<[1], [0], [0], [1], [0, 0, 1, 1], [], []>} : vector<256x4xbf16>, vector<4x4xbf16>, vector<256x4xf32> -> vector<256x4xf32>
    %c0_202 = arith.constant 0 : index
    %c0_203 = arith.constant 0 : index
    %156 = vector.load %arg10[%c0_202, %c0_203] : memref<256x4xf32, #tpu.memory_space<vmem>>, vector<256x4xf32>
    %157 = arith.addf %156, %155 : vector<256x4xf32>
    %c0_204 = arith.constant 0 : index
    %c0_205 = arith.constant 0 : index
    %158 = vector.load %arg10[%c0_204, %c0_205] : memref<256x4xf32, #tpu.memory_space<vmem>>, vector<256x4xf32>
    tpu.vector_store %arg10[%c0_204, %c0_205], %157 {strides = array<i32>} : memref<256x4xf32, #tpu.memory_space<vmem>>, vector<256x4xf32>,
    %c2_206 = arith.constant 2 : index
    %c15_207 = arith.constant 15 : index
    %c0_208 = arith.constant 0 : index
    %159 = vector.load %arg9[%c2_206, %c15_207, %c0_208] : memref<18x48x4xbf16, #tpu.memory_space<vmem>>, vector<16x16x4xbf16>
    %160 = vector.shape_cast %159 : vector<16x16x4xbf16> to vector<256x4xbf16>
    %c2_209 = arith.constant 2 : index
    %c0_210 = arith.constant 0 : index
    %c0_211 = arith.constant 0 : index
    %c0_212 = arith.constant 0 : index
    %161 = vector.load %arg5[%c2_209, %c0_210, %c0_211, %c0_212] : memref<3x3x4x4xbf16, #tpu.memory_space<vmem>>, vector<1x1x4x4xbf16>
    %162 = vector.shape_cast %161 : vector<1x1x4x4xbf16> to vector<4x4xbf16>
    %cst_213 = arith.constant dense<0.000000e+00> : vector<256x4xf32>
    %163 = tpu.matmul %160, %162, %cst_213 {dimension_numbers = #tpu.dot_dimension_numbers<[1], [0], [0], [1], [0, 0, 1, 1], [], []>} : vector<256x4xbf16>, vector<4x4xbf16>, vector<256x4xf32> -> vector<256x4xf32>
    %c0_214 = arith.constant 0 : index
    %c0_215 = arith.constant 0 : index
    %164 = vector.load %arg10[%c0_214, %c0_215] : memref<256x4xf32, #tpu.memory_space<vmem>>, vector<256x4xf32>
    %165 = arith.addf %164, %163 : vector<256x4xf32>
    %c0_216 = arith.constant 0 : index
    %c0_217 = arith.constant 0 : index
    %166 = vector.load %arg10[%c0_216, %c0_217] : memref<256x4xf32, #tpu.memory_space<vmem>>, vector<256x4xf32>
    tpu.vector_store %arg10[%c0_216, %c0_217], %165 {strides = array<i32>} : memref<256x4xf32, #tpu.memory_space<vmem>>, vector<256x4xf32>,
    %c2_218 = arith.constant 2 : index
    %c16_219 = arith.constant 16 : index
    %c0_220 = arith.constant 0 : index
    %167 = vector.load %arg9[%c2_218, %c16_219, %c0_220] : memref<18x48x4xbf16, #tpu.memory_space<vmem>>, vector<16x16x4xbf16>
    %168 = vector.shape_cast %167 : vector<16x16x4xbf16> to vector<256x4xbf16>
    %c2_221 = arith.constant 2 : index
    %c1_222 = arith.constant 1 : index
    %c0_223 = arith.constant 0 : index
    %c0_224 = arith.constant 0 : index
    %169 = vector.load %arg5[%c2_221, %c1_222, %c0_223, %c0_224] : memref<3x3x4x4xbf16, #tpu.memory_space<vmem>>, vector<1x1x4x4xbf16>
    %170 = vector.shape_cast %169 : vector<1x1x4x4xbf16> to vector<4x4xbf16>
    %cst_225 = arith.constant dense<0.000000e+00> : vector<256x4xf32>
    %171 = tpu.matmul %168, %170, %cst_225 {dimension_numbers = #tpu.dot_dimension_numbers<[1], [0], [0], [1], [0, 0, 1, 1], [], []>} : vector<256x4xbf16>, vector<4x4xbf16>, vector<256x4xf32> -> vector<256x4xf32>
    %c0_226 = arith.constant 0 : index
    %c0_227 = arith.constant 0 : index
    %172 = vector.load %arg10[%c0_226, %c0_227] : memref<256x4xf32, #tpu.memory_space<vmem>>, vector<256x4xf32>
    %173 = arith.addf %172, %171 : vector<256x4xf32>
    %c0_228 = arith.constant 0 : index
    %c0_229 = arith.constant 0 : index
    %174 = vector.load %arg10[%c0_228, %c0_229] : memref<256x4xf32, #tpu.memory_space<vmem>>, vector<256x4xf32>
    tpu.vector_store %arg10[%c0_228, %c0_229], %173 {strides = array<i32>} : memref<256x4xf32, #tpu.memory_space<vmem>>, vector<256x4xf32>,
    %c2_230 = arith.constant 2 : index
    %c17_231 = arith.constant 17 : index
    %c0_232 = arith.constant 0 : index
    %175 = vector.load %arg9[%c2_230, %c17_231, %c0_232] : memref<18x48x4xbf16, #tpu.memory_space<vmem>>, vector<16x16x4xbf16>
    %176 = vector.shape_cast %175 : vector<16x16x4xbf16> to vector<256x4xbf16>
    %c2_233 = arith.constant 2 : index
    %c2_234 = arith.constant 2 : index
    %c0_235 = arith.constant 0 : index
    %c0_236 = arith.constant 0 : index
    %177 = vector.load %arg5[%c2_233, %c2_234, %c0_235, %c0_236] : memref<3x3x4x4xbf16, #tpu.memory_space<vmem>>, vector<1x1x4x4xbf16>
    %178 = vector.shape_cast %177 : vector<1x1x4x4xbf16> to vector<4x4xbf16>
    %cst_237 = arith.constant dense<0.000000e+00> : vector<256x4xf32>
    %179 = tpu.matmul %176, %178, %cst_237 {dimension_numbers = #tpu.dot_dimension_numbers<[1], [0], [0], [1], [0, 0, 1, 1], [], []>} : vector<256x4xbf16>, vector<4x4xbf16>, vector<256x4xf32> -> vector<256x4xf32>
    %c0_238 = arith.constant 0 : index
    %c0_239 = arith.constant 0 : index
    %180 = vector.load %arg10[%c0_238, %c0_239] : memref<256x4xf32, #tpu.memory_space<vmem>>, vector<256x4xf32>
    %181 = arith.addf %180, %179 : vector<256x4xf32>
    %c0_240 = arith.constant 0 : index
    %c0_241 = arith.constant 0 : index
    %182 = vector.load %arg10[%c0_240, %c0_241] : memref<256x4xf32, #tpu.memory_space<vmem>>, vector<256x4xf32>
    tpu.vector_store %arg10[%c0_240, %c0_241], %181 {strides = array<i32>} : memref<256x4xf32, #tpu.memory_space<vmem>>, vector<256x4xf32>,
    %c0_242 = arith.constant 0 : index
    %c0_243 = arith.constant 0 : index
    %183 = vector.load %arg10[%c0_242, %c0_243] : memref<256x4xf32, #tpu.memory_space<vmem>>, vector<256x4xf32>
    %cst_244 = arith.constant dense<0.000000e+00> : vector<4xf32>
    %184 = vector.multi_reduction <add>, %183, %cst_244 [0] : vector<256x4xf32> to vector<4xf32>
    %185 = vector.shape_cast %184 : vector<4xf32> to vector<1x4xf32>
    %186 = arith.mulf %183, %183 : vector<256x4xf32>
    %cst_245 = arith.constant dense<0.000000e+00> : vector<4xf32>
    %187 = vector.multi_reduction <add>, %186, %cst_245 [0] : vector<256x4xf32> to vector<4xf32>
    %188 = vector.shape_cast %187 : vector<4xf32> to vector<1x4xf32>
    %cst_246 = arith.constant 3.906250e-03 : f32
    %189 = vector.broadcast %cst_246 : f32 to vector<1x4xf32>
    %190 = arith.mulf %185, %189 : vector<1x4xf32>
    %cst_247 = arith.constant 3.906250e-03 : f32
    %191 = vector.broadcast %cst_247 : f32 to vector<1x4xf32>
    %192 = arith.mulf %188, %191 : vector<1x4xf32>
    %193 = arith.mulf %190, %190 : vector<1x4xf32>
    %194 = arith.subf %192, %193 : vector<1x4xf32>
    %cst_248 = arith.constant 0.000000e+00 : f32
    %195 = vector.broadcast %cst_248 : f32 to vector<1x4xf32>
    %196 = arith.maximumf %194, %195 : vector<1x4xf32>
    %c0_249 = arith.constant 0 : index
    %c0_250 = arith.constant 0 : index
    %197 = vector.load %arg6[%c0_249, %c0_250] : memref<1x4xf32, #tpu.memory_space<vmem>>, vector<1x4xf32>
    %cst_251 = arith.constant 9.99999974E-6 : f32
    %198 = vector.broadcast %cst_251 : f32 to vector<1x4xf32>
    %199 = arith.addf %196, %198 : vector<1x4xf32>
    %200 = math.rsqrt %199 : vector<1x4xf32>
    %201 = arith.mulf %197, %200 : vector<1x4xf32>
    %c0_252 = arith.constant 0 : index
    %c0_253 = arith.constant 0 : index
    %202 = vector.load %arg7[%c0_252, %c0_253] : memref<1x4xf32, #tpu.memory_space<vmem>>, vector<1x4xf32>
    %203 = arith.mulf %190, %201 : vector<1x4xf32>
    %204 = arith.subf %202, %203 : vector<1x4xf32>
    %205 = vector.broadcast %201 : vector<1x4xf32> to vector<256x4xf32>
    %206 = arith.mulf %183, %205 : vector<256x4xf32>
    %207 = vector.broadcast %204 : vector<1x4xf32> to vector<256x4xf32>
    %208 = arith.addf %206, %207 : vector<256x4xf32>
    %c0_254 = arith.constant 0 : index
    %c0_255 = arith.constant 0 : index
    %c0_256 = arith.constant 0 : index
    %c0_257 = arith.constant 0 : index
    %209 = vector.load %arg1[%c0_254, %c0_255, %c0_256, %c0_257] : memref<1x16x16x4xf32, #tpu.memory_space<vmem>>, vector<1x16x16x4xf32>
    %210 = vector.shape_cast %209 : vector<1x16x16x4xf32> to vector<16x16x4xf32>
    %211 = vector.shape_cast %208 : vector<256x4xf32> to vector<16x16x4xf32>
    %212 = arith.addf %210, %211 : vector<16x16x4xf32>
    %c0_258 = arith.constant 0 : index
    %c0_259 = arith.constant 0 : index
    %c0_260 = arith.constant 0 : index
    %c0_261 = arith.constant 0 : index
    %213 = vector.load %arg8[%c0_258, %c0_259, %c0_260, %c0_261] : memref<1x16x16x4xf32, #tpu.memory_space<vmem>>, vector<1x16x16x4xf32>
    %214 = vector.shape_cast %213 : vector<1x16x16x4xf32> to vector<16x16x4xf32>
    %215 = vector.shape_cast %212 : vector<16x16x4xf32> to vector<1x16x16x4xf32>
    tpu.vector_store %arg8[%c0_258, %c0_259, %c0_260, %c0_261], %215 {strides = array<i32>} : memref<1x16x16x4xf32, #tpu.memory_space<vmem>>, vector<1x16x16x4xf32>,
    return
  }
  func.func @transform_0(%arg0: i32) -> (i32, i32, i32, i32) {
    %c0_i32 = arith.constant 0 : i32
    %c0_i32_0 = arith.constant 0 : i32
    %c0_i32_1 = arith.constant 0 : i32
    %c0_i32_2 = arith.constant 0 : i32
    return %arg0, %c0_i32, %c0_i32_0, %c0_i32_1 : i32, i32, i32, i32
  }
  func.func @transform_1(%arg0: i32) -> (i32, i32, i32, i32) {
    %c0_i32 = arith.constant 0 : i32
    %c0_i32_0 = arith.constant 0 : i32
    %c0_i32_1 = arith.constant 0 : i32
    %c0_i32_2 = arith.constant 0 : i32
    %c0_i32_3 = arith.constant 0 : i32
    return %c0_i32, %c0_i32_0, %c0_i32_1, %c0_i32_2 : i32, i32, i32, i32
  }
  func.func @transform_2(%arg0: i32) -> (i32, i32) {
    %c0_i32 = arith.constant 0 : i32
    %c0_i32_0 = arith.constant 0 : i32
    %c0_i32_1 = arith.constant 0 : i32
    return %c0_i32, %c0_i32_0 : i32, i32
  }
  func.func @transform_3(%arg0: i32) -> (i32, i32) {
    %c0_i32 = arith.constant 0 : i32
    %c0_i32_0 = arith.constant 0 : i32
    %c0_i32_1 = arith.constant 0 : i32
    return %c0_i32, %c0_i32_0 : i32, i32
  }
  func.func @transform_4(%arg0: i32) -> (i32, i32, i32, i32) {
    %c0_i32 = arith.constant 0 : i32
    %c0_i32_0 = arith.constant 0 : i32
    %c0_i32_1 = arith.constant 0 : i32
    %c0_i32_2 = arith.constant 0 : i32
    %c0_i32_3 = arith.constant 0 : i32
    return %c0_i32, %c0_i32_0, %c0_i32_1, %c0_i32_2 : i32, i32, i32, i32
  }
  func.func @transform_5(%arg0: i32) -> (i32, i32) {
    %c0_i32 = arith.constant 0 : i32
    %c0_i32_0 = arith.constant 0 : i32
    %c0_i32_1 = arith.constant 0 : i32
    return %c0_i32, %c0_i32_0 : i32, i32
  }
  func.func @transform_6(%arg0: i32) -> (i32, i32) {
    %c0_i32 = arith.constant 0 : i32
    %c0_i32_0 = arith.constant 0 : i32
    %c0_i32_1 = arith.constant 0 : i32
    return %c0_i32, %c0_i32_0 : i32, i32
  }
  func.func @transform_7(%arg0: i32) -> (i32, i32, i32, i32) {
    %c0_i32 = arith.constant 0 : i32
    %c0_i32_0 = arith.constant 0 : i32
    %c0_i32_1 = arith.constant 0 : i32
    %c0_i32_2 = arith.constant 0 : i32
    return %arg0, %c0_i32, %c0_i32_0, %c0_i32_1 : i32, i32, i32, i32
  }
}

</mosaic_0001>

<llo_original>
// kernel: resnet_block_forward.1
$region0: #{resnet_block_forward.1}
  #allocation0 [shape = 'u32[]', space=smem, size = 0x4, offset = 0x4, fixed_abs, tag = 'smem constant byte address 0x4 - core index']
  #allocation1 [shape = 'u32[144,128]{1,0:T(1,128)}', space=vmem, size = 0x12000, scoped, tag = 'internal scratch']
  #allocation2 [shape = 'bf16[18,48,4]{2,1,0:T(16,128)(2,1)}', space=vmem, size = 0x36000, scoped, tag = 'scratch operand']
  #allocation3 [shape = 'f32[256,4]{1,0:T(8,128)}', space=vmem, size = 0x20000, scoped, tag = 'scratch operand']
  %s0 = inlined_call_operand.vmem [shape: f32[2,16,16,4], index: 0, kind: input, shape index: {}]
  %s1 = inlined_call_operand.vmem [shape: bf16[3,3,4,4], index: 1, kind: input, shape index: {}]
  %s2 = inlined_call_operand.vmem [shape: f32[1,4], index: 2, kind: input, shape index: {}]
  %s3 = inlined_call_operand.vmem [shape: f32[1,4], index: 3, kind: input, shape index: {}]
  %s4 = inlined_call_operand.vmem [shape: bf16[3,3,4,4], index: 4, kind: input, shape index: {}]
  %s5 = inlined_call_operand.vmem [shape: f32[1,4], index: 5, kind: input, shape index: {}]
  %s6 = inlined_call_operand.vmem [shape: f32[1,4], index: 6, kind: input, shape index: {}]
  %s7 = inlined_call_operand.vmem [shape: f32[2,16,16,4], index: 7, kind: output, shape index: {}]
  %s8 = sld [smem:[#allocation0]]
  $region61: #{resnet_block_forward.1} parent=0
    _
  %s10 = ssub.s32 1, %s8
  %s11 = scalar_select 0, %s10, %s8
  loop: start=0, step=1, limit=4
  $region2: #{resnet_block_forward.1} parent=0 // loop_pre_header
    _
  $region3: #{resnet_block_forward.1} parent=0 // loop_header
    %s13 = sphi 0, %s17
    %p14 = scmp.ge.s32.totalorder %s13, 4
    %s23 = sphi 0, %s25
    %s26 = sphi 0, %s23
    %s27 = sphi 0, %s26
    %s43 = sphi 0, %s27
    %s47 = sphi 0, %s47
    %s49 = sphi 0, %s47
    %s50 = sphi 0, %s49
    %s64 = sphi 0, %s50
    %s68 = sphi 0, %s68
    %s70 = sphi 0, %s68
    %s71 = sphi 0, %s70
    %s85 = sphi 0, %s71
    %s89 = sphi 0, %s89
    %s91 = sphi 0, %s89
    %s92 = sphi 0, %s91
    %s106 = sphi 0, %s92
    %s110 = sphi 0, %s110
    %s112 = sphi 0, %s110
    %s113 = sphi 0, %s112
    %s127 = sphi 0, %s113
    %s131 = sphi 0, %s131
    %s133 = sphi 0, %s131
    %s134 = sphi 0, %s133
    %s148 = sphi 0, %s134
    %s152 = sphi 0, %s152
    %s154 = sphi 0, %s152
    %s155 = sphi 0, %s154
    %s169 = sphi 0, %s155
    %s175 = sphi 0, %s177
    %s178 = sphi 0, %s175
    %s179 = sphi 0, %s178
    %s195 = sphi 0, %s179
  $region4: #{resnet_block_forward.1} parent=0 // loop_header_branch
    %16 = sbr.rel (%p14) target = $region8
  $region5: #{resnet_block_forward.1} parent=0 // loop_body
    %s18 = ssub.s32 %s13, 1
    %s19 = ssub.s32 %s13, 2
    %s20 = sadd.s32 %s13, 1
    %s21 = ssub.s32 %s13, %s20
    %p22 = scmp.eq.s32.totalorder %s21, 0
    %s24 = sadd.s32 %s23, 1
    %s25 = scalar_select %p22, %s23, %s24
    %p28 = pneg %p22
    %p29 = scmp.eq.s32.totalorder %s13, 1
    %p30 = por %p28, %p29
    %p31 = scmp.ne.s32.totalorder %s23, %s26
    %p32 = scmp.eq.s32.totalorder %s13, 0
    %p33 = por %p31, %p32
    %p34 = scmp.ne.s32.totalorder %s23, %s26
    %p35 = scmp.eq.s32.totalorder %s18, 1
    %p36 = por %p34, %p35
    %p37 = scmp.ne.s32.totalorder %s26, %s27
    %p38 = scmp.eq.s32.totalorder %s18, 0
    %p39 = por %p37, %p38
    %p40 = scmp.ne.s32.totalorder %s26, %s27
    %p41 = scmp.eq.s32.totalorder %s19, 1
    %p42 = por %p40, %p41
    %p44 = scmp.ne.s32.totalorder %s27, %s43
    %p45 = scmp.eq.s32.totalorder %s19, 0
    %p46 = por %p44, %p45
    %s48 = sadd.s32 %s47, 1
    %p51 = scmp.eq.s32.totalorder %s13, 1
    %p52 = scmp.ne.s32.totalorder %s47, %s49
    %p53 = scmp.eq.s32.totalorder %s13, 0
    %p54 = por %p52, %p53
    %p55 = scmp.ne.s32.totalorder %s47, %s49
    %p56 = scmp.eq.s32.totalorder %s18, 1
    %p57 = por %p55, %p56
    %p58 = scmp.ne.s32.totalorder %s49, %s50
    %p59 = scmp.eq.s32.totalorder %s18, 0
    %p60 = por %p58, %p59
    %p61 = scmp.ne.s32.totalorder %s49, %s50
    %p62 = scmp.eq.s32.totalorder %s19, 1
    %p63 = por %p61, %p62
    %p65 = scmp.ne.s32.totalorder %s50, %s64
    %p66 = scmp.eq.s32.totalorder %s19, 0
    %p67 = por %p65, %p66
    %s69 = sadd.s32 %s68, 1
    %p72 = scmp.eq.s32.totalorder %s13, 1
    %p73 = scmp.ne.s32.totalorder %s68, %s70
    %p74 = scmp.eq.s32.totalorder %s13, 0
    %p75 = por %p73, %p74
    %p76 = scmp.ne.s32.totalorder %s68, %s70
    %p77 = scmp.eq.s32.totalorder %s18, 1
    %p78 = por %p76, %p77
    %p79 = scmp.ne.s32.totalorder %s70, %s71
    %p80 = scmp.eq.s32.totalorder %s18, 0
    %p81 = por %p79, %p80
    %p82 = scmp.ne.s32.totalorder %s70, %s71
    %p83 = scmp.eq.s32.totalorder %s19, 1
    %p84 = por %p82, %p83
    %p86 = scmp.ne.s32.totalorder %s71, %s85
    %p87 = scmp.eq.s32.totalorder %s19, 0
    %p88 = por %p86, %p87
    %s90 = sadd.s32 %s89, 1
    %p93 = scmp.eq.s32.totalorder %s13, 1
    %p94 = scmp.ne.s32.totalorder %s89, %s91
    %p95 = scmp.eq.s32.totalorder %s13, 0
    %p96 = por %p94, %p95
    %p97 = scmp.ne.s32.totalorder %s89, %s91
    %p98 = scmp.eq.s32.totalorder %s18, 1
    %p99 = por %p97, %p98
    %p100 = scmp.ne.s32.totalorder %s91, %s92
    %p101 = scmp.eq.s32.totalorder %s18, 0
    %p102 = por %p100, %p101
    %p103 = scmp.ne.s32.totalorder %s91, %s92
    %p104 = scmp.eq.s32.totalorder %s19, 1
    %p105 = por %p103, %p104
    %p107 = scmp.ne.s32.totalorder %s92, %s106
    %p108 = scmp.eq.s32.totalorder %s19, 0
    %p109 = por %p107, %p108
    %s111 = sadd.s32 %s110, 1
    %p114 = scmp.eq.s32.totalorder %s13, 1
    %p115 = scmp.ne.s32.totalorder %s110, %s112
    %p116 = scmp.eq.s32.totalorder %s13, 0
    %p117 = por %p115, %p116
    %p118 = scmp.ne.s32.totalorder %s110, %s112
    %p119 = scmp.eq.s32.totalorder %s18, 1
    %p120 = por %p118, %p119
    %p121 = scmp.ne.s32.totalorder %s112, %s113
    %p122 = scmp.eq.s32.totalorder %s18, 0
    %p123 = por %p121, %p122
    %p124 = scmp.ne.s32.totalorder %s112, %s113
    %p125 = scmp.eq.s32.totalorder %s19, 1
    %p126 = por %p124, %p125
    %p128 = scmp.ne.s32.totalorder %s113, %s127
    %p129 = scmp.eq.s32.totalorder %s19, 0
    %p130 = por %p128, %p129
    %s132 = sadd.s32 %s131, 1
    %p135 = scmp.eq.s32.totalorder %s13, 1
    %p136 = scmp.ne.s32.totalorder %s131, %s133
    %p137 = scmp.eq.s32.totalorder %s13, 0
    %p138 = por %p136, %p137
    %p139 = scmp.ne.s32.totalorder %s131, %s133
    %p140 = scmp.eq.s32.totalorder %s18, 1
    %p141 = por %p139, %p140
    %p142 = scmp.ne.s32.totalorder %s133, %s134
    %p143 = scmp.eq.s32.totalorder %s18, 0
    %p144 = por %p142, %p143
    %p145 = scmp.ne.s32.totalorder %s133, %s134
    %p146 = scmp.eq.s32.totalorder %s19, 1
    %p147 = por %p145, %p146
    %p149 = scmp.ne.s32.totalorder %s134, %s148
    %p150 = scmp.eq.s32.totalorder %s19, 0
    %p151 = por %p149, %p150
    %s153 = sadd.s32 %s152, 1
    %p156 = scmp.eq.s32.totalorder %s13, 1
    %p157 = scmp.ne.s32.totalorder %s152, %s154
    %p158 = scmp.eq.s32.totalorder %s13, 0
    %p159 = por %p157, %p158
    %p160 = scmp.ne.s32.totalorder %s152, %s154
    %p161 = scmp.eq.s32.totalorder %s18, 1
    %p162 = por %p160, %p161
    %p163 = scmp.ne.s32.totalorder %s154, %s155
    %p164 = scmp.eq.s32.totalorder %s18, 0
    %p165 = por %p163, %p164
    %p166 = scmp.ne.s32.totalorder %s154, %s155
    %p167 = scmp.eq.s32.totalorder %s19, 1
    %p168 = por %p166, %p167
    %p170 = scmp.ne.s32.totalorder %s155, %s169
    %p171 = scmp.eq.s32.totalorder %s19, 0
    %p172 = por %p170, %p171
    %s173 = ssub.s32 %s13, %s20
    %p174 = scmp.eq.s32.totalorder %s173, 0
    %s176 = sadd.s32 %s175, 1
    %s177 = scalar_select %p174, %s175, %s176
    %p180 = pneg %p174
    %p181 = scmp.eq.s32.totalorder %s13, 1
    %p182 = por %p180, %p181
    %p183 = scmp.ne.s32.totalorder %s175, %s178
    %p184 = scmp.eq.s32.totalorder %s13, 0
    %p185 = por %p183, %p184
    %p186 = scmp.ne.s32.totalorder %s175, %s178
    %p187 = scmp.eq.s32.totalorder %s18, 1
    %p188 = por %p186, %p187
    %p189 = scmp.ne.s32.totalorder %s178, %s179
    %p190 = scmp.eq.s32.totalorder %s18, 0
    %p191 = por %p189, %p190
    %p192 = scmp.ne.s32.totalorder %s178, %s179
    %p193 = scmp.eq.s32.totalorder %s19, 1
    %p194 = por %p192, %p193
    %p196 = scmp.ne.s32.totalorder %s179, %s195
    %p197 = scmp.eq.s32.totalorder %s19, 0
    %p198 = por %p196, %p197
    %p199 = scmp.le.s32.totalorder 1, %s13
    %p200 = scmp.lt.s32.totalorder %s13, 3
    %p201 = pnand %p199, %p200
    %p202 = pneg %p201
    // Predicated region
    $region9: #{resnet_block_forward.1} parent=5 // pred_check
      _
    $region10: #{resnet_block_forward.1} parent=5 // pred_check_branch
      %204 = sbr.rel (%p201) target = $region12
    $region11: #{resnet_block_forward.1} parent=5 // pred_region
      %s205 = ssub.s32 %s13, 1
      // Predicated region
      $region13: #{resnet_block_forward.1} parent=11 // pred_check
        %p206 = pneg %p60
      $region14: #{resnet_block_forward.1} parent=11 // pred_check_branch
        %208 = sbr.rel (%p206) target = $region16
      $region15: #{resnet_block_forward.1} parent=11 // pred_region
        _
      $region16: #{resnet_block_forward.1} parent=11 // pred_fallthru
        _
      // Predicated region
      $region17: #{resnet_block_forward.1} parent=11 // pred_check
        %p209 = pneg %p81
      $region18: #{resnet_block_forward.1} parent=11 // pred_check_branch
        %211 = sbr.rel (%p209) target = $region20
      $region19: #{resnet_block_forward.1} parent=11 // pred_region
        _
      $region20: #{resnet_block_forward.1} parent=11 // pred_fallthru
        _
      // Predicated region
      $region21: #{resnet_block_forward.1} parent=11 // pred_check
        %p212 = pneg %p102
      $region22: #{resnet_block_forward.1} parent=11 // pred_check_branch
        %214 = sbr.rel (%p212) target = $region24
      $region23: #{resnet_block_forward.1} parent=11 // pred_region
        _
      $region24: #{resnet_block_forward.1} parent=11 // pred_fallthru
        _
      // Predicated region
      $region25: #{resnet_block_forward.1} parent=11 // pred_check
        %p215 = pneg %p123
      $region26: #{resnet_block_forward.1} parent=11 // pred_check_branch
        %217 = sbr.rel (%p215) target = $region28
      $region27: #{resnet_block_forward.1} parent=11 // pred_region
        _
      $region28: #{resnet_block_forward.1} parent=11 // pred_fallthru
        _
      // Predicated region
      $region29: #{resnet_block_forward.1} parent=11 // pred_check
        %p218 = pneg %p144
      $region30: #{resnet_block_forward.1} parent=11 // pred_check_branch
        %220 = sbr.rel (%p218) target = $region32
      $region31: #{resnet_block_forward.1} parent=11 // pred_region
        _
      $region32: #{resnet_block_forward.1} parent=11 // pred_fallthru
        _
      // Predicated region
      $region33: #{resnet_block_forward.1} parent=11 // pred_check
        %p221 = pneg %p165
      $region34: #{resnet_block_forward.1} parent=11 // pred_check_branch
        %223 = sbr.rel (%p221) target = $region36
      $region35: #{resnet_block_forward.1} parent=11 // pred_region
        _
      $region36: #{resnet_block_forward.1} parent=11 // pred_fallthru
        _
    $region12: #{resnet_block_forward.1} parent=5 // pred_fallthru
      _
    %p224 = scmp.lt.s32.totalorder %s13, 2
    // Predicated region
    $region37: #{resnet_block_forward.1} parent=5 // pred_check
      %p225 = pneg %p224
    $region38: #{resnet_block_forward.1} parent=5 // pred_check_branch
      %227 = sbr.rel (%p225) target = $region40
    $region39: #{resnet_block_forward.1} parent=5 // pred_region
      // Predicated region
      $region41: #{resnet_block_forward.1} parent=39 // pred_check
        %p228 = pneg %p33
      $region42: #{resnet_block_forward.1} parent=39 // pred_check_branch
        %230 = sbr.rel (%p228) target = $region44
      $region43: #{resnet_block_forward.1} parent=39 // pred_region
        %p231 = scmp.lt.s32.totalorder %s13, 1
        %s232 = scalar_select %p231, %s13, 1
        %s233 = smul.addr %s232, 32
        %s234 = smul.addr %s233, 8
        %s235 = scalar_lea.vmem %s0, %s234
      $region44: #{resnet_block_forward.1} parent=39 // pred_fallthru
        _
    $region40: #{resnet_block_forward.1} parent=5 // pred_fallthru
      _
    %p236 = scmp.le.s32.totalorder 1, %s13
    %p237 = scmp.lt.s32.totalorder %s13, 3
    %p238 = pnand %p236, %p237
    %p239 = pneg %p238
    // Predicated region
    $region45: #{resnet_block_forward.1} parent=5 // pred_check
      _
    $region46: #{resnet_block_forward.1} parent=5 // pred_check_branch
      %241 = sbr.rel (%p238) target = $region48
    $region47: #{resnet_block_forward.1} parent=5 // pred_region
      %s242 = ssub.s32 %s13, 1
      %p243 = scmp.lt.s32.totalorder %s18, 1
      %s244 = scalar_select %p243, %s18, 1
      %s245 = smul.addr %s244, 32
      %s246 = smul.addr %s245, 8
      %s247 = scalar_lea.vmem %s0, %s246
      %p248 = pneg %p39
      %p249 = pneg %p36
      %p250 = pneg %p60
      %p251 = pneg %p57
      %p252 = pneg %p81
      %p253 = pneg %p78
      %p254 = pneg %p102
      %p255 = pneg %p99
      %p256 = pneg %p123
      %p257 = pneg %p120
      %p258 = pneg %p144
      %p259 = pneg %p141
      %p260 = pneg %p165
      %p261 = pneg %p162
      %p262 = pneg %p191
      %p263 = pneg %p188
      %p264 = scmp.lt.s32.totalorder %s18, 1
      %s265 = scalar_select %p264, %s18, 1
      %s266 = smul.addr %s265, 32
      %s267 = smul.addr %s266, 8
      %s268 = scalar_lea.vmem %s7, %s267
      %p269 = scmp.lt.s32.totalorder %s18, 1
      %s270 = scalar_select %p269, %s18, 1
      %s271 = smul.addr %s270, 32
      %s272 = smul.addr %s271, 8
      %s273 = scalar_lea.vmem %s0, %s272
      %p274 = scmp.lt.s32.totalorder %s18, 1
      %s275 = scalar_select %p274, %s18, 1
      %s276 = smul.addr %s275, 32
      %s277 = smul.addr %s276, 8
      %s278 = scalar_lea.vmem %s7, %s277
      %vm280 = vcmask 31744
      %281 = vst.msk [vmem:[#allocation2] sm:$0xff] %vm280, 0
      %282 = vst.msk [vmem:[#allocation2 + $0x8] sm:$0xff] %vm280, 0
      %283 = vst.msk [vmem:[#allocation2 + $0x10] sm:$0xff] %vm280, 0
      %s284 = scalar_lea.vmem [#allocation2], 408
      %285 = vst.msk [vmem:[%s284] sm:$0xff] %vm280, 0
      %286 = vst.msk [vmem:[%s284 + $0x8] sm:$0xff] %vm280, 0
      %287 = vst.msk [vmem:[%s284 + $0x10] sm:$0xff] %vm280, 0
      %s288 = scalar_lea.vmem [#allocation2], 24
      %vm289 = vcmask 31751
      %290 = vst.msk [vmem:[%s288] sm:$0x80] %vm289, 0
      %291 = vst.msk [vmem:[%s288 + $0x18] sm:$0x80] %vm289, 0
      %292 = vst.msk [vmem:[%s288 + $0x30] sm:$0x80] %vm289, 0
      %293 = vst.msk [vmem:[%s288 + $0x48] sm:$0x80] %vm289, 0
      %294 = vst.msk [vmem:[%s288 + $0x60] sm:$0x80] %vm289, 0
      %295 = vst.msk [vmem:[%s288 + $0x78] sm:$0x80] %vm289, 0
      %296 = vst.msk [vmem:[%s288 + $0x90] sm:$0x80] %vm289, 0
      %297 = vst.msk [vmem:[%s288 + $0xa8] sm:$0x80] %vm289, 0
      %298 = vst.msk [vmem:[%s288 + $0xc0] sm:$0x80] %vm289, 0
      %299 = vst.msk [vmem:[%s288 + $0xd8] sm:$0x80] %vm289, 0
      %300 = vst.msk [vmem:[%s288 + $0xf0] sm:$0x80] %vm289, 0
      %301 = vst.msk [vmem:[%s288 + $0x108] sm:$0x80] %vm289, 0
      %302 = vst.msk [vmem:[%s288 + $0x120] sm:$0x80] %vm289, 0
      %303 = vst.msk [vmem:[%s288 + $0x138] sm:$0x80] %vm289, 0
      %304 = vst.msk [vmem:[%s288 + $0x150] sm:$0x80] %vm289, 0
      %305 = vst.msk [vmem:[%s288 + $0x168] sm:$0x80] %vm289, 0
      %vm306 = vcmask 24576
      %307 = vst.msk [vmem:[%s288 + $0x10] sm:$0x1] %vm306, 0
      %308 = vst.msk [vmem:[%s288 + $0x28] sm:$0x1] %vm306, 0
      %309 = vst.msk [vmem:[%s288 + $0x40] sm:$0x1] %vm306, 0
      %310 = vst.msk [vmem:[%s288 + $0x58] sm:$0x1] %vm306, 0
      %311 = vst.msk [vmem:[%s288 + $0x70] sm:$0x1] %vm306, 0
      %312 = vst.msk [vmem:[%s288 + $0x88] sm:$0x1] %vm306, 0
      %313 = vst.msk [vmem:[%s288 + $0xa0] sm:$0x1] %vm306, 0
      %314 = vst.msk [vmem:[%s288 + $0xb8] sm:$0x1] %vm306, 0
      %315 = vst.msk [vmem:[%s288 + $0xd0] sm:$0x1] %vm306, 0
      %316 = vst.msk [vmem:[%s288 + $0xe8] sm:$0x1] %vm306, 0
      %317 = vst.msk [vmem:[%s288 + $0x100] sm:$0x1] %vm306, 0
      %318 = vst.msk [vmem:[%s288 + $0x118] sm:$0x1] %vm306, 0
      %319 = vst.msk [vmem:[%s288 + $0x130] sm:$0x1] %vm306, 0
      %320 = vst.msk [vmem:[%s288 + $0x148] sm:$0x1] %vm306, 0
      %321 = vst.msk [vmem:[%s288 + $0x160] sm:$0x1] %vm306, 0
      %322 = vst.msk [vmem:[%s288 + $0x178] sm:$0x1] %vm306, 0
      %v323 = vld [vmem:[%s273] sm:$0xff]
      %v324 = vld [vmem:[%s273 + $0x8] sm:$0xff]
      %v325 = vld [vmem:[%s273 + $0x10] sm:$0xff]
      %v326 = vld [vmem:[%s273 + $0x18] sm:$0xff]
      %v327 = vld [vmem:[%s273 + $0x20] sm:$0xff]
      %v328 = vld [vmem:[%s273 + $0x28] sm:$0xff]
      %v329 = vld [vmem:[%s273 + $0x30] sm:$0xff]
      %v330 = vld [vmem:[%s273 + $0x38] sm:$0xff]
      %v331 = vld [vmem:[%s273 + $0x40] sm:$0xff]
      %v332 = vld [vmem:[%s273 + $0x48] sm:$0xff]
      %v333 = vld [vmem:[%s273 + $0x50] sm:$0xff]
      %v334 = vld [vmem:[%s273 + $0x58] sm:$0xff]
      %v335 = vld [vmem:[%s273 + $0x60] sm:$0xff]
      %v336 = vld [vmem:[%s273 + $0x68] sm:$0xff]
      %v337 = vld [vmem:[%s273 + $0x70] sm:$0xff]
      %v338 = vld [vmem:[%s273 + $0x78] sm:$0xff]
      %v339 = vld [vmem:[%s273 + $0x80] sm:$0xff]
      %v340 = vld [vmem:[%s273 + $0x88] sm:$0xff]
      %v341 = vld [vmem:[%s273 + $0x90] sm:$0xff]
      %v342 = vld [vmem:[%s273 + $0x98] sm:$0xff]
      %v343 = vld [vmem:[%s273 + $0xa0] sm:$0xff]
      %v344 = vld [vmem:[%s273 + $0xa8] sm:$0xff]
      %v345 = vld [vmem:[%s273 + $0xb0] sm:$0xff]
      %v346 = vld [vmem:[%s273 + $0xb8] sm:$0xff]
      %v347 = vld [vmem:[%s273 + $0xc0] sm:$0xff]
      %v348 = vld [vmem:[%s273 + $0xc8] sm:$0xff]
      %v349 = vld [vmem:[%s273 + $0xd0] sm:$0xff]
      %v350 = vld [vmem:[%s273 + $0xd8] sm:$0xff]
      %v351 = vld [vmem:[%s273 + $0xe0] sm:$0xff]
      %v352 = vld [vmem:[%s273 + $0xe8] sm:$0xff]
      %v353 = vld [vmem:[%s273 + $0xf0] sm:$0xff]
      %v354 = vld [vmem:[%s273 + $0xf8] sm:$0xff]
      %v355 = vpack.c.bf16 %v324, %v323
      %v356 = vpack.c.bf16 %v326, %v325
      %v357 = vpack.c.bf16 %v328, %v327
      %v358 = vpack.c.bf16 %v330, %v329
      %v359 = vpack.c.bf16 %v332, %v331
      %v360 = vpack.c.bf16 %v334, %v333
      %v361 = vpack.c.bf16 %v336, %v335
      %v362 = vpack.c.bf16 %v338, %v337
      %v363 = vpack.c.bf16 %v340, %v339
      %v364 = vpack.c.bf16 %v342, %v341
      %v365 = vpack.c.bf16 %v344, %v343
      %v366 = vpack.c.bf16 %v346, %v345
      %v367 = vpack.c.bf16 %v348, %v347
      %v368 = vpack.c.bf16 %v350, %v349
      %v369 = vpack.c.bf16 %v352, %v351
      %v370 = vpack.c.bf16 %v354, %v353
      %371 = vst.msk [vmem:[%s288 + $0x8] sm:$0xff] %vm280, %v355
      %372 = vst.msk [vmem:[%s288 + $0x20] sm:$0xff] %vm280, %v356
      %373 = vst.msk [vmem:[%s288 + $0x38] sm:$0xff] %vm280, %v357
      %374 = vst.msk [vmem:[%s288 + $0x50] sm:$0xff] %vm280, %v358
      %375 = vst.msk [vmem:[%s288 + $0x68] sm:$0xff] %vm280, %v359
      %376 = vst.msk [vmem:[%s288 + $0x80] sm:$0xff] %vm280, %v360
      %377 = vst.msk [vmem:[%s288 + $0x98] sm:$0xff] %vm280, %v361
      %378 = vst.msk [vmem:[%s288 + $0xb0] sm:$0xff] %vm280, %v362
      %379 = vst.msk [vmem:[%s288 + $0xc8] sm:$0xff] %vm280, %v363
      %380 = vst.msk [vmem:[%s288 + $0xe0] sm:$0xff] %vm280, %v364
      %381 = vst.msk [vmem:[%s288 + $0xf8] sm:$0xff] %vm280, %v365
      %382 = vst.msk [vmem:[%s288 + $0x110] sm:$0xff] %vm280, %v366
      %383 = vst.msk [vmem:[%s288 + $0x128] sm:$0xff] %vm280, %v367
      %384 = vst.msk [vmem:[%s288 + $0x140] sm:$0xff] %vm280, %v368
      %385 = vst.msk [vmem:[%s288 + $0x158] sm:$0xff] %vm280, %v369
      %386 = vst.msk [vmem:[%s288 + $0x170] sm:$0xff] %vm280, %v370
      %v387 = vld [vmem:[#allocation2] sm:$0x80]
      %v388 = vld [vmem:[#allocation2 + $0x8] sm:$0xff]
      %v389 = vld [vmem:[#allocation2 + $0x18] sm:$0x80]
      %v390 = vld [vmem:[#allocation2 + $0x20] sm:$0xff]
      %v391 = vld [vmem:[#allocation2 + $0x30] sm:$0x80]
      %v392 = vld [vmem:[#allocation2 + $0x38] sm:$0xff]
      %v393 = vld [vmem:[#allocation2 + $0x48] sm:$0x80]
      %v394 = vld [vmem:[#allocation2 + $0x50] sm:$0xff]
      %v395 = vld [vmem:[#allocation2 + $0x60] sm:$0x80]
      %v396 = vld [vmem:[#allocation2 + $0x68] sm:$0xff]
      %v397 = vld [vmem:[#allocation2 + $0x78] sm:$0x80]
      %v398 = vld [vmem:[#allocation2 + $0x80] sm:$0xff]
      %v399 = vld [vmem:[#allocation2 + $0x90] sm:$0x80]
      %v400 = vld [vmem:[#allocation2 + $0x98] sm:$0xff]
      %v401 = vld [vmem:[#allocation2 + $0xa8] sm:$0x80]
      %v402 = vld [vmem:[#allocation2 + $0xb0] sm:$0xff]
      %v403 = vld [vmem:[#allocation2 + $0xc0] sm:$0x80]
      %v404 = vld [vmem:[#allocation2 + $0xc8] sm:$0xff]
      %v405 = vld [vmem:[#allocation2 + $0xd8] sm:$0x80]
      %v406 = vld [vmem:[#allocation2 + $0xe0] sm:$0xff]
      %v407 = vld [vmem:[#allocation2 + $0xf0] sm:$0x80]
      %v408 = vld [vmem:[#allocation2 + $0xf8] sm:$0xff]
      %v409 = vld [vmem:[#allocation2 + $0x108] sm:$0x80]
      %v410 = vld [vmem:[#allocation2 + $0x110] sm:$0xff]
      %v411 = vld [vmem:[#allocation2 + $0x120] sm:$0x80]
      %v412 = vld [vmem:[#allocation2 + $0x128] sm:$0xff]
      %v413 = vld [vmem:[#allocation2 + $0x138] sm:$0x80]
      %v414 = vld [vmem:[#allocation2 + $0x140] sm:$0xff]
      %v415 = vld [vmem:[#allocation2 + $0x150] sm:$0x80]
      %v416 = vld [vmem:[#allocation2 + $0x158] sm:$0xff]
      %v417 = vld [vmem:[#allocation2 + $0x168] sm:$0x80]
      %v418 = vld [vmem:[#allocation2 + $0x170] sm:$0xff]
      %vm419 = vsmask.f32 256
      %v421 = vshrl.u32 %v387, 16
      %v423 = vrot.slane %v421, 7
      %v425 = vshrl.u32 %v388, 16
      %v427 = vrot.slane %v425, 7
      %v428 = vshll.u32 %v388, 16
      %v430 = vor.u32 %v427, %v428
      %v431 = vsel %vm419, %v423, %v430
      %v433 = vshrl.u32 %v389, 16
      %v435 = vrot.slane %v433, 7
      %v437 = vshrl.u32 %v390, 16
      %v439 = vrot.slane %v437, 7
      %v440 = vshll.u32 %v390, 16
      %v442 = vor.u32 %v439, %v440
      %v443 = vsel %vm419, %v435, %v442
      %v445 = vshrl.u32 %v391, 16
      %v447 = vrot.slane %v445, 7
      %v449 = vshrl.u32 %v392, 16
      %v451 = vrot.slane %v449, 7
      %v452 = vshll.u32 %v392, 16
      %v454 = vor.u32 %v451, %v452
      %v455 = vsel %vm419, %v447, %v454
      %v457 = vshrl.u32 %v393, 16
      %v459 = vrot.slane %v457, 7
      %v461 = vshrl.u32 %v394, 16
      %v463 = vrot.slane %v461, 7
      %v464 = vshll.u32 %v394, 16
      %v466 = vor.u32 %v463, %v464
      %v467 = vsel %vm419, %v459, %v466
      %v469 = vshrl.u32 %v395, 16
      %v471 = vrot.slane %v469, 7
      %v473 = vshrl.u32 %v396, 16
      %v475 = vrot.slane %v473, 7
      %v476 = vshll.u32 %v396, 16
      %v478 = vor.u32 %v475, %v476
      %v479 = vsel %vm419, %v471, %v478
      %v481 = vshrl.u32 %v397, 16
      %v483 = vrot.slane %v481, 7
      %v485 = vshrl.u32 %v398, 16
      %v487 = vrot.slane %v485, 7
      %v488 = vshll.u32 %v398, 16
      %v490 = vor.u32 %v487, %v488
      %v491 = vsel %vm419, %v483, %v490
      %v493 = vshrl.u32 %v399, 16
      %v495 = vrot.slane %v493, 7
      %v497 = vshrl.u32 %v400, 16
      %v499 = vrot.slane %v497, 7
      %v500 = vshll.u32 %v400, 16
      %v502 = vor.u32 %v499, %v500
      %v503 = vsel %vm419, %v495, %v502
      %v505 = vshrl.u32 %v401, 16
      %v507 = vrot.slane %v505, 7
      %v509 = vshrl.u32 %v402, 16
      %v511 = vrot.slane %v509, 7
      %v512 = vshll.u32 %v402, 16
      %v514 = vor.u32 %v511, %v512
      %v515 = vsel %vm419, %v507, %v514
      %v517 = vshrl.u32 %v403, 16
      %v519 = vrot.slane %v517, 7
      %v521 = vshrl.u32 %v404, 16
      %v523 = vrot.slane %v521, 7
      %v524 = vshll.u32 %v404, 16
      %v526 = vor.u32 %v523, %v524
      %v527 = vsel %vm419, %v519, %v526
      %v529 = vshrl.u32 %v405, 16
      %v531 = vrot.slane %v529, 7
      %v533 = vshrl.u32 %v406, 16
      %v535 = vrot.slane %v533, 7
      %v536 = vshll.u32 %v406, 16
      %v538 = vor.u32 %v535, %v536
      %v539 = vsel %vm419, %v531, %v538
      %v541 = vshrl.u32 %v407, 16
      %v543 = vrot.slane %v541, 7
      %v545 = vshrl.u32 %v408, 16
      %v547 = vrot.slane %v545, 7
      %v548 = vshll.u32 %v408, 16
      %v550 = vor.u32 %v547, %v548
      %v551 = vsel %vm419, %v543, %v550
      %v553 = vshrl.u32 %v409, 16
      %v555 = vrot.slane %v553, 7
      %v557 = vshrl.u32 %v410, 16
      %v559 = vrot.slane %v557, 7
      %v560 = vshll.u32 %v410, 16
      %v562 = vor.u32 %v559, %v560
      %v563 = vsel %vm419, %v555, %v562
      %v565 = vshrl.u32 %v411, 16
      %v567 = vrot.slane %v565, 7
      %v569 = vshrl.u32 %v412, 16
      %v571 = vrot.slane %v569, 7
      %v572 = vshll.u32 %v412, 16
      %v574 = vor.u32 %v571, %v572
      %v575 = vsel %vm419, %v567, %v574
      %v577 = vshrl.u32 %v413, 16
      %v579 = vrot.slane %v577, 7
      %v581 = vshrl.u32 %v414, 16
      %v583 = vrot.slane %v581, 7
      %v584 = vshll.u32 %v414, 16
      %v586 = vor.u32 %v583, %v584
      %v587 = vsel %vm419, %v579, %v586
      %v589 = vshrl.u32 %v415, 16
      %v591 = vrot.slane %v589, 7
      %v593 = vshrl.u32 %v416, 16
      %v595 = vrot.slane %v593, 7
      %v596 = vshll.u32 %v416, 16
      %v598 = vor.u32 %v595, %v596
      %v599 = vsel %vm419, %v591, %v598
      %v601 = vshrl.u32 %v417, 16
      %v603 = vrot.slane %v601, 7
      %v605 = vshrl.u32 %v418, 16
      %v607 = vrot.slane %v605, 7
      %v608 = vshll.u32 %v418, 16
      %v610 = vor.u32 %v607, %v608
      %v611 = vsel %vm419, %v603, %v610
      %v612 = vld [vmem:[%s1] sm:$0x3]
      %v614 = vsel %vm280, %v431, 0
      %v617 = vsel %vm280, %v443, 0
      %v620 = vsel %vm280, %v455, 0
      %v623 = vsel %vm280, %v467, 0
      %v626 = vsel %vm280, %v479, 0
      %v629 = vsel %vm280, %v491, 0
      %v632 = vsel %vm280, %v503, 0
      %v635 = vsel %vm280, %v515, 0
      %v638 = vsel %vm280, %v527, 0
      %v641 = vsel %vm280, %v539, 0
      %v644 = vsel %vm280, %v551, 0
      %v647 = vsel %vm280, %v563, 0
      %v650 = vsel %vm280, %v575, 0
      %v653 = vsel %vm280, %v587, 0
      %v656 = vsel %vm280, %v599, 0
      %v659 = vsel %vm280, %v611, 0
      %vm661 = vcmask 1041408
      %v663 = vsel %vm661, %v612, 0
      %665 = vmatprep.subr.bf16.mxu0 0
      %666 = vmatpush1.bf16.msra.mxu0 %v663
      %667 = vmatprep.subr.bf16.mxu0 0
      %668 = vmatpush1.bf16.msra.mxu0 0
      %669 = vmatprep.subr.bf16.mxu0 0
      %670 = vmatpush1.bf16.msra.mxu0 0
      %671 = vmatprep.subr.bf16.mxu0 0
      %672 = vmatpush1.bf16.msra.mxu0 0
      %673 = vmatprep.subr.bf16.mxu0 0
      %674 = vmatpush1.bf16.msra.mxu0 0
      %675 = vmatprep.subr.bf16.mxu0 0
      %676 = vmatpush1.bf16.msra.mxu0 0
      %677 = vmatprep.subr.bf16.mxu0 0
      %678 = vmatpush1.bf16.msra.mxu0 0
      %679 = vmatprep.subr.bf16.mxu0 0
      %680 = vmatpush1.bf16.msra.mxu0 0
      %681 = vmatprep.subr.bf16.mxu0 0
      %682 = vmatpush1.bf16.msra.mxu0 0
      %683 = vmatprep.subr.bf16.mxu0 0
      %684 = vmatpush1.bf16.msra.mxu0 0
      %685 = vmatprep.subr.bf16.mxu0 0
      %686 = vmatpush1.bf16.msra.mxu0 0
      %687 = vmatprep.subr.bf16.mxu0 0
      %688 = vmatpush1.bf16.msra.mxu0 0
      %689 = vmatprep.subr.bf16.mxu0 0
      %690 = vmatpush1.bf16.msra.mxu0 0
      %691 = vmatprep.subr.bf16.mxu0 0
      %692 = vmatpush1.bf16.msra.mxu0 0
      %693 = vmatprep.subr.bf16.mxu0 0
      %694 = vmatpush1.bf16.msra.mxu0 0
      %695 = vmatprep.subr.bf16.mxu0 0
      %696 = vmatpush1.bf16.msra.mxu0 0
      %697 = vmatprep.mubr.bf16.mxu0 0
      %698 = vmatmul.mubr.bf16.gmra.mrb[0].mxu0 %v614
      %v699 = vpop.f32.mrb[0].mxu0
      %v700 = vadd.f32 0.0, %v699
      %v701 = vpop.f32.mrb[0].mxu0
      %v702 = vpop.f32.mrb[0].mxu0
      %v703 = vadd.f32 0.0, %v702
      %v704 = vpop.f32.mrb[0].mxu0
      %705 = vmatprep.mubr.bf16.mxu0 0
      %706 = vmatmul.mubr.bf16.gmra.mrb[0].mxu0 %v617
      %v707 = vpop.f32.mrb[0].mxu0
      %v708 = vadd.f32 0.0, %v707
      %v709 = vpop.f32.mrb[0].mxu0
      %v710 = vpop.f32.mrb[0].mxu0
      %v711 = vadd.f32 0.0, %v710
      %v712 = vpop.f32.mrb[0].mxu0
      %713 = vmatprep.mubr.bf16.mxu0 0
      %714 = vmatmul.mubr.bf16.gmra.mrb[0].mxu0 %v620
      %v715 = vpop.f32.mrb[0].mxu0
      %v716 = vadd.f32 0.0, %v715
      %v717 = vpop.f32.mrb[0].mxu0
      %v718 = vpop.f32.mrb[0].mxu0
      %v719 = vadd.f32 0.0, %v718
      %v720 = vpop.f32.mrb[0].mxu0
      %721 = vmatprep.mubr.bf16.mxu0 0
      %722 = vmatmul.mubr.bf16.gmra.mrb[0].mxu0 %v623
      %v723 = vpop.f32.mrb[0].mxu0
      %v724 = vadd.f32 0.0, %v723
      %v725 = vpop.f32.mrb[0].mxu0
      %v726 = vpop.f32.mrb[0].mxu0
      %v727 = vadd.f32 0.0, %v726
      %v728 = vpop.f32.mrb[0].mxu0
      %729 = vmatprep.mubr.bf16.mxu0 0
      %730 = vmatmul.mubr.bf16.gmra.mrb[0].mxu0 %v626
      %v731 = vpop.f32.mrb[0].mxu0
      %v732 = vadd.f32 0.0, %v731
      %v733 = vpop.f32.mrb[0].mxu0
      %v734 = vpop.f32.mrb[0].mxu0
      %v735 = vadd.f32 0.0, %v734
      %v736 = vpop.f32.mrb[0].mxu0
      %737 = vmatprep.mubr.bf16.mxu0 0
      %738 = vmatmul.mubr.bf16.gmra.mrb[0].mxu0 %v629
      %v739 = vpop.f32.mrb[0].mxu0
      %v740 = vadd.f32 0.0, %v739
      %v741 = vpop.f32.mrb[0].mxu0
      %v742 = vpop.f32.mrb[0].mxu0
      %v743 = vadd.f32 0.0, %v742
      %v744 = vpop.f32.mrb[0].mxu0
      %745 = vmatprep.mubr.bf16.mxu0 0
      %746 = vmatmul.mubr.bf16.gmra.mrb[0].mxu0 %v632
      %v747 = vpop.f32.mrb[0].mxu0
      %v748 = vadd.f32 0.0, %v747
      %v749 = vpop.f32.mrb[0].mxu0
      %v750 = vpop.f32.mrb[0].mxu0
      %v751 = vadd.f32 0.0, %v750
      %v752 = vpop.f32.mrb[0].mxu0
      %753 = vmatprep.mubr.bf16.mxu0 0
      %754 = vmatmul.mubr.bf16.gmra.mrb[0].mxu0 %v635
      %v755 = vpop.f32.mrb[0].mxu0
      %v756 = vadd.f32 0.0, %v755
      %v757 = vpop.f32.mrb[0].mxu0
      %v758 = vpop.f32.mrb[0].mxu0
      %v759 = vadd.f32 0.0, %v758
      %v760 = vpop.f32.mrb[0].mxu0
      %761 = vmatprep.mubr.bf16.mxu0 0
      %762 = vmatmul.mubr.bf16.gmra.mrb[0].mxu0 %v638
      %v763 = vpop.f32.mrb[0].mxu0
      %v764 = vadd.f32 0.0, %v763
      %v765 = vpop.f32.mrb[0].mxu0
      %v766 = vpop.f32.mrb[0].mxu0
      %v767 = vadd.f32 0.0, %v766
      %v768 = vpop.f32.mrb[0].mxu0
      %769 = vmatprep.mubr.bf16.mxu0 0
      %770 = vmatmul.mubr.bf16.gmra.mrb[0].mxu0 %v641
      %v771 = vpop.f32.mrb[0].mxu0
      %v772 = vadd.f32 0.0, %v771
      %v773 = vpop.f32.mrb[0].mxu0
      %v774 = vpop.f32.mrb[0].mxu0
      %v775 = vadd.f32 0.0, %v774
      %v776 = vpop.f32.mrb[0].mxu0
      %777 = vmatprep.mubr.bf16.mxu0 0
      %778 = vmatmul.mubr.bf16.gmra.mrb[0].mxu0 %v644
      %v779 = vpop.f32.mrb[0].mxu0
      %v780 = vadd.f32 0.0, %v779
      %v781 = vpop.f32.mrb[0].mxu0
      %v782 = vpop.f32.mrb[0].mxu0
      %v783 = vadd.f32 0.0, %v782
      %v784 = vpop.f32.mrb[0].mxu0
      %785 = vmatprep.mubr.bf16.mxu0 0
      %786 = vmatmul.mubr.bf16.gmra.mrb[0].mxu0 %v647
      %v787 = vpop.f32.mrb[0].mxu0
      %v788 = vadd.f32 0.0, %v787
      %v789 = vpop.f32.mrb[0].mxu0
      %v790 = vpop.f32.mrb[0].mxu0
      %v791 = vadd.f32 0.0, %v790
      %v792 = vpop.f32.mrb[0].mxu0
      %793 = vmatprep.mubr.bf16.mxu0 0
      %794 = vmatmul.mubr.bf16.gmra.mrb[0].mxu0 %v650
      %v795 = vpop.f32.mrb[0].mxu0
      %v796 = vadd.f32 0.0, %v795
      %v797 = vpop.f32.mrb[0].mxu0
      %v798 = vpop.f32.mrb[0].mxu0
      %v799 = vadd.f32 0.0, %v798
      %v800 = vpop.f32.mrb[0].mxu0
      %801 = vmatprep.mubr.bf16.mxu0 0
      %802 = vmatmul.mubr.bf16.gmra.mrb[0].mxu0 %v653
      %v803 = vpop.f32.mrb[0].mxu0
      %v804 = vadd.f32 0.0, %v803
      %v805 = vpop.f32.mrb[0].mxu0
      %v806 = vpop.f32.mrb[0].mxu0
      %v807 = vadd.f32 0.0, %v806
      %v808 = vpop.f32.mrb[0].mxu0
      %809 = vmatprep.mubr.bf16.mxu0 0
      %810 = vmatmul.mubr.bf16.gmra.mrb[0].mxu0 %v656
      %v811 = vpop.f32.mrb[0].mxu0
      %v812 = vadd.f32 0.0, %v811
      %v813 = vpop.f32.mrb[0].mxu0
      %v814 = vpop.f32.mrb[0].mxu0
      %v815 = vadd.f32 0.0, %v814
      %v816 = vpop.f32.mrb[0].mxu0
      %817 = vmatprep.mubr.bf16.mxu0 0
      %818 = vmatmul.mubr.bf16.gmra.mrb[0].mxu0 %v659
      %v819 = vpop.f32.mrb[0].mxu0
      %v820 = vadd.f32 0.0, %v819
      %v821 = vpop.f32.mrb[0].mxu0
      %v822 = vpop.f32.mrb[0].mxu0
      %v823 = vadd.f32 0.0, %v822
      %v824 = vpop.f32.mrb[0].mxu0
      %825 = vdwg.mxu0
      %826 = vst.msk [vmem:[#allocation3] sm:$0xff] %vm280, %v700
      %827 = vst.msk [vmem:[#allocation3 + $0x8] sm:$0xff] %vm280, %v703
      %828 = vst.msk [vmem:[#allocation3 + $0x10] sm:$0xff] %vm280, %v708
      %829 = vst.msk [vmem:[#allocation3 + $0x18] sm:$0xff] %vm280, %v711
      %830 = vst.msk [vmem:[#allocation3 + $0x20] sm:$0xff] %vm280, %v716
      %831 = vst.msk [vmem:[#allocation3 + $0x28] sm:$0xff] %vm280, %v719
      %832 = vst.msk [vmem:[#allocation3 + $0x30] sm:$0xff] %vm280, %v724
      %833 = vst.msk [vmem:[#allocation3 + $0x38] sm:$0xff] %vm280, %v727
      %834 = vst.msk [vmem:[#allocation3 + $0x40] sm:$0xff] %vm280, %v732
      %835 = vst.msk [vmem:[#allocation3 + $0x48] sm:$0xff] %vm280, %v735
      %836 = vst.msk [vmem:[#allocation3 + $0x50] sm:$0xff] %vm280, %v740
      %837 = vst.msk [vmem:[#allocation3 + $0x58] sm:$0xff] %vm280, %v743
      %838 = vst.msk [vmem:[#allocation3 + $0x60] sm:$0xff] %vm280, %v748
      %839 = vst.msk [vmem:[#allocation3 + $0x68] sm:$0xff] %vm280, %v751
      %840 = vst.msk [vmem:[#allocation3 + $0x70] sm:$0xff] %vm280, %v756
      %841 = vst.msk [vmem:[#allocation3 + $0x78] sm:$0xff] %vm280, %v759
      %842 = vst.msk [vmem:[#allocation3 + $0x80] sm:$0xff] %vm280, %v764
      %843 = vst.msk [vmem:[#allocation3 + $0x88] sm:$0xff] %vm280, %v767
      %844 = vst.msk [vmem:[#allocation3 + $0x90] sm:$0xff] %vm280, %v772
      %845 = vst.msk [vmem:[#allocation3 + $0x98] sm:$0xff] %vm280, %v775
      %846 = vst.msk [vmem:[#allocation3 + $0xa0] sm:$0xff] %vm280, %v780
      %847 = vst.msk [vmem:[#allocation3 + $0xa8] sm:$0xff] %vm280, %v783
      %848 = vst.msk [vmem:[#allocation3 + $0xb0] sm:$0xff] %vm280, %v788
      %849 = vst.msk [vmem:[#allocation3 + $0xb8] sm:$0xff] %vm280, %v791
      %850 = vst.msk [vmem:[#allocation3 + $0xc0] sm:$0xff] %vm280, %v796
      %851 = vst.msk [vmem:[#allocation3 + $0xc8] sm:$0xff] %vm280, %v799
      %852 = vst.msk [vmem:[#allocation3 + $0xd0] sm:$0xff] %vm280, %v804
      %853 = vst.msk [vmem:[#allocation3 + $0xd8] sm:$0xff] %vm280, %v807
      %854 = vst.msk [vmem:[#allocation3 + $0xe0] sm:$0xff] %vm280, %v812
      %855 = vst.msk [vmem:[#allocation3 + $0xe8] sm:$0xff] %vm280, %v815
      %856 = vst.msk [vmem:[#allocation3 + $0xf0] sm:$0xff] %vm280, %v820
      %857 = vst.msk [vmem:[#allocation3 + $0xf8] sm:$0xff] %vm280, %v823
      %v858 = vld [vmem:[#allocation2 + $0x8] sm:$0xff]
      %v859 = vld [vmem:[#allocation2 + $0x20] sm:$0xff]
      %v860 = vld [vmem:[#allocation2 + $0x38] sm:$0xff]
      %v861 = vld [vmem:[#allocation2 + $0x50] sm:$0xff]
      %v862 = vld [vmem:[#allocation2 + $0x68] sm:$0xff]
      %v863 = vld [vmem:[#allocation2 + $0x80] sm:$0xff]
      %v864 = vld [vmem:[#allocation2 + $0x98] sm:$0xff]
      %v865 = vld [vmem:[#allocation2 + $0xb0] sm:$0xff]
      %v866 = vld [vmem:[#allocation2 + $0xc8] sm:$0xff]
      %v867 = vld [vmem:[#allocation2 + $0xe0] sm:$0xff]
      %v868 = vld [vmem:[#allocation2 + $0xf8] sm:$0xff]
      %v869 = vld [vmem:[#allocation2 + $0x110] sm:$0xff]
      %v870 = vld [vmem:[#allocation2 + $0x128] sm:$0xff]
      %v871 = vld [vmem:[#allocation2 + $0x140] sm:$0xff]
      %v872 = vld [vmem:[#allocation2 + $0x158] sm:$0xff]
      %v873 = vld [vmem:[#allocation2 + $0x170] sm:$0xff]
      %s874 = scalar_lea.vmem %s1, 2
      %v875 = vld [vmem:[%s874] sm:$0x3]
      %v877 = vsel %vm280, %v858, 0
      %v880 = vsel %vm280, %v859, 0
      %v883 = vsel %vm280, %v860, 0
      %v886 = vsel %vm280, %v861, 0
      %v889 = vsel %vm280, %v862, 0
      %v892 = vsel %vm280, %v863, 0
      %v895 = vsel %vm280, %v864, 0
      %v898 = vsel %vm280, %v865, 0
      %v901 = vsel %vm280, %v866, 0
      %v904 = vsel %vm280, %v867, 0
      %v907 = vsel %vm280, %v868, 0
      %v910 = vsel %vm280, %v869, 0
      %v913 = vsel %vm280, %v870, 0
      %v916 = vsel %vm280, %v871, 0
      %v919 = vsel %vm280, %v872, 0
      %v922 = vsel %vm280, %v873, 0
      %v925 = vsel %vm661, %v875, 0
      %927 = vmatprep.subr.bf16.mxu0 0
      %928 = vmatpush1.bf16.msra.mxu0 %v925
      %929 = vmatprep.subr.bf16.mxu0 0
      %930 = vmatpush1.bf16.msra.mxu0 0
      %931 = vmatprep.subr.bf16.mxu0 0
      %932 = vmatpush1.bf16.msra.mxu0 0
      %933 = vmatprep.subr.bf16.mxu0 0
      %934 = vmatpush1.bf16.msra.mxu0 0
      %935 = vmatprep.subr.bf16.mxu0 0
      %936 = vmatpush1.bf16.msra.mxu0 0
      %937 = vmatprep.subr.bf16.mxu0 0
      %938 = vmatpush1.bf16.msra.mxu0 0
      %939 = vmatprep.subr.bf16.mxu0 0
      %940 = vmatpush1.bf16.msra.mxu0 0
      %941 = vmatprep.subr.bf16.mxu0 0
      %942 = vmatpush1.bf16.msra.mxu0 0
      %943 = vmatprep.subr.bf16.mxu0 0
      %944 = vmatpush1.bf16.msra.mxu0 0
      %945 = vmatprep.subr.bf16.mxu0 0
      %946 = vmatpush1.bf16.msra.mxu0 0
      %947 = vmatprep.subr.bf16.mxu0 0
      %948 = vmatpush1.bf16.msra.mxu0 0
      %949 = vmatprep.subr.bf16.mxu0 0
      %950 = vmatpush1.bf16.msra.mxu0 0
      %951 = vmatprep.subr.bf16.mxu0 0
      %952 = vmatpush1.bf16.msra.mxu0 0
      %953 = vmatprep.subr.bf16.mxu0 0
      %954 = vmatpush1.bf16.msra.mxu0 0
      %955 = vmatprep.subr.bf16.mxu0 0
      %956 = vmatpush1.bf16.msra.mxu0 0
      %957 = vmatprep.subr.bf16.mxu0 0
      %958 = vmatpush1.bf16.msra.mxu0 0
      %959 = vmatprep.mubr.bf16.mxu0 0
      %960 = vmatmul.mubr.bf16.gmra.mrb[0].mxu0 %v877
      %v961 = vpop.f32.mrb[0].mxu0
      %v962 = vadd.f32 0.0, %v961
      %v963 = vpop.f32.mrb[0].mxu0
      %v964 = vpop.f32.mrb[0].mxu0
      %v965 = vadd.f32 0.0, %v964
      %v966 = vpop.f32.mrb[0].mxu0
      %967 = vmatprep.mubr.bf16.mxu0 0
      %968 = vmatmul.mubr.bf16.gmra.mrb[0].mxu0 %v880
      %v969 = vpop.f32.mrb[0].mxu0
      %v970 = vadd.f32 0.0, %v969
      %v971 = vpop.f32.mrb[0].mxu0
      %v972 = vpop.f32.mrb[0].mxu0
      %v973 = vadd.f32 0.0, %v972
      %v974 = vpop.f32.mrb[0].mxu0
      %975 = vmatprep.mubr.bf16.mxu0 0
      %976 = vmatmul.mubr.bf16.gmra.mrb[0].mxu0 %v883
      %v977 = vpop.f32.mrb[0].mxu0
      %v978 = vadd.f32 0.0, %v977
      %v979 = vpop.f32.mrb[0].mxu0
      %v980 = vpop.f32.mrb[0].mxu0
      %v981 = vadd.f32 0.0, %v980
      %v982 = vpop.f32.mrb[0].mxu0
      %983 = vmatprep.mubr.bf16.mxu0 0
      %984 = vmatmul.mubr.bf16.gmra.mrb[0].mxu0 %v886
      %v985 = vpop.f32.mrb[0].mxu0
      %v986 = vadd.f32 0.0, %v985
      %v987 = vpop.f32.mrb[0].mxu0
      %v988 = vpop.f32.mrb[0].mxu0
      %v989 = vadd.f32 0.0, %v988
      %v990 = vpop.f32.mrb[0].mxu0
      %991 = vmatprep.mubr.bf16.mxu0 0
      %992 = vmatmul.mubr.bf16.gmra.mrb[0].mxu0 %v889
      %v993 = vpop.f32.mrb[0].mxu0
      %v994 = vadd.f32 0.0, %v993
      %v995 = vpop.f32.mrb[0].mxu0
      %v996 = vpop.f32.mrb[0].mxu0
      %v997 = vadd.f32 0.0, %v996
      %v998 = vpop.f32.mrb[0].mxu0
      %999 = vmatprep.mubr.bf16.mxu0 0
      %1000 = vmatmul.mubr.bf16.gmra.mrb[0].mxu0 %v892
      %v1001 = vpop.f32.mrb[0].mxu0
      %v1002 = vadd.f32 0.0, %v1001
      %v1003 = vpop.f32.mrb[0].mxu0
      %v1004 = vpop.f32.mrb[0].mxu0
      %v1005 = vadd.f32 0.0, %v1004
      %v1006 = vpop.f32.mrb[0].mxu0
      %1007 = vmatprep.mubr.bf16.mxu0 0
      %1008 = vmatmul.mubr.bf16.gmra.mrb[0].mxu0 %v895
      %v1009 = vpop.f32.mrb[0].mxu0
      %v1010 = vadd.f32 0.0, %v1009
      %v1011 = vpop.f32.mrb[0].mxu0
      %v1012 = vpop.f32.mrb[0].mxu0
      %v1013 = vadd.f32 0.0, %v1012
      %v1014 = vpop.f32.mrb[0].mxu0
      %1015 = vmatprep.mubr.bf16.mxu0 0
      %1016 = vmatmul.mubr.bf16.gmra.mrb[0].mxu0 %v898
      %v1017 = vpop.f32.mrb[0].mxu0
      %v1018 = vadd.f32 0.0, %v1017
      %v1019 = vpop.f32.mrb[0].mxu0
      %v1020 = vpop.f32.mrb[0].mxu0
      %v1021 = vadd.f32 0.0, %v1020
      %v1022 = vpop.f32.mrb[0].mxu0
      %1023 = vmatprep.mubr.bf16.mxu0 0
      %1024 = vmatmul.mubr.bf16.gmra.mrb[0].mxu0 %v901
      %v1025 = vpop.f32.mrb[0].mxu0
      %v1026 = vadd.f32 0.0, %v1025
      %v1027 = vpop.f32.mrb[0].mxu0
      %v1028 = vpop.f32.mrb[0].mxu0
      %v1029 = vadd.f32 0.0, %v1028
      %v1030 = vpop.f32.mrb[0].mxu0
      %1031 = vmatprep.mubr.bf16.mxu0 0
      %1032 = vmatmul.mubr.bf16.gmra.mrb[0].mxu0 %v904
      %v1033 = vpop.f32.mrb[0].mxu0
      %v1034 = vadd.f32 0.0, %v1033
      %v1035 = vpop.f32.mrb[0].mxu0
      %v1036 = vpop.f32.mrb[0].mxu0
      %v1037 = vadd.f32 0.0, %v1036
      %v1038 = vpop.f32.mrb[0].mxu0
      %1039 = vmatprep.mubr.bf16.mxu0 0
      %1040 = vmatmul.mubr.bf16.gmra.mrb[0].mxu0 %v907
      %v1041 = vpop.f32.mrb[0].mxu0
      %v1042 = vadd.f32 0.0, %v1041
      %v1043 = vpop.f32.mrb[0].mxu0
      %v1044 = vpop.f32.mrb[0].mxu0
      %v1045 = vadd.f32 0.0, %v1044
      %v1046 = vpop.f32.mrb[0].mxu0
      %1047 = vmatprep.mubr.bf16.mxu0 0
      %1048 = vmatmul.mubr.bf16.gmra.mrb[0].mxu0 %v910
      %v1049 = vpop.f32.mrb[0].mxu0
      %v1050 = vadd.f32 0.0, %v1049
      %v1051 = vpop.f32.mrb[0].mxu0
      %v1052 = vpop.f32.mrb[0].mxu0
      %v1053 = vadd.f32 0.0, %v1052
      %v1054 = vpop.f32.mrb[0].mxu0
      %1055 = vmatprep.mubr.bf16.mxu0 0
      %1056 = vmatmul.mubr.bf16.gmra.mrb[0].mxu0 %v913
      %v1057 = vpop.f32.mrb[0].mxu0
      %v1058 = vadd.f32 0.0, %v1057
      %v1059 = vpop.f32.mrb[0].mxu0
      %v1060 = vpop.f32.mrb[0].mxu0
      %v1061 = vadd.f32 0.0, %v1060
      %v1062 = vpop.f32.mrb[0].mxu0
      %1063 = vmatprep.mubr.bf16.mxu0 0
      %1064 = vmatmul.mubr.bf16.gmra.mrb[0].mxu0 %v916
      %v1065 = vpop.f32.mrb[0].mxu0
      %v1066 = vadd.f32 0.0, %v1065
      %v1067 = vpop.f32.mrb[0].mxu0
      %v1068 = vpop.f32.mrb[0].mxu0
      %v1069 = vadd.f32 0.0, %v1068
      %v1070 = vpop.f32.mrb[0].mxu0
      %1071 = vmatprep.mubr.bf16.mxu0 0
      %1072 = vmatmul.mubr.bf16.gmra.mrb[0].mxu0 %v919
      %v1073 = vpop.f32.mrb[0].mxu0
      %v1074 = vadd.f32 0.0, %v1073
      %v1075 = vpop.f32.mrb[0].mxu0
      %v1076 = vpop.f32.mrb[0].mxu0
      %v1077 = vadd.f32 0.0, %v1076
      %v1078 = vpop.f32.mrb[0].mxu0
      %1079 = vmatprep.mubr.bf16.mxu0 0
      %1080 = vmatmul.mubr.bf16.gmra.mrb[0].mxu0 %v922
      %v1081 = vpop.f32.mrb[0].mxu0
      %v1082 = vadd.f32 0.0, %v1081
      %v1083 = vpop.f32.mrb[0].mxu0
      %v1084 = vpop.f32.mrb[0].mxu0
      %v1085 = vadd.f32 0.0, %v1084
      %v1086 = vpop.f32.mrb[0].mxu0
      %1087 = vdwg.mxu0
      %v1088 = vld [vmem:[#allocation3] sm:$0xff]
      %v1089 = vld [vmem:[#allocation3 + $0x8] sm:$0xff]
      %v1090 = vld [vmem:[#allocation3 + $0x10] sm:$0xff]
      %v1091 = vld [vmem:[#allocation3 + $0x18] sm:$0xff]
      %v1092 = vld [vmem:[#allocation3 + $0x20] sm:$0xff]
      %v1093 = vld [vmem:[#allocation3 + $0x28] sm:$0xff]
      %v1094 = vld [vmem:[#allocation3 + $0x30] sm:$0xff]
      %v1095 = vld [vmem:[#allocation3 + $0x38] sm:$0xff]
      %v1096 = vld [vmem:[#allocation3 + $0x40] sm:$0xff]
      %v1097 = vld [vmem:[#allocation3 + $0x48] sm:$0xff]
      %v1098 = vld [vmem:[#allocation3 + $0x50] sm:$0xff]
      %v1099 = vld [vmem:[#allocation3 + $0x58] sm:$0xff]
      %v1100 = vld [vmem:[#allocation3 + $0x60] sm:$0xff]
      %v1101 = vld [vmem:[#allocation3 + $0x68] sm:$0xff]
      %v1102 = vld [vmem:[#allocation3 + $0x70] sm:$0xff]
      %v1103 = vld [vmem:[#allocation3 + $0x78] sm:$0xff]
      %v1104 = vld [vmem:[#allocation3 + $0x80] sm:$0xff]
      %v1105 = vld [vmem:[#allocation3 + $0x88] sm:$0xff]
      %v1106 = vld [vmem:[#allocation3 + $0x90] sm:$0xff]
      %v1107 = vld [vmem:[#allocation3 + $0x98] sm:$0xff]
      %v1108 = vld [vmem:[#allocation3 + $0xa0] sm:$0xff]
      %v1109 = vld [vmem:[#allocation3 + $0xa8] sm:$0xff]
      %v1110 = vld [vmem:[#allocation3 + $0xb0] sm:$0xff]
      %v1111 = vld [vmem:[#allocation3 + $0xb8] sm:$0xff]
      %v1112 = vld [vmem:[#allocation3 + $0xc0] sm:$0xff]
      %v1113 = vld [vmem:[#allocation3 + $0xc8] sm:$0xff]
      %v1114 = vld [vmem:[#allocation3 + $0xd0] sm:$0xff]
      %v1115 = vld [vmem:[#allocation3 + $0xd8] sm:$0xff]
      %v1116 = vld [vmem:[#allocation3 + $0xe0] sm:$0xff]
      %v1117 = vld [vmem:[#allocation3 + $0xe8] sm:$0xff]
      %v1118 = vld [vmem:[#allocation3 + $0xf0] sm:$0xff]
      %v1119 = vld [vmem:[#allocation3 + $0xf8] sm:$0xff]
      %v1120 = vadd.f32 %v1088, %v962
      %v1121 = vadd.f32 %v1089, %v965
      %v1122 = vadd.f32 %v1090, %v970
      %v1123 = vadd.f32 %v1091, %v973
      %v1124 = vadd.f32 %v1092, %v978
      %v1125 = vadd.f32 %v1093, %v981
      %v1126 = vadd.f32 %v1094, %v986
      %v1127 = vadd.f32 %v1095, %v989
      %v1128 = vadd.f32 %v1096, %v994
      %v1129 = vadd.f32 %v1097, %v997
      %v1130 = vadd.f32 %v1098, %v1002
      %v1131 = vadd.f32 %v1099, %v1005
      %v1132 = vadd.f32 %v1100, %v1010
      %v1133 = vadd.f32 %v1101, %v1013
      %v1134 = vadd.f32 %v1102, %v1018
      %v1135 = vadd.f32 %v1103, %v1021
      %v1136 = vadd.f32 %v1104, %v1026
      %v1137 = vadd.f32 %v1105, %v1029
      %v1138 = vadd.f32 %v1106, %v1034
      %v1139 = vadd.f32 %v1107, %v1037
      %v1140 = vadd.f32 %v1108, %v1042
      %v1141 = vadd.f32 %v1109, %v1045
      %v1142 = vadd.f32 %v1110, %v1050
      %v1143 = vadd.f32 %v1111, %v1053
      %v1144 = vadd.f32 %v1112, %v1058
      %v1145 = vadd.f32 %v1113, %v1061
      %v1146 = vadd.f32 %v1114, %v1066
      %v1147 = vadd.f32 %v1115, %v1069
      %v1148 = vadd.f32 %v1116, %v1074
      %v1149 = vadd.f32 %v1117, %v1077
      %v1150 = vadd.f32 %v1118, %v1082
      %v1151 = vadd.f32 %v1119, %v1085
      %1152 = vst.msk [vmem:[#allocation3] sm:$0xff] %vm280, %v1120
      %1153 = vst.msk [vmem:[#allocation3 + $0x8] sm:$0xff] %vm280, %v1121
      %1154 = vst.msk [vmem:[#allocation3 + $0x10] sm:$0xff] %vm280, %v1122
      %1155 = vst.msk [vmem:[#allocation3 + $0x18] sm:$0xff] %vm280, %v1123
      %1156 = vst.msk [vmem:[#allocation3 + $0x20] sm:$0xff] %vm280, %v1124
      %1157 = vst.msk [vmem:[#allocation3 + $0x28] sm:$0xff] %vm280, %v1125
      %1158 = vst.msk [vmem:[#allocation3 + $0x30] sm:$0xff] %vm280, %v1126
      %1159 = vst.msk [vmem:[#allocation3 + $0x38] sm:$0xff] %vm280, %v1127
      %1160 = vst.msk [vmem:[#allocation3 + $0x40] sm:$0xff] %vm280, %v1128
      %1161 = vst.msk [vmem:[#allocation3 + $0x48] sm:$0xff] %vm280, %v1129
      %1162 = vst.msk [vmem:[#allocation3 + $0x50] sm:$0xff] %vm280, %v1130
      %1163 = vst.msk [vmem:[#allocation3 + $0x58] sm:$0xff] %vm280, %v1131
      %1164 = vst.msk [vmem:[#allocation3 + $0x60] sm:$0xff] %vm280, %v1132
      %1165 = vst.msk [vmem:[#allocation3 + $0x68] sm:$0xff] %vm280, %v1133
      %1166 = vst.msk [vmem:[#allocation3 + $0x70] sm:$0xff] %vm280, %v1134
      %1167 = vst.msk [vmem:[#allocation3 + $0x78] sm:$0xff] %vm280, %v1135
      %1168 = vst.msk [vmem:[#allocation3 + $0x80] sm:$0xff] %vm280, %v1136
      %1169 = vst.msk [vmem:[#allocation3 + $0x88] sm:$0xff] %vm280, %v1137
      %1170 = vst.msk [vmem:[#allocation3 + $0x90] sm:$0xff] %vm280, %v1138
      %1171 = vst.msk [vmem:[#allocation3 + $0x98] sm:$0xff] %vm280, %v1139
      %1172 = vst.msk [vmem:[#allocation3 + $0xa0] sm:$0xff] %vm280, %v1140
      %1173 = vst.msk [vmem:[#allocation3 + $0xa8] sm:$0xff] %vm280, %v1141
      %1174 = vst.msk [vmem:[#allocation3 + $0xb0] sm:$0xff] %vm280, %v1142
      %1175 = vst.msk [vmem:[#allocation3 + $0xb8] sm:$0xff] %vm280, %v1143
      %1176 = vst.msk [vmem:[#allocation3 + $0xc0] sm:$0xff] %vm280, %v1144
      %1177 = vst.msk [vmem:[#allocation3 + $0xc8] sm:$0xff] %vm280, %v1145
      %1178 = vst.msk [vmem:[#allocation3 + $0xd0] sm:$0xff] %vm280, %v1146
      %1179 = vst.msk [vmem:[#allocation3 + $0xd8] sm:$0xff] %vm280, %v1147
      %1180 = vst.msk [vmem:[#allocation3 + $0xe0] sm:$0xff] %vm280, %v1148
      %1181 = vst.msk [vmem:[#allocation3 + $0xe8] sm:$0xff] %vm280, %v1149
      %1182 = vst.msk [vmem:[#allocation3 + $0xf0] sm:$0xff] %vm280, %v1150
      %1183 = vst.msk [vmem:[#allocation3 + $0xf8] sm:$0xff] %vm280, %v1151
      %v1184 = vld [vmem:[#allocation2 + $0x8] sm:$0xff]
      %v1185 = vld [vmem:[#allocation2 + $0x10] sm:$0x1]
      %v1186 = vld [vmem:[#allocation2 + $0x20] sm:$0xff]
      %v1187 = vld [vmem:[#allocation2 + $0x28] sm:$0x1]
      %v1188 = vld [vmem:[#allocation2 + $0x38] sm:$0xff]
      %v1189 = vld [vmem:[#allocation2 + $0x40] sm:$0x1]
      %v1190 = vld [vmem:[#allocation2 + $0x50] sm:$0xff]
      %v1191 = vld [vmem:[#allocation2 + $0x58] sm:$0x1]
      %v1192 = vld [vmem:[#allocation2 + $0x68] sm:$0xff]
      %v1193 = vld [vmem:[#allocation2 + $0x70] sm:$0x1]
      %v1194 = vld [vmem:[#allocation2 + $0x80] sm:$0xff]
      %v1195 = vld [vmem:[#allocation2 + $0x88] sm:$0x1]
      %v1196 = vld [vmem:[#allocation2 + $0x98] sm:$0xff]
      %v1197 = vld [vmem:[#allocation2 + $0xa0] sm:$0x1]
      %v1198 = vld [vmem:[#allocation2 + $0xb0] sm:$0xff]
      %v1199 = vld [vmem:[#allocation2 + $0xb8] sm:$0x1]
      %v1200 = vld [vmem:[#allocation2 + $0xc8] sm:$0xff]
      %v1201 = vld [vmem:[#allocation2 + $0xd0] sm:$0x1]
      %v1202 = vld [vmem:[#allocation2 + $0xe0] sm:$0xff]
      %v1203 = vld [vmem:[#allocation2 + $0xe8] sm:$0x1]
      %v1204 = vld [vmem:[#allocation2 + $0xf8] sm:$0xff]
      %v1205 = vld [vmem:[#allocation2 + $0x100] sm:$0x1]
      %v1206 = vld [vmem:[#allocation2 + $0x110] sm:$0xff]
      %v1207 = vld [vmem:[#allocation2 + $0x118] sm:$0x1]
      %v1208 = vld [vmem:[#allocation2 + $0x128] sm:$0xff]
      %v1209 = vld [vmem:[#allocation2 + $0x130] sm:$0x1]
      %v1210 = vld [vmem:[#allocation2 + $0x140] sm:$0xff]
      %v1211 = vld [vmem:[#allocation2 + $0x148] sm:$0x1]
      %v1212 = vld [vmem:[#allocation2 + $0x158] sm:$0xff]
      %v1213 = vld [vmem:[#allocation2 + $0x160] sm:$0x1]
      %v1214 = vld [vmem:[#allocation2 + $0x170] sm:$0xff]
      %v1215 = vld [vmem:[#allocation2 + $0x178] sm:$0x1]
      %vm1216 = vsmask.f32 7424
      %v1218 = vshrl.u32 %v1184, 16
      %v1220 = vshll.u32 %v1184, 16
      %v1222 = vrot.slane %v1220, 1
      %v1223 = vor.u32 %v1218, %v1222
      %v1225 = vshll.u32 %v1185, 16
      %v1227 = vrot.slane %v1225, 1
      %v1228 = vsel %vm1216, %v1223, %v1227
      %v1230 = vshrl.u32 %v1186, 16
      %v1232 = vshll.u32 %v1186, 16
      %v1234 = vrot.slane %v1232, 1
      %v1235 = vor.u32 %v1230, %v1234
      %v1237 = vshll.u32 %v1187, 16
      %v1239 = vrot.slane %v1237, 1
      %v1240 = vsel %vm1216, %v1235, %v1239
      %v1242 = vshrl.u32 %v1188, 16
      %v1244 = vshll.u32 %v1188, 16
      %v1246 = vrot.slane %v1244, 1
      %v1247 = vor.u32 %v1242, %v1246
      %v1249 = vshll.u32 %v1189, 16
      %v1251 = vrot.slane %v1249, 1
      %v1252 = vsel %vm1216, %v1247, %v1251
      %v1254 = vshrl.u32 %v1190, 16
      %v1256 = vshll.u32 %v1190, 16
      %v1258 = vrot.slane %v1256, 1
      %v1259 = vor.u32 %v1254, %v1258
      %v1261 = vshll.u32 %v1191, 16
      %v1263 = vrot.slane %v1261, 1
      %v1264 = vsel %vm1216, %v1259, %v1263
      %v1266 = vshrl.u32 %v1192, 16
      %v1268 = vshll.u32 %v1192, 16
      %v1270 = vrot.slane %v1268, 1
      %v1271 = vor.u32 %v1266, %v1270
      %v1273 = vshll.u32 %v1193, 16
      %v1275 = vrot.slane %v1273, 1
      %v1276 = vsel %vm1216, %v1271, %v1275
      %v1278 = vshrl.u32 %v1194, 16
      %v1280 = vshll.u32 %v1194, 16
      %v1282 = vrot.slane %v1280, 1
      %v1283 = vor.u32 %v1278, %v1282
      %v1285 = vshll.u32 %v1195, 16
      %v1287 = vrot.slane %v1285, 1
      %v1288 = vsel %vm1216, %v1283, %v1287
      %v1290 = vshrl.u32 %v1196, 16
      %v1292 = vshll.u32 %v1196, 16
      %v1294 = vrot.slane %v1292, 1
      %v1295 = vor.u32 %v1290, %v1294
      %v1297 = vshll.u32 %v1197, 16
      %v1299 = vrot.slane %v1297, 1
      %v1300 = vsel %vm1216, %v1295, %v1299
      %v1302 = vshrl.u32 %v1198, 16
      %v1304 = vshll.u32 %v1198, 16
      %v1306 = vrot.slane %v1304, 1
      %v1307 = vor.u32 %v1302, %v1306
      %v1309 = vshll.u32 %v1199, 16
      %v1311 = vrot.slane %v1309, 1
      %v1312 = vsel %vm1216, %v1307, %v1311
      %v1314 = vshrl.u32 %v1200, 16
      %v1316 = vshll.u32 %v1200, 16
      %v1318 = vrot.slane %v1316, 1
      %v1319 = vor.u32 %v1314, %v1318
      %v1321 = vshll.u32 %v1201, 16
      %v1323 = vrot.slane %v1321, 1
      %v1324 = vsel %vm1216, %v1319, %v1323
      %v1326 = vshrl.u32 %v1202, 16
      %v1328 = vshll.u32 %v1202, 16
      %v1330 = vrot.slane %v1328, 1
      %v1331 = vor.u32 %v1326, %v1330
      %v1333 = vshll.u32 %v1203, 16
      %v1335 = vrot.slane %v1333, 1
      %v1336 = vsel %vm1216, %v1331, %v1335
      %v1338 = vshrl.u32 %v1204, 16
      %v1340 = vshll.u32 %v1204, 16
      %v1342 = vrot.slane %v1340, 1
      %v1343 = vor.u32 %v1338, %v1342
      %v1345 = vshll.u32 %v1205, 16
      %v1347 = vrot.slane %v1345, 1
      %v1348 = vsel %vm1216, %v1343, %v1347
      %v1350 = vshrl.u32 %v1206, 16
      %v1352 = vshll.u32 %v1206, 16
      %v1354 = vrot.slane %v1352, 1
      %v1355 = vor.u32 %v1350, %v1354
      %v1357 = vshll.u32 %v1207, 16
      %v1359 = vrot.slane %v1357, 1
      %v1360 = vsel %vm1216, %v1355, %v1359
      %v1362 = vshrl.u32 %v1208, 16
      %v1364 = vshll.u32 %v1208, 16
      %v1366 = vrot.slane %v1364, 1
      %v1367 = vor.u32 %v1362, %v1366
      %v1369 = vshll.u32 %v1209, 16
      %v1371 = vrot.slane %v1369, 1
      %v1372 = vsel %vm1216, %v1367, %v1371
      %v1374 = vshrl.u32 %v1210, 16
      %v1376 = vshll.u32 %v1210, 16
      %v1378 = vrot.slane %v1376, 1
      %v1379 = vor.u32 %v1374, %v1378
      %v1381 = vshll.u32 %v1211, 16
      %v1383 = vrot.slane %v1381, 1
      %v1384 = vsel %vm1216, %v1379, %v1383
      %v1386 = vshrl.u32 %v1212, 16
      %v1388 = vshll.u32 %v1212, 16
      %v1390 = vrot.slane %v1388, 1
      %v1391 = vor.u32 %v1386, %v1390
      %v1393 = vshll.u32 %v1213, 16
      %v1395 = vrot.slane %v1393, 1
      %v1396 = vsel %vm1216, %v1391, %v1395
      %v1398 = vshrl.u32 %v1214, 16
      %v1400 = vshll.u32 %v1214, 16
      %v1402 = vrot.slane %v1400, 1
      %v1403 = vor.u32 %v1398, %v1402
      %v1405 = vshll.u32 %v1215, 16
      %v1407 = vrot.slane %v1405, 1
      %v1408 = vsel %vm1216, %v1403, %v1407
      %s1409 = scalar_lea.vmem %s1, 4
      %v1410 = vld [vmem:[%s1409] sm:$0x3]
      %v1412 = vsel %vm280, %v1228, 0
      %v1415 = vsel %vm280, %v1240, 0
      %v1418 = vsel %vm280, %v1252, 0
      %v1421 = vsel %vm280, %v1264, 0
      %v1424 = vsel %vm280, %v1276, 0
      %v1427 = vsel %vm280, %v1288, 0
      %v1430 = vsel %vm280, %v1300, 0
      %v1433 = vsel %vm280, %v1312, 0
      %v1436 = vsel %vm280, %v1324, 0
      %v1439 = vsel %vm280, %v1336, 0
      %v1442 = vsel %vm280, %v1348, 0
      %v1445 = vsel %vm280, %v1360, 0
      %v1448 = vsel %vm280, %v1372, 0
      %v1451 = vsel %vm280, %v1384, 0
      %v1454 = vsel %vm280, %v1396, 0
      %v1457 = vsel %vm280, %v1408, 0
      %v1460 = vsel %vm661, %v1410, 0
      %1462 = vmatprep.subr.bf16.mxu0 0
      %1463 = vmatpush1.bf16.msra.mxu0 %v1460
      %1464 = vmatprep.subr.bf16.mxu0 0
      %1465 = vmatpush1.bf16.msra.mxu0 0
      %1466 = vmatprep.subr.bf16.mxu0 0
      %1467 = vmatpush1.bf16.msra.mxu0 0
      %1468 = vmatprep.subr.bf16.mxu0 0
      %1469 = vmatpush1.bf16.msra.mxu0 0
      %1470 = vmatprep.subr.bf16.mxu0 0
      %1471 = vmatpush1.bf16.msra.mxu0 0
      %1472 = vmatprep.subr.bf16.mxu0 0
      %1473 = vmatpush1.bf16.msra.mxu0 0
      %1474 = vmatprep.subr.bf16.mxu0 0
      %1475 = vmatpush1.bf16.msra.mxu0 0
      %1476 = vmatprep.subr.bf16.mxu0 0
      %1477 = vmatpush1.bf16.msra.mxu0 0
      %1478 = vmatprep.subr.bf16.mxu0 0
      %1479 = vmatpush1.bf16.msra.mxu0 0
      %1480 = vmatprep.subr.bf16.mxu0 0
      %1481 = vmatpush1.bf16.msra.mxu0 0
      %1482 = vmatprep.subr.bf16.mxu0 0
      %1483 = vmatpush1.bf16.msra.mxu0 0
      %1484 = vmatprep.subr.bf16.mxu0 0
      %1485 = vmatpush1.bf16.msra.mxu0 0
      %1486 = vmatprep.subr.bf16.mxu0 0
      %1487 = vmatpush1.bf16.msra.mxu0 0
      %1488 = vmatprep.subr.bf16.mxu0 0
      %1489 = vmatpush1.bf16.msra.mxu0 0
      %1490 = vmatprep.subr.bf16.mxu0 0
      %1491 = vmatpush1.bf16.msra.mxu0 0
      %1492 = vmatprep.subr.bf16.mxu0 0
      %1493 = vmatpush1.bf16.msra.mxu0 0
      %1494 = vmatprep.mubr.bf16.mxu0 0
      %1495 = vmatmul.mubr.bf16.gmra.mrb[0].mxu0 %v1412
      %v1496 = vpop.f32.mrb[0].mxu0
      %v1497 = vadd.f32 0.0, %v1496
      %v1498 = vpop.f32.mrb[0].mxu0
      %v1499 = vpop.f32.mrb[0].mxu0
      %v1500 = vadd.f32 0.0, %v1499
      %v1501 = vpop.f32.mrb[0].mxu0
      %1502 = vmatprep.mubr.bf16.mxu0 0
      %1503 = vmatmul.mubr.bf16.gmra.mrb[0].mxu0 %v1415
      %v1504 = vpop.f32.mrb[0].mxu0
      %v1505 = vadd.f32 0.0, %v1504
      %v1506 = vpop.f32.mrb[0].mxu0
      %v1507 = vpop.f32.mrb[0].mxu0
      %v1508 = vadd.f32 0.0, %v1507
      %v1509 = vpop.f32.mrb[0].mxu0
      %1510 = vmatprep.mubr.bf16.mxu0 0
      %1511 = vmatmul.mubr.bf16.gmra.mrb[0].mxu0 %v1418
      %v1512 = vpop.f32.mrb[0].mxu0
      %v1513 = vadd.f32 0.0, %v1512
      %v1514 = vpop.f32.mrb[0].mxu0
      %v1515 = vpop.f32.mrb[0].mxu0
      %v1516 = vadd.f32 0.0, %v1515
      %v1517 = vpop.f32.mrb[0].mxu0
      %1518 = vmatprep.mubr.bf16.mxu0 0
      %1519 = vmatmul.mubr.bf16.gmra.mrb[0].mxu0 %v1421
      %v1520 = vpop.f32.mrb[0].mxu0
      %v1521 = vadd.f32 0.0, %v1520
      %v1522 = vpop.f32.mrb[0].mxu0
      %v1523 = vpop.f32.mrb[0].mxu0
      %v1524 = vadd.f32 0.0, %v1523
      %v1525 = vpop.f32.mrb[0].mxu0
      %1526 = vmatprep.mubr.bf16.mxu0 0
      %1527 = vmatmul.mubr.bf16.gmra.mrb[0].mxu0 %v1424
      %v1528 = vpop.f32.mrb[0].mxu0
      %v1529 = vadd.f32 0.0, %v1528
      %v1530 = vpop.f32.mrb[0].mxu0
      %v1531 = vpop.f32.mrb[0].mxu0
      %v1532 = vadd.f32 0.0, %v1531
      %v1533 = vpop.f32.mrb[0].mxu0
      %1534 = vmatprep.mubr.bf16.mxu0 0
      %1535 = vmatmul.mubr.bf16.gmra.mrb[0].mxu0 %v1427
      %v1536 = vpop.f32.mrb[0].mxu0
      %v1537 = vadd.f32 0.0, %v1536
      %v1538 = vpop.f32.mrb[0].mxu0
      %v1539 = vpop.f32.mrb[0].mxu0
      %v1540 = vadd.f32 0.0, %v1539
      %v1541 = vpop.f32.mrb[0].mxu0
      %1542 = vmatprep.mubr.bf16.mxu0 0
      %1543 = vmatmul.mubr.bf16.gmra.mrb[0].mxu0 %v1430
      %v1544 = vpop.f32.mrb[0].mxu0
      %v1545 = vadd.f32 0.0, %v1544
      %v1546 = vpop.f32.mrb[0].mxu0
      %v1547 = vpop.f32.mrb[0].mxu0
      %v1548 = vadd.f32 0.0, %v1547
      %v1549 = vpop.f32.mrb[0].mxu0
      %1550 = vmatprep.mubr.bf16.mxu0 0
      %1551 = vmatmul.mubr.bf16.gmra.mrb[0].mxu0 %v1433
      %v1552 = vpop.f32.mrb[0].mxu0
      %v1553 = vadd.f32 0.0, %v1552
      %v1554 = vpop.f32.mrb[0].mxu0
      %v1555 = vpop.f32.mrb[0].mxu0
      %v1556 = vadd.f32 0.0, %v1555
      %v1557 = vpop.f32.mrb[0].mxu0
      %1558 = vmatprep.mubr.bf16.mxu0 0
      %1559 = vmatmul.mubr.bf16.gmra.mrb[0].mxu0 %v1436
      %v1560 = vpop.f32.mrb[0].mxu0
      %v1561 = vadd.f32 0.0, %v1560
      %v1562 = vpop.f32.mrb[0].mxu0
      %v1563 = vpop.f32.mrb[0].mxu0
      %v1564 = vadd.f32 0.0, %v1563
      %v1565 = vpop.f32.mrb[0].mxu0
      %1566 = vmatprep.mubr.bf16.mxu0 0
      %1567 = vmatmul.mubr.bf16.gmra.mrb[0].mxu0 %v1439
      %v1568 = vpop.f32.mrb[0].mxu0
      %v1569 = vadd.f32 0.0, %v1568
      %v1570 = vpop.f32.mrb[0].mxu0
      %v1571 = vpop.f32.mrb[0].mxu0
      %v1572 = vadd.f32 0.0, %v1571
      %v1573 = vpop.f32.mrb[0].mxu0
      %1574 = vmatprep.mubr.bf16.mxu0 0
      %1575 = vmatmul.mubr.bf16.gmra.mrb[0].mxu0 %v1442
      %v1576 = vpop.f32.mrb[0].mxu0
      %v1577 = vadd.f32 0.0, %v1576
      %v1578 = vpop.f32.mrb[0].mxu0
      %v1579 = vpop.f32.mrb[0].mxu0
      %v1580 = vadd.f32 0.0, %v1579
      %v1581 = vpop.f32.mrb[0].mxu0
      %1582 = vmatprep.mubr.bf16.mxu0 0
      %1583 = vmatmul.mubr.bf16.gmra.mrb[0].mxu0 %v1445
      %v1584 = vpop.f32.mrb[0].mxu0
      %v1585 = vadd.f32 0.0, %v1584
      %v1586 = vpop.f32.mrb[0].mxu0
      %v1587 = vpop.f32.mrb[0].mxu0
      %v1588 = vadd.f32 0.0, %v1587
      %v1589 = vpop.f32.mrb[0].mxu0
      %1590 = vmatprep.mubr.bf16.mxu0 0
      %1591 = vmatmul.mubr.bf16.gmra.mrb[0].mxu0 %v1448
      %v1592 = vpop.f32.mrb[0].mxu0
      %v1593 = vadd.f32 0.0, %v1592
      %v1594 = vpop.f32.mrb[0].mxu0
      %v1595 = vpop.f32.mrb[0].mxu0
      %v1596 = vadd.f32 0.0, %v1595
      %v1597 = vpop.f32.mrb[0].mxu0
      %1598 = vmatprep.mubr.bf16.mxu0 0
      %1599 = vmatmul.mubr.bf16.gmra.mrb[0].mxu0 %v1451
      %v1600 = vpop.f32.mrb[0].mxu0
      %v1601 = vadd.f32 0.0, %v1600
      %v1602 = vpop.f32.mrb[0].mxu0
      %v1603 = vpop.f32.mrb[0].mxu0
      %v1604 = vadd.f32 0.0, %v1603
      %v1605 = vpop.f32.mrb[0].mxu0
      %1606 = vmatprep.mubr.bf16.mxu0 0
      %1607 = vmatmul.mubr.bf16.gmra.mrb[0].mxu0 %v1454
      %v1608 = vpop.f32.mrb[0].mxu0
      %v1609 = vadd.f32 0.0, %v1608
      %v1610 = vpop.f32.mrb[0].mxu0
      %v1611 = vpop.f32.mrb[0].mxu0
      %v1612 = vadd.f32 0.0, %v1611
      %v1613 = vpop.f32.mrb[0].mxu0
      %1614 = vmatprep.mubr.bf16.mxu0 0
      %1615 = vmatmul.mubr.bf16.gmra.mrb[0].mxu0 %v1457
      %v1616 = vpop.f32.mrb[0].mxu0
      %v1617 = vadd.f32 0.0, %v1616
      %v1618 = vpop.f32.mrb[0].mxu0
      %v1619 = vpop.f32.mrb[0].mxu0
      %v1620 = vadd.f32 0.0, %v1619
      %v1621 = vpop.f32.mrb[0].mxu0
      %1622 = vdwg.mxu0
      %v1623 = vld [vmem:[#allocation3] sm:$0xff]
      %v1624 = vld [vmem:[#allocation3 + $0x8] sm:$0xff]
      %v1625 = vld [vmem:[#allocation3 + $0x10] sm:$0xff]
      %v1626 = vld [vmem:[#allocation3 + $0x18] sm:$0xff]
      %v1627 = vld [vmem:[#allocation3 + $0x20] sm:$0xff]
      %v1628 = vld [vmem:[#allocation3 + $0x28] sm:$0xff]
      %v1629 = vld [vmem:[#allocation3 + $0x30] sm:$0xff]
      %v1630 = vld [vmem:[#allocation3 + $0x38] sm:$0xff]
      %v1631 = vld [vmem:[#allocation3 + $0x40] sm:$0xff]
      %v1632 = vld [vmem:[#allocation3 + $0x48] sm:$0xff]
      %v1633 = vld [vmem:[#allocation3 + $0x50] sm:$0xff]
      %v1634 = vld [vmem:[#allocation3 + $0x58] sm:$0xff]
      %v1635 = vld [vmem:[#allocation3 + $0x60] sm:$0xff]
      %v1636 = vld [vmem:[#allocation3 + $0x68] sm:$0xff]
      %v1637 = vld [vmem:[#allocation3 + $0x70] sm:$0xff]
      %v1638 = vld [vmem:[#allocation3 + $0x78] sm:$0xff]
      %v1639 = vld [vmem:[#allocation3 + $0x80] sm:$0xff]
      %v1640 = vld [vmem:[#allocation3 + $0x88] sm:$0xff]
      %v1641 = vld [vmem:[#allocation3 + $0x90] sm:$0xff]
      %v1642 = vld [vmem:[#allocation3 + $0x98] sm:$0xff]
      %v1643 = vld [vmem:[#allocation3 + $0xa0] sm:$0xff]
      %v1644 = vld [vmem:[#allocation3 + $0xa8] sm:$0xff]
      %v1645 = vld [vmem:[#allocation3 + $0xb0] sm:$0xff]
      %v1646 = vld [vmem:[#allocation3 + $0xb8] sm:$0xff]
      %v1647 = vld [vmem:[#allocation3 + $0xc0] sm:$0xff]
      %v1648 = vld [vmem:[#allocation3 + $0xc8] sm:$0xff]
      %v1649 = vld [vmem:[#allocation3 + $0xd0] sm:$0xff]
      %v1650 = vld [vmem:[#allocation3 + $0xd8] sm:$0xff]
      %v1651 = vld [vmem:[#allocation3 + $0xe0] sm:$0xff]
      %v1652 = vld [vmem:[#allocation3 + $0xe8] sm:$0xff]
      %v1653 = vld [vmem:[#allocation3 + $0xf0] sm:$0xff]
      %v1654 = vld [vmem:[#allocation3 + $0xf8] sm:$0xff]
      %v1655 = vadd.f32 %v1623, %v1497
      %v1656 = vadd.f32 %v1624, %v1500
      %v1657 = vadd.f32 %v1625, %v1505
      %v1658 = vadd.f32 %v1626, %v1508
      %v1659 = vadd.f32 %v1627, %v1513
      %v1660 = vadd.f32 %v1628, %v1516
      %v1661 = vadd.f32 %v1629, %v1521
      %v1662 = vadd.f32 %v1630, %v1524
      %v1663 = vadd.f32 %v1631, %v1529
      %v1664 = vadd.f32 %v1632, %v1532
      %v1665 = vadd.f32 %v1633, %v1537
      %v1666 = vadd.f32 %v1634, %v1540
      %v1667 = vadd.f32 %v1635, %v1545
      %v1668 = vadd.f32 %v1636, %v1548
      %v1669 = vadd.f32 %v1637, %v1553
      %v1670 = vadd.f32 %v1638, %v1556
      %v1671 = vadd.f32 %v1639, %v1561
      %v1672 = vadd.f32 %v1640, %v1564
      %v1673 = vadd.f32 %v1641, %v1569
      %v1674 = vadd.f32 %v1642, %v1572
      %v1675 = vadd.f32 %v1643, %v1577
      %v1676 = vadd.f32 %v1644, %v1580
      %v1677 = vadd.f32 %v1645, %v1585
      %v1678 = vadd.f32 %v1646, %v1588
      %v1679 = vadd.f32 %v1647, %v1593
      %v1680 = vadd.f32 %v1648, %v1596
      %v1681 = vadd.f32 %v1649, %v1601
      %v1682 = vadd.f32 %v1650, %v1604
      %v1683 = vadd.f32 %v1651, %v1609
      %v1684 = vadd.f32 %v1652, %v1612
      %v1685 = vadd.f32 %v1653, %v1617
      %v1686 = vadd.f32 %v1654, %v1620
      %1687 = vst.msk [vmem:[#allocation3] sm:$0xff] %vm280, %v1655
      %1688 = vst.msk [vmem:[#allocation3 + $0x8] sm:$0xff] %vm280, %v1656
      %1689 = vst.msk [vmem:[#allocation3 + $0x10] sm:$0xff] %vm280, %v1657
      %1690 = vst.msk [vmem:[#allocation3 + $0x18] sm:$0xff] %vm280, %v1658
      %1691 = vst.msk [vmem:[#allocation3 + $0x20] sm:$0xff] %vm280, %v1659
      %1692 = vst.msk [vmem:[#allocation3 + $0x28] sm:$0xff] %vm280, %v1660
      %1693 = vst.msk [vmem:[#allocation3 + $0x30] sm:$0xff] %vm280, %v1661
      %1694 = vst.msk [vmem:[#allocation3 + $0x38] sm:$0xff] %vm280, %v1662
      %1695 = vst.msk [vmem:[#allocation3 + $0x40] sm:$0xff] %vm280, %v1663
      %1696 = vst.msk [vmem:[#allocation3 + $0x48] sm:$0xff] %vm280, %v1664
      %1697 = vst.msk [vmem:[#allocation3 + $0x50] sm:$0xff] %vm280, %v1665
      %1698 = vst.msk [vmem:[#allocation3 + $0x58] sm:$0xff] %vm280, %v1666
      %1699 = vst.msk [vmem:[#allocation3 + $0x60] sm:$0xff] %vm280, %v1667
      %1700 = vst.msk [vmem:[#allocation3 + $0x68] sm:$0xff] %vm280, %v1668
      %1701 = vst.msk [vmem:[#allocation3 + $0x70] sm:$0xff] %vm280, %v1669
      %1702 = vst.msk [vmem:[#allocation3 + $0x78] sm:$0xff] %vm280, %v1670
      %1703 = vst.msk [vmem:[#allocation3 + $0x80] sm:$0xff] %vm280, %v1671
      %1704 = vst.msk [vmem:[#allocation3 + $0x88] sm:$0xff] %vm280, %v1672
      %1705 = vst.msk [vmem:[#allocation3 + $0x90] sm:$0xff] %vm280, %v1673
      %1706 = vst.msk [vmem:[#allocation3 + $0x98] sm:$0xff] %vm280, %v1674
      %1707 = vst.msk [vmem:[#allocation3 + $0xa0] sm:$0xff] %vm280, %v1675
      %1708 = vst.msk [vmem:[#allocation3 + $0xa8] sm:$0xff] %vm280, %v1676
      %1709 = vst.msk [vmem:[#allocation3 + $0xb0] sm:$0xff] %vm280, %v1677
      %1710 = vst.msk [vmem:[#allocation3 + $0xb8] sm:$0xff] %vm280, %v1678
      %1711 = vst.msk [vmem:[#allocation3 + $0xc0] sm:$0xff] %vm280, %v1679
      %1712 = vst.msk [vmem:[#allocation3 + $0xc8] sm:$0xff] %vm280, %v1680
      %1713 = vst.msk [vmem:[#allocation3 + $0xd0] sm:$0xff] %vm280, %v1681
      %1714 = vst.msk [vmem:[#allocation3 + $0xd8] sm:$0xff] %vm280, %v1682
      %1715 = vst.msk [vmem:[#allocation3 + $0xe0] sm:$0xff] %vm280, %v1683
      %1716 = vst.msk [vmem:[#allocation3 + $0xe8] sm:$0xff] %vm280, %v1684
      %1717 = vst.msk [vmem:[#allocation3 + $0xf0] sm:$0xff] %vm280, %v1685
      %1718 = vst.msk [vmem:[#allocation3 + $0xf8] sm:$0xff] %vm280, %v1686
      %v1719 = vld [vmem:[%s288] sm:$0x80]
      %v1720 = vld [vmem:[%s288 + $0x8] sm:$0xff]
      %v1721 = vld [vmem:[%s288 + $0x18] sm:$0x80]
      %v1722 = vld [vmem:[%s288 + $0x20] sm:$0xff]
      %v1723 = vld [vmem:[%s288 + $0x30] sm:$0x80]
      %v1724 = vld [vmem:[%s288 + $0x38] sm:$0xff]
      %v1725 = vld [vmem:[%s288 + $0x48] sm:$0x80]
      %v1726 = vld [vmem:[%s288 + $0x50] sm:$0xff]
      %v1727 = vld [vmem:[%s288 + $0x60] sm:$0x80]
      %v1728 = vld [vmem:[%s288 + $0x68] sm:$0xff]
      %v1729 = vld [vmem:[%s288 + $0x78] sm:$0x80]
      %v1730 = vld [vmem:[%s288 + $0x80] sm:$0xff]
      %v1731 = vld [vmem:[%s288 + $0x90] sm:$0x80]
      %v1732 = vld [vmem:[%s288 + $0x98] sm:$0xff]
      %v1733 = vld [vmem:[%s288 + $0xa8] sm:$0x80]
      %v1734 = vld [vmem:[%s288 + $0xb0] sm:$0xff]
      %v1735 = vld [vmem:[%s288 + $0xc0] sm:$0x80]
      %v1736 = vld [vmem:[%s288 + $0xc8] sm:$0xff]
      %v1737 = vld [vmem:[%s288 + $0xd8] sm:$0x80]
      %v1738 = vld [vmem:[%s288 + $0xe0] sm:$0xff]
      %v1739 = vld [vmem:[%s288 + $0xf0] sm:$0x80]
      %v1740 = vld [vmem:[%s288 + $0xf8] sm:$0xff]
      %v1741 = vld [vmem:[%s288 + $0x108] sm:$0x80]
      %v1742 = vld [vmem:[%s288 + $0x110] sm:$0xff]
      %v1743 = vld [vmem:[%s288 + $0x120] sm:$0x80]
      %v1744 = vld [vmem:[%s288 + $0x128] sm:$0xff]
      %v1745 = vld [vmem:[%s288 + $0x138] sm:$0x80]
      %v1746 = vld [vmem:[%s288 + $0x140] sm:$0xff]
      %v1747 = vld [vmem:[%s288 + $0x150] sm:$0x80]
      %v1748 = vld [vmem:[%s288 + $0x158] sm:$0xff]
      %v1749 = vld [vmem:[%s288 + $0x168] sm:$0x80]
      %v1750 = vld [vmem:[%s288 + $0x170] sm:$0xff]
      %v1752 = vshrl.u32 %v1719, 16
      %v1754 = vrot.slane %v1752, 7
      %v1756 = vshrl.u32 %v1720, 16
      %v1758 = vrot.slane %v1756, 7
      %v1759 = vshll.u32 %v1720, 16
      %v1761 = vor.u32 %v1758, %v1759
      %v1762 = vsel %vm419, %v1754, %v1761
      %v1764 = vshrl.u32 %v1721, 16
      %v1766 = vrot.slane %v1764, 7
      %v1768 = vshrl.u32 %v1722, 16
      %v1770 = vrot.slane %v1768, 7
      %v1771 = vshll.u32 %v1722, 16
      %v1773 = vor.u32 %v1770, %v1771
      %v1774 = vsel %vm419, %v1766, %v1773
      %v1776 = vshrl.u32 %v1723, 16
      %v1778 = vrot.slane %v1776, 7
      %v1780 = vshrl.u32 %v1724, 16
      %v1782 = vrot.slane %v1780, 7
      %v1783 = vshll.u32 %v1724, 16
      %v1785 = vor.u32 %v1782, %v1783
      %v1786 = vsel %vm419, %v1778, %v1785
      %v1788 = vshrl.u32 %v1725, 16
      %v1790 = vrot.slane %v1788, 7
      %v1792 = vshrl.u32 %v1726, 16
      %v1794 = vrot.slane %v1792, 7
      %v1795 = vshll.u32 %v1726, 16
      %v1797 = vor.u32 %v1794, %v1795
      %v1798 = vsel %vm419, %v1790, %v1797
      %v1800 = vshrl.u32 %v1727, 16
      %v1802 = vrot.slane %v1800, 7
      %v1804 = vshrl.u32 %v1728, 16
      %v1806 = vrot.slane %v1804, 7
      %v1807 = vshll.u32 %v1728, 16
      %v1809 = vor.u32 %v1806, %v1807
      %v1810 = vsel %vm419, %v1802, %v1809
      %v1812 = vshrl.u32 %v1729, 16
      %v1814 = vrot.slane %v1812, 7
      %v1816 = vshrl.u32 %v1730, 16
      %v1818 = vrot.slane %v1816, 7
      %v1819 = vshll.u32 %v1730, 16
      %v1821 = vor.u32 %v1818, %v1819
      %v1822 = vsel %vm419, %v1814, %v1821
      %v1824 = vshrl.u32 %v1731, 16
      %v1826 = vrot.slane %v1824, 7
      %v1828 = vshrl.u32 %v1732, 16
      %v1830 = vrot.slane %v1828, 7
      %v1831 = vshll.u32 %v1732, 16
      %v1833 = vor.u32 %v1830, %v1831
      %v1834 = vsel %vm419, %v1826, %v1833
      %v1836 = vshrl.u32 %v1733, 16
      %v1838 = vrot.slane %v1836, 7
      %v1840 = vshrl.u32 %v1734, 16
      %v1842 = vrot.slane %v1840, 7
      %v1843 = vshll.u32 %v1734, 16
      %v1845 = vor.u32 %v1842, %v1843
      %v1846 = vsel %vm419, %v1838, %v1845
      %v1848 = vshrl.u32 %v1735, 16
      %v1850 = vrot.slane %v1848, 7
      %v1852 = vshrl.u32 %v1736, 16
      %v1854 = vrot.slane %v1852, 7
      %v1855 = vshll.u32 %v1736, 16
      %v1857 = vor.u32 %v1854, %v1855
      %v1858 = vsel %vm419, %v1850, %v1857
      %v1860 = vshrl.u32 %v1737, 16
      %v1862 = vrot.slane %v1860, 7
      %v1864 = vshrl.u32 %v1738, 16
      %v1866 = vrot.slane %v1864, 7
      %v1867 = vshll.u32 %v1738, 16
      %v1869 = vor.u32 %v1866, %v1867
      %v1870 = vsel %vm419, %v1862, %v1869
      %v1872 = vshrl.u32 %v1739, 16
      %v1874 = vrot.slane %v1872, 7
      %v1876 = vshrl.u32 %v1740, 16
      %v1878 = vrot.slane %v1876, 7
      %v1879 = vshll.u32 %v1740, 16
      %v1881 = vor.u32 %v1878, %v1879
      %v1882 = vsel %vm419, %v1874, %v1881
      %v1884 = vshrl.u32 %v1741, 16
      %v1886 = vrot.slane %v1884, 7
      %v1888 = vshrl.u32 %v1742, 16
      %v1890 = vrot.slane %v1888, 7
      %v1891 = vshll.u32 %v1742, 16
      %v1893 = vor.u32 %v1890, %v1891
      %v1894 = vsel %vm419, %v1886, %v1893
      %v1896 = vshrl.u32 %v1743, 16
      %v1898 = vrot.slane %v1896, 7
      %v1900 = vshrl.u32 %v1744, 16
      %v1902 = vrot.slane %v1900, 7
      %v1903 = vshll.u32 %v1744, 16
      %v1905 = vor.u32 %v1902, %v1903
      %v1906 = vsel %vm419, %v1898, %v1905
      %v1908 = vshrl.u32 %v1745, 16
      %v1910 = vrot.slane %v1908, 7
      %v1912 = vshrl.u32 %v1746, 16
      %v1914 = vrot.slane %v1912, 7
      %v1915 = vshll.u32 %v1746, 16
      %v1917 = vor.u32 %v1914, %v1915
      %v1918 = vsel %vm419, %v1910, %v1917
      %v1920 = vshrl.u32 %v1747, 16
      %v1922 = vrot.slane %v1920, 7
      %v1924 = vshrl.u32 %v1748, 16
      %v1926 = vrot.slane %v1924, 7
      %v1927 = vshll.u32 %v1748, 16
      %v1929 = vor.u32 %v1926, %v1927
      %v1930 = vsel %vm419, %v1922, %v1929
      %v1932 = vshrl.u32 %v1749, 16
      %v1934 = vrot.slane %v1932, 7
      %v1936 = vshrl.u32 %v1750, 16
      %v1938 = vrot.slane %v1936, 7
      %v1939 = vshll.u32 %v1750, 16
      %v1941 = vor.u32 %v1938, %v1939
      %v1942 = vsel %vm419, %v1934, %v1941
      %s1943 = scalar_lea.vmem %s1, 6
      %v1944 = vld [vmem:[%s1943] sm:$0x3]
      %v1946 = vsel %vm280, %v1762, 0
      %v1949 = vsel %vm280, %v1774, 0
      %v1952 = vsel %vm280, %v1786, 0
      %v1955 = vsel %vm280, %v1798, 0
      %v1958 = vsel %vm280, %v1810, 0
      %v1961 = vsel %vm280, %v1822, 0
      %v1964 = vsel %vm280, %v1834, 0
      %v1967 = vsel %vm280, %v1846, 0
      %v1970 = vsel %vm280, %v1858, 0
      %v1973 = vsel %vm280, %v1870, 0
      %v1976 = vsel %vm280, %v1882, 0
      %v1979 = vsel %vm280, %v1894, 0
      %v1982 = vsel %vm280, %v1906, 0
      %v1985 = vsel %vm280, %v1918, 0
      %v1988 = vsel %vm280, %v1930, 0
      %v1991 = vsel %vm280, %v1942, 0
      %v1994 = vsel %vm661, %v1944, 0
      %1996 = vmatprep.subr.bf16.mxu0 0
      %1997 = vmatpush1.bf16.msra.mxu0 %v1994
      %1998 = vmatprep.subr.bf16.mxu0 0
      %1999 = vmatpush1.bf16.msra.mxu0 0
      %2000 = vmatprep.subr.bf16.mxu0 0
      %2001 = vmatpush1.bf16.msra.mxu0 0
      %2002 = vmatprep.subr.bf16.mxu0 0
      %2003 = vmatpush1.bf16.msra.mxu0 0
      %2004 = vmatprep.subr.bf16.mxu0 0
      %2005 = vmatpush1.bf16.msra.mxu0 0
      %2006 = vmatprep.subr.bf16.mxu0 0
      %2007 = vmatpush1.bf16.msra.mxu0 0
      %2008 = vmatprep.subr.bf16.mxu0 0
      %2009 = vmatpush1.bf16.msra.mxu0 0
      %2010 = vmatprep.subr.bf16.mxu0 0
      %2011 = vmatpush1.bf16.msra.mxu0 0
      %2012 = vmatprep.subr.bf16.mxu0 0
      %2013 = vmatpush1.bf16.msra.mxu0 0
      %2014 = vmatprep.subr.bf16.mxu0 0
      %2015 = vmatpush1.bf16.msra.mxu0 0
      %2016 = vmatprep.subr.bf16.mxu0 0
      %2017 = vmatpush1.bf16.msra.mxu0 0
      %2018 = vmatprep.subr.bf16.mxu0 0
      %2019 = vmatpush1.bf16.msra.mxu0 0
      %2020 = vmatprep.subr.bf16.mxu0 0
      %2021 = vmatpush1.bf16.msra.mxu0 0
      %2022 = vmatprep.subr.bf16.mxu0 0
      %2023 = vmatpush1.bf16.msra.mxu0 0
      %2024 = vmatprep.subr.bf16.mxu0 0
      %2025 = vmatpush1.bf16.msra.mxu0 0
      %2026 = vmatprep.subr.bf16.mxu0 0
      %2027 = vmatpush1.bf16.msra.mxu0 0
      %2028 = vmatprep.mubr.bf16.mxu0 0
      %2029 = vmatmul.mubr.bf16.gmra.mrb[0].mxu0 %v1946
      %v2030 = vpop.f32.mrb[0].mxu0
      %v2031 = vadd.f32 0.0, %v2030
      %v2032 = vpop.f32.mrb[0].mxu0
      %v2033 = vpop.f32.mrb[0].mxu0
      %v2034 = vadd.f32 0.0, %v2033
      %v2035 = vpop.f32.mrb[0].mxu0
      %2036 = vmatprep.mubr.bf16.mxu0 0
      %2037 = vmatmul.mubr.bf16.gmra.mrb[0].mxu0 %v1949
      %v2038 = vpop.f32.mrb[0].mxu0
      %v2039 = vadd.f32 0.0, %v2038
      %v2040 = vpop.f32.mrb[0].mxu0
      %v2041 = vpop.f32.mrb[0].mxu0
      %v2042 = vadd.f32 0.0, %v2041
      %v2043 = vpop.f32.mrb[0].mxu0
      %2044 = vmatprep.mubr.bf16.mxu0 0
      %2045 = vmatmul.mubr.bf16.gmra.mrb[0].mxu0 %v1952
      %v2046 = vpop.f32.mrb[0].mxu0
      %v2047 = vadd.f32 0.0, %v2046
      %v2048 = vpop.f32.mrb[0].mxu0
      %v2049 = vpop.f32.mrb[0].mxu0
      %v2050 = vadd.f32 0.0, %v2049
      %v2051 = vpop.f32.mrb[0].mxu0
      %2052 = vmatprep.mubr.bf16.mxu0 0
      %2053 = vmatmul.mubr.bf16.gmra.mrb[0].mxu0 %v1955
      %v2054 = vpop.f32.mrb[0].mxu0
      %v2055 = vadd.f32 0.0, %v2054
      %v2056 = vpop.f32.mrb[0].mxu0
      %v2057 = vpop.f32.mrb[0].mxu0
      %v2058 = vadd.f32 0.0, %v2057
      %v2059 = vpop.f32.mrb[0].mxu0
      %2060 = vmatprep.mubr.bf16.mxu0 0
      %2061 = vmatmul.mubr.bf16.gmra.mrb[0].mxu0 %v1958
      %v2062 = vpop.f32.mrb[0].mxu0
      %v2063 = vadd.f32 0.0, %v2062
      %v2064 = vpop.f32.mrb[0].mxu0
      %v2065 = vpop.f32.mrb[0].mxu0
      %v2066 = vadd.f32 0.0, %v2065
      %v2067 = vpop.f32.mrb[0].mxu0
      %2068 = vmatprep.mubr.bf16.mxu0 0
      %2069 = vmatmul.mubr.bf16.gmra.mrb[0].mxu0 %v1961
      %v2070 = vpop.f32.mrb[0].mxu0
      %v2071 = vadd.f32 0.0, %v2070
      %v2072 = vpop.f32.mrb[0].mxu0
      %v2073 = vpop.f32.mrb[0].mxu0
      %v2074 = vadd.f32 0.0, %v2073
      %v2075 = vpop.f32.mrb[0].mxu0
      %2076 = vmatprep.mubr.bf16.mxu0 0
      %2077 = vmatmul.mubr.bf16.gmra.mrb[0].mxu0 %v1964
      %v2078 = vpop.f32.mrb[0].mxu0
      %v2079 = vadd.f32 0.0, %v2078
      %v2080 = vpop.f32.mrb[0].mxu0
      %v2081 = vpop.f32.mrb[0].mxu0
      %v2082 = vadd.f32 0.0, %v2081
      %v2083 = vpop.f32.mrb[0].mxu0
      %2084 = vmatprep.mubr.bf16.mxu0 0
      %2085 = vmatmul.mubr.bf16.gmra.mrb[0].mxu0 %v1967
      %v2086 = vpop.f32.mrb[0].mxu0
      %v2087 = vadd.f32 0.0, %v2086
      %v2088 = vpop.f32.mrb[0].mxu0
      %v2089 = vpop.f32.mrb[0].mxu0
      %v2090 = vadd.f32 0.0, %v2089
      %v2091 = vpop.f32.mrb[0].mxu0
      %2092 = vmatprep.mubr.bf16.mxu0 0
      %2093 = vmatmul.mubr.bf16.gmra.mrb[0].mxu0 %v1970
      %v2094 = vpop.f32.mrb[0].mxu0
      %v2095 = vadd.f32 0.0, %v2094
      %v2096 = vpop.f32.mrb[0].mxu0
      %v2097 = vpop.f32.mrb[0].mxu0
      %v2098 = vadd.f32 0.0, %v2097
      %v2099 = vpop.f32.mrb[0].mxu0
      %2100 = vmatprep.mubr.bf16.mxu0 0
      %2101 = vmatmul.mubr.bf16.gmra.mrb[0].mxu0 %v1973
      %v2102 = vpop.f32.mrb[0].mxu0
      %v2103 = vadd.f32 0.0, %v2102
      %v2104 = vpop.f32.mrb[0].mxu0
      %v2105 = vpop.f32.mrb[0].mxu0
      %v2106 = vadd.f32 0.0, %v2105
      %v2107 = vpop.f32.mrb[0].mxu0
      %2108 = vmatprep.mubr.bf16.mxu0 0
      %2109 = vmatmul.mubr.bf16.gmra.mrb[0].mxu0 %v1976
      %v2110 = vpop.f32.mrb[0].mxu0
      %v2111 = vadd.f32 0.0, %v2110
      %v2112 = vpop.f32.mrb[0].mxu0
      %v2113 = vpop.f32.mrb[0].mxu0
      %v2114 = vadd.f32 0.0, %v2113
      %v2115 = vpop.f32.mrb[0].mxu0
      %2116 = vmatprep.mubr.bf16.mxu0 0
      %2117 = vmatmul.mubr.bf16.gmra.mrb[0].mxu0 %v1979
      %v2118 = vpop.f32.mrb[0].mxu0
      %v2119 = vadd.f32 0.0, %v2118
      %v2120 = vpop.f32.mrb[0].mxu0
      %v2121 = vpop.f32.mrb[0].mxu0
      %v2122 = vadd.f32 0.0, %v2121
      %v2123 = vpop.f32.mrb[0].mxu0
      %2124 = vmatprep.mubr.bf16.mxu0 0
      %2125 = vmatmul.mubr.bf16.gmra.mrb[0].mxu0 %v1982
      %v2126 = vpop.f32.mrb[0].mxu0
      %v2127 = vadd.f32 0.0, %v2126
      %v2128 = vpop.f32.mrb[0].mxu0
      %v2129 = vpop.f32.mrb[0].mxu0
      %v2130 = vadd.f32 0.0, %v2129
      %v2131 = vpop.f32.mrb[0].mxu0
      %2132 = vmatprep.mubr.bf16.mxu0 0
      %2133 = vmatmul.mubr.bf16.gmra.mrb[0].mxu0 %v1985
      %v2134 = vpop.f32.mrb[0].mxu0
      %v2135 = vadd.f32 0.0, %v2134
      %v2136 = vpop.f32.mrb[0].mxu0
      %v2137 = vpop.f32.mrb[0].mxu0
      %v2138 = vadd.f32 0.0, %v2137
      %v2139 = vpop.f32.mrb[0].mxu0
      %2140 = vmatprep.mubr.bf16.mxu0 0
      %2141 = vmatmul.mubr.bf16.gmra.mrb[0].mxu0 %v1988
      %v2142 = vpop.f32.mrb[0].mxu0
      %v2143 = vadd.f32 0.0, %v2142
      %v2144 = vpop.f32.mrb[0].mxu0
      %v2145 = vpop.f32.mrb[0].mxu0
      %v2146 = vadd.f32 0.0, %v2145
      %v2147 = vpop.f32.mrb[0].mxu0
      %2148 = vmatprep.mubr.bf16.mxu0 0
      %2149 = vmatmul.mubr.bf16.gmra.mrb[0].mxu0 %v1991
      %v2150 = vpop.f32.mrb[0].mxu0
      %v2151 = vadd.f32 0.0, %v2150
      %v2152 = vpop.f32.mrb[0].mxu0
      %v2153 = vpop.f32.mrb[0].mxu0
      %v2154 = vadd.f32 0.0, %v2153
      %v2155 = vpop.f32.mrb[0].mxu0
      %2156 = vdwg.mxu0
      %v2157 = vld [vmem:[#allocation3] sm:$0xff]
      %v2158 = vld [vmem:[#allocation3 + $0x8] sm:$0xff]
      %v2159 = vld [vmem:[#allocation3 + $0x10] sm:$0xff]
      %v2160 = vld [vmem:[#allocation3 + $0x18] sm:$0xff]
      %v2161 = vld [vmem:[#allocation3 + $0x20] sm:$0xff]
      %v2162 = vld [vmem:[#allocation3 + $0x28] sm:$0xff]
      %v2163 = vld [vmem:[#allocation3 + $0x30] sm:$0xff]
      %v2164 = vld [vmem:[#allocation3 + $0x38] sm:$0xff]
      %v2165 = vld [vmem:[#allocation3 + $0x40] sm:$0xff]
      %v2166 = vld [vmem:[#allocation3 + $0x48] sm:$0xff]
      %v2167 = vld [vmem:[#allocation3 + $0x50] sm:$0xff]
      %v2168 = vld [vmem:[#allocation3 + $0x58] sm:$0xff]
      %v2169 = vld [vmem:[#allocation3 + $0x60] sm:$0xff]
      %v2170 = vld [vmem:[#allocation3 + $0x68] sm:$0xff]
      %v2171 = vld [vmem:[#allocation3 + $0x70] sm:$0xff]
      %v2172 = vld [vmem:[#allocation3 + $0x78] sm:$0xff]
      %v2173 = vld [vmem:[#allocation3 + $0x80] sm:$0xff]
      %v2174 = vld [vmem:[#allocation3 + $0x88] sm:$0xff]
      %v2175 = vld [vmem:[#allocation3 + $0x90] sm:$0xff]
      %v2176 = vld [vmem:[#allocation3 + $0x98] sm:$0xff]
      %v2177 = vld [vmem:[#allocation3 + $0xa0] sm:$0xff]
      %v2178 = vld [vmem:[#allocation3 + $0xa8] sm:$0xff]
      %v2179 = vld [vmem:[#allocation3 + $0xb0] sm:$0xff]
      %v2180 = vld [vmem:[#allocation3 + $0xb8] sm:$0xff]
      %v2181 = vld [vmem:[#allocation3 + $0xc0] sm:$0xff]
      %v2182 = vld [vmem:[#allocation3 + $0xc8] sm:$0xff]
      %v2183 = vld [vmem:[#allocation3 + $0xd0] sm:$0xff]
      %v2184 = vld [vmem:[#allocation3 + $0xd8] sm:$0xff]
      %v2185 = vld [vmem:[#allocation3 + $0xe0] sm:$0xff]
      %v2186 = vld [vmem:[#allocation3 + $0xe8] sm:$0xff]
      %v2187 = vld [vmem:[#allocation3 + $0xf0] sm:$0xff]
      %v2188 = vld [vmem:[#allocation3 + $0xf8] sm:$0xff]
      %v2189 = vadd.f32 %v2157, %v2031
      %v2190 = vadd.f32 %v2158, %v2034
      %v2191 = vadd.f32 %v2159, %v2039
      %v2192 = vadd.f32 %v2160, %v2042
      %v2193 = vadd.f32 %v2161, %v2047
      %v2194 = vadd.f32 %v2162, %v2050
      %v2195 = vadd.f32 %v2163, %v2055
      %v2196 = vadd.f32 %v2164, %v2058
      %v2197 = vadd.f32 %v2165, %v2063
      %v2198 = vadd.f32 %v2166, %v2066
      %v2199 = vadd.f32 %v2167, %v2071
      %v2200 = vadd.f32 %v2168, %v2074
      %v2201 = vadd.f32 %v2169, %v2079
      %v2202 = vadd.f32 %v2170, %v2082
      %v2203 = vadd.f32 %v2171, %v2087
      %v2204 = vadd.f32 %v2172, %v2090
      %v2205 = vadd.f32 %v2173, %v2095
      %v2206 = vadd.f32 %v2174, %v2098
      %v2207 = vadd.f32 %v2175, %v2103
      %v2208 = vadd.f32 %v2176, %v2106
      %v2209 = vadd.f32 %v2177, %v2111
      %v2210 = vadd.f32 %v2178, %v2114
      %v2211 = vadd.f32 %v2179, %v2119
      %v2212 = vadd.f32 %v2180, %v2122
      %v2213 = vadd.f32 %v2181, %v2127
      %v2214 = vadd.f32 %v2182, %v2130
      %v2215 = vadd.f32 %v2183, %v2135
      %v2216 = vadd.f32 %v2184, %v2138
      %v2217 = vadd.f32 %v2185, %v2143
      %v2218 = vadd.f32 %v2186, %v2146
      %v2219 = vadd.f32 %v2187, %v2151
      %v2220 = vadd.f32 %v2188, %v2154
      %2221 = vst.msk [vmem:[#allocation3] sm:$0xff] %vm280, %v2189
      %2222 = vst.msk [vmem:[#allocation3 + $0x8] sm:$0xff] %vm280, %v2190
      %2223 = vst.msk [vmem:[#allocation3 + $0x10] sm:$0xff] %vm280, %v2191
      %2224 = vst.msk [vmem:[#allocation3 + $0x18] sm:$0xff] %vm280, %v2192
      %2225 = vst.msk [vmem:[#allocation3 + $0x20] sm:$0xff] %vm280, %v2193
      %2226 = vst.msk [vmem:[#allocation3 + $0x28] sm:$0xff] %vm280, %v2194
      %2227 = vst.msk [vmem:[#allocation3 + $0x30] sm:$0xff] %vm280, %v2195
      %2228 = vst.msk [vmem:[#allocation3 + $0x38] sm:$0xff] %vm280, %v2196
      %2229 = vst.msk [vmem:[#allocation3 + $0x40] sm:$0xff] %vm280, %v2197
      %2230 = vst.msk [vmem:[#allocation3 + $0x48] sm:$0xff] %vm280, %v2198
      %2231 = vst.msk [vmem:[#allocation3 + $0x50] sm:$0xff] %vm280, %v2199
      %2232 = vst.msk [vmem:[#allocation3 + $0x58] sm:$0xff] %vm280, %v2200
      %2233 = vst.msk [vmem:[#allocation3 + $0x60] sm:$0xff] %vm280, %v2201
      %2234 = vst.msk [vmem:[#allocation3 + $0x68] sm:$0xff] %vm280, %v2202
      %2235 = vst.msk [vmem:[#allocation3 + $0x70] sm:$0xff] %vm280, %v2203
      %2236 = vst.msk [vmem:[#allocation3 + $0x78] sm:$0xff] %vm280, %v2204
      %2237 = vst.msk [vmem:[#allocation3 + $0x80] sm:$0xff] %vm280, %v2205
      %2238 = vst.msk [vmem:[#allocation3 + $0x88] sm:$0xff] %vm280, %v2206
      %2239 = vst.msk [vmem:[#allocation3 + $0x90] sm:$0xff] %vm280, %v2207
      %2240 = vst.msk [vmem:[#allocation3 + $0x98] sm:$0xff] %vm280, %v2208
      %2241 = vst.msk [vmem:[#allocation3 + $0xa0] sm:$0xff] %vm280, %v2209
      %2242 = vst.msk [vmem:[#allocation3 + $0xa8] sm:$0xff] %vm280, %v2210
      %2243 = vst.msk [vmem:[#allocation3 + $0xb0] sm:$0xff] %vm280, %v2211
      %2244 = vst.msk [vmem:[#allocation3 + $0xb8] sm:$0xff] %vm280, %v2212
      %2245 = vst.msk [vmem:[#allocation3 + $0xc0] sm:$0xff] %vm280, %v2213
      %2246 = vst.msk [vmem:[#allocation3 + $0xc8] sm:$0xff] %vm280, %v2214
      %2247 = vst.msk [vmem:[#allocation3 + $0xd0] sm:$0xff] %vm280, %v2215
      %2248 = vst.msk [vmem:[#allocation3 + $0xd8] sm:$0xff] %vm280, %v2216
      %2249 = vst.msk [vmem:[#allocation3 + $0xe0] sm:$0xff] %vm280, %v2217
      %2250 = vst.msk [vmem:[#allocation3 + $0xe8] sm:$0xff] %vm280, %v2218
      %2251 = vst.msk [vmem:[#allocation3 + $0xf0] sm:$0xff] %vm280, %v2219
      %2252 = vst.msk [vmem:[#allocation3 + $0xf8] sm:$0xff] %vm280, %v2220
      %v2253 = vld [vmem:[%s288 + $0x8] sm:$0xff]
      %v2254 = vld [vmem:[%s288 + $0x20] sm:$0xff]
      %v2255 = vld [vmem:[%s288 + $0x38] sm:$0xff]
      %v2256 = vld [vmem:[%s288 + $0x50] sm:$0xff]
      %v2257 = vld [vmem:[%s288 + $0x68] sm:$0xff]
      %v2258 = vld [vmem:[%s288 + $0x80] sm:$0xff]
      %v2259 = vld [vmem:[%s288 + $0x98] sm:$0xff]
      %v2260 = vld [vmem:[%s288 + $0xb0] sm:$0xff]
      %v2261 = vld [vmem:[%s288 + $0xc8] sm:$0xff]
      %v2262 = vld [vmem:[%s288 + $0xe0] sm:$0xff]
      %v2263 = vld [vmem:[%s288 + $0xf8] sm:$0xff]
      %v2264 = vld [vmem:[%s288 + $0x110] sm:$0xff]
      %v2265 = vld [vmem:[%s288 + $0x128] sm:$0xff]
      %v2266 = vld [vmem:[%s288 + $0x140] sm:$0xff]
      %v2267 = vld [vmem:[%s288 + $0x158] sm:$0xff]
      %v2268 = vld [vmem:[%s288 + $0x170] sm:$0xff]
      %s2269 = scalar_lea.vmem %s1, 8
      %v2270 = vld [vmem:[%s2269] sm:$0x3]
      %v2272 = vsel %vm280, %v2253, 0
      %v2275 = vsel %vm280, %v2254, 0
      %v2278 = vsel %vm280, %v2255, 0
      %v2281 = vsel %vm280, %v2256, 0
      %v2284 = vsel %vm280, %v2257, 0
      %v2287 = vsel %vm280, %v2258, 0
      %v2290 = vsel %vm280, %v2259, 0
      %v2293 = vsel %vm280, %v2260, 0
      %v2296 = vsel %vm280, %v2261, 0
      %v2299 = vsel %vm280, %v2262, 0
      %v2302 = vsel %vm280, %v2263, 0
      %v2305 = vsel %vm280, %v2264, 0
      %v2308 = vsel %vm280, %v2265, 0
      %v2311 = vsel %vm280, %v2266, 0
      %v2314 = vsel %vm280, %v2267, 0
      %v2317 = vsel %vm280, %v2268, 0
      %v2320 = vsel %vm661, %v2270, 0
      %2322 = vmatprep.subr.bf16.mxu0 0
      %2323 = vmatpush1.bf16.msra.mxu0 %v2320
      %2324 = vmatprep.subr.bf16.mxu0 0
      %2325 = vmatpush1.bf16.msra.mxu0 0
      %2326 = vmatprep.subr.bf16.mxu0 0
      %2327 = vmatpush1.bf16.msra.mxu0 0
      %2328 = vmatprep.subr.bf16.mxu0 0
      %2329 = vmatpush1.bf16.msra.mxu0 0
      %2330 = vmatprep.subr.bf16.mxu0 0
      %2331 = vmatpush1.bf16.msra.mxu0 0
      %2332 = vmatprep.subr.bf16.mxu0 0
      %2333 = vmatpush1.bf16.msra.mxu0 0
      %2334 = vmatprep.subr.bf16.mxu0 0
      %2335 = vmatpush1.bf16.msra.mxu0 0
      %2336 = vmatprep.subr.bf16.mxu0 0
      %2337 = vmatpush1.bf16.msra.mxu0 0
      %2338 = vmatprep.subr.bf16.mxu0 0
      %2339 = vmatpush1.bf16.msra.mxu0 0
      %2340 = vmatprep.subr.bf16.mxu0 0
      %2341 = vmatpush1.bf16.msra.mxu0 0
      %2342 = vmatprep.subr.bf16.mxu0 0
      %2343 = vmatpush1.bf16.msra.mxu0 0
      %2344 = vmatprep.subr.bf16.mxu0 0
      %2345 = vmatpush1.bf16.msra.mxu0 0
      %2346 = vmatprep.subr.bf16.mxu0 0
      %2347 = vmatpush1.bf16.msra.mxu0 0
      %2348 = vmatprep.subr.bf16.mxu0 0
      %2349 = vmatpush1.bf16.msra.mxu0 0
      %2350 = vmatprep.subr.bf16.mxu0 0
      %2351 = vmatpush1.bf16.msra.mxu0 0
      %2352 = vmatprep.subr.bf16.mxu0 0
      %2353 = vmatpush1.bf16.msra.mxu0 0
      %2354 = vmatprep.mubr.bf16.mxu0 0
      %2355 = vmatmul.mubr.bf16.gmra.mrb[0].mxu0 %v2272
      %v2356 = vpop.f32.mrb[0].mxu0
      %v2357 = vadd.f32 0.0, %v2356
      %v2358 = vpop.f32.mrb[0].mxu0
      %v2359 = vpop.f32.mrb[0].mxu0
      %v2360 = vadd.f32 0.0, %v2359
      %v2361 = vpop.f32.mrb[0].mxu0
      %2362 = vmatprep.mubr.bf16.mxu0 0
      %2363 = vmatmul.mubr.bf16.gmra.mrb[0].mxu0 %v2275
      %v2364 = vpop.f32.mrb[0].mxu0
      %v2365 = vadd.f32 0.0, %v2364
      %v2366 = vpop.f32.mrb[0].mxu0
      %v2367 = vpop.f32.mrb[0].mxu0
      %v2368 = vadd.f32 0.0, %v2367
      %v2369 = vpop.f32.mrb[0].mxu0
      %2370 = vmatprep.mubr.bf16.mxu0 0
      %2371 = vmatmul.mubr.bf16.gmra.mrb[0].mxu0 %v2278
      %v2372 = vpop.f32.mrb[0].mxu0
      %v2373 = vadd.f32 0.0, %v2372
      %v2374 = vpop.f32.mrb[0].mxu0
      %v2375 = vpop.f32.mrb[0].mxu0
      %v2376 = vadd.f32 0.0, %v2375
      %v2377 = vpop.f32.mrb[0].mxu0
      %2378 = vmatprep.mubr.bf16.mxu0 0
      %2379 = vmatmul.mubr.bf16.gmra.mrb[0].mxu0 %v2281
      %v2380 = vpop.f32.mrb[0].mxu0
      %v2381 = vadd.f32 0.0, %v2380
      %v2382 = vpop.f32.mrb[0].mxu0
      %v2383 = vpop.f32.mrb[0].mxu0
      %v2384 = vadd.f32 0.0, %v2383
      %v2385 = vpop.f32.mrb[0].mxu0
      %2386 = vmatprep.mubr.bf16.mxu0 0
      %2387 = vmatmul.mubr.bf16.gmra.mrb[0].mxu0 %v2284
      %v2388 = vpop.f32.mrb[0].mxu0
      %v2389 = vadd.f32 0.0, %v2388
      %v2390 = vpop.f32.mrb[0].mxu0
      %v2391 = vpop.f32.mrb[0].mxu0
      %v2392 = vadd.f32 0.0, %v2391
      %v2393 = vpop.f32.mrb[0].mxu0
      %2394 = vmatprep.mubr.bf16.mxu0 0
      %2395 = vmatmul.mubr.bf16.gmra.mrb[0].mxu0 %v2287
      %v2396 = vpop.f32.mrb[0].mxu0
      %v2397 = vadd.f32 0.0, %v2396
      %v2398 = vpop.f32.mrb[0].mxu0
      %v2399 = vpop.f32.mrb[0].mxu0
      %v2400 = vadd.f32 0.0, %v2399
      %v2401 = vpop.f32.mrb[0].mxu0
      %2402 = vmatprep.mubr.bf16.mxu0 0
      %2403 = vmatmul.mubr.bf16.gmra.mrb[0].mxu0 %v2290
      %v2404 = vpop.f32.mrb[0].mxu0
      %v2405 = vadd.f32 0.0, %v2404
      %v2406 = vpop.f32.mrb[0].mxu0
      %v2407 = vpop.f32.mrb[0].mxu0
      %v2408 = vadd.f32 0.0, %v2407
      %v2409 = vpop.f32.mrb[0].mxu0
      %2410 = vmatprep.mubr.bf16.mxu0 0
      %2411 = vmatmul.mubr.bf16.gmra.mrb[0].mxu0 %v2293
      %v2412 = vpop.f32.mrb[0].mxu0
      %v2413 = vadd.f32 0.0, %v2412
      %v2414 = vpop.f32.mrb[0].mxu0
      %v2415 = vpop.f32.mrb[0].mxu0
      %v2416 = vadd.f32 0.0, %v2415
      %v2417 = vpop.f32.mrb[0].mxu0
      %2418 = vmatprep.mubr.bf16.mxu0 0
      %2419 = vmatmul.mubr.bf16.gmra.mrb[0].mxu0 %v2296
      %v2420 = vpop.f32.mrb[0].mxu0
      %v2421 = vadd.f32 0.0, %v2420
      %v2422 = vpop.f32.mrb[0].mxu0
      %v2423 = vpop.f32.mrb[0].mxu0
      %v2424 = vadd.f32 0.0, %v2423
      %v2425 = vpop.f32.mrb[0].mxu0
      %2426 = vmatprep.mubr.bf16.mxu0 0
      %2427 = vmatmul.mubr.bf16.gmra.mrb[0].mxu0 %v2299
      %v2428 = vpop.f32.mrb[0].mxu0
      %v2429 = vadd.f32 0.0, %v2428
      %v2430 = vpop.f32.mrb[0].mxu0
      %v2431 = vpop.f32.mrb[0].mxu0
      %v2432 = vadd.f32 0.0, %v2431
      %v2433 = vpop.f32.mrb[0].mxu0
      %2434 = vmatprep.mubr.bf16.mxu0 0
      %2435 = vmatmul.mubr.bf16.gmra.mrb[0].mxu0 %v2302
      %v2436 = vpop.f32.mrb[0].mxu0
      %v2437 = vadd.f32 0.0, %v2436
      %v2438 = vpop.f32.mrb[0].mxu0
      %v2439 = vpop.f32.mrb[0].mxu0
      %v2440 = vadd.f32 0.0, %v2439
      %v2441 = vpop.f32.mrb[0].mxu0
      %2442 = vmatprep.mubr.bf16.mxu0 0
      %2443 = vmatmul.mubr.bf16.gmra.mrb[0].mxu0 %v2305
      %v2444 = vpop.f32.mrb[0].mxu0
      %v2445 = vadd.f32 0.0, %v2444
      %v2446 = vpop.f32.mrb[0].mxu0
      %v2447 = vpop.f32.mrb[0].mxu0
      %v2448 = vadd.f32 0.0, %v2447
      %v2449 = vpop.f32.mrb[0].mxu0
      %2450 = vmatprep.mubr.bf16.mxu0 0
      %2451 = vmatmul.mubr.bf16.gmra.mrb[0].mxu0 %v2308
      %v2452 = vpop.f32.mrb[0].mxu0
      %v2453 = vadd.f32 0.0, %v2452
      %v2454 = vpop.f32.mrb[0].mxu0
      %v2455 = vpop.f32.mrb[0].mxu0
      %v2456 = vadd.f32 0.0, %v2455
      %v2457 = vpop.f32.mrb[0].mxu0
      %2458 = vmatprep.mubr.bf16.mxu0 0
      %2459 = vmatmul.mubr.bf16.gmra.mrb[0].mxu0 %v2311
      %v2460 = vpop.f32.mrb[0].mxu0
      %v2461 = vadd.f32 0.0, %v2460
      %v2462 = vpop.f32.mrb[0].mxu0
      %v2463 = vpop.f32.mrb[0].mxu0
      %v2464 = vadd.f32 0.0, %v2463
      %v2465 = vpop.f32.mrb[0].mxu0
      %2466 = vmatprep.mubr.bf16.mxu0 0
      %2467 = vmatmul.mubr.bf16.gmra.mrb[0].mxu0 %v2314
      %v2468 = vpop.f32.mrb[0].mxu0
      %v2469 = vadd.f32 0.0, %v2468
      %v2470 = vpop.f32.mrb[0].mxu0
      %v2471 = vpop.f32.mrb[0].mxu0
      %v2472 = vadd.f32 0.0, %v2471
      %v2473 = vpop.f32.mrb[0].mxu0
      %2474 = vmatprep.mubr.bf16.mxu0 0
      %2475 = vmatmul.mubr.bf16.gmra.mrb[0].mxu0 %v2317
      %v2476 = vpop.f32.mrb[0].mxu0
      %v2477 = vadd.f32 0.0, %v2476
      %v2478 = vpop.f32.mrb[0].mxu0
      %v2479 = vpop.f32.mrb[0].mxu0
      %v2480 = vadd.f32 0.0, %v2479
      %v2481 = vpop.f32.mrb[0].mxu0
      %2482 = vdwg.mxu0
      %v2483 = vld [vmem:[#allocation3] sm:$0xff]
      %v2484 = vld [vmem:[#allocation3 + $0x8] sm:$0xff]
      %v2485 = vld [vmem:[#allocation3 + $0x10] sm:$0xff]
      %v2486 = vld [vmem:[#allocation3 + $0x18] sm:$0xff]
      %v2487 = vld [vmem:[#allocation3 + $0x20] sm:$0xff]
      %v2488 = vld [vmem:[#allocation3 + $0x28] sm:$0xff]
      %v2489 = vld [vmem:[#allocation3 + $0x30] sm:$0xff]
      %v2490 = vld [vmem:[#allocation3 + $0x38] sm:$0xff]
      %v2491 = vld [vmem:[#allocation3 + $0x40] sm:$0xff]
      %v2492 = vld [vmem:[#allocation3 + $0x48] sm:$0xff]
      %v2493 = vld [vmem:[#allocation3 + $0x50] sm:$0xff]
      %v2494 = vld [vmem:[#allocation3 + $0x58] sm:$0xff]
      %v2495 = vld [vmem:[#allocation3 + $0x60] sm:$0xff]
      %v2496 = vld [vmem:[#allocation3 + $0x68] sm:$0xff]
      %v2497 = vld [vmem:[#allocation3 + $0x70] sm:$0xff]
      %v2498 = vld [vmem:[#allocation3 + $0x78] sm:$0xff]
      %v2499 = vld [vmem:[#allocation3 + $0x80] sm:$0xff]
      %v2500 = vld [vmem:[#allocation3 + $0x88] sm:$0xff]
      %v2501 = vld [vmem:[#allocation3 + $0x90] sm:$0xff]
      %v2502 = vld [vmem:[#allocation3 + $0x98] sm:$0xff]
      %v2503 = vld [vmem:[#allocation3 + $0xa0] sm:$0xff]
      %v2504 = vld [vmem:[#allocation3 + $0xa8] sm:$0xff]
      %v2505 = vld [vmem:[#allocation3 + $0xb0] sm:$0xff]
      %v2506 = vld [vmem:[#allocation3 + $0xb8] sm:$0xff]
      %v2507 = vld [vmem:[#allocation3 + $0xc0] sm:$0xff]
      %v2508 = vld [vmem:[#allocation3 + $0xc8] sm:$0xff]
      %v2509 = vld [vmem:[#allocation3 + $0xd0] sm:$0xff]
      %v2510 = vld [vmem:[#allocation3 + $0xd8] sm:$0xff]
      %v2511 = vld [vmem:[#allocation3 + $0xe0] sm:$0xff]
      %v2512 = vld [vmem:[#allocation3 + $0xe8] sm:$0xff]
      %v2513 = vld [vmem:[#allocation3 + $0xf0] sm:$0xff]
      %v2514 = vld [vmem:[#allocation3 + $0xf8] sm:$0xff]
      %v2515 = vadd.f32 %v2483, %v2357
      %v2516 = vadd.f32 %v2484, %v2360
      %v2517 = vadd.f32 %v2485, %v2365
      %v2518 = vadd.f32 %v2486, %v2368
      %v2519 = vadd.f32 %v2487, %v2373
      %v2520 = vadd.f32 %v2488, %v2376
      %v2521 = vadd.f32 %v2489, %v2381
      %v2522 = vadd.f32 %v2490, %v2384
      %v2523 = vadd.f32 %v2491, %v2389
      %v2524 = vadd.f32 %v2492, %v2392
      %v2525 = vadd.f32 %v2493, %v2397
      %v2526 = vadd.f32 %v2494, %v2400
      %v2527 = vadd.f32 %v2495, %v2405
      %v2528 = vadd.f32 %v2496, %v2408
      %v2529 = vadd.f32 %v2497, %v2413
      %v2530 = vadd.f32 %v2498, %v2416
      %v2531 = vadd.f32 %v2499, %v2421
      %v2532 = vadd.f32 %v2500, %v2424
      %v2533 = vadd.f32 %v2501, %v2429
      %v2534 = vadd.f32 %v2502, %v2432
      %v2535 = vadd.f32 %v2503, %v2437
      %v2536 = vadd.f32 %v2504, %v2440
      %v2537 = vadd.f32 %v2505, %v2445
      %v2538 = vadd.f32 %v2506, %v2448
      %v2539 = vadd.f32 %v2507, %v2453
      %v2540 = vadd.f32 %v2508, %v2456
      %v2541 = vadd.f32 %v2509, %v2461
      %v2542 = vadd.f32 %v2510, %v2464
      %v2543 = vadd.f32 %v2511, %v2469
      %v2544 = vadd.f32 %v2512, %v2472
      %v2545 = vadd.f32 %v2513, %v2477
      %v2546 = vadd.f32 %v2514, %v2480
      %2547 = vst.msk [vmem:[#allocation3] sm:$0xff] %vm280, %v2515
      %2548 = vst.msk [vmem:[#allocation3 + $0x8] sm:$0xff] %vm280, %v2516
      %2549 = vst.msk [vmem:[#allocation3 + $0x10] sm:$0xff] %vm280, %v2517
      %2550 = vst.msk [vmem:[#allocation3 + $0x18] sm:$0xff] %vm280, %v2518
      %2551 = vst.msk [vmem:[#allocation3 + $0x20] sm:$0xff] %vm280, %v2519
      %2552 = vst.msk [vmem:[#allocation3 + $0x28] sm:$0xff] %vm280, %v2520
      %2553 = vst.msk [vmem:[#allocation3 + $0x30] sm:$0xff] %vm280, %v2521
      %2554 = vst.msk [vmem:[#allocation3 + $0x38] sm:$0xff] %vm280, %v2522
      %2555 = vst.msk [vmem:[#allocation3 + $0x40] sm:$0xff] %vm280, %v2523
      %2556 = vst.msk [vmem:[#allocation3 + $0x48] sm:$0xff] %vm280, %v2524
      %2557 = vst.msk [vmem:[#allocation3 + $0x50] sm:$0xff] %vm280, %v2525
      %2558 = vst.msk [vmem:[#allocation3 + $0x58] sm:$0xff] %vm280, %v2526
      %2559 = vst.msk [vmem:[#allocation3 + $0x60] sm:$0xff] %vm280, %v2527
      %2560 = vst.msk [vmem:[#allocation3 + $0x68] sm:$0xff] %vm280, %v2528
      %2561 = vst.msk [vmem:[#allocation3 + $0x70] sm:$0xff] %vm280, %v2529
      %2562 = vst.msk [vmem:[#allocation3 + $0x78] sm:$0xff] %vm280, %v2530
      %2563 = vst.msk [vmem:[#allocation3 + $0x80] sm:$0xff] %vm280, %v2531
      %2564 = vst.msk [vmem:[#allocation3 + $0x88] sm:$0xff] %vm280, %v2532
      %2565 = vst.msk [vmem:[#allocation3 + $0x90] sm:$0xff] %vm280, %v2533
      %2566 = vst.msk [vmem:[#allocation3 + $0x98] sm:$0xff] %vm280, %v2534
      %2567 = vst.msk [vmem:[#allocation3 + $0xa0] sm:$0xff] %vm280, %v2535
      %2568 = vst.msk [vmem:[#allocation3 + $0xa8] sm:$0xff] %vm280, %v2536
      %2569 = vst.msk [vmem:[#allocation3 + $0xb0] sm:$0xff] %vm280, %v2537
      %2570 = vst.msk [vmem:[#allocation3 + $0xb8] sm:$0xff] %vm280, %v2538
      %2571 = vst.msk [vmem:[#allocation3 + $0xc0] sm:$0xff] %vm280, %v2539
      %2572 = vst.msk [vmem:[#allocation3 + $0xc8] sm:$0xff] %vm280, %v2540
      %2573 = vst.msk [vmem:[#allocation3 + $0xd0] sm:$0xff] %vm280, %v2541
      %2574 = vst.msk [vmem:[#allocation3 + $0xd8] sm:$0xff] %vm280, %v2542
      %2575 = vst.msk [vmem:[#allocation3 + $0xe0] sm:$0xff] %vm280, %v2543
      %2576 = vst.msk [vmem:[#allocation3 + $0xe8] sm:$0xff] %vm280, %v2544
      %2577 = vst.msk [vmem:[#allocation3 + $0xf0] sm:$0xff] %vm280, %v2545
      %2578 = vst.msk [vmem:[#allocation3 + $0xf8] sm:$0xff] %vm280, %v2546
      %v2579 = vld [vmem:[%s288 + $0x8] sm:$0xff]
      %v2580 = vld [vmem:[%s288 + $0x10] sm:$0x1]
      %v2581 = vld [vmem:[%s288 + $0x20] sm:$0xff]
      %v2582 = vld [vmem:[%s288 + $0x28] sm:$0x1]
      %v2583 = vld [vmem:[%s288 + $0x38] sm:$0xff]
      %v2584 = vld [vmem:[%s288 + $0x40] sm:$0x1]
      %v2585 = vld [vmem:[%s288 + $0x50] sm:$0xff]
      %v2586 = vld [vmem:[%s288 + $0x58] sm:$0x1]
      %v2587 = vld [vmem:[%s288 + $0x68] sm:$0xff]
      %v2588 = vld [vmem:[%s288 + $0x70] sm:$0x1]
      %v2589 = vld [vmem:[%s288 + $0x80] sm:$0xff]
      %v2590 = vld [vmem:[%s288 + $0x88] sm:$0x1]
      %v2591 = vld [vmem:[%s288 + $0x98] sm:$0xff]
      %v2592 = vld [vmem:[%s288 + $0xa0] sm:$0x1]
      %v2593 = vld [vmem:[%s288 + $0xb0] sm:$0xff]
      %v2594 = vld [vmem:[%s288 + $0xb8] sm:$0x1]
      %v2595 = vld [vmem:[%s288 + $0xc8] sm:$0xff]
      %v2596 = vld [vmem:[%s288 + $0xd0] sm:$0x1]
      %v2597 = vld [vmem:[%s288 + $0xe0] sm:$0xff]
      %v2598 = vld [vmem:[%s288 + $0xe8] sm:$0x1]
      %v2599 = vld [vmem:[%s288 + $0xf8] sm:$0xff]
      %v2600 = vld [vmem:[%s288 + $0x100] sm:$0x1]
      %v2601 = vld [vmem:[%s288 + $0x110] sm:$0xff]
      %v2602 = vld [vmem:[%s288 + $0x118] sm:$0x1]
      %v2603 = vld [vmem:[%s288 + $0x128] sm:$0xff]
      %v2604 = vld [vmem:[%s288 + $0x130] sm:$0x1]
      %v2605 = vld [vmem:[%s288 + $0x140] sm:$0xff]
      %v2606 = vld [vmem:[%s288 + $0x148] sm:$0x1]
      %v2607 = vld [vmem:[%s288 + $0x158] sm:$0xff]
      %v2608 = vld [vmem:[%s288 + $0x160] sm:$0x1]
      %v2609 = vld [vmem:[%s288 + $0x170] sm:$0xff]
      %v2610 = vld [vmem:[%s288 + $0x178] sm:$0x1]
      %v2612 = vshrl.u32 %v2579, 16
      %v2614 = vshll.u32 %v2579, 16
      %v2616 = vrot.slane %v2614, 1
      %v2617 = vor.u32 %v2612, %v2616
      %v2619 = vshll.u32 %v2580, 16
      %v2621 = vrot.slane %v2619, 1
      %v2622 = vsel %vm1216, %v2617, %v2621
      %v2624 = vshrl.u32 %v2581, 16
      %v2626 = vshll.u32 %v2581, 16
      %v2628 = vrot.slane %v2626, 1
      %v2629 = vor.u32 %v2624, %v2628
      %v2631 = vshll.u32 %v2582, 16
      %v2633 = vrot.slane %v2631, 1
      %v2634 = vsel %vm1216, %v2629, %v2633
      %v2636 = vshrl.u32 %v2583, 16
      %v2638 = vshll.u32 %v2583, 16
      %v2640 = vrot.slane %v2638, 1
      %v2641 = vor.u32 %v2636, %v2640
      %v2643 = vshll.u32 %v2584, 16
      %v2645 = vrot.slane %v2643, 1
      %v2646 = vsel %vm1216, %v2641, %v2645
      %v2648 = vshrl.u32 %v2585, 16
      %v2650 = vshll.u32 %v2585, 16
      %v2652 = vrot.slane %v2650, 1
      %v2653 = vor.u32 %v2648, %v2652
      %v2655 = vshll.u32 %v2586, 16
      %v2657 = vrot.slane %v2655, 1
      %v2658 = vsel %vm1216, %v2653, %v2657
      %v2660 = vshrl.u32 %v2587, 16
      %v2662 = vshll.u32 %v2587, 16
      %v2664 = vrot.slane %v2662, 1
      %v2665 = vor.u32 %v2660, %v2664
      %v2667 = vshll.u32 %v2588, 16
      %v2669 = vrot.slane %v2667, 1
      %v2670 = vsel %vm1216, %v2665, %v2669
      %v2672 = vshrl.u32 %v2589, 16
      %v2674 = vshll.u32 %v2589, 16
      %v2676 = vrot.slane %v2674, 1
      %v2677 = vor.u32 %v2672, %v2676
      %v2679 = vshll.u32 %v2590, 16
      %v2681 = vrot.slane %v2679, 1
      %v2682 = vsel %vm1216, %v2677, %v2681
      %v2684 = vshrl.u32 %v2591, 16
      %v2686 = vshll.u32 %v2591, 16
      %v2688 = vrot.slane %v2686, 1
      %v2689 = vor.u32 %v2684, %v2688
      %v2691 = vshll.u32 %v2592, 16
      %v2693 = vrot.slane %v2691, 1
      %v2694 = vsel %vm1216, %v2689, %v2693
      %v2696 = vshrl.u32 %v2593, 16
      %v2698 = vshll.u32 %v2593, 16
      %v2700 = vrot.slane %v2698, 1
      %v2701 = vor.u32 %v2696, %v2700
      %v2703 = vshll.u32 %v2594, 16
      %v2705 = vrot.slane %v2703, 1
      %v2706 = vsel %vm1216, %v2701, %v2705
      %v2708 = vshrl.u32 %v2595, 16
      %v2710 = vshll.u32 %v2595, 16
      %v2712 = vrot.slane %v2710, 1
      %v2713 = vor.u32 %v2708, %v2712
      %v2715 = vshll.u32 %v2596, 16
      %v2717 = vrot.slane %v2715, 1
      %v2718 = vsel %vm1216, %v2713, %v2717
      %v2720 = vshrl.u32 %v2597, 16
      %v2722 = vshll.u32 %v2597, 16
      %v2724 = vrot.slane %v2722, 1
      %v2725 = vor.u32 %v2720, %v2724
      %v2727 = vshll.u32 %v2598, 16
      %v2729 = vrot.slane %v2727, 1
      %v2730 = vsel %vm1216, %v2725, %v2729
      %v2732 = vshrl.u32 %v2599, 16
      %v2734 = vshll.u32 %v2599, 16
      %v2736 = vrot.slane %v2734, 1
      %v2737 = vor.u32 %v2732, %v2736
      %v2739 = vshll.u32 %v2600, 16
      %v2741 = vrot.slane %v2739, 1
      %v2742 = vsel %vm1216, %v2737, %v2741
      %v2744 = vshrl.u32 %v2601, 16
      %v2746 = vshll.u32 %v2601, 16
      %v2748 = vrot.slane %v2746, 1
      %v2749 = vor.u32 %v2744, %v2748
      %v2751 = vshll.u32 %v2602, 16
      %v2753 = vrot.slane %v2751, 1
      %v2754 = vsel %vm1216, %v2749, %v2753
      %v2756 = vshrl.u32 %v2603, 16
      %v2758 = vshll.u32 %v2603, 16
      %v2760 = vrot.slane %v2758, 1
      %v2761 = vor.u32 %v2756, %v2760
      %v2763 = vshll.u32 %v2604, 16
      %v2765 = vrot.slane %v2763, 1
      %v2766 = vsel %vm1216, %v2761, %v2765
      %v2768 = vshrl.u32 %v2605, 16
      %v2770 = vshll.u32 %v2605, 16
      %v2772 = vrot.slane %v2770, 1
      %v2773 = vor.u32 %v2768, %v2772
      %v2775 = vshll.u32 %v2606, 16
      %v2777 = vrot.slane %v2775, 1
      %v2778 = vsel %vm1216, %v2773, %v2777
      %v2780 = vshrl.u32 %v2607, 16
      %v2782 = vshll.u32 %v2607, 16
      %v2784 = vrot.slane %v2782, 1
      %v2785 = vor.u32 %v2780, %v2784
      %v2787 = vshll.u32 %v2608, 16
      %v2789 = vrot.slane %v2787, 1
      %v2790 = vsel %vm1216, %v2785, %v2789
      %v2792 = vshrl.u32 %v2609, 16
      %v2794 = vshll.u32 %v2609, 16
      %v2796 = vrot.slane %v2794, 1
      %v2797 = vor.u32 %v2792, %v2796
      %v2799 = vshll.u32 %v2610, 16
      %v2801 = vrot.slane %v2799, 1
      %v2802 = vsel %vm1216, %v2797, %v2801
      %s2803 = scalar_lea.vmem %s1, 10
      %v2804 = vld [vmem:[%s2803] sm:$0x3]
      %v2806 = vsel %vm280, %v2622, 0
      %v2809 = vsel %vm280, %v2634, 0
      %v2812 = vsel %vm280, %v2646, 0
      %v2815 = vsel %vm280, %v2658, 0
      %v2818 = vsel %vm280, %v2670, 0
      %v2821 = vsel %vm280, %v2682, 0
      %v2824 = vsel %vm280, %v2694, 0
      %v2827 = vsel %vm280, %v2706, 0
      %v2830 = vsel %vm280, %v2718, 0
      %v2833 = vsel %vm280, %v2730, 0
      %v2836 = vsel %vm280, %v2742, 0
      %v2839 = vsel %vm280, %v2754, 0
      %v2842 = vsel %vm280, %v2766, 0
      %v2845 = vsel %vm280, %v2778, 0
      %v2848 = vsel %vm280, %v2790, 0
      %v2851 = vsel %vm280, %v2802, 0
      %v2854 = vsel %vm661, %v2804, 0
      %2856 = vmatprep.subr.bf16.mxu0 0
      %2857 = vmatpush1.bf16.msra.mxu0 %v2854
      %2858 = vmatprep.subr.bf16.mxu0 0
      %2859 = vmatpush1.bf16.msra.mxu0 0
      %2860 = vmatprep.subr.bf16.mxu0 0
      %2861 = vmatpush1.bf16.msra.mxu0 0
      %2862 = vmatprep.subr.bf16.mxu0 0
      %2863 = vmatpush1.bf16.msra.mxu0 0
      %2864 = vmatprep.subr.bf16.mxu0 0
      %2865 = vmatpush1.bf16.msra.mxu0 0
      %2866 = vmatprep.subr.bf16.mxu0 0
      %2867 = vmatpush1.bf16.msra.mxu0 0
      %2868 = vmatprep.subr.bf16.mxu0 0
      %2869 = vmatpush1.bf16.msra.mxu0 0
      %2870 = vmatprep.subr.bf16.mxu0 0
      %2871 = vmatpush1.bf16.msra.mxu0 0
      %2872 = vmatprep.subr.bf16.mxu0 0
      %2873 = vmatpush1.bf16.msra.mxu0 0
      %2874 = vmatprep.subr.bf16.mxu0 0
      %2875 = vmatpush1.bf16.msra.mxu0 0
      %2876 = vmatprep.subr.bf16.mxu0 0
      %2877 = vmatpush1.bf16.msra.mxu0 0
      %2878 = vmatprep.subr.bf16.mxu0 0
      %2879 = vmatpush1.bf16.msra.mxu0 0
      %2880 = vmatprep.subr.bf16.mxu0 0
      %2881 = vmatpush1.bf16.msra.mxu0 0
      %2882 = vmatprep.subr.bf16.mxu0 0
      %2883 = vmatpush1.bf16.msra.mxu0 0
      %2884 = vmatprep.subr.bf16.mxu0 0
      %2885 = vmatpush1.bf16.msra.mxu0 0
      %2886 = vmatprep.subr.bf16.mxu0 0
      %2887 = vmatpush1.bf16.msra.mxu0 0
      %2888 = vmatprep.mubr.bf16.mxu0 0
      %2889 = vmatmul.mubr.bf16.gmra.mrb[0].mxu0 %v2806
      %v2890 = vpop.f32.mrb[0].mxu0
      %v2891 = vadd.f32 0.0, %v2890
      %v2892 = vpop.f32.mrb[0].mxu0
      %v2893 = vpop.f32.mrb[0].mxu0
      %v2894 = vadd.f32 0.0, %v2893
      %v2895 = vpop.f32.mrb[0].mxu0
      %2896 = vmatprep.mubr.bf16.mxu0 0
      %2897 = vmatmul.mubr.bf16.gmra.mrb[0].mxu0 %v2809
      %v2898 = vpop.f32.mrb[0].mxu0
      %v2899 = vadd.f32 0.0, %v2898
      %v2900 = vpop.f32.mrb[0].mxu0
      %v2901 = vpop.f32.mrb[0].mxu0
      %v2902 = vadd.f32 0.0, %v2901
      %v2903 = vpop.f32.mrb[0].mxu0
      %2904 = vmatprep.mubr.bf16.mxu0 0
      %2905 = vmatmul.mubr.bf16.gmra.mrb[0].mxu0 %v2812
      %v2906 = vpop.f32.mrb[0].mxu0
      %v2907 = vadd.f32 0.0, %v2906
      %v2908 = vpop.f32.mrb[0].mxu0
      %v2909 = vpop.f32.mrb[0].mxu0
      %v2910 = vadd.f32 0.0, %v2909
      %v2911 = vpop.f32.mrb[0].mxu0
      %2912 = vmatprep.mubr.bf16.mxu0 0
      %2913 = vmatmul.mubr.bf16.gmra.mrb[0].mxu0 %v2815
      %v2914 = vpop.f32.mrb[0].mxu0
      %v2915 = vadd.f32 0.0, %v2914
      %v2916 = vpop.f32.mrb[0].mxu0
      %v2917 = vpop.f32.mrb[0].mxu0
      %v2918 = vadd.f32 0.0, %v2917
      %v2919 = vpop.f32.mrb[0].mxu0
      %2920 = vmatprep.mubr.bf16.mxu0 0
      %2921 = vmatmul.mubr.bf16.gmra.mrb[0].mxu0 %v2818
      %v2922 = vpop.f32.mrb[0].mxu0
      %v2923 = vadd.f32 0.0, %v2922
      %v2924 = vpop.f32.mrb[0].mxu0
      %v2925 = vpop.f32.mrb[0].mxu0
      %v2926 = vadd.f32 0.0, %v2925
      %v2927 = vpop.f32.mrb[0].mxu0
      %2928 = vmatprep.mubr.bf16.mxu0 0
      %2929 = vmatmul.mubr.bf16.gmra.mrb[0].mxu0 %v2821
      %v2930 = vpop.f32.mrb[0].mxu0
      %v2931 = vadd.f32 0.0, %v2930
      %v2932 = vpop.f32.mrb[0].mxu0
      %v2933 = vpop.f32.mrb[0].mxu0
      %v2934 = vadd.f32 0.0, %v2933
      %v2935 = vpop.f32.mrb[0].mxu0
      %2936 = vmatprep.mubr.bf16.mxu0 0
      %2937 = vmatmul.mubr.bf16.gmra.mrb[0].mxu0 %v2824
      %v2938 = vpop.f32.mrb[0].mxu0
      %v2939 = vadd.f32 0.0, %v2938
      %v2940 = vpop.f32.mrb[0].mxu0
      %v2941 = vpop.f32.mrb[0].mxu0
      %v2942 = vadd.f32 0.0, %v2941
      %v2943 = vpop.f32.mrb[0].mxu0
      %2944 = vmatprep.mubr.bf16.mxu0 0
      %2945 = vmatmul.mubr.bf16.gmra.mrb[0].mxu0 %v2827
      %v2946 = vpop.f32.mrb[0].mxu0
      %v2947 = vadd.f32 0.0, %v2946
      %v2948 = vpop.f32.mrb[0].mxu0
      %v2949 = vpop.f32.mrb[0].mxu0
      %v2950 = vadd.f32 0.0, %v2949
      %v2951 = vpop.f32.mrb[0].mxu0
      %2952 = vmatprep.mubr.bf16.mxu0 0
      %2953 = vmatmul.mubr.bf16.gmra.mrb[0].mxu0 %v2830
      %v2954 = vpop.f32.mrb[0].mxu0
      %v2955 = vadd.f32 0.0, %v2954
      %v2956 = vpop.f32.mrb[0].mxu0
      %v2957 = vpop.f32.mrb[0].mxu0
      %v2958 = vadd.f32 0.0, %v2957
      %v2959 = vpop.f32.mrb[0].mxu0
      %2960 = vmatprep.mubr.bf16.mxu0 0
      %2961 = vmatmul.mubr.bf16.gmra.mrb[0].mxu0 %v2833
      %v2962 = vpop.f32.mrb[0].mxu0
      %v2963 = vadd.f32 0.0, %v2962
      %v2964 = vpop.f32.mrb[0].mxu0
      %v2965 = vpop.f32.mrb[0].mxu0
      %v2966 = vadd.f32 0.0, %v2965
      %v2967 = vpop.f32.mrb[0].mxu0
      %2968 = vmatprep.mubr.bf16.mxu0 0
      %2969 = vmatmul.mubr.bf16.gmra.mrb[0].mxu0 %v2836
      %v2970 = vpop.f32.mrb[0].mxu0
      %v2971 = vadd.f32 0.0, %v2970
      %v2972 = vpop.f32.mrb[0].mxu0
      %v2973 = vpop.f32.mrb[0].mxu0
      %v2974 = vadd.f32 0.0, %v2973
      %v2975 = vpop.f32.mrb[0].mxu0
      %2976 = vmatprep.mubr.bf16.mxu0 0
      %2977 = vmatmul.mubr.bf16.gmra.mrb[0].mxu0 %v2839
      %v2978 = vpop.f32.mrb[0].mxu0
      %v2979 = vadd.f32 0.0, %v2978
      %v2980 = vpop.f32.mrb[0].mxu0
      %v2981 = vpop.f32.mrb[0].mxu0
      %v2982 = vadd.f32 0.0, %v2981
      %v2983 = vpop.f32.mrb[0].mxu0
      %2984 = vmatprep.mubr.bf16.mxu0 0
      %2985 = vmatmul.mubr.bf16.gmra.mrb[0].mxu0 %v2842
      %v2986 = vpop.f32.mrb[0].mxu0
      %v2987 = vadd.f32 0.0, %v2986
      %v2988 = vpop.f32.mrb[0].mxu0
      %v2989 = vpop.f32.mrb[0].mxu0
      %v2990 = vadd.f32 0.0, %v2989
      %v2991 = vpop.f32.mrb[0].mxu0
      %2992 = vmatprep.mubr.bf16.mxu0 0
      %2993 = vmatmul.mubr.bf16.gmra.mrb[0].mxu0 %v2845
      %v2994 = vpop.f32.mrb[0].mxu0
      %v2995 = vadd.f32 0.0, %v2994
      %v2996 = vpop.f32.mrb[0].mxu0
      %v2997 = vpop.f32.mrb[0].mxu0
      %v2998 = vadd.f32 0.0, %v2997
      %v2999 = vpop.f32.mrb[0].mxu0
      %3000 = vmatprep.mubr.bf16.mxu0 0
      %3001 = vmatmul.mubr.bf16.gmra.mrb[0].mxu0 %v2848
      %v3002 = vpop.f32.mrb[0].mxu0
      %v3003 = vadd.f32 0.0, %v3002
      %v3004 = vpop.f32.mrb[0].mxu0
      %v3005 = vpop.f32.mrb[0].mxu0
      %v3006 = vadd.f32 0.0, %v3005
      %v3007 = vpop.f32.mrb[0].mxu0
      %3008 = vmatprep.mubr.bf16.mxu0 0
      %3009 = vmatmul.mubr.bf16.gmra.mrb[0].mxu0 %v2851
      %v3010 = vpop.f32.mrb[0].mxu0
      %v3011 = vadd.f32 0.0, %v3010
      %v3012 = vpop.f32.mrb[0].mxu0
      %v3013 = vpop.f32.mrb[0].mxu0
      %v3014 = vadd.f32 0.0, %v3013
      %v3015 = vpop.f32.mrb[0].mxu0
      %3016 = vdwg.mxu0
      %v3017 = vld [vmem:[#allocation3] sm:$0xff]
      %v3018 = vld [vmem:[#allocation3 + $0x8] sm:$0xff]
      %v3019 = vld [vmem:[#allocation3 + $0x10] sm:$0xff]
      %v3020 = vld [vmem:[#allocation3 + $0x18] sm:$0xff]
      %v3021 = vld [vmem:[#allocation3 + $0x20] sm:$0xff]
      %v3022 = vld [vmem:[#allocation3 + $0x28] sm:$0xff]
      %v3023 = vld [vmem:[#allocation3 + $0x30] sm:$0xff]
      %v3024 = vld [vmem:[#allocation3 + $0x38] sm:$0xff]
      %v3025 = vld [vmem:[#allocation3 + $0x40] sm:$0xff]
      %v3026 = vld [vmem:[#allocation3 + $0x48] sm:$0xff]
      %v3027 = vld [vmem:[#allocation3 + $0x50] sm:$0xff]
      %v3028 = vld [vmem:[#allocation3 + $0x58] sm:$0xff]
      %v3029 = vld [vmem:[#allocation3 + $0x60] sm:$0xff]
      %v3030 = vld [vmem:[#allocation3 + $0x68] sm:$0xff]
      %v3031 = vld [vmem:[#allocation3 + $0x70] sm:$0xff]
      %v3032 = vld [vmem:[#allocation3 + $0x78] sm:$0xff]
      %v3033 = vld [vmem:[#allocation3 + $0x80] sm:$0xff]
      %v3034 = vld [vmem:[#allocation3 + $0x88] sm:$0xff]
      %v3035 = vld [vmem:[#allocation3 + $0x90] sm:$0xff]
      %v3036 = vld [vmem:[#allocation3 + $0x98] sm:$0xff]
      %v3037 = vld [vmem:[#allocation3 + $0xa0] sm:$0xff]
      %v3038 = vld [vmem:[#allocation3 + $0xa8] sm:$0xff]
      %v3039 = vld [vmem:[#allocation3 + $0xb0] sm:$0xff]
      %v3040 = vld [vmem:[#allocation3 + $0xb8] sm:$0xff]
      %v3041 = vld [vmem:[#allocation3 + $0xc0] sm:$0xff]
      %v3042 = vld [vmem:[#allocation3 + $0xc8] sm:$0xff]
      %v3043 = vld [vmem:[#allocation3 + $0xd0] sm:$0xff]
      %v3044 = vld [vmem:[#allocation3 + $0xd8] sm:$0xff]
      %v3045 = vld [vmem:[#allocation3 + $0xe0] sm:$0xff]
      %v3046 = vld [vmem:[#allocation3 + $0xe8] sm:$0xff]
      %v3047 = vld [vmem:[#allocation3 + $0xf0] sm:$0xff]
      %v3048 = vld [vmem:[#allocation3 + $0xf8] sm:$0xff]
      %v3049 = vadd.f32 %v3017, %v2891
      %v3050 = vadd.f32 %v3018, %v2894
      %v3051 = vadd.f32 %v3019, %v2899
      %v3052 = vadd.f32 %v3020, %v2902
      %v3053 = vadd.f32 %v3021, %v2907
      %v3054 = vadd.f32 %v3022, %v2910
      %v3055 = vadd.f32 %v3023, %v2915
      %v3056 = vadd.f32 %v3024, %v2918
      %v3057 = vadd.f32 %v3025, %v2923
      %v3058 = vadd.f32 %v3026, %v2926
      %v3059 = vadd.f32 %v3027, %v2931
      %v3060 = vadd.f32 %v3028, %v2934
      %v3061 = vadd.f32 %v3029, %v2939
      %v3062 = vadd.f32 %v3030, %v2942
      %v3063 = vadd.f32 %v3031, %v2947
      %v3064 = vadd.f32 %v3032, %v2950
      %v3065 = vadd.f32 %v3033, %v2955
      %v3066 = vadd.f32 %v3034, %v2958
      %v3067 = vadd.f32 %v3035, %v2963
      %v3068 = vadd.f32 %v3036, %v2966
      %v3069 = vadd.f32 %v3037, %v2971
      %v3070 = vadd.f32 %v3038, %v2974
      %v3071 = vadd.f32 %v3039, %v2979
      %v3072 = vadd.f32 %v3040, %v2982
      %v3073 = vadd.f32 %v3041, %v2987
      %v3074 = vadd.f32 %v3042, %v2990
      %v3075 = vadd.f32 %v3043, %v2995
      %v3076 = vadd.f32 %v3044, %v2998
      %v3077 = vadd.f32 %v3045, %v3003
      %v3078 = vadd.f32 %v3046, %v3006
      %v3079 = vadd.f32 %v3047, %v3011
      %v3080 = vadd.f32 %v3048, %v3014
      %3081 = vst.msk [vmem:[#allocation3] sm:$0xff] %vm280, %v3049
      %3082 = vst.msk [vmem:[#allocation3 + $0x8] sm:$0xff] %vm280, %v3050
      %3083 = vst.msk [vmem:[#allocation3 + $0x10] sm:$0xff] %vm280, %v3051
      %3084 = vst.msk [vmem:[#allocation3 + $0x18] sm:$0xff] %vm280, %v3052
      %3085 = vst.msk [vmem:[#allocation3 + $0x20] sm:$0xff] %vm280, %v3053
      %3086 = vst.msk [vmem:[#allocation3 + $0x28] sm:$0xff] %vm280, %v3054
      %3087 = vst.msk [vmem:[#allocation3 + $0x30] sm:$0xff] %vm280, %v3055
      %3088 = vst.msk [vmem:[#allocation3 + $0x38] sm:$0xff] %vm280, %v3056
      %3089 = vst.msk [vmem:[#allocation3 + $0x40] sm:$0xff] %vm280, %v3057
      %3090 = vst.msk [vmem:[#allocation3 + $0x48] sm:$0xff] %vm280, %v3058
      %3091 = vst.msk [vmem:[#allocation3 + $0x50] sm:$0xff] %vm280, %v3059
      %3092 = vst.msk [vmem:[#allocation3 + $0x58] sm:$0xff] %vm280, %v3060
      %3093 = vst.msk [vmem:[#allocation3 + $0x60] sm:$0xff] %vm280, %v3061
      %3094 = vst.msk [vmem:[#allocation3 + $0x68] sm:$0xff] %vm280, %v3062
      %3095 = vst.msk [vmem:[#allocation3 + $0x70] sm:$0xff] %vm280, %v3063
      %3096 = vst.msk [vmem:[#allocation3 + $0x78] sm:$0xff] %vm280, %v3064
      %3097 = vst.msk [vmem:[#allocation3 + $0x80] sm:$0xff] %vm280, %v3065
      %3098 = vst.msk [vmem:[#allocation3 + $0x88] sm:$0xff] %vm280, %v3066
      %3099 = vst.msk [vmem:[#allocation3 + $0x90] sm:$0xff] %vm280, %v3067
      %3100 = vst.msk [vmem:[#allocation3 + $0x98] sm:$0xff] %vm280, %v3068
      %3101 = vst.msk [vmem:[#allocation3 + $0xa0] sm:$0xff] %vm280, %v3069
      %3102 = vst.msk [vmem:[#allocation3 + $0xa8] sm:$0xff] %vm280, %v3070
      %3103 = vst.msk [vmem:[#allocation3 + $0xb0] sm:$0xff] %vm280, %v3071
      %3104 = vst.msk [vmem:[#allocation3 + $0xb8] sm:$0xff] %vm280, %v3072
      %3105 = vst.msk [vmem:[#allocation3 + $0xc0] sm:$0xff] %vm280, %v3073
      %3106 = vst.msk [vmem:[#allocation3 + $0xc8] sm:$0xff] %vm280, %v3074
      %3107 = vst.msk [vmem:[#allocation3 + $0xd0] sm:$0xff] %vm280, %v3075
      %3108 = vst.msk [vmem:[#allocation3 + $0xd8] sm:$0xff] %vm280, %v3076
      %3109 = vst.msk [vmem:[#allocation3 + $0xe0] sm:$0xff] %vm280, %v3077
      %3110 = vst.msk [vmem:[#allocation3 + $0xe8] sm:$0xff] %vm280, %v3078
      %3111 = vst.msk [vmem:[#allocation3 + $0xf0] sm:$0xff] %vm280, %v3079
      %3112 = vst.msk [vmem:[#allocation3 + $0xf8] sm:$0xff] %vm280, %v3080
      %s3113 = scalar_lea.vmem [#allocation2], 48
      %v3114 = vld [vmem:[%s3113] sm:$0x80]
      %v3115 = vld [vmem:[%s3113 + $0x8] sm:$0xff]
      %v3116 = vld [vmem:[%s3113 + $0x18] sm:$0x80]
      %v3117 = vld [vmem:[%s3113 + $0x20] sm:$0xff]
      %v3118 = vld [vmem:[%s3113 + $0x30] sm:$0x80]
      %v3119 = vld [vmem:[%s3113 + $0x38] sm:$0xff]
      %v3120 = vld [vmem:[%s3113 + $0x48] sm:$0x80]
      %v3121 = vld [vmem:[%s3113 + $0x50] sm:$0xff]
      %v3122 = vld [vmem:[%s3113 + $0x60] sm:$0x80]
      %v3123 = vld [vmem:[%s3113 + $0x68] sm:$0xff]
      %v3124 = vld [vmem:[%s3113 + $0x78] sm:$0x80]
      %v3125 = vld [vmem:[%s3113 + $0x80] sm:$0xff]
      %v3126 = vld [vmem:[%s3113 + $0x90] sm:$0x80]
      %v3127 = vld [vmem:[%s3113 + $0x98] sm:$0xff]
      %v3128 = vld [vmem:[%s3113 + $0xa8] sm:$0x80]
      %v3129 = vld [vmem:[%s3113 + $0xb0] sm:$0xff]
      %v3130 = vld [vmem:[%s3113 + $0xc0] sm:$0x80]
      %v3131 = vld [vmem:[%s3113 + $0xc8] sm:$0xff]
      %v3132 = vld [vmem:[%s3113 + $0xd8] sm:$0x80]
      %v3133 = vld [vmem:[%s3113 + $0xe0] sm:$0xff]
      %v3134 = vld [vmem:[%s3113 + $0xf0] sm:$0x80]
      %v3135 = vld [vmem:[%s3113 + $0xf8] sm:$0xff]
      %v3136 = vld [vmem:[%s3113 + $0x108] sm:$0x80]
      %v3137 = vld [vmem:[%s3113 + $0x110] sm:$0xff]
      %v3138 = vld [vmem:[%s3113 + $0x120] sm:$0x80]
      %v3139 = vld [vmem:[%s3113 + $0x128] sm:$0xff]
      %v3140 = vld [vmem:[%s3113 + $0x138] sm:$0x80]
      %v3141 = vld [vmem:[%s3113 + $0x140] sm:$0xff]
      %v3142 = vld [vmem:[%s3113 + $0x150] sm:$0x80]
      %v3143 = vld [vmem:[%s3113 + $0x158] sm:$0xff]
      %v3144 = vld [vmem:[%s3113 + $0x168] sm:$0x80]
      %v3145 = vld [vmem:[%s3113 + $0x170] sm:$0xff]
      %v3147 = vshrl.u32 %v3114, 16
      %v3149 = vrot.slane %v3147, 7
      %v3151 = vshrl.u32 %v3115, 16
      %v3153 = vrot.slane %v3151, 7
      %v3154 = vshll.u32 %v3115, 16
      %v3156 = vor.u32 %v3153, %v3154
      %v3157 = vsel %vm419, %v3149, %v3156
      %v3159 = vshrl.u32 %v3116, 16
      %v3161 = vrot.slane %v3159, 7
      %v3163 = vshrl.u32 %v3117, 16
      %v3165 = vrot.slane %v3163, 7
      %v3166 = vshll.u32 %v3117, 16
      %v3168 = vor.u32 %v3165, %v3166
      %v3169 = vsel %vm419, %v3161, %v3168
      %v3171 = vshrl.u32 %v3118, 16
      %v3173 = vrot.slane %v3171, 7
      %v3175 = vshrl.u32 %v3119, 16
      %v3177 = vrot.slane %v3175, 7
      %v3178 = vshll.u32 %v3119, 16
      %v3180 = vor.u32 %v3177, %v3178
      %v3181 = vsel %vm419, %v3173, %v3180
      %v3183 = vshrl.u32 %v3120, 16
      %v3185 = vrot.slane %v3183, 7
      %v3187 = vshrl.u32 %v3121, 16
      %v3189 = vrot.slane %v3187, 7
      %v3190 = vshll.u32 %v3121, 16
      %v3192 = vor.u32 %v3189, %v3190
      %v3193 = vsel %vm419, %v3185, %v3192
      %v3195 = vshrl.u32 %v3122, 16
      %v3197 = vrot.slane %v3195, 7
      %v3199 = vshrl.u32 %v3123, 16
      %v3201 = vrot.slane %v3199, 7
      %v3202 = vshll.u32 %v3123, 16
      %v3204 = vor.u32 %v3201, %v3202
      %v3205 = vsel %vm419, %v3197, %v3204
      %v3207 = vshrl.u32 %v3124, 16
      %v3209 = vrot.slane %v3207, 7
      %v3211 = vshrl.u32 %v3125, 16
      %v3213 = vrot.slane %v3211, 7
      %v3214 = vshll.u32 %v3125, 16
      %v3216 = vor.u32 %v3213, %v3214
      %v3217 = vsel %vm419, %v3209, %v3216
      %v3219 = vshrl.u32 %v3126, 16
      %v3221 = vrot.slane %v3219, 7
      %v3223 = vshrl.u32 %v3127, 16
      %v3225 = vrot.slane %v3223, 7
      %v3226 = vshll.u32 %v3127, 16
      %v3228 = vor.u32 %v3225, %v3226
      %v3229 = vsel %vm419, %v3221, %v3228
      %v3231 = vshrl.u32 %v3128, 16
      %v3233 = vrot.slane %v3231, 7
      %v3235 = vshrl.u32 %v3129, 16
      %v3237 = vrot.slane %v3235, 7
      %v3238 = vshll.u32 %v3129, 16
      %v3240 = vor.u32 %v3237, %v3238
      %v3241 = vsel %vm419, %v3233, %v3240
      %v3243 = vshrl.u32 %v3130, 16
      %v3245 = vrot.slane %v3243, 7
      %v3247 = vshrl.u32 %v3131, 16
      %v3249 = vrot.slane %v3247, 7
      %v3250 = vshll.u32 %v3131, 16
      %v3252 = vor.u32 %v3249, %v3250
      %v3253 = vsel %vm419, %v3245, %v3252
      %v3255 = vshrl.u32 %v3132, 16
      %v3257 = vrot.slane %v3255, 7
      %v3259 = vshrl.u32 %v3133, 16
      %v3261 = vrot.slane %v3259, 7
      %v3262 = vshll.u32 %v3133, 16
      %v3264 = vor.u32 %v3261, %v3262
      %v3265 = vsel %vm419, %v3257, %v3264
      %v3267 = vshrl.u32 %v3134, 16
      %v3269 = vrot.slane %v3267, 7
      %v3271 = vshrl.u32 %v3135, 16
      %v3273 = vrot.slane %v3271, 7
      %v3274 = vshll.u32 %v3135, 16
      %v3276 = vor.u32 %v3273, %v3274
      %v3277 = vsel %vm419, %v3269, %v3276
      %v3279 = vshrl.u32 %v3136, 16
      %v3281 = vrot.slane %v3279, 7
      %v3283 = vshrl.u32 %v3137, 16
      %v3285 = vrot.slane %v3283, 7
      %v3286 = vshll.u32 %v3137, 16
      %v3288 = vor.u32 %v3285, %v3286
      %v3289 = vsel %vm419, %v3281, %v3288
      %v3291 = vshrl.u32 %v3138, 16
      %v3293 = vrot.slane %v3291, 7
      %v3295 = vshrl.u32 %v3139, 16
      %v3297 = vrot.slane %v3295, 7
      %v3298 = vshll.u32 %v3139, 16
      %v3300 = vor.u32 %v3297, %v3298
      %v3301 = vsel %vm419, %v3293, %v3300
      %v3303 = vshrl.u32 %v3140, 16
      %v3305 = vrot.slane %v3303, 7
      %v3307 = vshrl.u32 %v3141, 16
      %v3309 = vrot.slane %v3307, 7
      %v3310 = vshll.u32 %v3141, 16
      %v3312 = vor.u32 %v3309, %v3310
      %v3313 = vsel %vm419, %v3305, %v3312
      %v3315 = vshrl.u32 %v3142, 16
      %v3317 = vrot.slane %v3315, 7
      %v3319 = vshrl.u32 %v3143, 16
      %v3321 = vrot.slane %v3319, 7
      %v3322 = vshll.u32 %v3143, 16
      %v3324 = vor.u32 %v3321, %v3322
      %v3325 = vsel %vm419, %v3317, %v3324
      %v3327 = vshrl.u32 %v3144, 16
      %v3329 = vrot.slane %v3327, 7
      %v3331 = vshrl.u32 %v3145, 16
      %v3333 = vrot.slane %v3331, 7
      %v3334 = vshll.u32 %v3145, 16
      %v3336 = vor.u32 %v3333, %v3334
      %v3337 = vsel %vm419, %v3329, %v3336
      %s3338 = scalar_lea.vmem %s1, 12
      %v3339 = vld [vmem:[%s3338] sm:$0x3]
      %v3341 = vsel %vm280, %v3157, 0
      %v3344 = vsel %vm280, %v3169, 0
      %v3347 = vsel %vm280, %v3181, 0
      %v3350 = vsel %vm280, %v3193, 0
      %v3353 = vsel %vm280, %v3205, 0
      %v3356 = vsel %vm280, %v3217, 0
      %v3359 = vsel %vm280, %v3229, 0
      %v3362 = vsel %vm280, %v3241, 0
      %v3365 = vsel %vm280, %v3253, 0
      %v3368 = vsel %vm280, %v3265, 0
      %v3371 = vsel %vm280, %v3277, 0
      %v3374 = vsel %vm280, %v3289, 0
      %v3377 = vsel %vm280, %v3301, 0
      %v3380 = vsel %vm280, %v3313, 0
      %v3383 = vsel %vm280, %v3325, 0
      %v3386 = vsel %vm280, %v3337, 0
      %v3389 = vsel %vm661, %v3339, 0
      %3391 = vmatprep.subr.bf16.mxu0 0
      %3392 = vmatpush1.bf16.msra.mxu0 %v3389
      %3393 = vmatprep.subr.bf16.mxu0 0
      %3394 = vmatpush1.bf16.msra.mxu0 0
      %3395 = vmatprep.subr.bf16.mxu0 0
      %3396 = vmatpush1.bf16.msra.mxu0 0
      %3397 = vmatprep.subr.bf16.mxu0 0
      %3398 = vmatpush1.bf16.msra.mxu0 0
      %3399 = vmatprep.subr.bf16.mxu0 0
      %3400 = vmatpush1.bf16.msra.mxu0 0
      %3401 = vmatprep.subr.bf16.mxu0 0
      %3402 = vmatpush1.bf16.msra.mxu0 0
      %3403 = vmatprep.subr.bf16.mxu0 0
      %3404 = vmatpush1.bf16.msra.mxu0 0
      %3405 = vmatprep.subr.bf16.mxu0 0
      %3406 = vmatpush1.bf16.msra.mxu0 0
      %3407 = vmatprep.subr.bf16.mxu0 0
      %3408 = vmatpush1.bf16.msra.mxu0 0
      %3409 = vmatprep.subr.bf16.mxu0 0
      %3410 = vmatpush1.bf16.msra.mxu0 0
      %3411 = vmatprep.subr.bf16.mxu0 0
      %3412 = vmatpush1.bf16.msra.mxu0 0
      %3413 = vmatprep.subr.bf16.mxu0 0
      %3414 = vmatpush1.bf16.msra.mxu0 0
      %3415 = vmatprep.subr.bf16.mxu0 0
      %3416 = vmatpush1.bf16.msra.mxu0 0
      %3417 = vmatprep.subr.bf16.mxu0 0
      %3418 = vmatpush1.bf16.msra.mxu0 0
      %3419 = vmatprep.subr.bf16.mxu0 0
      %3420 = vmatpush1.bf16.msra.mxu0 0
      %3421 = vmatprep.subr.bf16.mxu0 0
      %3422 = vmatpush1.bf16.msra.mxu0 0
      %3423 = vmatprep.mubr.bf16.mxu0 0
      %3424 = vmatmul.mubr.bf16.gmra.mrb[0].mxu0 %v3341
      %v3425 = vpop.f32.mrb[0].mxu0
      %v3426 = vadd.f32 0.0, %v3425
      %v3427 = vpop.f32.mrb[0].mxu0
      %v3428 = vpop.f32.mrb[0].mxu0
      %v3429 = vadd.f32 0.0, %v3428
      %v3430 = vpop.f32.mrb[0].mxu0
      %3431 = vmatprep.mubr.bf16.mxu0 0
      %3432 = vmatmul.mubr.bf16.gmra.mrb[0].mxu0 %v3344
      %v3433 = vpop.f32.mrb[0].mxu0
      %v3434 = vadd.f32 0.0, %v3433
      %v3435 = vpop.f32.mrb[0].mxu0
      %v3436 = vpop.f32.mrb[0].mxu0
      %v3437 = vadd.f32 0.0, %v3436
      %v3438 = vpop.f32.mrb[0].mxu0
      %3439 = vmatprep.mubr.bf16.mxu0 0
      %3440 = vmatmul.mubr.bf16.gmra.mrb[0].mxu0 %v3347
      %v3441 = vpop.f32.mrb[0].mxu0
      %v3442 = vadd.f32 0.0, %v3441
      %v3443 = vpop.f32.mrb[0].mxu0
      %v3444 = vpop.f32.mrb[0].mxu0
      %v3445 = vadd.f32 0.0, %v3444
      %v3446 = vpop.f32.mrb[0].mxu0
      %3447 = vmatprep.mubr.bf16.mxu0 0
      %3448 = vmatmul.mubr.bf16.gmra.mrb[0].mxu0 %v3350
      %v3449 = vpop.f32.mrb[0].mxu0
      %v3450 = vadd.f32 0.0, %v3449
      %v3451 = vpop.f32.mrb[0].mxu0
      %v3452 = vpop.f32.mrb[0].mxu0
      %v3453 = vadd.f32 0.0, %v3452
      %v3454 = vpop.f32.mrb[0].mxu0
      %3455 = vmatprep.mubr.bf16.mxu0 0
      %3456 = vmatmul.mubr.bf16.gmra.mrb[0].mxu0 %v3353
      %v3457 = vpop.f32.mrb[0].mxu0
      %v3458 = vadd.f32 0.0, %v3457
      %v3459 = vpop.f32.mrb[0].mxu0
      %v3460 = vpop.f32.mrb[0].mxu0
      %v3461 = vadd.f32 0.0, %v3460
      %v3462 = vpop.f32.mrb[0].mxu0
      %3463 = vmatprep.mubr.bf16.mxu0 0
      %3464 = vmatmul.mubr.bf16.gmra.mrb[0].mxu0 %v3356
      %v3465 = vpop.f32.mrb[0].mxu0
      %v3466 = vadd.f32 0.0, %v3465
      %v3467 = vpop.f32.mrb[0].mxu0
      %v3468 = vpop.f32.mrb[0].mxu0
      %v3469 = vadd.f32 0.0, %v3468
      %v3470 = vpop.f32.mrb[0].mxu0
      %3471 = vmatprep.mubr.bf16.mxu0 0
      %3472 = vmatmul.mubr.bf16.gmra.mrb[0].mxu0 %v3359
      %v3473 = vpop.f32.mrb[0].mxu0
      %v3474 = vadd.f32 0.0, %v3473
      %v3475 = vpop.f32.mrb[0].mxu0
      %v3476 = vpop.f32.mrb[0].mxu0
      %v3477 = vadd.f32 0.0, %v3476
      %v3478 = vpop.f32.mrb[0].mxu0
      %3479 = vmatprep.mubr.bf16.mxu0 0
      %3480 = vmatmul.mubr.bf16.gmra.mrb[0].mxu0 %v3362
      %v3481 = vpop.f32.mrb[0].mxu0
      %v3482 = vadd.f32 0.0, %v3481
      %v3483 = vpop.f32.mrb[0].mxu0
      %v3484 = vpop.f32.mrb[0].mxu0
      %v3485 = vadd.f32 0.0, %v3484
      %v3486 = vpop.f32.mrb[0].mxu0
      %3487 = vmatprep.mubr.bf16.mxu0 0
      %3488 = vmatmul.mubr.bf16.gmra.mrb[0].mxu0 %v3365
      %v3489 = vpop.f32.mrb[0].mxu0
      %v3490 = vadd.f32 0.0, %v3489
      %v3491 = vpop.f32.mrb[0].mxu0
      %v3492 = vpop.f32.mrb[0].mxu0
      %v3493 = vadd.f32 0.0, %v3492
      %v3494 = vpop.f32.mrb[0].mxu0
      %3495 = vmatprep.mubr.bf16.mxu0 0
      %3496 = vmatmul.mubr.bf16.gmra.mrb[0].mxu0 %v3368
      %v3497 = vpop.f32.mrb[0].mxu0
      %v3498 = vadd.f32 0.0, %v3497
      %v3499 = vpop.f32.mrb[0].mxu0
      %v3500 = vpop.f32.mrb[0].mxu0
      %v3501 = vadd.f32 0.0, %v3500
      %v3502 = vpop.f32.mrb[0].mxu0
      %3503 = vmatprep.mubr.bf16.mxu0 0
      %3504 = vmatmul.mubr.bf16.gmra.mrb[0].mxu0 %v3371
      %v3505 = vpop.f32.mrb[0].mxu0
      %v3506 = vadd.f32 0.0, %v3505
      %v3507 = vpop.f32.mrb[0].mxu0
      %v3508 = vpop.f32.mrb[0].mxu0
      %v3509 = vadd.f32 0.0, %v3508
      %v3510 = vpop.f32.mrb[0].mxu0
      %3511 = vmatprep.mubr.bf16.mxu0 0
      %3512 = vmatmul.mubr.bf16.gmra.mrb[0].mxu0 %v3374
      %v3513 = vpop.f32.mrb[0].mxu0
      %v3514 = vadd.f32 0.0, %v3513
      %v3515 = vpop.f32.mrb[0].mxu0
      %v3516 = vpop.f32.mrb[0].mxu0
      %v3517 = vadd.f32 0.0, %v3516
      %v3518 = vpop.f32.mrb[0].mxu0
      %3519 = vmatprep.mubr.bf16.mxu0 0
      %3520 = vmatmul.mubr.bf16.gmra.mrb[0].mxu0 %v3377
      %v3521 = vpop.f32.mrb[0].mxu0
      %v3522 = vadd.f32 0.0, %v3521
      %v3523 = vpop.f32.mrb[0].mxu0
      %v3524 = vpop.f32.mrb[0].mxu0
      %v3525 = vadd.f32 0.0, %v3524
      %v3526 = vpop.f32.mrb[0].mxu0
      %3527 = vmatprep.mubr.bf16.mxu0 0
      %3528 = vmatmul.mubr.bf16.gmra.mrb[0].mxu0 %v3380
      %v3529 = vpop.f32.mrb[0].mxu0
      %v3530 = vadd.f32 0.0, %v3529
      %v3531 = vpop.f32.mrb[0].mxu0
      %v3532 = vpop.f32.mrb[0].mxu0
      %v3533 = vadd.f32 0.0, %v3532
      %v3534 = vpop.f32.mrb[0].mxu0
      %3535 = vmatprep.mubr.bf16.mxu0 0
      %3536 = vmatmul.mubr.bf16.gmra.mrb[0].mxu0 %v3383
      %v3537 = vpop.f32.mrb[0].mxu0
      %v3538 = vadd.f32 0.0, %v3537
      %v3539 = vpop.f32.mrb[0].mxu0
      %v3540 = vpop.f32.mrb[0].mxu0
      %v3541 = vadd.f32 0.0, %v3540
      %v3542 = vpop.f32.mrb[0].mxu0
      %3543 = vmatprep.mubr.bf16.mxu0 0
      %3544 = vmatmul.mubr.bf16.gmra.mrb[0].mxu0 %v3386
      %v3545 = vpop.f32.mrb[0].mxu0
      %v3546 = vadd.f32 0.0, %v3545
      %v3547 = vpop.f32.mrb[0].mxu0
      %v3548 = vpop.f32.mrb[0].mxu0
      %v3549 = vadd.f32 0.0, %v3548
      %v3550 = vpop.f32.mrb[0].mxu0
      %3551 = vdwg.mxu0
      %v3552 = vld [vmem:[#allocation3] sm:$0xff]
      %v3553 = vld [vmem:[#allocation3 + $0x8] sm:$0xff]
      %v3554 = vld [vmem:[#allocation3 + $0x10] sm:$0xff]
      %v3555 = vld [vmem:[#allocation3 + $0x18] sm:$0xff]
      %v3556 = vld [vmem:[#allocation3 + $0x20] sm:$0xff]
      %v3557 = vld [vmem:[#allocation3 + $0x28] sm:$0xff]
      %v3558 = vld [vmem:[#allocation3 + $0x30] sm:$0xff]
      %v3559 = vld [vmem:[#allocation3 + $0x38] sm:$0xff]
      %v3560 = vld [vmem:[#allocation3 + $0x40] sm:$0xff]
      %v3561 = vld [vmem:[#allocation3 + $0x48] sm:$0xff]
      %v3562 = vld [vmem:[#allocation3 + $0x50] sm:$0xff]
      %v3563 = vld [vmem:[#allocation3 + $0x58] sm:$0xff]
      %v3564 = vld [vmem:[#allocation3 + $0x60] sm:$0xff]
      %v3565 = vld [vmem:[#allocation3 + $0x68] sm:$0xff]
      %v3566 = vld [vmem:[#allocation3 + $0x70] sm:$0xff]
      %v3567 = vld [vmem:[#allocation3 + $0x78] sm:$0xff]
      %v3568 = vld [vmem:[#allocation3 + $0x80] sm:$0xff]
      %v3569 = vld [vmem:[#allocation3 + $0x88] sm:$0xff]
      %v3570 = vld [vmem:[#allocation3 + $0x90] sm:$0xff]
      %v3571 = vld [vmem:[#allocation3 + $0x98] sm:$0xff]
      %v3572 = vld [vmem:[#allocation3 + $0xa0] sm:$0xff]
      %v3573 = vld [vmem:[#allocation3 + $0xa8] sm:$0xff]
      %v3574 = vld [vmem:[#allocation3 + $0xb0] sm:$0xff]
      %v3575 = vld [vmem:[#allocation3 + $0xb8] sm:$0xff]
      %v3576 = vld [vmem:[#allocation3 + $0xc0] sm:$0xff]
      %v3577 = vld [vmem:[#allocation3 + $0xc8] sm:$0xff]
      %v3578 = vld [vmem:[#allocation3 + $0xd0] sm:$0xff]
      %v3579 = vld [vmem:[#allocation3 + $0xd8] sm:$0xff]
      %v3580 = vld [vmem:[#allocation3 + $0xe0] sm:$0xff]
      %v3581 = vld [vmem:[#allocation3 + $0xe8] sm:$0xff]
      %v3582 = vld [vmem:[#allocation3 + $0xf0] sm:$0xff]
      %v3583 = vld [vmem:[#allocation3 + $0xf8] sm:$0xff]
      %v3584 = vadd.f32 %v3552, %v3426
      %v3585 = vadd.f32 %v3553, %v3429
      %v3586 = vadd.f32 %v3554, %v3434
      %v3587 = vadd.f32 %v3555, %v3437
      %v3588 = vadd.f32 %v3556, %v3442
      %v3589 = vadd.f32 %v3557, %v3445
      %v3590 = vadd.f32 %v3558, %v3450
      %v3591 = vadd.f32 %v3559, %v3453
      %v3592 = vadd.f32 %v3560, %v3458
      %v3593 = vadd.f32 %v3561, %v3461
      %v3594 = vadd.f32 %v3562, %v3466
      %v3595 = vadd.f32 %v3563, %v3469
      %v3596 = vadd.f32 %v3564, %v3474
      %v3597 = vadd.f32 %v3565, %v3477
      %v3598 = vadd.f32 %v3566, %v3482
      %v3599 = vadd.f32 %v3567, %v3485
      %v3600 = vadd.f32 %v3568, %v3490
      %v3601 = vadd.f32 %v3569, %v3493
      %v3602 = vadd.f32 %v3570, %v3498
      %v3603 = vadd.f32 %v3571, %v3501
      %v3604 = vadd.f32 %v3572, %v3506
      %v3605 = vadd.f32 %v3573, %v3509
      %v3606 = vadd.f32 %v3574, %v3514
      %v3607 = vadd.f32 %v3575, %v3517
      %v3608 = vadd.f32 %v3576, %v3522
      %v3609 = vadd.f32 %v3577, %v3525
      %v3610 = vadd.f32 %v3578, %v3530
      %v3611 = vadd.f32 %v3579, %v3533
      %v3612 = vadd.f32 %v3580, %v3538
      %v3613 = vadd.f32 %v3581, %v3541
      %v3614 = vadd.f32 %v3582, %v3546
      %v3615 = vadd.f32 %v3583, %v3549
      %3616 = vst.msk [vmem:[#allocation3] sm:$0xff] %vm280, %v3584
      %3617 = vst.msk [vmem:[#allocation3 + $0x8] sm:$0xff] %vm280, %v3585
      %3618 = vst.msk [vmem:[#allocation3 + $0x10] sm:$0xff] %vm280, %v3586
      %3619 = vst.msk [vmem:[#allocation3 + $0x18] sm:$0xff] %vm280, %v3587
      %3620 = vst.msk [vmem:[#allocation3 + $0x20] sm:$0xff] %vm280, %v3588
      %3621 = vst.msk [vmem:[#allocation3 + $0x28] sm:$0xff] %vm280, %v3589
      %3622 = vst.msk [vmem:[#allocation3 + $0x30] sm:$0xff] %vm280, %v3590
      %3623 = vst.msk [vmem:[#allocation3 + $0x38] sm:$0xff] %vm280, %v3591
      %3624 = vst.msk [vmem:[#allocation3 + $0x40] sm:$0xff] %vm280, %v3592
      %3625 = vst.msk [vmem:[#allocation3 + $0x48] sm:$0xff] %vm280, %v3593
      %3626 = vst.msk [vmem:[#allocation3 + $0x50] sm:$0xff] %vm280, %v3594
      %3627 = vst.msk [vmem:[#allocation3 + $0x58] sm:$0xff] %vm280, %v3595
      %3628 = vst.msk [vmem:[#allocation3 + $0x60] sm:$0xff] %vm280, %v3596
      %3629 = vst.msk [vmem:[#allocation3 + $0x68] sm:$0xff] %vm280, %v3597
      %3630 = vst.msk [vmem:[#allocation3 + $0x70] sm:$0xff] %vm280, %v3598
      %3631 = vst.msk [vmem:[#allocation3 + $0x78] sm:$0xff] %vm280, %v3599
      %3632 = vst.msk [vmem:[#allocation3 + $0x80] sm:$0xff] %vm280, %v3600
      %3633 = vst.msk [vmem:[#allocation3 + $0x88] sm:$0xff] %vm280, %v3601
      %3634 = vst.msk [vmem:[#allocation3 + $0x90] sm:$0xff] %vm280, %v3602
      %3635 = vst.msk [vmem:[#allocation3 + $0x98] sm:$0xff] %vm280, %v3603
      %3636 = vst.msk [vmem:[#allocation3 + $0xa0] sm:$0xff] %vm280, %v3604
      %3637 = vst.msk [vmem:[#allocation3 + $0xa8] sm:$0xff] %vm280, %v3605
      %3638 = vst.msk [vmem:[#allocation3 + $0xb0] sm:$0xff] %vm280, %v3606
      %3639 = vst.msk [vmem:[#allocation3 + $0xb8] sm:$0xff] %vm280, %v3607
      %3640 = vst.msk [vmem:[#allocation3 + $0xc0] sm:$0xff] %vm280, %v3608
      %3641 = vst.msk [vmem:[#allocation3 + $0xc8] sm:$0xff] %vm280, %v3609
      %3642 = vst.msk [vmem:[#allocation3 + $0xd0] sm:$0xff] %vm280, %v3610
      %3643 = vst.msk [vmem:[#allocation3 + $0xd8] sm:$0xff] %vm280, %v3611
      %3644 = vst.msk [vmem:[#allocation3 + $0xe0] sm:$0xff] %vm280, %v3612
      %3645 = vst.msk [vmem:[#allocation3 + $0xe8] sm:$0xff] %vm280, %v3613
      %3646 = vst.msk [vmem:[#allocation3 + $0xf0] sm:$0xff] %vm280, %v3614
      %3647 = vst.msk [vmem:[#allocation3 + $0xf8] sm:$0xff] %vm280, %v3615
      %v3648 = vld [vmem:[%s3113 + $0x8] sm:$0xff]
      %v3649 = vld [vmem:[%s3113 + $0x20] sm:$0xff]
      %v3650 = vld [vmem:[%s3113 + $0x38] sm:$0xff]
      %v3651 = vld [vmem:[%s3113 + $0x50] sm:$0xff]
      %v3652 = vld [vmem:[%s3113 + $0x68] sm:$0xff]
      %v3653 = vld [vmem:[%s3113 + $0x80] sm:$0xff]
      %v3654 = vld [vmem:[%s3113 + $0x98] sm:$0xff]
      %v3655 = vld [vmem:[%s3113 + $0xb0] sm:$0xff]
      %v3656 = vld [vmem:[%s3113 + $0xc8] sm:$0xff]
      %v3657 = vld [vmem:[%s3113 + $0xe0] sm:$0xff]
      %v3658 = vld [vmem:[%s3113 + $0xf8] sm:$0xff]
      %v3659 = vld [vmem:[%s3113 + $0x110] sm:$0xff]
      %v3660 = vld [vmem:[%s3113 + $0x128] sm:$0xff]
      %v3661 = vld [vmem:[%s3113 + $0x140] sm:$0xff]
      %v3662 = vld [vmem:[%s3113 + $0x158] sm:$0xff]
      %v3663 = vld [vmem:[%s3113 + $0x170] sm:$0xff]
      %s3664 = scalar_lea.vmem %s1, 14
      %v3665 = vld [vmem:[%s3664] sm:$0x3]
      %v3667 = vsel %vm280, %v3648, 0
      %v3670 = vsel %vm280, %v3649, 0
      %v3673 = vsel %vm280, %v3650, 0
      %v3676 = vsel %vm280, %v3651, 0
      %v3679 = vsel %vm280, %v3652, 0
      %v3682 = vsel %vm280, %v3653, 0
      %v3685 = vsel %vm280, %v3654, 0
      %v3688 = vsel %vm280, %v3655, 0
      %v3691 = vsel %vm280, %v3656, 0
      %v3694 = vsel %vm280, %v3657, 0
      %v3697 = vsel %vm280, %v3658, 0
      %v3700 = vsel %vm280, %v3659, 0
      %v3703 = vsel %vm280, %v3660, 0
      %v3706 = vsel %vm280, %v3661, 0
      %v3709 = vsel %vm280, %v3662, 0
      %v3712 = vsel %vm280, %v3663, 0
      %v3715 = vsel %vm661, %v3665, 0
      %3717 = vmatprep.subr.bf16.mxu0 0
      %3718 = vmatpush1.bf16.msra.mxu0 %v3715
      %3719 = vmatprep.subr.bf16.mxu0 0
      %3720 = vmatpush1.bf16.msra.mxu0 0
      %3721 = vmatprep.subr.bf16.mxu0 0
      %3722 = vmatpush1.bf16.msra.mxu0 0
      %3723 = vmatprep.subr.bf16.mxu0 0
      %3724 = vmatpush1.bf16.msra.mxu0 0
      %3725 = vmatprep.subr.bf16.mxu0 0
      %3726 = vmatpush1.bf16.msra.mxu0 0
      %3727 = vmatprep.subr.bf16.mxu0 0
      %3728 = vmatpush1.bf16.msra.mxu0 0
      %3729 = vmatprep.subr.bf16.mxu0 0
      %3730 = vmatpush1.bf16.msra.mxu0 0
      %3731 = vmatprep.subr.bf16.mxu0 0
      %3732 = vmatpush1.bf16.msra.mxu0 0
      %3733 = vmatprep.subr.bf16.mxu0 0
      %3734 = vmatpush1.bf16.msra.mxu0 0
      %3735 = vmatprep.subr.bf16.mxu0 0
      %3736 = vmatpush1.bf16.msra.mxu0 0
      %3737 = vmatprep.subr.bf16.mxu0 0
      %3738 = vmatpush1.bf16.msra.mxu0 0
      %3739 = vmatprep.subr.bf16.mxu0 0
      %3740 = vmatpush1.bf16.msra.mxu0 0
      %3741 = vmatprep.subr.bf16.mxu0 0
      %3742 = vmatpush1.bf16.msra.mxu0 0
      %3743 = vmatprep.subr.bf16.mxu0 0
      %3744 = vmatpush1.bf16.msra.mxu0 0
      %3745 = vmatprep.subr.bf16.mxu0 0
      %3746 = vmatpush1.bf16.msra.mxu0 0
      %3747 = vmatprep.subr.bf16.mxu0 0
      %3748 = vmatpush1.bf16.msra.mxu0 0
      %3749 = vmatprep.mubr.bf16.mxu0 0
      %3750 = vmatmul.mubr.bf16.gmra.mrb[0].mxu0 %v3667
      %v3751 = vpop.f32.mrb[0].mxu0
      %v3752 = vadd.f32 0.0, %v3751
      %v3753 = vpop.f32.mrb[0].mxu0
      %v3754 = vpop.f32.mrb[0].mxu0
      %v3755 = vadd.f32 0.0, %v3754
      %v3756 = vpop.f32.mrb[0].mxu0
      %3757 = vmatprep.mubr.bf16.mxu0 0
      %3758 = vmatmul.mubr.bf16.gmra.mrb[0].mxu0 %v3670
      %v3759 = vpop.f32.mrb[0].mxu0
      %v3760 = vadd.f32 0.0, %v3759
      %v3761 = vpop.f32.mrb[0].mxu0
      %v3762 = vpop.f32.mrb[0].mxu0
      %v3763 = vadd.f32 0.0, %v3762
      %v3764 = vpop.f32.mrb[0].mxu0
      %3765 = vmatprep.mubr.bf16.mxu0 0
      %3766 = vmatmul.mubr.bf16.gmra.mrb[0].mxu0 %v3673
      %v3767 = vpop.f32.mrb[0].mxu0
      %v3768 = vadd.f32 0.0, %v3767
      %v3769 = vpop.f32.mrb[0].mxu0
      %v3770 = vpop.f32.mrb[0].mxu0
      %v3771 = vadd.f32 0.0, %v3770
      %v3772 = vpop.f32.mrb[0].mxu0
      %3773 = vmatprep.mubr.bf16.mxu0 0
      %3774 = vmatmul.mubr.bf16.gmra.mrb[0].mxu0 %v3676
      %v3775 = vpop.f32.mrb[0].mxu0
      %v3776 = vadd.f32 0.0, %v3775
      %v3777 = vpop.f32.mrb[0].mxu0
      %v3778 = vpop.f32.mrb[0].mxu0
      %v3779 = vadd.f32 0.0, %v3778
      %v3780 = vpop.f32.mrb[0].mxu0
      %3781 = vmatprep.mubr.bf16.mxu0 0
      %3782 = vmatmul.mubr.bf16.gmra.mrb[0].mxu0 %v3679
      %v3783 = vpop.f32.mrb[0].mxu0
      %v3784 = vadd.f32 0.0, %v3783
      %v3785 = vpop.f32.mrb[0].mxu0
      %v3786 = vpop.f32.mrb[0].mxu0
      %v3787 = vadd.f32 0.0, %v3786
      %v3788 = vpop.f32.mrb[0].mxu0
      %3789 = vmatprep.mubr.bf16.mxu0 0
      %3790 = vmatmul.mubr.bf16.gmra.mrb[0].mxu0 %v3682
      %v3791 = vpop.f32.mrb[0].mxu0
      %v3792 = vadd.f32 0.0, %v3791
      %v3793 = vpop.f32.mrb[0].mxu0
      %v3794 = vpop.f32.mrb[0].mxu0
      %v3795 = vadd.f32 0.0, %v3794
      %v3796 = vpop.f32.mrb[0].mxu0
      %3797 = vmatprep.mubr.bf16.mxu0 0
      %3798 = vmatmul.mubr.bf16.gmra.mrb[0].mxu0 %v3685
      %v3799 = vpop.f32.mrb[0].mxu0
      %v3800 = vadd.f32 0.0, %v3799
      %v3801 = vpop.f32.mrb[0].mxu0
      %v3802 = vpop.f32.mrb[0].mxu0
      %v3803 = vadd.f32 0.0, %v3802
      %v3804 = vpop.f32.mrb[0].mxu0
      %3805 = vmatprep.mubr.bf16.mxu0 0
      %3806 = vmatmul.mubr.bf16.gmra.mrb[0].mxu0 %v3688
      %v3807 = vpop.f32.mrb[0].mxu0
      %v3808 = vadd.f32 0.0, %v3807
      %v3809 = vpop.f32.mrb[0].mxu0
      %v3810 = vpop.f32.mrb[0].mxu0
      %v3811 = vadd.f32 0.0, %v3810
      %v3812 = vpop.f32.mrb[0].mxu0
      %3813 = vmatprep.mubr.bf16.mxu0 0
      %3814 = vmatmul.mubr.bf16.gmra.mrb[0].mxu0 %v3691
      %v3815 = vpop.f32.mrb[0].mxu0
      %v3816 = vadd.f32 0.0, %v3815
      %v3817 = vpop.f32.mrb[0].mxu0
      %v3818 = vpop.f32.mrb[0].mxu0
      %v3819 = vadd.f32 0.0, %v3818
      %v3820 = vpop.f32.mrb[0].mxu0
      %3821 = vmatprep.mubr.bf16.mxu0 0
      %3822 = vmatmul.mubr.bf16.gmra.mrb[0].mxu0 %v3694
      %v3823 = vpop.f32.mrb[0].mxu0
      %v3824 = vadd.f32 0.0, %v3823
      %v3825 = vpop.f32.mrb[0].mxu0
      %v3826 = vpop.f32.mrb[0].mxu0
      %v3827 = vadd.f32 0.0, %v3826
      %v3828 = vpop.f32.mrb[0].mxu0
      %3829 = vmatprep.mubr.bf16.mxu0 0
      %3830 = vmatmul.mubr.bf16.gmra.mrb[0].mxu0 %v3697
      %v3831 = vpop.f32.mrb[0].mxu0
      %v3832 = vadd.f32 0.0, %v3831
      %v3833 = vpop.f32.mrb[0].mxu0
      %v3834 = vpop.f32.mrb[0].mxu0
      %v3835 = vadd.f32 0.0, %v3834
      %v3836 = vpop.f32.mrb[0].mxu0
      %3837 = vmatprep.mubr.bf16.mxu0 0
      %3838 = vmatmul.mubr.bf16.gmra.mrb[0].mxu0 %v3700
      %v3839 = vpop.f32.mrb[0].mxu0
      %v3840 = vadd.f32 0.0, %v3839
      %v3841 = vpop.f32.mrb[0].mxu0
      %v3842 = vpop.f32.mrb[0].mxu0
      %v3843 = vadd.f32 0.0, %v3842
      %v3844 = vpop.f32.mrb[0].mxu0
      %3845 = vmatprep.mubr.bf16.mxu0 0
      %3846 = vmatmul.mubr.bf16.gmra.mrb[0].mxu0 %v3703
      %v3847 = vpop.f32.mrb[0].mxu0
      %v3848 = vadd.f32 0.0, %v3847
      %v3849 = vpop.f32.mrb[0].mxu0
      %v3850 = vpop.f32.mrb[0].mxu0
      %v3851 = vadd.f32 0.0, %v3850
      %v3852 = vpop.f32.mrb[0].mxu0
      %3853 = vmatprep.mubr.bf16.mxu0 0
      %3854 = vmatmul.mubr.bf16.gmra.mrb[0].mxu0 %v3706
      %v3855 = vpop.f32.mrb[0].mxu0
      %v3856 = vadd.f32 0.0, %v3855
      %v3857 = vpop.f32.mrb[0].mxu0
      %v3858 = vpop.f32.mrb[0].mxu0
      %v3859 = vadd.f32 0.0, %v3858
      %v3860 = vpop.f32.mrb[0].mxu0
      %3861 = vmatprep.mubr.bf16.mxu0 0
      %3862 = vmatmul.mubr.bf16.gmra.mrb[0].mxu0 %v3709
      %v3863 = vpop.f32.mrb[0].mxu0
      %v3864 = vadd.f32 0.0, %v3863
      %v3865 = vpop.f32.mrb[0].mxu0
      %v3866 = vpop.f32.mrb[0].mxu0
      %v3867 = vadd.f32 0.0, %v3866
      %v3868 = vpop.f32.mrb[0].mxu0
      %3869 = vmatprep.mubr.bf16.mxu0 0
      %3870 = vmatmul.mubr.bf16.gmra.mrb[0].mxu0 %v3712
      %v3871 = vpop.f32.mrb[0].mxu0
      %v3872 = vadd.f32 0.0, %v3871
      %v3873 = vpop.f32.mrb[0].mxu0
      %v3874 = vpop.f32.mrb[0].mxu0
      %v3875 = vadd.f32 0.0, %v3874
      %v3876 = vpop.f32.mrb[0].mxu0
      %3877 = vdwg.mxu0
      %v3878 = vld [vmem:[#allocation3] sm:$0xff]
      %v3879 = vld [vmem:[#allocation3 + $0x8] sm:$0xff]
      %v3880 = vld [vmem:[#allocation3 + $0x10] sm:$0xff]
      %v3881 = vld [vmem:[#allocation3 + $0x18] sm:$0xff]
      %v3882 = vld [vmem:[#allocation3 + $0x20] sm:$0xff]
      %v3883 = vld [vmem:[#allocation3 + $0x28] sm:$0xff]
      %v3884 = vld [vmem:[#allocation3 + $0x30] sm:$0xff]
      %v3885 = vld [vmem:[#allocation3 + $0x38] sm:$0xff]
      %v3886 = vld [vmem:[#allocation3 + $0x40] sm:$0xff]
      %v3887 = vld [vmem:[#allocation3 + $0x48] sm:$0xff]
      %v3888 = vld [vmem:[#allocation3 + $0x50] sm:$0xff]
      %v3889 = vld [vmem:[#allocation3 + $0x58] sm:$0xff]
      %v3890 = vld [vmem:[#allocation3 + $0x60] sm:$0xff]
      %v3891 = vld [vmem:[#allocation3 + $0x68] sm:$0xff]
      %v3892 = vld [vmem:[#allocation3 + $0x70] sm:$0xff]
      %v3893 = vld [vmem:[#allocation3 + $0x78] sm:$0xff]
      %v3894 = vld [vmem:[#allocation3 + $0x80] sm:$0xff]
      %v3895 = vld [vmem:[#allocation3 + $0x88] sm:$0xff]
      %v3896 = vld [vmem:[#allocation3 + $0x90] sm:$0xff]
      %v3897 = vld [vmem:[#allocation3 + $0x98] sm:$0xff]
      %v3898 = vld [vmem:[#allocation3 + $0xa0] sm:$0xff]
      %v3899 = vld [vmem:[#allocation3 + $0xa8] sm:$0xff]
      %v3900 = vld [vmem:[#allocation3 + $0xb0] sm:$0xff]
      %v3901 = vld [vmem:[#allocation3 + $0xb8] sm:$0xff]
      %v3902 = vld [vmem:[#allocation3 + $0xc0] sm:$0xff]
      %v3903 = vld [vmem:[#allocation3 + $0xc8] sm:$0xff]
      %v3904 = vld [vmem:[#allocation3 + $0xd0] sm:$0xff]
      %v3905 = vld [vmem:[#allocation3 + $0xd8] sm:$0xff]
      %v3906 = vld [vmem:[#allocation3 + $0xe0] sm:$0xff]
      %v3907 = vld [vmem:[#allocation3 + $0xe8] sm:$0xff]
      %v3908 = vld [vmem:[#allocation3 + $0xf0] sm:$0xff]
      %v3909 = vld [vmem:[#allocation3 + $0xf8] sm:$0xff]
      %v3910 = vadd.f32 %v3878, %v3752
      %v3911 = vadd.f32 %v3879, %v3755
      %v3912 = vadd.f32 %v3880, %v3760
      %v3913 = vadd.f32 %v3881, %v3763
      %v3914 = vadd.f32 %v3882, %v3768
      %v3915 = vadd.f32 %v3883, %v3771
      %v3916 = vadd.f32 %v3884, %v3776
      %v3917 = vadd.f32 %v3885, %v3779
      %v3918 = vadd.f32 %v3886, %v3784
      %v3919 = vadd.f32 %v3887, %v3787
      %v3920 = vadd.f32 %v3888, %v3792
      %v3921 = vadd.f32 %v3889, %v3795
      %v3922 = vadd.f32 %v3890, %v3800
      %v3923 = vadd.f32 %v3891, %v3803
      %v3924 = vadd.f32 %v3892, %v3808
      %v3925 = vadd.f32 %v3893, %v3811
      %v3926 = vadd.f32 %v3894, %v3816
      %v3927 = vadd.f32 %v3895, %v3819
      %v3928 = vadd.f32 %v3896, %v3824
      %v3929 = vadd.f32 %v3897, %v3827
      %v3930 = vadd.f32 %v3898, %v3832
      %v3931 = vadd.f32 %v3899, %v3835
      %v3932 = vadd.f32 %v3900, %v3840
      %v3933 = vadd.f32 %v3901, %v3843
      %v3934 = vadd.f32 %v3902, %v3848
      %v3935 = vadd.f32 %v3903, %v3851
      %v3936 = vadd.f32 %v3904, %v3856
      %v3937 = vadd.f32 %v3905, %v3859
      %v3938 = vadd.f32 %v3906, %v3864
      %v3939 = vadd.f32 %v3907, %v3867
      %v3940 = vadd.f32 %v3908, %v3872
      %v3941 = vadd.f32 %v3909, %v3875
      %3942 = vst.msk [vmem:[#allocation3] sm:$0xff] %vm280, %v3910
      %3943 = vst.msk [vmem:[#allocation3 + $0x8] sm:$0xff] %vm280, %v3911
      %3944 = vst.msk [vmem:[#allocation3 + $0x10] sm:$0xff] %vm280, %v3912
      %3945 = vst.msk [vmem:[#allocation3 + $0x18] sm:$0xff] %vm280, %v3913
      %3946 = vst.msk [vmem:[#allocation3 + $0x20] sm:$0xff] %vm280, %v3914
      %3947 = vst.msk [vmem:[#allocation3 + $0x28] sm:$0xff] %vm280, %v3915
      %3948 = vst.msk [vmem:[#allocation3 + $0x30] sm:$0xff] %vm280, %v3916
      %3949 = vst.msk [vmem:[#allocation3 + $0x38] sm:$0xff] %vm280, %v3917
      %3950 = vst.msk [vmem:[#allocation3 + $0x40] sm:$0xff] %vm280, %v3918
      %3951 = vst.msk [vmem:[#allocation3 + $0x48] sm:$0xff] %vm280, %v3919
      %3952 = vst.msk [vmem:[#allocation3 + $0x50] sm:$0xff] %vm280, %v3920
      %3953 = vst.msk [vmem:[#allocation3 + $0x58] sm:$0xff] %vm280, %v3921
      %3954 = vst.msk [vmem:[#allocation3 + $0x60] sm:$0xff] %vm280, %v3922
      %3955 = vst.msk [vmem:[#allocation3 + $0x68] sm:$0xff] %vm280, %v3923
      %3956 = vst.msk [vmem:[#allocation3 + $0x70] sm:$0xff] %vm280, %v3924
      %3957 = vst.msk [vmem:[#allocation3 + $0x78] sm:$0xff] %vm280, %v3925
      %3958 = vst.msk [vmem:[#allocation3 + $0x80] sm:$0xff] %vm280, %v3926
      %3959 = vst.msk [vmem:[#allocation3 + $0x88] sm:$0xff] %vm280, %v3927
      %3960 = vst.msk [vmem:[#allocation3 + $0x90] sm:$0xff] %vm280, %v3928
      %3961 = vst.msk [vmem:[#allocation3 + $0x98] sm:$0xff] %vm280, %v3929
      %3962 = vst.msk [vmem:[#allocation3 + $0xa0] sm:$0xff] %vm280, %v3930
      %3963 = vst.msk [vmem:[#allocation3 + $0xa8] sm:$0xff] %vm280, %v3931
      %3964 = vst.msk [vmem:[#allocation3 + $0xb0] sm:$0xff] %vm280, %v3932
      %3965 = vst.msk [vmem:[#allocation3 + $0xb8] sm:$0xff] %vm280, %v3933
      %3966 = vst.msk [vmem:[#allocation3 + $0xc0] sm:$0xff] %vm280, %v3934
      %3967 = vst.msk [vmem:[#allocation3 + $0xc8] sm:$0xff] %vm280, %v3935
      %3968 = vst.msk [vmem:[#allocation3 + $0xd0] sm:$0xff] %vm280, %v3936
      %3969 = vst.msk [vmem:[#allocation3 + $0xd8] sm:$0xff] %vm280, %v3937
      %3970 = vst.msk [vmem:[#allocation3 + $0xe0] sm:$0xff] %vm280, %v3938
      %3971 = vst.msk [vmem:[#allocation3 + $0xe8] sm:$0xff] %vm280, %v3939
      %3972 = vst.msk [vmem:[#allocation3 + $0xf0] sm:$0xff] %vm280, %v3940
      %3973 = vst.msk [vmem:[#allocation3 + $0xf8] sm:$0xff] %vm280, %v3941
      %v3974 = vld [vmem:[%s3113 + $0x8] sm:$0xff]
      %v3975 = vld [vmem:[%s3113 + $0x10] sm:$0x1]
      %v3976 = vld [vmem:[%s3113 + $0x20] sm:$0xff]
      %v3977 = vld [vmem:[%s3113 + $0x28] sm:$0x1]
      %v3978 = vld [vmem:[%s3113 + $0x38] sm:$0xff]
      %v3979 = vld [vmem:[%s3113 + $0x40] sm:$0x1]
      %v3980 = vld [vmem:[%s3113 + $0x50] sm:$0xff]
      %v3981 = vld [vmem:[%s3113 + $0x58] sm:$0x1]
      %v3982 = vld [vmem:[%s3113 + $0x68] sm:$0xff]
      %v3983 = vld [vmem:[%s3113 + $0x70] sm:$0x1]
      %v3984 = vld [vmem:[%s3113 + $0x80] sm:$0xff]
      %v3985 = vld [vmem:[%s3113 + $0x88] sm:$0x1]
      %v3986 = vld [vmem:[%s3113 + $0x98] sm:$0xff]
      %v3987 = vld [vmem:[%s3113 + $0xa0] sm:$0x1]
      %v3988 = vld [vmem:[%s3113 + $0xb0] sm:$0xff]
      %v3989 = vld [vmem:[%s3113 + $0xb8] sm:$0x1]
      %v3990 = vld [vmem:[%s3113 + $0xc8] sm:$0xff]
      %v3991 = vld [vmem:[%s3113 + $0xd0] sm:$0x1]
      %v3992 = vld [vmem:[%s3113 + $0xe0] sm:$0xff]
      %v3993 = vld [vmem:[%s3113 + $0xe8] sm:$0x1]
      %v3994 = vld [vmem:[%s3113 + $0xf8] sm:$0xff]
      %v3995 = vld [vmem:[%s3113 + $0x100] sm:$0x1]
      %v3996 = vld [vmem:[%s3113 + $0x110] sm:$0xff]
      %v3997 = vld [vmem:[%s3113 + $0x118] sm:$0x1]
      %v3998 = vld [vmem:[%s3113 + $0x128] sm:$0xff]
      %v3999 = vld [vmem:[%s3113 + $0x130] sm:$0x1]
      %v4000 = vld [vmem:[%s3113 + $0x140] sm:$0xff]
      %v4001 = vld [vmem:[%s3113 + $0x148] sm:$0x1]
      %v4002 = vld [vmem:[%s3113 + $0x158] sm:$0xff]
      %v4003 = vld [vmem:[%s3113 + $0x160] sm:$0x1]
      %v4004 = vld [vmem:[%s3113 + $0x170] sm:$0xff]
      %v4005 = vld [vmem:[%s3113 + $0x178] sm:$0x1]
      %v4007 = vshrl.u32 %v3974, 16
      %v4009 = vshll.u32 %v3974, 16
      %v4011 = vrot.slane %v4009, 1
      %v4012 = vor.u32 %v4007, %v4011
      %v4014 = vshll.u32 %v3975, 16
      %v4016 = vrot.slane %v4014, 1
      %v4017 = vsel %vm1216, %v4012, %v4016
      %v4019 = vshrl.u32 %v3976, 16
      %v4021 = vshll.u32 %v3976, 16
      %v4023 = vrot.slane %v4021, 1
      %v4024 = vor.u32 %v4019, %v4023
      %v4026 = vshll.u32 %v3977, 16
      %v4028 = vrot.slane %v4026, 1
      %v4029 = vsel %vm1216, %v4024, %v4028
      %v4031 = vshrl.u32 %v3978, 16
      %v4033 = vshll.u32 %v3978, 16
      %v4035 = vrot.slane %v4033, 1
      %v4036 = vor.u32 %v4031, %v4035
      %v4038 = vshll.u32 %v3979, 16
      %v4040 = vrot.slane %v4038, 1
      %v4041 = vsel %vm1216, %v4036, %v4040
      %v4043 = vshrl.u32 %v3980, 16
      %v4045 = vshll.u32 %v3980, 16
      %v4047 = vrot.slane %v4045, 1
      %v4048 = vor.u32 %v4043, %v4047
      %v4050 = vshll.u32 %v3981, 16
      %v4052 = vrot.slane %v4050, 1
      %v4053 = vsel %vm1216, %v4048, %v4052
      %v4055 = vshrl.u32 %v3982, 16
      %v4057 = vshll.u32 %v3982, 16
      %v4059 = vrot.slane %v4057, 1
      %v4060 = vor.u32 %v4055, %v4059
      %v4062 = vshll.u32 %v3983, 16
      %v4064 = vrot.slane %v4062, 1
      %v4065 = vsel %vm1216, %v4060, %v4064
      %v4067 = vshrl.u32 %v3984, 16
      %v4069 = vshll.u32 %v3984, 16
      %v4071 = vrot.slane %v4069, 1
      %v4072 = vor.u32 %v4067, %v4071
      %v4074 = vshll.u32 %v3985, 16
      %v4076 = vrot.slane %v4074, 1
      %v4077 = vsel %vm1216, %v4072, %v4076
      %v4079 = vshrl.u32 %v3986, 16
      %v4081 = vshll.u32 %v3986, 16
      %v4083 = vrot.slane %v4081, 1
      %v4084 = vor.u32 %v4079, %v4083
      %v4086 = vshll.u32 %v3987, 16
      %v4088 = vrot.slane %v4086, 1
      %v4089 = vsel %vm1216, %v4084, %v4088
      %v4091 = vshrl.u32 %v3988, 16
      %v4093 = vshll.u32 %v3988, 16
      %v4095 = vrot.slane %v4093, 1
      %v4096 = vor.u32 %v4091, %v4095
      %v4098 = vshll.u32 %v3989, 16
      %v4100 = vrot.slane %v4098, 1
      %v4101 = vsel %vm1216, %v4096, %v4100
      %v4103 = vshrl.u32 %v3990, 16
      %v4105 = vshll.u32 %v3990, 16
      %v4107 = vrot.slane %v4105, 1
      %v4108 = vor.u32 %v4103, %v4107
      %v4110 = vshll.u32 %v3991, 16
      %v4112 = vrot.slane %v4110, 1
      %v4113 = vsel %vm1216, %v4108, %v4112
      %v4115 = vshrl.u32 %v3992, 16
      %v4117 = vshll.u32 %v3992, 16
      %v4119 = vrot.slane %v4117, 1
      %v4120 = vor.u32 %v4115, %v4119
      %v4122 = vshll.u32 %v3993, 16
      %v4124 = vrot.slane %v4122, 1
      %v4125 = vsel %vm1216, %v4120, %v4124
      %v4127 = vshrl.u32 %v3994, 16
      %v4129 = vshll.u32 %v3994, 16
      %v4131 = vrot.slane %v4129, 1
      %v4132 = vor.u32 %v4127, %v4131
      %v4134 = vshll.u32 %v3995, 16
      %v4136 = vrot.slane %v4134, 1
      %v4137 = vsel %vm1216, %v4132, %v4136
      %v4139 = vshrl.u32 %v3996, 16
      %v4141 = vshll.u32 %v3996, 16
      %v4143 = vrot.slane %v4141, 1
      %v4144 = vor.u32 %v4139, %v4143
      %v4146 = vshll.u32 %v3997, 16
      %v4148 = vrot.slane %v4146, 1
      %v4149 = vsel %vm1216, %v4144, %v4148
      %v4151 = vshrl.u32 %v3998, 16
      %v4153 = vshll.u32 %v3998, 16
      %v4155 = vrot.slane %v4153, 1
      %v4156 = vor.u32 %v4151, %v4155
      %v4158 = vshll.u32 %v3999, 16
      %v4160 = vrot.slane %v4158, 1
      %v4161 = vsel %vm1216, %v4156, %v4160
      %v4163 = vshrl.u32 %v4000, 16
      %v4165 = vshll.u32 %v4000, 16
      %v4167 = vrot.slane %v4165, 1
      %v4168 = vor.u32 %v4163, %v4167
      %v4170 = vshll.u32 %v4001, 16
      %v4172 = vrot.slane %v4170, 1
      %v4173 = vsel %vm1216, %v4168, %v4172
      %v4175 = vshrl.u32 %v4002, 16
      %v4177 = vshll.u32 %v4002, 16
      %v4179 = vrot.slane %v4177, 1
      %v4180 = vor.u32 %v4175, %v4179
      %v4182 = vshll.u32 %v4003, 16
      %v4184 = vrot.slane %v4182, 1
      %v4185 = vsel %vm1216, %v4180, %v4184
      %v4187 = vshrl.u32 %v4004, 16
      %v4189 = vshll.u32 %v4004, 16
      %v4191 = vrot.slane %v4189, 1
      %v4192 = vor.u32 %v4187, %v4191
      %v4194 = vshll.u32 %v4005, 16
      %v4196 = vrot.slane %v4194, 1
      %v4197 = vsel %vm1216, %v4192, %v4196
      %s4198 = scalar_lea.vmem %s1, 16
      %v4199 = vld [vmem:[%s4198] sm:$0x3]
      %v4201 = vsel %vm280, %v4017, 0
      %v4204 = vsel %vm280, %v4029, 0
      %v4207 = vsel %vm280, %v4041, 0
      %v4210 = vsel %vm280, %v4053, 0
      %v4213 = vsel %vm280, %v4065, 0
      %v4216 = vsel %vm280, %v4077, 0
      %v4219 = vsel %vm280, %v4089, 0
      %v4222 = vsel %vm280, %v4101, 0
      %v4225 = vsel %vm280, %v4113, 0
      %v4228 = vsel %vm280, %v4125, 0
      %v4231 = vsel %vm280, %v4137, 0
      %v4234 = vsel %vm280, %v4149, 0
      %v4237 = vsel %vm280, %v4161, 0
      %v4240 = vsel %vm280, %v4173, 0
      %v4243 = vsel %vm280, %v4185, 0
      %v4246 = vsel %vm280, %v4197, 0
      %v4249 = vsel %vm661, %v4199, 0
      %4251 = vmatprep.subr.bf16.mxu0 0
      %4252 = vmatpush1.bf16.msra.mxu0 %v4249
      %4253 = vmatprep.subr.bf16.mxu0 0
      %4254 = vmatpush1.bf16.msra.mxu0 0
      %4255 = vmatprep.subr.bf16.mxu0 0
      %4256 = vmatpush1.bf16.msra.mxu0 0
      %4257 = vmatprep.subr.bf16.mxu0 0
      %4258 = vmatpush1.bf16.msra.mxu0 0
      %4259 = vmatprep.subr.bf16.mxu0 0
      %4260 = vmatpush1.bf16.msra.mxu0 0
      %4261 = vmatprep.subr.bf16.mxu0 0
      %4262 = vmatpush1.bf16.msra.mxu0 0
      %4263 = vmatprep.subr.bf16.mxu0 0
      %4264 = vmatpush1.bf16.msra.mxu0 0
      %4265 = vmatprep.subr.bf16.mxu0 0
      %4266 = vmatpush1.bf16.msra.mxu0 0
      %4267 = vmatprep.subr.bf16.mxu0 0
      %4268 = vmatpush1.bf16.msra.mxu0 0
      %4269 = vmatprep.subr.bf16.mxu0 0
      %4270 = vmatpush1.bf16.msra.mxu0 0
      %4271 = vmatprep.subr.bf16.mxu0 0
      %4272 = vmatpush1.bf16.msra.mxu0 0
      %4273 = vmatprep.subr.bf16.mxu0 0
      %4274 = vmatpush1.bf16.msra.mxu0 0
      %4275 = vmatprep.subr.bf16.mxu0 0
      %4276 = vmatpush1.bf16.msra.mxu0 0
      %4277 = vmatprep.subr.bf16.mxu0 0
      %4278 = vmatpush1.bf16.msra.mxu0 0
      %4279 = vmatprep.subr.bf16.mxu0 0
      %4280 = vmatpush1.bf16.msra.mxu0 0
      %4281 = vmatprep.subr.bf16.mxu0 0
      %4282 = vmatpush1.bf16.msra.mxu0 0
      %4283 = vmatprep.mubr.bf16.mxu0 0
      %4284 = vmatmul.mubr.bf16.gmra.mrb[0].mxu0 %v4201
      %v4285 = vpop.f32.mrb[0].mxu0
      %v4286 = vadd.f32 0.0, %v4285
      %v4287 = vpop.f32.mrb[0].mxu0
      %v4288 = vpop.f32.mrb[0].mxu0
      %v4289 = vadd.f32 0.0, %v4288
      %v4290 = vpop.f32.mrb[0].mxu0
      %4291 = vmatprep.mubr.bf16.mxu0 0
      %4292 = vmatmul.mubr.bf16.gmra.mrb[0].mxu0 %v4204
      %v4293 = vpop.f32.mrb[0].mxu0
      %v4294 = vadd.f32 0.0, %v4293
      %v4295 = vpop.f32.mrb[0].mxu0
      %v4296 = vpop.f32.mrb[0].mxu0
      %v4297 = vadd.f32 0.0, %v4296
      %v4298 = vpop.f32.mrb[0].mxu0
      %4299 = vmatprep.mubr.bf16.mxu0 0
      %4300 = vmatmul.mubr.bf16.gmra.mrb[0].mxu0 %v4207
      %v4301 = vpop.f32.mrb[0].mxu0
      %v4302 = vadd.f32 0.0, %v4301
      %v4303 = vpop.f32.mrb[0].mxu0
      %v4304 = vpop.f32.mrb[0].mxu0
      %v4305 = vadd.f32 0.0, %v4304
      %v4306 = vpop.f32.mrb[0].mxu0
      %4307 = vmatprep.mubr.bf16.mxu0 0
      %4308 = vmatmul.mubr.bf16.gmra.mrb[0].mxu0 %v4210
      %v4309 = vpop.f32.mrb[0].mxu0
      %v4310 = vadd.f32 0.0, %v4309
      %v4311 = vpop.f32.mrb[0].mxu0
      %v4312 = vpop.f32.mrb[0].mxu0
      %v4313 = vadd.f32 0.0, %v4312
      %v4314 = vpop.f32.mrb[0].mxu0
      %4315 = vmatprep.mubr.bf16.mxu0 0
      %4316 = vmatmul.mubr.bf16.gmra.mrb[0].mxu0 %v4213
      %v4317 = vpop.f32.mrb[0].mxu0
      %v4318 = vadd.f32 0.0, %v4317
      %v4319 = vpop.f32.mrb[0].mxu0
      %v4320 = vpop.f32.mrb[0].mxu0
      %v4321 = vadd.f32 0.0, %v4320
      %v4322 = vpop.f32.mrb[0].mxu0
      %4323 = vmatprep.mubr.bf16.mxu0 0
      %4324 = vmatmul.mubr.bf16.gmra.mrb[0].mxu0 %v4216
      %v4325 = vpop.f32.mrb[0].mxu0
      %v4326 = vadd.f32 0.0, %v4325
      %v4327 = vpop.f32.mrb[0].mxu0
      %v4328 = vpop.f32.mrb[0].mxu0
      %v4329 = vadd.f32 0.0, %v4328
      %v4330 = vpop.f32.mrb[0].mxu0
      %4331 = vmatprep.mubr.bf16.mxu0 0
      %4332 = vmatmul.mubr.bf16.gmra.mrb[0].mxu0 %v4219
      %v4333 = vpop.f32.mrb[0].mxu0
      %v4334 = vadd.f32 0.0, %v4333
      %v4335 = vpop.f32.mrb[0].mxu0
      %v4336 = vpop.f32.mrb[0].mxu0
      %v4337 = vadd.f32 0.0, %v4336
      %v4338 = vpop.f32.mrb[0].mxu0
      %4339 = vmatprep.mubr.bf16.mxu0 0
      %4340 = vmatmul.mubr.bf16.gmra.mrb[0].mxu0 %v4222
      %v4341 = vpop.f32.mrb[0].mxu0
      %v4342 = vadd.f32 0.0, %v4341
      %v4343 = vpop.f32.mrb[0].mxu0
      %v4344 = vpop.f32.mrb[0].mxu0
      %v4345 = vadd.f32 0.0, %v4344
      %v4346 = vpop.f32.mrb[0].mxu0
      %4347 = vmatprep.mubr.bf16.mxu0 0
      %4348 = vmatmul.mubr.bf16.gmra.mrb[0].mxu0 %v4225
      %v4349 = vpop.f32.mrb[0].mxu0
      %v4350 = vadd.f32 0.0, %v4349
      %v4351 = vpop.f32.mrb[0].mxu0
      %v4352 = vpop.f32.mrb[0].mxu0
      %v4353 = vadd.f32 0.0, %v4352
      %v4354 = vpop.f32.mrb[0].mxu0
      %4355 = vmatprep.mubr.bf16.mxu0 0
      %4356 = vmatmul.mubr.bf16.gmra.mrb[0].mxu0 %v4228
      %v4357 = vpop.f32.mrb[0].mxu0
      %v4358 = vadd.f32 0.0, %v4357
      %v4359 = vpop.f32.mrb[0].mxu0
      %v4360 = vpop.f32.mrb[0].mxu0
      %v4361 = vadd.f32 0.0, %v4360
      %v4362 = vpop.f32.mrb[0].mxu0
      %4363 = vmatprep.mubr.bf16.mxu0 0
      %4364 = vmatmul.mubr.bf16.gmra.mrb[0].mxu0 %v4231
      %v4365 = vpop.f32.mrb[0].mxu0
      %v4366 = vadd.f32 0.0, %v4365
      %v4367 = vpop.f32.mrb[0].mxu0
      %v4368 = vpop.f32.mrb[0].mxu0
      %v4369 = vadd.f32 0.0, %v4368
      %v4370 = vpop.f32.mrb[0].mxu0
      %4371 = vmatprep.mubr.bf16.mxu0 0
      %4372 = vmatmul.mubr.bf16.gmra.mrb[0].mxu0 %v4234
      %v4373 = vpop.f32.mrb[0].mxu0
      %v4374 = vadd.f32 0.0, %v4373
      %v4375 = vpop.f32.mrb[0].mxu0
      %v4376 = vpop.f32.mrb[0].mxu0
      %v4377 = vadd.f32 0.0, %v4376
      %v4378 = vpop.f32.mrb[0].mxu0
      %4379 = vmatprep.mubr.bf16.mxu0 0
      %4380 = vmatmul.mubr.bf16.gmra.mrb[0].mxu0 %v4237
      %v4381 = vpop.f32.mrb[0].mxu0
      %v4382 = vadd.f32 0.0, %v4381
      %v4383 = vpop.f32.mrb[0].mxu0
      %v4384 = vpop.f32.mrb[0].mxu0
      %v4385 = vadd.f32 0.0, %v4384
      %v4386 = vpop.f32.mrb[0].mxu0
      %4387 = vmatprep.mubr.bf16.mxu0 0
      %4388 = vmatmul.mubr.bf16.gmra.mrb[0].mxu0 %v4240
      %v4389 = vpop.f32.mrb[0].mxu0
      %v4390 = vadd.f32 0.0, %v4389
      %v4391 = vpop.f32.mrb[0].mxu0
      %v4392 = vpop.f32.mrb[0].mxu0
      %v4393 = vadd.f32 0.0, %v4392
      %v4394 = vpop.f32.mrb[0].mxu0
      %4395 = vmatprep.mubr.bf16.mxu0 0
      %4396 = vmatmul.mubr.bf16.gmra.mrb[0].mxu0 %v4243
      %v4397 = vpop.f32.mrb[0].mxu0
      %v4398 = vadd.f32 0.0, %v4397
      %v4399 = vpop.f32.mrb[0].mxu0
      %v4400 = vpop.f32.mrb[0].mxu0
      %v4401 = vadd.f32 0.0, %v4400
      %v4402 = vpop.f32.mrb[0].mxu0
      %4403 = vmatprep.mubr.bf16.mxu0 0
      %4404 = vmatmul.mubr.bf16.gmra.mrb[0].mxu0 %v4246
      %v4405 = vpop.f32.mrb[0].mxu0
      %v4406 = vadd.f32 0.0, %v4405
      %v4407 = vpop.f32.mrb[0].mxu0
      %v4408 = vpop.f32.mrb[0].mxu0
      %v4409 = vadd.f32 0.0, %v4408
      %v4410 = vpop.f32.mrb[0].mxu0
      %4411 = vdwg.mxu0
      %v4412 = vld [vmem:[#allocation3] sm:$0xff]
      %v4413 = vld [vmem:[#allocation3 + $0x8] sm:$0xff]
      %v4414 = vld [vmem:[#allocation3 + $0x10] sm:$0xff]
      %v4415 = vld [vmem:[#allocation3 + $0x18] sm:$0xff]
      %v4416 = vld [vmem:[#allocation3 + $0x20] sm:$0xff]
      %v4417 = vld [vmem:[#allocation3 + $0x28] sm:$0xff]
      %v4418 = vld [vmem:[#allocation3 + $0x30] sm:$0xff]
      %v4419 = vld [vmem:[#allocation3 + $0x38] sm:$0xff]
      %v4420 = vld [vmem:[#allocation3 + $0x40] sm:$0xff]
      %v4421 = vld [vmem:[#allocation3 + $0x48] sm:$0xff]
      %v4422 = vld [vmem:[#allocation3 + $0x50] sm:$0xff]
      %v4423 = vld [vmem:[#allocation3 + $0x58] sm:$0xff]
      %v4424 = vld [vmem:[#allocation3 + $0x60] sm:$0xff]
      %v4425 = vld [vmem:[#allocation3 + $0x68] sm:$0xff]
      %v4426 = vld [vmem:[#allocation3 + $0x70] sm:$0xff]
      %v4427 = vld [vmem:[#allocation3 + $0x78] sm:$0xff]
      %v4428 = vld [vmem:[#allocation3 + $0x80] sm:$0xff]
      %v4429 = vld [vmem:[#allocation3 + $0x88] sm:$0xff]
      %v4430 = vld [vmem:[#allocation3 + $0x90] sm:$0xff]
      %v4431 = vld [vmem:[#allocation3 + $0x98] sm:$0xff]
      %v4432 = vld [vmem:[#allocation3 + $0xa0] sm:$0xff]
      %v4433 = vld [vmem:[#allocation3 + $0xa8] sm:$0xff]
      %v4434 = vld [vmem:[#allocation3 + $0xb0] sm:$0xff]
      %v4435 = vld [vmem:[#allocation3 + $0xb8] sm:$0xff]
      %v4436 = vld [vmem:[#allocation3 + $0xc0] sm:$0xff]
      %v4437 = vld [vmem:[#allocation3 + $0xc8] sm:$0xff]
      %v4438 = vld [vmem:[#allocation3 + $0xd0] sm:$0xff]
      %v4439 = vld [vmem:[#allocation3 + $0xd8] sm:$0xff]
      %v4440 = vld [vmem:[#allocation3 + $0xe0] sm:$0xff]
      %v4441 = vld [vmem:[#allocation3 + $0xe8] sm:$0xff]
      %v4442 = vld [vmem:[#allocation3 + $0xf0] sm:$0xff]
      %v4443 = vld [vmem:[#allocation3 + $0xf8] sm:$0xff]
      %v4444 = vadd.f32 %v4412, %v4286
      %v4445 = vadd.f32 %v4413, %v4289
      %v4446 = vadd.f32 %v4414, %v4294
      %v4447 = vadd.f32 %v4415, %v4297
      %v4448 = vadd.f32 %v4416, %v4302
      %v4449 = vadd.f32 %v4417, %v4305
      %v4450 = vadd.f32 %v4418, %v4310
      %v4451 = vadd.f32 %v4419, %v4313
      %v4452 = vadd.f32 %v4420, %v4318
      %v4453 = vadd.f32 %v4421, %v4321
      %v4454 = vadd.f32 %v4422, %v4326
      %v4455 = vadd.f32 %v4423, %v4329
      %v4456 = vadd.f32 %v4424, %v4334
      %v4457 = vadd.f32 %v4425, %v4337
      %v4458 = vadd.f32 %v4426, %v4342
      %v4459 = vadd.f32 %v4427, %v4345
      %v4460 = vadd.f32 %v4428, %v4350
      %v4461 = vadd.f32 %v4429, %v4353
      %v4462 = vadd.f32 %v4430, %v4358
      %v4463 = vadd.f32 %v4431, %v4361
      %v4464 = vadd.f32 %v4432, %v4366
      %v4465 = vadd.f32 %v4433, %v4369
      %v4466 = vadd.f32 %v4434, %v4374
      %v4467 = vadd.f32 %v4435, %v4377
      %v4468 = vadd.f32 %v4436, %v4382
      %v4469 = vadd.f32 %v4437, %v4385
      %v4470 = vadd.f32 %v4438, %v4390
      %v4471 = vadd.f32 %v4439, %v4393
      %v4472 = vadd.f32 %v4440, %v4398
      %v4473 = vadd.f32 %v4441, %v4401
      %v4474 = vadd.f32 %v4442, %v4406
      %v4475 = vadd.f32 %v4443, %v4409
      %4476 = vst.msk [vmem:[#allocation3] sm:$0xff] %vm280, %v4444
      %4477 = vst.msk [vmem:[#allocation3 + $0x8] sm:$0xff] %vm280, %v4445
      %4478 = vst.msk [vmem:[#allocation3 + $0x10] sm:$0xff] %vm280, %v4446
      %4479 = vst.msk [vmem:[#allocation3 + $0x18] sm:$0xff] %vm280, %v4447
      %4480 = vst.msk [vmem:[#allocation3 + $0x20] sm:$0xff] %vm280, %v4448
      %4481 = vst.msk [vmem:[#allocation3 + $0x28] sm:$0xff] %vm280, %v4449
      %4482 = vst.msk [vmem:[#allocation3 + $0x30] sm:$0xff] %vm280, %v4450
      %4483 = vst.msk [vmem:[#allocation3 + $0x38] sm:$0xff] %vm280, %v4451
      %4484 = vst.msk [vmem:[#allocation3 + $0x40] sm:$0xff] %vm280, %v4452
      %4485 = vst.msk [vmem:[#allocation3 + $0x48] sm:$0xff] %vm280, %v4453
      %4486 = vst.msk [vmem:[#allocation3 + $0x50] sm:$0xff] %vm280, %v4454
      %4487 = vst.msk [vmem:[#allocation3 + $0x58] sm:$0xff] %vm280, %v4455
      %4488 = vst.msk [vmem:[#allocation3 + $0x60] sm:$0xff] %vm280, %v4456
      %4489 = vst.msk [vmem:[#allocation3 + $0x68] sm:$0xff] %vm280, %v4457
      %4490 = vst.msk [vmem:[#allocation3 + $0x70] sm:$0xff] %vm280, %v4458
      %4491 = vst.msk [vmem:[#allocation3 + $0x78] sm:$0xff] %vm280, %v4459
      %4492 = vst.msk [vmem:[#allocation3 + $0x80] sm:$0xff] %vm280, %v4460
      %4493 = vst.msk [vmem:[#allocation3 + $0x88] sm:$0xff] %vm280, %v4461
      %4494 = vst.msk [vmem:[#allocation3 + $0x90] sm:$0xff] %vm280, %v4462
      %4495 = vst.msk [vmem:[#allocation3 + $0x98] sm:$0xff] %vm280, %v4463
      %4496 = vst.msk [vmem:[#allocation3 + $0xa0] sm:$0xff] %vm280, %v4464
      %4497 = vst.msk [vmem:[#allocation3 + $0xa8] sm:$0xff] %vm280, %v4465
      %4498 = vst.msk [vmem:[#allocation3 + $0xb0] sm:$0xff] %vm280, %v4466
      %4499 = vst.msk [vmem:[#allocation3 + $0xb8] sm:$0xff] %vm280, %v4467
      %4500 = vst.msk [vmem:[#allocation3 + $0xc0] sm:$0xff] %vm280, %v4468
      %4501 = vst.msk [vmem:[#allocation3 + $0xc8] sm:$0xff] %vm280, %v4469
      %4502 = vst.msk [vmem:[#allocation3 + $0xd0] sm:$0xff] %vm280, %v4470
      %4503 = vst.msk [vmem:[#allocation3 + $0xd8] sm:$0xff] %vm280, %v4471
      %4504 = vst.msk [vmem:[#allocation3 + $0xe0] sm:$0xff] %vm280, %v4472
      %4505 = vst.msk [vmem:[#allocation3 + $0xe8] sm:$0xff] %vm280, %v4473
      %4506 = vst.msk [vmem:[#allocation3 + $0xf0] sm:$0xff] %vm280, %v4474
      %4507 = vst.msk [vmem:[#allocation3 + $0xf8] sm:$0xff] %vm280, %v4475
      %v4508 = vld [vmem:[#allocation3] sm:$0xff]
      %v4509 = vld [vmem:[#allocation3 + $0x8] sm:$0xff]
      %v4510 = vld [vmem:[#allocation3 + $0x10] sm:$0xff]
      %v4511 = vld [vmem:[#allocation3 + $0x18] sm:$0xff]
      %v4512 = vld [vmem:[#allocation3 + $0x20] sm:$0xff]
      %v4513 = vld [vmem:[#allocation3 + $0x28] sm:$0xff]
      %v4514 = vld [vmem:[#allocation3 + $0x30] sm:$0xff]
      %v4515 = vld [vmem:[#allocation3 + $0x38] sm:$0xff]
      %v4516 = vld [vmem:[#allocation3 + $0x40] sm:$0xff]
      %v4517 = vld [vmem:[#allocation3 + $0x48] sm:$0xff]
      %v4518 = vld [vmem:[#allocation3 + $0x50] sm:$0xff]
      %v4519 = vld [vmem:[#allocation3 + $0x58] sm:$0xff]
      %v4520 = vld [vmem:[#allocation3 + $0x60] sm:$0xff]
      %v4521 = vld [vmem:[#allocation3 + $0x68] sm:$0xff]
      %v4522 = vld [vmem:[#allocation3 + $0x70] sm:$0xff]
      %v4523 = vld [vmem:[#allocation3 + $0x78] sm:$0xff]
      %v4524 = vld [vmem:[#allocation3 + $0x80] sm:$0xff]
      %v4525 = vld [vmem:[#allocation3 + $0x88] sm:$0xff]
      %v4526 = vld [vmem:[#allocation3 + $0x90] sm:$0xff]
      %v4527 = vld [vmem:[#allocation3 + $0x98] sm:$0xff]
      %v4528 = vld [vmem:[#allocation3 + $0xa0] sm:$0xff]
      %v4529 = vld [vmem:[#allocation3 + $0xa8] sm:$0xff]
      %v4530 = vld [vmem:[#allocation3 + $0xb0] sm:$0xff]
      %v4531 = vld [vmem:[#allocation3 + $0xb8] sm:$0xff]
      %v4532 = vld [vmem:[#allocation3 + $0xc0] sm:$0xff]
      %v4533 = vld [vmem:[#allocation3 + $0xc8] sm:$0xff]
      %v4534 = vld [vmem:[#allocation3 + $0xd0] sm:$0xff]
      %v4535 = vld [vmem:[#allocation3 + $0xd8] sm:$0xff]
      %v4536 = vld [vmem:[#allocation3 + $0xe0] sm:$0xff]
      %v4537 = vld [vmem:[#allocation3 + $0xe8] sm:$0xff]
      %v4538 = vld [vmem:[#allocation3 + $0xf0] sm:$0xff]
      %v4539 = vld [vmem:[#allocation3 + $0xf8] sm:$0xff]
      %v4540 = vsel %vm280, %v4508, 0.0
      %v4541 = vsel %vm280, %v4509, 0.0
      %v4542 = vadd.f32 %v4540, %v4541
      %v4543 = vsel %vm280, %v4510, 0.0
      %v4544 = vadd.f32 %v4542, %v4543
      %v4545 = vsel %vm280, %v4511, 0.0
      %v4546 = vadd.f32 %v4544, %v4545
      %v4547 = vsel %vm280, %v4512, 0.0
      %v4548 = vadd.f32 %v4546, %v4547
      %v4549 = vsel %vm280, %v4513, 0.0
      %v4550 = vadd.f32 %v4548, %v4549
      %v4551 = vsel %vm280, %v4514, 0.0
      %v4552 = vadd.f32 %v4550, %v4551
      %v4553 = vsel %vm280, %v4515, 0.0
      %v4554 = vadd.f32 %v4552, %v4553
      %v4555 = vsel %vm280, %v4516, 0.0
      %v4556 = vadd.f32 %v4554, %v4555
      %v4557 = vsel %vm280, %v4517, 0.0
      %v4558 = vadd.f32 %v4556, %v4557
      %v4559 = vsel %vm280, %v4518, 0.0
      %v4560 = vadd.f32 %v4558, %v4559
      %v4561 = vsel %vm280, %v4519, 0.0
      %v4562 = vadd.f32 %v4560, %v4561
      %v4563 = vsel %vm280, %v4520, 0.0
      %v4564 = vadd.f32 %v4562, %v4563
      %v4565 = vsel %vm280, %v4521, 0.0
      %v4566 = vadd.f32 %v4564, %v4565
      %v4567 = vsel %vm280, %v4522, 0.0
      %v4568 = vadd.f32 %v4566, %v4567
      %v4569 = vsel %vm280, %v4523, 0.0
      %v4570 = vadd.f32 %v4568, %v4569
      %v4571 = vsel %vm280, %v4524, 0.0
      %v4572 = vadd.f32 %v4570, %v4571
      %v4573 = vsel %vm280, %v4525, 0.0
      %v4574 = vadd.f32 %v4572, %v4573
      %v4575 = vsel %vm280, %v4526, 0.0
      %v4576 = vadd.f32 %v4574, %v4575
      %v4577 = vsel %vm280, %v4527, 0.0
      %v4578 = vadd.f32 %v4576, %v4577
      %v4579 = vsel %vm280, %v4528, 0.0
      %v4580 = vadd.f32 %v4578, %v4579
      %v4581 = vsel %vm280, %v4529, 0.0
      %v4582 = vadd.f32 %v4580, %v4581
      %v4583 = vsel %vm280, %v4530, 0.0
      %v4584 = vadd.f32 %v4582, %v4583
      %v4585 = vsel %vm280, %v4531, 0.0
      %v4586 = vadd.f32 %v4584, %v4585
      %v4587 = vsel %vm280, %v4532, 0.0
      %v4588 = vadd.f32 %v4586, %v4587
      %v4589 = vsel %vm280, %v4533, 0.0
      %v4590 = vadd.f32 %v4588, %v4589
      %v4591 = vsel %vm280, %v4534, 0.0
      %v4592 = vadd.f32 %v4590, %v4591
      %v4593 = vsel %vm280, %v4535, 0.0
      %v4594 = vadd.f32 %v4592, %v4593
      %v4595 = vsel %vm280, %v4536, 0.0
      %v4596 = vadd.f32 %v4594, %v4595
      %v4597 = vsel %vm280, %v4537, 0.0
      %v4598 = vadd.f32 %v4596, %v4597
      %v4599 = vsel %vm280, %v4538, 0.0
      %v4600 = vadd.f32 %v4598, %v4599
      %v4601 = vsel %vm280, %v4539, 0.0
      %v4602 = vadd.f32 %v4600, %v4601
      %v4603 = vrot.slane %v4602, 4
      %v4604 = vadd.f32 %v4602, %v4603
      %v4605 = vrot.slane %v4604, 2
      %v4606 = vadd.f32 %v4604, %v4605
      %v4607 = vrot.slane %v4606, 1
      %v4608 = vadd.f32 %v4606, %v4607
      %v4609 = vmul.f32 %v4508, %v4508
      %v4610 = vmul.f32 %v4509, %v4509
      %v4611 = vmul.f32 %v4510, %v4510
      %v4612 = vmul.f32 %v4511, %v4511
      %v4613 = vmul.f32 %v4512, %v4512
      %v4614 = vmul.f32 %v4513, %v4513
      %v4615 = vmul.f32 %v4514, %v4514
      %v4616 = vmul.f32 %v4515, %v4515
      %v4617 = vmul.f32 %v4516, %v4516
      %v4618 = vmul.f32 %v4517, %v4517
      %v4619 = vmul.f32 %v4518, %v4518
      %v4620 = vmul.f32 %v4519, %v4519
      %v4621 = vmul.f32 %v4520, %v4520
      %v4622 = vmul.f32 %v4521, %v4521
      %v4623 = vmul.f32 %v4522, %v4522
      %v4624 = vmul.f32 %v4523, %v4523
      %v4625 = vmul.f32 %v4524, %v4524
      %v4626 = vmul.f32 %v4525, %v4525
      %v4627 = vmul.f32 %v4526, %v4526
      %v4628 = vmul.f32 %v4527, %v4527
      %v4629 = vmul.f32 %v4528, %v4528
      %v4630 = vmul.f32 %v4529, %v4529
      %v4631 = vmul.f32 %v4530, %v4530
      %v4632 = vmul.f32 %v4531, %v4531
      %v4633 = vmul.f32 %v4532, %v4532
      %v4634 = vmul.f32 %v4533, %v4533
      %v4635 = vmul.f32 %v4534, %v4534
      %v4636 = vmul.f32 %v4535, %v4535
      %v4637 = vmul.f32 %v4536, %v4536
      %v4638 = vmul.f32 %v4537, %v4537
      %v4639 = vmul.f32 %v4538, %v4538
      %v4640 = vmul.f32 %v4539, %v4539
      %v4641 = vsel %vm280, %v4609, 0.0
      %v4642 = vsel %vm280, %v4610, 0.0
      %v4643 = vadd.f32 %v4641, %v4642
      %v4644 = vsel %vm280, %v4611, 0.0
      %v4645 = vadd.f32 %v4643, %v4644
      %v4646 = vsel %vm280, %v4612, 0.0
      %v4647 = vadd.f32 %v4645, %v4646
      %v4648 = vsel %vm280, %v4613, 0.0
      %v4649 = vadd.f32 %v4647, %v4648
      %v4650 = vsel %vm280, %v4614, 0.0
      %v4651 = vadd.f32 %v4649, %v4650
      %v4652 = vsel %vm280, %v4615, 0.0
      %v4653 = vadd.f32 %v4651, %v4652
      %v4654 = vsel %vm280, %v4616, 0.0
      %v4655 = vadd.f32 %v4653, %v4654
      %v4656 = vsel %vm280, %v4617, 0.0
      %v4657 = vadd.f32 %v4655, %v4656
      %v4658 = vsel %vm280, %v4618, 0.0
      %v4659 = vadd.f32 %v4657, %v4658
      %v4660 = vsel %vm280, %v4619, 0.0
      %v4661 = vadd.f32 %v4659, %v4660
      %v4662 = vsel %vm280, %v4620, 0.0
      %v4663 = vadd.f32 %v4661, %v4662
      %v4664 = vsel %vm280, %v4621, 0.0
      %v4665 = vadd.f32 %v4663, %v4664
      %v4666 = vsel %vm280, %v4622, 0.0
      %v4667 = vadd.f32 %v4665, %v4666
      %v4668 = vsel %vm280, %v4623, 0.0
      %v4669 = vadd.f32 %v4667, %v4668
      %v4670 = vsel %vm280, %v4624, 0.0
      %v4671 = vadd.f32 %v4669, %v4670
      %v4672 = vsel %vm280, %v4625, 0.0
      %v4673 = vadd.f32 %v4671, %v4672
      %v4674 = vsel %vm280, %v4626, 0.0
      %v4675 = vadd.f32 %v4673, %v4674
      %v4676 = vsel %vm280, %v4627, 0.0
      %v4677 = vadd.f32 %v4675, %v4676
      %v4678 = vsel %vm280, %v4628, 0.0
      %v4679 = vadd.f32 %v4677, %v4678
      %v4680 = vsel %vm280, %v4629, 0.0
      %v4681 = vadd.f32 %v4679, %v4680
      %v4682 = vsel %vm280, %v4630, 0.0
      %v4683 = vadd.f32 %v4681, %v4682
      %v4684 = vsel %vm280, %v4631, 0.0
      %v4685 = vadd.f32 %v4683, %v4684
      %v4686 = vsel %vm280, %v4632, 0.0
      %v4687 = vadd.f32 %v4685, %v4686
      %v4688 = vsel %vm280, %v4633, 0.0
      %v4689 = vadd.f32 %v4687, %v4688
      %v4690 = vsel %vm280, %v4634, 0.0
      %v4691 = vadd.f32 %v4689, %v4690
      %v4692 = vsel %vm280, %v4635, 0.0
      %v4693 = vadd.f32 %v4691, %v4692
      %v4694 = vsel %vm280, %v4636, 0.0
      %v4695 = vadd.f32 %v4693, %v4694
      %v4696 = vsel %vm280, %v4637, 0.0
      %v4697 = vadd.f32 %v4695, %v4696
      %v4698 = vsel %vm280, %v4638, 0.0
      %v4699 = vadd.f32 %v4697, %v4698
      %v4700 = vsel %vm280, %v4639, 0.0
      %v4701 = vadd.f32 %v4699, %v4700
      %v4702 = vsel %vm280, %v4640, 0.0
      %v4703 = vadd.f32 %v4701, %v4702
      %v4704 = vrot.slane %v4703, 4
      %v4705 = vadd.f32 %v4703, %v4704
      %v4706 = vrot.slane %v4705, 2
      %v4707 = vadd.f32 %v4705, %v4706
      %v4708 = vrot.slane %v4707, 1
      %v4709 = vadd.f32 %v4707, %v4708
      %v4710 = vmul.f32 %v4608, 0.00390625
      %v4711 = vmul.f32 %v4709, 0.00390625
      %v4712 = vmul.f32 %v4710, %v4710
      %v4713 = vsub.f32 %v4711, %v4712
      %v4714 = vmax.f32 %v4713, 0.0
      %v4715 = vld [vmem:[%s2] sm:$0x1]
      %v4716 = vadd.f32 %v4714, 1e-05
      %v4717 = vrsqrt.pop %v4716
      %v4718 = vmul.f32 %v4715, %v4717
      %v4719 = vld [vmem:[%s3] sm:$0x1]
      %v4720 = vmul.f32 %v4710, %v4718
      %v4721 = vsub.f32 %v4719, %v4720
      %v4723 = vlaneseq
      %v4724 = vshrl.u32 %v4723, 7
      %v4725 = vsub.s32 0, %v4724
      %v4726 = vrot.slane %v4718, %v4725
      %v4728 = vmul.f32 %v4508, %v4726
      %v4729 = vmul.f32 %v4509, %v4726
      %v4730 = vmul.f32 %v4510, %v4726
      %v4731 = vmul.f32 %v4511, %v4726
      %v4732 = vmul.f32 %v4512, %v4726
      %v4733 = vmul.f32 %v4513, %v4726
      %v4734 = vmul.f32 %v4514, %v4726
      %v4735 = vmul.f32 %v4515, %v4726
      %v4736 = vmul.f32 %v4516, %v4726
      %v4737 = vmul.f32 %v4517, %v4726
      %v4738 = vmul.f32 %v4518, %v4726
      %v4739 = vmul.f32 %v4519, %v4726
      %v4740 = vmul.f32 %v4520, %v4726
      %v4741 = vmul.f32 %v4521, %v4726
      %v4742 = vmul.f32 %v4522, %v4726
      %v4743 = vmul.f32 %v4523, %v4726
      %v4744 = vmul.f32 %v4524, %v4726
      %v4745 = vmul.f32 %v4525, %v4726
      %v4746 = vmul.f32 %v4526, %v4726
      %v4747 = vmul.f32 %v4527, %v4726
      %v4748 = vmul.f32 %v4528, %v4726
      %v4749 = vmul.f32 %v4529, %v4726
      %v4750 = vmul.f32 %v4530, %v4726
      %v4751 = vmul.f32 %v4531, %v4726
      %v4752 = vmul.f32 %v4532, %v4726
      %v4753 = vmul.f32 %v4533, %v4726
      %v4754 = vmul.f32 %v4534, %v4726
      %v4755 = vmul.f32 %v4535, %v4726
      %v4756 = vmul.f32 %v4536, %v4726
      %v4757 = vmul.f32 %v4537, %v4726
      %v4758 = vmul.f32 %v4538, %v4726
      %v4759 = vmul.f32 %v4539, %v4726
      %v4761 = vlaneseq
      %v4762 = vshrl.u32 %v4761, 7
      %v4763 = vsub.s32 0, %v4762
      %v4764 = vrot.slane %v4721, %v4763
      %v4766 = vadd.f32 %v4728, %v4764
      %v4767 = vadd.f32 %v4729, %v4764
      %v4768 = vadd.f32 %v4730, %v4764
      %v4769 = vadd.f32 %v4731, %v4764
      %v4770 = vadd.f32 %v4732, %v4764
      %v4771 = vadd.f32 %v4733, %v4764
      %v4772 = vadd.f32 %v4734, %v4764
      %v4773 = vadd.f32 %v4735, %v4764
      %v4774 = vadd.f32 %v4736, %v4764
      %v4775 = vadd.f32 %v4737, %v4764
      %v4776 = vadd.f32 %v4738, %v4764
      %v4777 = vadd.f32 %v4739, %v4764
      %v4778 = vadd.f32 %v4740, %v4764
      %v4779 = vadd.f32 %v4741, %v4764
      %v4780 = vadd.f32 %v4742, %v4764
      %v4781 = vadd.f32 %v4743, %v4764
      %v4782 = vadd.f32 %v4744, %v4764
      %v4783 = vadd.f32 %v4745, %v4764
      %v4784 = vadd.f32 %v4746, %v4764
      %v4785 = vadd.f32 %v4747, %v4764
      %v4786 = vadd.f32 %v4748, %v4764
      %v4787 = vadd.f32 %v4749, %v4764
      %v4788 = vadd.f32 %v4750, %v4764
      %v4789 = vadd.f32 %v4751, %v4764
      %v4790 = vadd.f32 %v4752, %v4764
      %v4791 = vadd.f32 %v4753, %v4764
      %v4792 = vadd.f32 %v4754, %v4764
      %v4793 = vadd.f32 %v4755, %v4764
      %v4794 = vadd.f32 %v4756, %v4764
      %v4795 = vadd.f32 %v4757, %v4764
      %v4796 = vadd.f32 %v4758, %v4764
      %v4797 = vadd.f32 %v4759, %v4764
      %v4798 = vmax.f32 %v4766, 0.0
      %v4799 = vmax.f32 %v4767, 0.0
      %v4800 = vmax.f32 %v4768, 0.0
      %v4801 = vmax.f32 %v4769, 0.0
      %v4802 = vmax.f32 %v4770, 0.0
      %v4803 = vmax.f32 %v4771, 0.0
      %v4804 = vmax.f32 %v4772, 0.0
      %v4805 = vmax.f32 %v4773, 0.0
      %v4806 = vmax.f32 %v4774, 0.0
      %v4807 = vmax.f32 %v4775, 0.0
      %v4808 = vmax.f32 %v4776, 0.0
      %v4809 = vmax.f32 %v4777, 0.0
      %v4810 = vmax.f32 %v4778, 0.0
      %v4811 = vmax.f32 %v4779, 0.0
      %v4812 = vmax.f32 %v4780, 0.0
      %v4813 = vmax.f32 %v4781, 0.0
      %v4814 = vmax.f32 %v4782, 0.0
      %v4815 = vmax.f32 %v4783, 0.0
      %v4816 = vmax.f32 %v4784, 0.0
      %v4817 = vmax.f32 %v4785, 0.0
      %v4818 = vmax.f32 %v4786, 0.0
      %v4819 = vmax.f32 %v4787, 0.0
      %v4820 = vmax.f32 %v4788, 0.0
      %v4821 = vmax.f32 %v4789, 0.0
      %v4822 = vmax.f32 %v4790, 0.0
      %v4823 = vmax.f32 %v4791, 0.0
      %v4824 = vmax.f32 %v4792, 0.0
      %v4825 = vmax.f32 %v4793, 0.0
      %v4826 = vmax.f32 %v4794, 0.0
      %v4827 = vmax.f32 %v4795, 0.0
      %v4828 = vmax.f32 %v4796, 0.0
      %v4829 = vmax.f32 %v4797, 0.0
      %v4830 = vpack.c.bf16 %v4799, %v4798
      %v4831 = vpack.c.bf16 %v4801, %v4800
      %v4832 = vpack.c.bf16 %v4803, %v4802
      %v4833 = vpack.c.bf16 %v4805, %v4804
      %v4834 = vpack.c.bf16 %v4807, %v4806
      %v4835 = vpack.c.bf16 %v4809, %v4808
      %v4836 = vpack.c.bf16 %v4811, %v4810
      %v4837 = vpack.c.bf16 %v4813, %v4812
      %v4838 = vpack.c.bf16 %v4815, %v4814
      %v4839 = vpack.c.bf16 %v4817, %v4816
      %v4840 = vpack.c.bf16 %v4819, %v4818
      %v4841 = vpack.c.bf16 %v4821, %v4820
      %v4842 = vpack.c.bf16 %v4823, %v4822
      %v4843 = vpack.c.bf16 %v4825, %v4824
      %v4844 = vpack.c.bf16 %v4827, %v4826
      %v4845 = vpack.c.bf16 %v4829, %v4828
      %4846 = vst.msk [vmem:[%s288 + $0x8] sm:$0xff] %vm280, %v4830
      %4847 = vst.msk [vmem:[%s288 + $0x20] sm:$0xff] %vm280, %v4831
      %4848 = vst.msk [vmem:[%s288 + $0x38] sm:$0xff] %vm280, %v4832
      %4849 = vst.msk [vmem:[%s288 + $0x50] sm:$0xff] %vm280, %v4833
      %4850 = vst.msk [vmem:[%s288 + $0x68] sm:$0xff] %vm280, %v4834
      %4851 = vst.msk [vmem:[%s288 + $0x80] sm:$0xff] %vm280, %v4835
      %4852 = vst.msk [vmem:[%s288 + $0x98] sm:$0xff] %vm280, %v4836
      %4853 = vst.msk [vmem:[%s288 + $0xb0] sm:$0xff] %vm280, %v4837
      %4854 = vst.msk [vmem:[%s288 + $0xc8] sm:$0xff] %vm280, %v4838
      %4855 = vst.msk [vmem:[%s288 + $0xe0] sm:$0xff] %vm280, %v4839
      %4856 = vst.msk [vmem:[%s288 + $0xf8] sm:$0xff] %vm280, %v4840
      %4857 = vst.msk [vmem:[%s288 + $0x110] sm:$0xff] %vm280, %v4841
      %4858 = vst.msk [vmem:[%s288 + $0x128] sm:$0xff] %vm280, %v4842
      %4859 = vst.msk [vmem:[%s288 + $0x140] sm:$0xff] %vm280, %v4843
      %4860 = vst.msk [vmem:[%s288 + $0x158] sm:$0xff] %vm280, %v4844
      %4861 = vst.msk [vmem:[%s288 + $0x170] sm:$0xff] %vm280, %v4845
      %v4862 = vld [vmem:[#allocation2] sm:$0x80]
      %v4863 = vld [vmem:[#allocation2 + $0x8] sm:$0xff]
      %v4864 = vld [vmem:[#allocation2 + $0x18] sm:$0x80]
      %v4865 = vld [vmem:[#allocation2 + $0x20] sm:$0xff]
      %v4866 = vld [vmem:[#allocation2 + $0x30] sm:$0x80]
      %v4867 = vld [vmem:[#allocation2 + $0x38] sm:$0xff]
      %v4868 = vld [vmem:[#allocation2 + $0x48] sm:$0x80]
      %v4869 = vld [vmem:[#allocation2 + $0x50] sm:$0xff]
      %v4870 = vld [vmem:[#allocation2 + $0x60] sm:$0x80]
      %v4871 = vld [vmem:[#allocation2 + $0x68] sm:$0xff]
      %v4872 = vld [vmem:[#allocation2 + $0x78] sm:$0x80]
      %v4873 = vld [vmem:[#allocation2 + $0x80] sm:$0xff]
      %v4874 = vld [vmem:[#allocation2 + $0x90] sm:$0x80]
      %v4875 = vld [vmem:[#allocation2 + $0x98] sm:$0xff]
      %v4876 = vld [vmem:[#allocation2 + $0xa8] sm:$0x80]
      %v4877 = vld [vmem:[#allocation2 + $0xb0] sm:$0xff]
      %v4878 = vld [vmem:[#allocation2 + $0xc0] sm:$0x80]
      %v4879 = vld [vmem:[#allocation2 + $0xc8] sm:$0xff]
      %v4880 = vld [vmem:[#allocation2 + $0xd8] sm:$0x80]
      %v4881 = vld [vmem:[#allocation2 + $0xe0] sm:$0xff]
      %v4882 = vld [vmem:[#allocation2 + $0xf0] sm:$0x80]
      %v4883 = vld [vmem:[#allocation2 + $0xf8] sm:$0xff]
      %v4884 = vld [vmem:[#allocation2 + $0x108] sm:$0x80]
      %v4885 = vld [vmem:[#allocation2 + $0x110] sm:$0xff]
      %v4886 = vld [vmem:[#allocation2 + $0x120] sm:$0x80]
      %v4887 = vld [vmem:[#allocation2 + $0x128] sm:$0xff]
      %v4888 = vld [vmem:[#allocation2 + $0x138] sm:$0x80]
      %v4889 = vld [vmem:[#allocation2 + $0x140] sm:$0xff]
      %v4890 = vld [vmem:[#allocation2 + $0x150] sm:$0x80]
      %v4891 = vld [vmem:[#allocation2 + $0x158] sm:$0xff]
      %v4892 = vld [vmem:[#allocation2 + $0x168] sm:$0x80]
      %v4893 = vld [vmem:[#allocation2 + $0x170] sm:$0xff]
      %v4895 = vshrl.u32 %v4862, 16
      %v4897 = vrot.slane %v4895, 7
      %v4899 = vshrl.u32 %v4863, 16
      %v4901 = vrot.slane %v4899, 7
      %v4902 = vshll.u32 %v4863, 16
      %v4904 = vor.u32 %v4901, %v4902
      %v4905 = vsel %vm419, %v4897, %v4904
      %v4907 = vshrl.u32 %v4864, 16
      %v4909 = vrot.slane %v4907, 7
      %v4911 = vshrl.u32 %v4865, 16
      %v4913 = vrot.slane %v4911, 7
      %v4914 = vshll.u32 %v4865, 16
      %v4916 = vor.u32 %v4913, %v4914
      %v4917 = vsel %vm419, %v4909, %v4916
      %v4919 = vshrl.u32 %v4866, 16
      %v4921 = vrot.slane %v4919, 7
      %v4923 = vshrl.u32 %v4867, 16
      %v4925 = vrot.slane %v4923, 7
      %v4926 = vshll.u32 %v4867, 16
      %v4928 = vor.u32 %v4925, %v4926
      %v4929 = vsel %vm419, %v4921, %v4928
      %v4931 = vshrl.u32 %v4868, 16
      %v4933 = vrot.slane %v4931, 7
      %v4935 = vshrl.u32 %v4869, 16
      %v4937 = vrot.slane %v4935, 7
      %v4938 = vshll.u32 %v4869, 16
      %v4940 = vor.u32 %v4937, %v4938
      %v4941 = vsel %vm419, %v4933, %v4940
      %v4943 = vshrl.u32 %v4870, 16
      %v4945 = vrot.slane %v4943, 7
      %v4947 = vshrl.u32 %v4871, 16
      %v4949 = vrot.slane %v4947, 7
      %v4950 = vshll.u32 %v4871, 16
      %v4952 = vor.u32 %v4949, %v4950
      %v4953 = vsel %vm419, %v4945, %v4952
      %v4955 = vshrl.u32 %v4872, 16
      %v4957 = vrot.slane %v4955, 7
      %v4959 = vshrl.u32 %v4873, 16
      %v4961 = vrot.slane %v4959, 7
      %v4962 = vshll.u32 %v4873, 16
      %v4964 = vor.u32 %v4961, %v4962
      %v4965 = vsel %vm419, %v4957, %v4964
      %v4967 = vshrl.u32 %v4874, 16
      %v4969 = vrot.slane %v4967, 7
      %v4971 = vshrl.u32 %v4875, 16
      %v4973 = vrot.slane %v4971, 7
      %v4974 = vshll.u32 %v4875, 16
      %v4976 = vor.u32 %v4973, %v4974
      %v4977 = vsel %vm419, %v4969, %v4976
      %v4979 = vshrl.u32 %v4876, 16
      %v4981 = vrot.slane %v4979, 7
      %v4983 = vshrl.u32 %v4877, 16
      %v4985 = vrot.slane %v4983, 7
      %v4986 = vshll.u32 %v4877, 16
      %v4988 = vor.u32 %v4985, %v4986
      %v4989 = vsel %vm419, %v4981, %v4988
      %v4991 = vshrl.u32 %v4878, 16
      %v4993 = vrot.slane %v4991, 7
      %v4995 = vshrl.u32 %v4879, 16
      %v4997 = vrot.slane %v4995, 7
      %v4998 = vshll.u32 %v4879, 16
      %v5000 = vor.u32 %v4997, %v4998
      %v5001 = vsel %vm419, %v4993, %v5000
      %v5003 = vshrl.u32 %v4880, 16
      %v5005 = vrot.slane %v5003, 7
      %v5007 = vshrl.u32 %v4881, 16
      %v5009 = vrot.slane %v5007, 7
      %v5010 = vshll.u32 %v4881, 16
      %v5012 = vor.u32 %v5009, %v5010
      %v5013 = vsel %vm419, %v5005, %v5012
      %v5015 = vshrl.u32 %v4882, 16
      %v5017 = vrot.slane %v5015, 7
      %v5019 = vshrl.u32 %v4883, 16
      %v5021 = vrot.slane %v5019, 7
      %v5022 = vshll.u32 %v4883, 16
      %v5024 = vor.u32 %v5021, %v5022
      %v5025 = vsel %vm419, %v5017, %v5024
      %v5027 = vshrl.u32 %v4884, 16
      %v5029 = vrot.slane %v5027, 7
      %v5031 = vshrl.u32 %v4885, 16
      %v5033 = vrot.slane %v5031, 7
      %v5034 = vshll.u32 %v4885, 16
      %v5036 = vor.u32 %v5033, %v5034
      %v5037 = vsel %vm419, %v5029, %v5036
      %v5039 = vshrl.u32 %v4886, 16
      %v5041 = vrot.slane %v5039, 7
      %v5043 = vshrl.u32 %v4887, 16
      %v5045 = vrot.slane %v5043, 7
      %v5046 = vshll.u32 %v4887, 16
      %v5048 = vor.u32 %v5045, %v5046
      %v5049 = vsel %vm419, %v5041, %v5048
      %v5051 = vshrl.u32 %v4888, 16
      %v5053 = vrot.slane %v5051, 7
      %v5055 = vshrl.u32 %v4889, 16
      %v5057 = vrot.slane %v5055, 7
      %v5058 = vshll.u32 %v4889, 16
      %v5060 = vor.u32 %v5057, %v5058
      %v5061 = vsel %vm419, %v5053, %v5060
      %v5063 = vshrl.u32 %v4890, 16
      %v5065 = vrot.slane %v5063, 7
      %v5067 = vshrl.u32 %v4891, 16
      %v5069 = vrot.slane %v5067, 7
      %v5070 = vshll.u32 %v4891, 16
      %v5072 = vor.u32 %v5069, %v5070
      %v5073 = vsel %vm419, %v5065, %v5072
      %v5075 = vshrl.u32 %v4892, 16
      %v5077 = vrot.slane %v5075, 7
      %v5079 = vshrl.u32 %v4893, 16
      %v5081 = vrot.slane %v5079, 7
      %v5082 = vshll.u32 %v4893, 16
      %v5084 = vor.u32 %v5081, %v5082
      %v5085 = vsel %vm419, %v5077, %v5084
      %v5086 = vld [vmem:[%s4] sm:$0x3]
      %v5088 = vsel %vm280, %v4905, 0
      %v5091 = vsel %vm280, %v4917, 0
      %v5094 = vsel %vm280, %v4929, 0
      %v5097 = vsel %vm280, %v4941, 0
      %v5100 = vsel %vm280, %v4953, 0
      %v5103 = vsel %vm280, %v4965, 0
      %v5106 = vsel %vm280, %v4977, 0
      %v5109 = vsel %vm280, %v4989, 0
      %v5112 = vsel %vm280, %v5001, 0
      %v5115 = vsel %vm280, %v5013, 0
      %v5118 = vsel %vm280, %v5025, 0
      %v5121 = vsel %vm280, %v5037, 0
      %v5124 = vsel %vm280, %v5049, 0
      %v5127 = vsel %vm280, %v5061, 0
      %v5130 = vsel %vm280, %v5073, 0
      %v5133 = vsel %vm280, %v5085, 0
      %v5136 = vsel %vm661, %v5086, 0
      %5138 = vmatprep.subr.bf16.mxu0 0
      %5139 = vmatpush1.bf16.msra.mxu0 %v5136
      %5140 = vmatprep.subr.bf16.mxu0 0
      %5141 = vmatpush1.bf16.msra.mxu0 0
      %5142 = vmatprep.subr.bf16.mxu0 0
      %5143 = vmatpush1.bf16.msra.mxu0 0
      %5144 = vmatprep.subr.bf16.mxu0 0
      %5145 = vmatpush1.bf16.msra.mxu0 0
      %5146 = vmatprep.subr.bf16.mxu0 0
      %5147 = vmatpush1.bf16.msra.mxu0 0
      %5148 = vmatprep.subr.bf16.mxu0 0
      %5149 = vmatpush1.bf16.msra.mxu0 0
      %5150 = vmatprep.subr.bf16.mxu0 0
      %5151 = vmatpush1.bf16.msra.mxu0 0
      %5152 = vmatprep.subr.bf16.mxu0 0
      %5153 = vmatpush1.bf16.msra.mxu0 0
      %5154 = vmatprep.subr.bf16.mxu0 0
      %5155 = vmatpush1.bf16.msra.mxu0 0
      %5156 = vmatprep.subr.bf16.mxu0 0
      %5157 = vmatpush1.bf16.msra.mxu0 0
      %5158 = vmatprep.subr.bf16.mxu0 0
      %5159 = vmatpush1.bf16.msra.mxu0 0
      %5160 = vmatprep.subr.bf16.mxu0 0
      %5161 = vmatpush1.bf16.msra.mxu0 0
      %5162 = vmatprep.subr.bf16.mxu0 0
      %5163 = vmatpush1.bf16.msra.mxu0 0
      %5164 = vmatprep.subr.bf16.mxu0 0
      %5165 = vmatpush1.bf16.msra.mxu0 0
      %5166 = vmatprep.subr.bf16.mxu0 0
      %5167 = vmatpush1.bf16.msra.mxu0 0
      %5168 = vmatprep.subr.bf16.mxu0 0
      %5169 = vmatpush1.bf16.msra.mxu0 0
      %5170 = vmatprep.mubr.bf16.mxu0 0
      %5171 = vmatmul.mubr.bf16.gmra.mrb[0].mxu0 %v5088
      %v5172 = vpop.f32.mrb[0].mxu0
      %v5173 = vadd.f32 0.0, %v5172
      %v5174 = vpop.f32.mrb[0].mxu0
      %v5175 = vpop.f32.mrb[0].mxu0
      %v5176 = vadd.f32 0.0, %v5175
      %v5177 = vpop.f32.mrb[0].mxu0
      %5178 = vmatprep.mubr.bf16.mxu0 0
      %5179 = vmatmul.mubr.bf16.gmra.mrb[0].mxu0 %v5091
      %v5180 = vpop.f32.mrb[0].mxu0
      %v5181 = vadd.f32 0.0, %v5180
      %v5182 = vpop.f32.mrb[0].mxu0
      %v5183 = vpop.f32.mrb[0].mxu0
      %v5184 = vadd.f32 0.0, %v5183
      %v5185 = vpop.f32.mrb[0].mxu0
      %5186 = vmatprep.mubr.bf16.mxu0 0
      %5187 = vmatmul.mubr.bf16.gmra.mrb[0].mxu0 %v5094
      %v5188 = vpop.f32.mrb[0].mxu0
      %v5189 = vadd.f32 0.0, %v5188
      %v5190 = vpop.f32.mrb[0].mxu0
      %v5191 = vpop.f32.mrb[0].mxu0
      %v5192 = vadd.f32 0.0, %v5191
      %v5193 = vpop.f32.mrb[0].mxu0
      %5194 = vmatprep.mubr.bf16.mxu0 0
      %5195 = vmatmul.mubr.bf16.gmra.mrb[0].mxu0 %v5097
      %v5196 = vpop.f32.mrb[0].mxu0
      %v5197 = vadd.f32 0.0, %v5196
      %v5198 = vpop.f32.mrb[0].mxu0
      %v5199 = vpop.f32.mrb[0].mxu0
      %v5200 = vadd.f32 0.0, %v5199
      %v5201 = vpop.f32.mrb[0].mxu0
      %5202 = vmatprep.mubr.bf16.mxu0 0
      %5203 = vmatmul.mubr.bf16.gmra.mrb[0].mxu0 %v5100
      %v5204 = vpop.f32.mrb[0].mxu0
      %v5205 = vadd.f32 0.0, %v5204
      %v5206 = vpop.f32.mrb[0].mxu0
      %v5207 = vpop.f32.mrb[0].mxu0
      %v5208 = vadd.f32 0.0, %v5207
      %v5209 = vpop.f32.mrb[0].mxu0
      %5210 = vmatprep.mubr.bf16.mxu0 0
      %5211 = vmatmul.mubr.bf16.gmra.mrb[0].mxu0 %v5103
      %v5212 = vpop.f32.mrb[0].mxu0
      %v5213 = vadd.f32 0.0, %v5212
      %v5214 = vpop.f32.mrb[0].mxu0
      %v5215 = vpop.f32.mrb[0].mxu0
      %v5216 = vadd.f32 0.0, %v5215
      %v5217 = vpop.f32.mrb[0].mxu0
      %5218 = vmatprep.mubr.bf16.mxu0 0
      %5219 = vmatmul.mubr.bf16.gmra.mrb[0].mxu0 %v5106
      %v5220 = vpop.f32.mrb[0].mxu0
      %v5221 = vadd.f32 0.0, %v5220
      %v5222 = vpop.f32.mrb[0].mxu0
      %v5223 = vpop.f32.mrb[0].mxu0
      %v5224 = vadd.f32 0.0, %v5223
      %v5225 = vpop.f32.mrb[0].mxu0
      %5226 = vmatprep.mubr.bf16.mxu0 0
      %5227 = vmatmul.mubr.bf16.gmra.mrb[0].mxu0 %v5109
      %v5228 = vpop.f32.mrb[0].mxu0
      %v5229 = vadd.f32 0.0, %v5228
      %v5230 = vpop.f32.mrb[0].mxu0
      %v5231 = vpop.f32.mrb[0].mxu0
      %v5232 = vadd.f32 0.0, %v5231
      %v5233 = vpop.f32.mrb[0].mxu0
      %5234 = vmatprep.mubr.bf16.mxu0 0
      %5235 = vmatmul.mubr.bf16.gmra.mrb[0].mxu0 %v5112
      %v5236 = vpop.f32.mrb[0].mxu0
      %v5237 = vadd.f32 0.0, %v5236
      %v5238 = vpop.f32.mrb[0].mxu0
      %v5239 = vpop.f32.mrb[0].mxu0
      %v5240 = vadd.f32 0.0, %v5239
      %v5241 = vpop.f32.mrb[0].mxu0
      %5242 = vmatprep.mubr.bf16.mxu0 0
      %5243 = vmatmul.mubr.bf16.gmra.mrb[0].mxu0 %v5115
      %v5244 = vpop.f32.mrb[0].mxu0
      %v5245 = vadd.f32 0.0, %v5244
      %v5246 = vpop.f32.mrb[0].mxu0
      %v5247 = vpop.f32.mrb[0].mxu0
      %v5248 = vadd.f32 0.0, %v5247
      %v5249 = vpop.f32.mrb[0].mxu0
      %5250 = vmatprep.mubr.bf16.mxu0 0
      %5251 = vmatmul.mubr.bf16.gmra.mrb[0].mxu0 %v5118
      %v5252 = vpop.f32.mrb[0].mxu0
      %v5253 = vadd.f32 0.0, %v5252
      %v5254 = vpop.f32.mrb[0].mxu0
      %v5255 = vpop.f32.mrb[0].mxu0
      %v5256 = vadd.f32 0.0, %v5255
      %v5257 = vpop.f32.mrb[0].mxu0
      %5258 = vmatprep.mubr.bf16.mxu0 0
      %5259 = vmatmul.mubr.bf16.gmra.mrb[0].mxu0 %v5121
      %v5260 = vpop.f32.mrb[0].mxu0
      %v5261 = vadd.f32 0.0, %v5260
      %v5262 = vpop.f32.mrb[0].mxu0
      %v5263 = vpop.f32.mrb[0].mxu0
      %v5264 = vadd.f32 0.0, %v5263
      %v5265 = vpop.f32.mrb[0].mxu0
      %5266 = vmatprep.mubr.bf16.mxu0 0
      %5267 = vmatmul.mubr.bf16.gmra.mrb[0].mxu0 %v5124
      %v5268 = vpop.f32.mrb[0].mxu0
      %v5269 = vadd.f32 0.0, %v5268
      %v5270 = vpop.f32.mrb[0].mxu0
      %v5271 = vpop.f32.mrb[0].mxu0
      %v5272 = vadd.f32 0.0, %v5271
      %v5273 = vpop.f32.mrb[0].mxu0
      %5274 = vmatprep.mubr.bf16.mxu0 0
      %5275 = vmatmul.mubr.bf16.gmra.mrb[0].mxu0 %v5127
      %v5276 = vpop.f32.mrb[0].mxu0
      %v5277 = vadd.f32 0.0, %v5276
      %v5278 = vpop.f32.mrb[0].mxu0
      %v5279 = vpop.f32.mrb[0].mxu0
      %v5280 = vadd.f32 0.0, %v5279
      %v5281 = vpop.f32.mrb[0].mxu0
      %5282 = vmatprep.mubr.bf16.mxu0 0
      %5283 = vmatmul.mubr.bf16.gmra.mrb[0].mxu0 %v5130
      %v5284 = vpop.f32.mrb[0].mxu0
      %v5285 = vadd.f32 0.0, %v5284
      %v5286 = vpop.f32.mrb[0].mxu0
      %v5287 = vpop.f32.mrb[0].mxu0
      %v5288 = vadd.f32 0.0, %v5287
      %v5289 = vpop.f32.mrb[0].mxu0
      %5290 = vmatprep.mubr.bf16.mxu0 0
      %5291 = vmatmul.mubr.bf16.gmra.mrb[0].mxu0 %v5133
      %v5292 = vpop.f32.mrb[0].mxu0
      %v5293 = vadd.f32 0.0, %v5292
      %v5294 = vpop.f32.mrb[0].mxu0
      %v5295 = vpop.f32.mrb[0].mxu0
      %v5296 = vadd.f32 0.0, %v5295
      %v5297 = vpop.f32.mrb[0].mxu0
      %5298 = vdwg.mxu0
      %5299 = vst.msk [vmem:[#allocation3] sm:$0xff] %vm280, %v5173
      %5300 = vst.msk [vmem:[#allocation3 + $0x8] sm:$0xff] %vm280, %v5176
      %5301 = vst.msk [vmem:[#allocation3 + $0x10] sm:$0xff] %vm280, %v5181
      %5302 = vst.msk [vmem:[#allocation3 + $0x18] sm:$0xff] %vm280, %v5184
      %5303 = vst.msk [vmem:[#allocation3 + $0x20] sm:$0xff] %vm280, %v5189
      %5304 = vst.msk [vmem:[#allocation3 + $0x28] sm:$0xff] %vm280, %v5192
      %5305 = vst.msk [vmem:[#allocation3 + $0x30] sm:$0xff] %vm280, %v5197
      %5306 = vst.msk [vmem:[#allocation3 + $0x38] sm:$0xff] %vm280, %v5200
      %5307 = vst.msk [vmem:[#allocation3 + $0x40] sm:$0xff] %vm280, %v5205
      %5308 = vst.msk [vmem:[#allocation3 + $0x48] sm:$0xff] %vm280, %v5208
      %5309 = vst.msk [vmem:[#allocation3 + $0x50] sm:$0xff] %vm280, %v5213
      %5310 = vst.msk [vmem:[#allocation3 + $0x58] sm:$0xff] %vm280, %v5216
      %5311 = vst.msk [vmem:[#allocation3 + $0x60] sm:$0xff] %vm280, %v5221
      %5312 = vst.msk [vmem:[#allocation3 + $0x68] sm:$0xff] %vm280, %v5224
      %5313 = vst.msk [vmem:[#allocation3 + $0x70] sm:$0xff] %vm280, %v5229
      %5314 = vst.msk [vmem:[#allocation3 + $0x78] sm:$0xff] %vm280, %v5232
      %5315 = vst.msk [vmem:[#allocation3 + $0x80] sm:$0xff] %vm280, %v5237
      %5316 = vst.msk [vmem:[#allocation3 + $0x88] sm:$0xff] %vm280, %v5240
      %5317 = vst.msk [vmem:[#allocation3 + $0x90] sm:$0xff] %vm280, %v5245
      %5318 = vst.msk [vmem:[#allocation3 + $0x98] sm:$0xff] %vm280, %v5248
      %5319 = vst.msk [vmem:[#allocation3 + $0xa0] sm:$0xff] %vm280, %v5253
      %5320 = vst.msk [vmem:[#allocation3 + $0xa8] sm:$0xff] %vm280, %v5256
      %5321 = vst.msk [vmem:[#allocation3 + $0xb0] sm:$0xff] %vm280, %v5261
      %5322 = vst.msk [vmem:[#allocation3 + $0xb8] sm:$0xff] %vm280, %v5264
      %5323 = vst.msk [vmem:[#allocation3 + $0xc0] sm:$0xff] %vm280, %v5269
      %5324 = vst.msk [vmem:[#allocation3 + $0xc8] sm:$0xff] %vm280, %v5272
      %5325 = vst.msk [vmem:[#allocation3 + $0xd0] sm:$0xff] %vm280, %v5277
      %5326 = vst.msk [vmem:[#allocation3 + $0xd8] sm:$0xff] %vm280, %v5280
      %5327 = vst.msk [vmem:[#allocation3 + $0xe0] sm:$0xff] %vm280, %v5285
      %5328 = vst.msk [vmem:[#allocation3 + $0xe8] sm:$0xff] %vm280, %v5288
      %5329 = vst.msk [vmem:[#allocation3 + $0xf0] sm:$0xff] %vm280, %v5293
      %5330 = vst.msk [vmem:[#allocation3 + $0xf8] sm:$0xff] %vm280, %v5296
      %v5331 = vld [vmem:[#allocation2 + $0x8] sm:$0xff]
      %v5332 = vld [vmem:[#allocation2 + $0x20] sm:$0xff]
      %v5333 = vld [vmem:[#allocation2 + $0x38] sm:$0xff]
      %v5334 = vld [vmem:[#allocation2 + $0x50] sm:$0xff]
      %v5335 = vld [vmem:[#allocation2 + $0x68] sm:$0xff]
      %v5336 = vld [vmem:[#allocation2 + $0x80] sm:$0xff]
      %v5337 = vld [vmem:[#allocation2 + $0x98] sm:$0xff]
      %v5338 = vld [vmem:[#allocation2 + $0xb0] sm:$0xff]
      %v5339 = vld [vmem:[#allocation2 + $0xc8] sm:$0xff]
      %v5340 = vld [vmem:[#allocation2 + $0xe0] sm:$0xff]
      %v5341 = vld [vmem:[#allocation2 + $0xf8] sm:$0xff]
      %v5342 = vld [vmem:[#allocation2 + $0x110] sm:$0xff]
      %v5343 = vld [vmem:[#allocation2 + $0x128] sm:$0xff]
      %v5344 = vld [vmem:[#allocation2 + $0x140] sm:$0xff]
      %v5345 = vld [vmem:[#allocation2 + $0x158] sm:$0xff]
      %v5346 = vld [vmem:[#allocation2 + $0x170] sm:$0xff]
      %s5347 = scalar_lea.vmem %s4, 2
      %v5348 = vld [vmem:[%s5347] sm:$0x3]
      %v5350 = vsel %vm280, %v5331, 0
      %v5353 = vsel %vm280, %v5332, 0
      %v5356 = vsel %vm280, %v5333, 0
      %v5359 = vsel %vm280, %v5334, 0
      %v5362 = vsel %vm280, %v5335, 0
      %v5365 = vsel %vm280, %v5336, 0
      %v5368 = vsel %vm280, %v5337, 0
      %v5371 = vsel %vm280, %v5338, 0
      %v5374 = vsel %vm280, %v5339, 0
      %v5377 = vsel %vm280, %v5340, 0
      %v5380 = vsel %vm280, %v5341, 0
      %v5383 = vsel %vm280, %v5342, 0
      %v5386 = vsel %vm280, %v5343, 0
      %v5389 = vsel %vm280, %v5344, 0
      %v5392 = vsel %vm280, %v5345, 0
      %v5395 = vsel %vm280, %v5346, 0
      %v5398 = vsel %vm661, %v5348, 0
      %5400 = vmatprep.subr.bf16.mxu0 0
      %5401 = vmatpush1.bf16.msra.mxu0 %v5398
      %5402 = vmatprep.subr.bf16.mxu0 0
      %5403 = vmatpush1.bf16.msra.mxu0 0
      %5404 = vmatprep.subr.bf16.mxu0 0
      %5405 = vmatpush1.bf16.msra.mxu0 0
      %5406 = vmatprep.subr.bf16.mxu0 0
      %5407 = vmatpush1.bf16.msra.mxu0 0
      %5408 = vmatprep.subr.bf16.mxu0 0
      %5409 = vmatpush1.bf16.msra.mxu0 0
      %5410 = vmatprep.subr.bf16.mxu0 0
      %5411 = vmatpush1.bf16.msra.mxu0 0
      %5412 = vmatprep.subr.bf16.mxu0 0
      %5413 = vmatpush1.bf16.msra.mxu0 0
      %5414 = vmatprep.subr.bf16.mxu0 0
      %5415 = vmatpush1.bf16.msra.mxu0 0
      %5416 = vmatprep.subr.bf16.mxu0 0
      %5417 = vmatpush1.bf16.msra.mxu0 0
      %5418 = vmatprep.subr.bf16.mxu0 0
      %5419 = vmatpush1.bf16.msra.mxu0 0
      %5420 = vmatprep.subr.bf16.mxu0 0
      %5421 = vmatpush1.bf16.msra.mxu0 0
      %5422 = vmatprep.subr.bf16.mxu0 0
      %5423 = vmatpush1.bf16.msra.mxu0 0
      %5424 = vmatprep.subr.bf16.mxu0 0
      %5425 = vmatpush1.bf16.msra.mxu0 0
      %5426 = vmatprep.subr.bf16.mxu0 0
      %5427 = vmatpush1.bf16.msra.mxu0 0
      %5428 = vmatprep.subr.bf16.mxu0 0
      %5429 = vmatpush1.bf16.msra.mxu0 0
      %5430 = vmatprep.subr.bf16.mxu0 0
      %5431 = vmatpush1.bf16.msra.mxu0 0
      %5432 = vmatprep.mubr.bf16.mxu0 0
      %5433 = vmatmul.mubr.bf16.gmra.mrb[0].mxu0 %v5350
      %v5434 = vpop.f32.mrb[0].mxu0
      %v5435 = vadd.f32 0.0, %v5434
      %v5436 = vpop.f32.mrb[0].mxu0
      %v5437 = vpop.f32.mrb[0].mxu0
      %v5438 = vadd.f32 0.0, %v5437
      %v5439 = vpop.f32.mrb[0].mxu0
      %5440 = vmatprep.mubr.bf16.mxu0 0
      %5441 = vmatmul.mubr.bf16.gmra.mrb[0].mxu0 %v5353
      %v5442 = vpop.f32.mrb[0].mxu0
      %v5443 = vadd.f32 0.0, %v5442
      %v5444 = vpop.f32.mrb[0].mxu0
      %v5445 = vpop.f32.mrb[0].mxu0
      %v5446 = vadd.f32 0.0, %v5445
      %v5447 = vpop.f32.mrb[0].mxu0
      %5448 = vmatprep.mubr.bf16.mxu0 0
      %5449 = vmatmul.mubr.bf16.gmra.mrb[0].mxu0 %v5356
      %v5450 = vpop.f32.mrb[0].mxu0
      %v5451 = vadd.f32 0.0, %v5450
      %v5452 = vpop.f32.mrb[0].mxu0
      %v5453 = vpop.f32.mrb[0].mxu0
      %v5454 = vadd.f32 0.0, %v5453
      %v5455 = vpop.f32.mrb[0].mxu0
      %5456 = vmatprep.mubr.bf16.mxu0 0
      %5457 = vmatmul.mubr.bf16.gmra.mrb[0].mxu0 %v5359
      %v5458 = vpop.f32.mrb[0].mxu0
      %v5459 = vadd.f32 0.0, %v5458
      %v5460 = vpop.f32.mrb[0].mxu0
      %v5461 = vpop.f32.mrb[0].mxu0
      %v5462 = vadd.f32 0.0, %v5461
      %v5463 = vpop.f32.mrb[0].mxu0
      %5464 = vmatprep.mubr.bf16.mxu0 0
      %5465 = vmatmul.mubr.bf16.gmra.mrb[0].mxu0 %v5362
      %v5466 = vpop.f32.mrb[0].mxu0
      %v5467 = vadd.f32 0.0, %v5466
      %v5468 = vpop.f32.mrb[0].mxu0
      %v5469 = vpop.f32.mrb[0].mxu0
      %v5470 = vadd.f32 0.0, %v5469
      %v5471 = vpop.f32.mrb[0].mxu0
      %5472 = vmatprep.mubr.bf16.mxu0 0
      %5473 = vmatmul.mubr.bf16.gmra.mrb[0].mxu0 %v5365
      %v5474 = vpop.f32.mrb[0].mxu0
      %v5475 = vadd.f32 0.0, %v5474
      %v5476 = vpop.f32.mrb[0].mxu0
      %v5477 = vpop.f32.mrb[0].mxu0
      %v5478 = vadd.f32 0.0, %v5477
      %v5479 = vpop.f32.mrb[0].mxu0
      %5480 = vmatprep.mubr.bf16.mxu0 0
      %5481 = vmatmul.mubr.bf16.gmra.mrb[0].mxu0 %v5368
      %v5482 = vpop.f32.mrb[0].mxu0
      %v5483 = vadd.f32 0.0, %v5482
      %v5484 = vpop.f32.mrb[0].mxu0
      %v5485 = vpop.f32.mrb[0].mxu0
      %v5486 = vadd.f32 0.0, %v5485
      %v5487 = vpop.f32.mrb[0].mxu0
      %5488 = vmatprep.mubr.bf16.mxu0 0
      %5489 = vmatmul.mubr.bf16.gmra.mrb[0].mxu0 %v5371
      %v5490 = vpop.f32.mrb[0].mxu0
      %v5491 = vadd.f32 0.0, %v5490
      %v5492 = vpop.f32.mrb[0].mxu0
      %v5493 = vpop.f32.mrb[0].mxu0
      %v5494 = vadd.f32 0.0, %v5493
      %v5495 = vpop.f32.mrb[0].mxu0
      %5496 = vmatprep.mubr.bf16.mxu0 0
      %5497 = vmatmul.mubr.bf16.gmra.mrb[0].mxu0 %v5374
      %v5498 = vpop.f32.mrb[0].mxu0
      %v5499 = vadd.f32 0.0, %v5498
      %v5500 = vpop.f32.mrb[0].mxu0
      %v5501 = vpop.f32.mrb[0].mxu0
      %v5502 = vadd.f32 0.0, %v5501
      %v5503 = vpop.f32.mrb[0].mxu0
      %5504 = vmatprep.mubr.bf16.mxu0 0
      %5505 = vmatmul.mubr.bf16.gmra.mrb[0].mxu0 %v5377
      %v5506 = vpop.f32.mrb[0].mxu0
      %v5507 = vadd.f32 0.0, %v5506
      %v5508 = vpop.f32.mrb[0].mxu0
      %v5509 = vpop.f32.mrb[0].mxu0
      %v5510 = vadd.f32 0.0, %v5509
      %v5511 = vpop.f32.mrb[0].mxu0
      %5512 = vmatprep.mubr.bf16.mxu0 0
      %5513 = vmatmul.mubr.bf16.gmra.mrb[0].mxu0 %v5380
      %v5514 = vpop.f32.mrb[0].mxu0
      %v5515 = vadd.f32 0.0, %v5514
      %v5516 = vpop.f32.mrb[0].mxu0
      %v5517 = vpop.f32.mrb[0].mxu0
      %v5518 = vadd.f32 0.0, %v5517
      %v5519 = vpop.f32.mrb[0].mxu0
      %5520 = vmatprep.mubr.bf16.mxu0 0
      %5521 = vmatmul.mubr.bf16.gmra.mrb[0].mxu0 %v5383
      %v5522 = vpop.f32.mrb[0].mxu0
      %v5523 = vadd.f32 0.0, %v5522
      %v5524 = vpop.f32.mrb[0].mxu0
      %v5525 = vpop.f32.mrb[0].mxu0
      %v5526 = vadd.f32 0.0, %v5525
      %v5527 = vpop.f32.mrb[0].mxu0
      %5528 = vmatprep.mubr.bf16.mxu0 0
      %5529 = vmatmul.mubr.bf16.gmra.mrb[0].mxu0 %v5386
      %v5530 = vpop.f32.mrb[0].mxu0
      %v5531 = vadd.f32 0.0, %v5530
      %v5532 = vpop.f32.mrb[0].mxu0
      %v5533 = vpop.f32.mrb[0].mxu0
      %v5534 = vadd.f32 0.0, %v5533
      %v5535 = vpop.f32.mrb[0].mxu0
      %5536 = vmatprep.mubr.bf16.mxu0 0
      %5537 = vmatmul.mubr.bf16.gmra.mrb[0].mxu0 %v5389
      %v5538 = vpop.f32.mrb[0].mxu0
      %v5539 = vadd.f32 0.0, %v5538
      %v5540 = vpop.f32.mrb[0].mxu0
      %v5541 = vpop.f32.mrb[0].mxu0
      %v5542 = vadd.f32 0.0, %v5541
      %v5543 = vpop.f32.mrb[0].mxu0
      %5544 = vmatprep.mubr.bf16.mxu0 0
      %5545 = vmatmul.mubr.bf16.gmra.mrb[0].mxu0 %v5392
      %v5546 = vpop.f32.mrb[0].mxu0
      %v5547 = vadd.f32 0.0, %v5546
      %v5548 = vpop.f32.mrb[0].mxu0
      %v5549 = vpop.f32.mrb[0].mxu0
      %v5550 = vadd.f32 0.0, %v5549
      %v5551 = vpop.f32.mrb[0].mxu0
      %5552 = vmatprep.mubr.bf16.mxu0 0
      %5553 = vmatmul.mubr.bf16.gmra.mrb[0].mxu0 %v5395
      %v5554 = vpop.f32.mrb[0].mxu0
      %v5555 = vadd.f32 0.0, %v5554
      %v5556 = vpop.f32.mrb[0].mxu0
      %v5557 = vpop.f32.mrb[0].mxu0
      %v5558 = vadd.f32 0.0, %v5557
      %v5559 = vpop.f32.mrb[0].mxu0
      %5560 = vdwg.mxu0
      %v5561 = vld [vmem:[#allocation3] sm:$0xff]
      %v5562 = vld [vmem:[#allocation3 + $0x8] sm:$0xff]
      %v5563 = vld [vmem:[#allocation3 + $0x10] sm:$0xff]
      %v5564 = vld [vmem:[#allocation3 + $0x18] sm:$0xff]
      %v5565 = vld [vmem:[#allocation3 + $0x20] sm:$0xff]
      %v5566 = vld [vmem:[#allocation3 + $0x28] sm:$0xff]
      %v5567 = vld [vmem:[#allocation3 + $0x30] sm:$0xff]
      %v5568 = vld [vmem:[#allocation3 + $0x38] sm:$0xff]
      %v5569 = vld [vmem:[#allocation3 + $0x40] sm:$0xff]
      %v5570 = vld [vmem:[#allocation3 + $0x48] sm:$0xff]
      %v5571 = vld [vmem:[#allocation3 + $0x50] sm:$0xff]
      %v5572 = vld [vmem:[#allocation3 + $0x58] sm:$0xff]
      %v5573 = vld [vmem:[#allocation3 + $0x60] sm:$0xff]
      %v5574 = vld [vmem:[#allocation3 + $0x68] sm:$0xff]
      %v5575 = vld [vmem:[#allocation3 + $0x70] sm:$0xff]
      %v5576 = vld [vmem:[#allocation3 + $0x78] sm:$0xff]
      %v5577 = vld [vmem:[#allocation3 + $0x80] sm:$0xff]
      %v5578 = vld [vmem:[#allocation3 + $0x88] sm:$0xff]
      %v5579 = vld [vmem:[#allocation3 + $0x90] sm:$0xff]
      %v5580 = vld [vmem:[#allocation3 + $0x98] sm:$0xff]
      %v5581 = vld [vmem:[#allocation3 + $0xa0] sm:$0xff]
      %v5582 = vld [vmem:[#allocation3 + $0xa8] sm:$0xff]
      %v5583 = vld [vmem:[#allocation3 + $0xb0] sm:$0xff]
      %v5584 = vld [vmem:[#allocation3 + $0xb8] sm:$0xff]
      %v5585 = vld [vmem:[#allocation3 + $0xc0] sm:$0xff]
      %v5586 = vld [vmem:[#allocation3 + $0xc8] sm:$0xff]
      %v5587 = vld [vmem:[#allocation3 + $0xd0] sm:$0xff]
      %v5588 = vld [vmem:[#allocation3 + $0xd8] sm:$0xff]
      %v5589 = vld [vmem:[#allocation3 + $0xe0] sm:$0xff]
      %v5590 = vld [vmem:[#allocation3 + $0xe8] sm:$0xff]
      %v5591 = vld [vmem:[#allocation3 + $0xf0] sm:$0xff]
      %v5592 = vld [vmem:[#allocation3 + $0xf8] sm:$0xff]
      %v5593 = vadd.f32 %v5561, %v5435
      %v5594 = vadd.f32 %v5562, %v5438
      %v5595 = vadd.f32 %v5563, %v5443
      %v5596 = vadd.f32 %v5564, %v5446
      %v5597 = vadd.f32 %v5565, %v5451
      %v5598 = vadd.f32 %v5566, %v5454
      %v5599 = vadd.f32 %v5567, %v5459
      %v5600 = vadd.f32 %v5568, %v5462
      %v5601 = vadd.f32 %v5569, %v5467
      %v5602 = vadd.f32 %v5570, %v5470
      %v5603 = vadd.f32 %v5571, %v5475
      %v5604 = vadd.f32 %v5572, %v5478
      %v5605 = vadd.f32 %v5573, %v5483
      %v5606 = vadd.f32 %v5574, %v5486
      %v5607 = vadd.f32 %v5575, %v5491
      %v5608 = vadd.f32 %v5576, %v5494
      %v5609 = vadd.f32 %v5577, %v5499
      %v5610 = vadd.f32 %v5578, %v5502
      %v5611 = vadd.f32 %v5579, %v5507
      %v5612 = vadd.f32 %v5580, %v5510
      %v5613 = vadd.f32 %v5581, %v5515
      %v5614 = vadd.f32 %v5582, %v5518
      %v5615 = vadd.f32 %v5583, %v5523
      %v5616 = vadd.f32 %v5584, %v5526
      %v5617 = vadd.f32 %v5585, %v5531
      %v5618 = vadd.f32 %v5586, %v5534
      %v5619 = vadd.f32 %v5587, %v5539
      %v5620 = vadd.f32 %v5588, %v5542
      %v5621 = vadd.f32 %v5589, %v5547
      %v5622 = vadd.f32 %v5590, %v5550
      %v5623 = vadd.f32 %v5591, %v5555
      %v5624 = vadd.f32 %v5592, %v5558
      %5625 = vst.msk [vmem:[#allocation3] sm:$0xff] %vm280, %v5593
      %5626 = vst.msk [vmem:[#allocation3 + $0x8] sm:$0xff] %vm280, %v5594
      %5627 = vst.msk [vmem:[#allocation3 + $0x10] sm:$0xff] %vm280, %v5595
      %5628 = vst.msk [vmem:[#allocation3 + $0x18] sm:$0xff] %vm280, %v5596
      %5629 = vst.msk [vmem:[#allocation3 + $0x20] sm:$0xff] %vm280, %v5597
      %5630 = vst.msk [vmem:[#allocation3 + $0x28] sm:$0xff] %vm280, %v5598
      %5631 = vst.msk [vmem:[#allocation3 + $0x30] sm:$0xff] %vm280, %v5599
      %5632 = vst.msk [vmem:[#allocation3 + $0x38] sm:$0xff] %vm280, %v5600
      %5633 = vst.msk [vmem:[#allocation3 + $0x40] sm:$0xff] %vm280, %v5601
      %5634 = vst.msk [vmem:[#allocation3 + $0x48] sm:$0xff] %vm280, %v5602
      %5635 = vst.msk [vmem:[#allocation3 + $0x50] sm:$0xff] %vm280, %v5603
      %5636 = vst.msk [vmem:[#allocation3 + $0x58] sm:$0xff] %vm280, %v5604
      %5637 = vst.msk [vmem:[#allocation3 + $0x60] sm:$0xff] %vm280, %v5605
      %5638 = vst.msk [vmem:[#allocation3 + $0x68] sm:$0xff] %vm280, %v5606
      %5639 = vst.msk [vmem:[#allocation3 + $0x70] sm:$0xff] %vm280, %v5607
      %5640 = vst.msk [vmem:[#allocation3 + $0x78] sm:$0xff] %vm280, %v5608
      %5641 = vst.msk [vmem:[#allocation3 + $0x80] sm:$0xff] %vm280, %v5609
      %5642 = vst.msk [vmem:[#allocation3 + $0x88] sm:$0xff] %vm280, %v5610
      %5643 = vst.msk [vmem:[#allocation3 + $0x90] sm:$0xff] %vm280, %v5611
      %5644 = vst.msk [vmem:[#allocation3 + $0x98] sm:$0xff] %vm280, %v5612
      %5645 = vst.msk [vmem:[#allocation3 + $0xa0] sm:$0xff] %vm280, %v5613
      %5646 = vst.msk [vmem:[#allocation3 + $0xa8] sm:$0xff] %vm280, %v5614
      %5647 = vst.msk [vmem:[#allocation3 + $0xb0] sm:$0xff] %vm280, %v5615
      %5648 = vst.msk [vmem:[#allocation3 + $0xb8] sm:$0xff] %vm280, %v5616
      %5649 = vst.msk [vmem:[#allocation3 + $0xc0] sm:$0xff] %vm280, %v5617
      %5650 = vst.msk [vmem:[#allocation3 + $0xc8] sm:$0xff] %vm280, %v5618
      %5651 = vst.msk [vmem:[#allocation3 + $0xd0] sm:$0xff] %vm280, %v5619
      %5652 = vst.msk [vmem:[#allocation3 + $0xd8] sm:$0xff] %vm280, %v5620
      %5653 = vst.msk [vmem:[#allocation3 + $0xe0] sm:$0xff] %vm280, %v5621
      %5654 = vst.msk [vmem:[#allocation3 + $0xe8] sm:$0xff] %vm280, %v5622
      %5655 = vst.msk [vmem:[#allocation3 + $0xf0] sm:$0xff] %vm280, %v5623
      %5656 = vst.msk [vmem:[#allocation3 + $0xf8] sm:$0xff] %vm280, %v5624
      %v5657 = vld [vmem:[#allocation2 + $0x8] sm:$0xff]
      %v5658 = vld [vmem:[#allocation2 + $0x10] sm:$0x1]
      %v5659 = vld [vmem:[#allocation2 + $0x20] sm:$0xff]
      %v5660 = vld [vmem:[#allocation2 + $0x28] sm:$0x1]
      %v5661 = vld [vmem:[#allocation2 + $0x38] sm:$0xff]
      %v5662 = vld [vmem:[#allocation2 + $0x40] sm:$0x1]
      %v5663 = vld [vmem:[#allocation2 + $0x50] sm:$0xff]
      %v5664 = vld [vmem:[#allocation2 + $0x58] sm:$0x1]
      %v5665 = vld [vmem:[#allocation2 + $0x68] sm:$0xff]
      %v5666 = vld [vmem:[#allocation2 + $0x70] sm:$0x1]
      %v5667 = vld [vmem:[#allocation2 + $0x80] sm:$0xff]
      %v5668 = vld [vmem:[#allocation2 + $0x88] sm:$0x1]
      %v5669 = vld [vmem:[#allocation2 + $0x98] sm:$0xff]
      %v5670 = vld [vmem:[#allocation2 + $0xa0] sm:$0x1]
      %v5671 = vld [vmem:[#allocation2 + $0xb0] sm:$0xff]
      %v5672 = vld [vmem:[#allocation2 + $0xb8] sm:$0x1]
      %v5673 = vld [vmem:[#allocation2 + $0xc8] sm:$0xff]
      %v5674 = vld [vmem:[#allocation2 + $0xd0] sm:$0x1]
      %v5675 = vld [vmem:[#allocation2 + $0xe0] sm:$0xff]
      %v5676 = vld [vmem:[#allocation2 + $0xe8] sm:$0x1]
      %v5677 = vld [vmem:[#allocation2 + $0xf8] sm:$0xff]
      %v5678 = vld [vmem:[#allocation2 + $0x100] sm:$0x1]
      %v5679 = vld [vmem:[#allocation2 + $0x110] sm:$0xff]
      %v5680 = vld [vmem:[#allocation2 + $0x118] sm:$0x1]
      %v5681 = vld [vmem:[#allocation2 + $0x128] sm:$0xff]
      %v5682 = vld [vmem:[#allocation2 + $0x130] sm:$0x1]
      %v5683 = vld [vmem:[#allocation2 + $0x140] sm:$0xff]
      %v5684 = vld [vmem:[#allocation2 + $0x148] sm:$0x1]
      %v5685 = vld [vmem:[#allocation2 + $0x158] sm:$0xff]
      %v5686 = vld [vmem:[#allocation2 + $0x160] sm:$0x1]
      %v5687 = vld [vmem:[#allocation2 + $0x170] sm:$0xff]
      %v5688 = vld [vmem:[#allocation2 + $0x178] sm:$0x1]
      %v5690 = vshrl.u32 %v5657, 16
      %v5692 = vshll.u32 %v5657, 16
      %v5694 = vrot.slane %v5692, 1
      %v5695 = vor.u32 %v5690, %v5694
      %v5697 = vshll.u32 %v5658, 16
      %v5699 = vrot.slane %v5697, 1
      %v5700 = vsel %vm1216, %v5695, %v5699
      %v5702 = vshrl.u32 %v5659, 16
      %v5704 = vshll.u32 %v5659, 16
      %v5706 = vrot.slane %v5704, 1
      %v5707 = vor.u32 %v5702, %v5706
      %v5709 = vshll.u32 %v5660, 16
      %v5711 = vrot.slane %v5709, 1
      %v5712 = vsel %vm1216, %v5707, %v5711
      %v5714 = vshrl.u32 %v5661, 16
      %v5716 = vshll.u32 %v5661, 16
      %v5718 = vrot.slane %v5716, 1
      %v5719 = vor.u32 %v5714, %v5718
      %v5721 = vshll.u32 %v5662, 16
      %v5723 = vrot.slane %v5721, 1
      %v5724 = vsel %vm1216, %v5719, %v5723
      %v5726 = vshrl.u32 %v5663, 16
      %v5728 = vshll.u32 %v5663, 16
      %v5730 = vrot.slane %v5728, 1
      %v5731 = vor.u32 %v5726, %v5730
      %v5733 = vshll.u32 %v5664, 16
      %v5735 = vrot.slane %v5733, 1
      %v5736 = vsel %vm1216, %v5731, %v5735
      %v5738 = vshrl.u32 %v5665, 16
      %v5740 = vshll.u32 %v5665, 16
      %v5742 = vrot.slane %v5740, 1
      %v5743 = vor.u32 %v5738, %v5742
      %v5745 = vshll.u32 %v5666, 16
      %v5747 = vrot.slane %v5745, 1
      %v5748 = vsel %vm1216, %v5743, %v5747
      %v5750 = vshrl.u32 %v5667, 16
      %v5752 = vshll.u32 %v5667, 16
      %v5754 = vrot.slane %v5752, 1
      %v5755 = vor.u32 %v5750, %v5754
      %v5757 = vshll.u32 %v5668, 16
      %v5759 = vrot.slane %v5757, 1
      %v5760 = vsel %vm1216, %v5755, %v5759
      %v5762 = vshrl.u32 %v5669, 16
      %v5764 = vshll.u32 %v5669, 16
      %v5766 = vrot.slane %v5764, 1
      %v5767 = vor.u32 %v5762, %v5766
      %v5769 = vshll.u32 %v5670, 16
      %v5771 = vrot.slane %v5769, 1
      %v5772 = vsel %vm1216, %v5767, %v5771
      %v5774 = vshrl.u32 %v5671, 16
      %v5776 = vshll.u32 %v5671, 16
      %v5778 = vrot.slane %v5776, 1
      %v5779 = vor.u32 %v5774, %v5778
      %v5781 = vshll.u32 %v5672, 16
      %v5783 = vrot.slane %v5781, 1
      %v5784 = vsel %vm1216, %v5779, %v5783
      %v5786 = vshrl.u32 %v5673, 16
      %v5788 = vshll.u32 %v5673, 16
      %v5790 = vrot.slane %v5788, 1
      %v5791 = vor.u32 %v5786, %v5790
      %v5793 = vshll.u32 %v5674, 16
      %v5795 = vrot.slane %v5793, 1
      %v5796 = vsel %vm1216, %v5791, %v5795
      %v5798 = vshrl.u32 %v5675, 16
      %v5800 = vshll.u32 %v5675, 16
      %v5802 = vrot.slane %v5800, 1
      %v5803 = vor.u32 %v5798, %v5802
      %v5805 = vshll.u32 %v5676, 16
      %v5807 = vrot.slane %v5805, 1
      %v5808 = vsel %vm1216, %v5803, %v5807
      %v5810 = vshrl.u32 %v5677, 16
      %v5812 = vshll.u32 %v5677, 16
      %v5814 = vrot.slane %v5812, 1
      %v5815 = vor.u32 %v5810, %v5814
      %v5817 = vshll.u32 %v5678, 16
      %v5819 = vrot.slane %v5817, 1
      %v5820 = vsel %vm1216, %v5815, %v5819
      %v5822 = vshrl.u32 %v5679, 16
      %v5824 = vshll.u32 %v5679, 16
      %v5826 = vrot.slane %v5824, 1
      %v5827 = vor.u32 %v5822, %v5826
      %v5829 = vshll.u32 %v5680, 16
      %v5831 = vrot.slane %v5829, 1
      %v5832 = vsel %vm1216, %v5827, %v5831
      %v5834 = vshrl.u32 %v5681, 16
      %v5836 = vshll.u32 %v5681, 16
      %v5838 = vrot.slane %v5836, 1
      %v5839 = vor.u32 %v5834, %v5838
      %v5841 = vshll.u32 %v5682, 16
      %v5843 = vrot.slane %v5841, 1
      %v5844 = vsel %vm1216, %v5839, %v5843
      %v5846 = vshrl.u32 %v5683, 16
      %v5848 = vshll.u32 %v5683, 16
      %v5850 = vrot.slane %v5848, 1
      %v5851 = vor.u32 %v5846, %v5850
      %v5853 = vshll.u32 %v5684, 16
      %v5855 = vrot.slane %v5853, 1
      %v5856 = vsel %vm1216, %v5851, %v5855
      %v5858 = vshrl.u32 %v5685, 16
      %v5860 = vshll.u32 %v5685, 16
      %v5862 = vrot.slane %v5860, 1
      %v5863 = vor.u32 %v5858, %v5862
      %v5865 = vshll.u32 %v5686, 16
      %v5867 = vrot.slane %v5865, 1
      %v5868 = vsel %vm1216, %v5863, %v5867
      %v5870 = vshrl.u32 %v5687, 16
      %v5872 = vshll.u32 %v5687, 16
      %v5874 = vrot.slane %v5872, 1
      %v5875 = vor.u32 %v5870, %v5874
      %v5877 = vshll.u32 %v5688, 16
      %v5879 = vrot.slane %v5877, 1
      %v5880 = vsel %vm1216, %v5875, %v5879
      %s5881 = scalar_lea.vmem %s4, 4
      %v5882 = vld [vmem:[%s5881] sm:$0x3]
      %v5884 = vsel %vm280, %v5700, 0
      %v5887 = vsel %vm280, %v5712, 0
      %v5890 = vsel %vm280, %v5724, 0
      %v5893 = vsel %vm280, %v5736, 0
      %v5896 = vsel %vm280, %v5748, 0
      %v5899 = vsel %vm280, %v5760, 0
      %v5902 = vsel %vm280, %v5772, 0
      %v5905 = vsel %vm280, %v5784, 0
      %v5908 = vsel %vm280, %v5796, 0
      %v5911 = vsel %vm280, %v5808, 0
      %v5914 = vsel %vm280, %v5820, 0
      %v5917 = vsel %vm280, %v5832, 0
      %v5920 = vsel %vm280, %v5844, 0
      %v5923 = vsel %vm280, %v5856, 0
      %v5926 = vsel %vm280, %v5868, 0
      %v5929 = vsel %vm280, %v5880, 0
      %v5932 = vsel %vm661, %v5882, 0
      %5934 = vmatprep.subr.bf16.mxu0 0
      %5935 = vmatpush1.bf16.msra.mxu0 %v5932
      %5936 = vmatprep.subr.bf16.mxu0 0
      %5937 = vmatpush1.bf16.msra.mxu0 0
      %5938 = vmatprep.subr.bf16.mxu0 0
      %5939 = vmatpush1.bf16.msra.mxu0 0
      %5940 = vmatprep.subr.bf16.mxu0 0
      %5941 = vmatpush1.bf16.msra.mxu0 0
      %5942 = vmatprep.subr.bf16.mxu0 0
      %5943 = vmatpush1.bf16.msra.mxu0 0
      %5944 = vmatprep.subr.bf16.mxu0 0
      %5945 = vmatpush1.bf16.msra.mxu0 0
      %5946 = vmatprep.subr.bf16.mxu0 0
      %5947 = vmatpush1.bf16.msra.mxu0 0
      %5948 = vmatprep.subr.bf16.mxu0 0
      %5949 = vmatpush1.bf16.msra.mxu0 0
      %5950 = vmatprep.subr.bf16.mxu0 0
      %5951 = vmatpush1.bf16.msra.mxu0 0
      %5952 = vmatprep.subr.bf16.mxu0 0
      %5953 = vmatpush1.bf16.msra.mxu0 0
      %5954 = vmatprep.subr.bf16.mxu0 0
      %5955 = vmatpush1.bf16.msra.mxu0 0
      %5956 = vmatprep.subr.bf16.mxu0 0
      %5957 = vmatpush1.bf16.msra.mxu0 0
      %5958 = vmatprep.subr.bf16.mxu0 0
      %5959 = vmatpush1.bf16.msra.mxu0 0
      %5960 = vmatprep.subr.bf16.mxu0 0
      %5961 = vmatpush1.bf16.msra.mxu0 0
      %5962 = vmatprep.subr.bf16.mxu0 0
      %5963 = vmatpush1.bf16.msra.mxu0 0
      %5964 = vmatprep.subr.bf16.mxu0 0
      %5965 = vmatpush1.bf16.msra.mxu0 0
      %5966 = vmatprep.mubr.bf16.mxu0 0
      %5967 = vmatmul.mubr.bf16.gmra.mrb[0].mxu0 %v5884
      %v5968 = vpop.f32.mrb[0].mxu0
      %v5969 = vadd.f32 0.0, %v5968
      %v5970 = vpop.f32.mrb[0].mxu0
      %v5971 = vpop.f32.mrb[0].mxu0
      %v5972 = vadd.f32 0.0, %v5971
      %v5973 = vpop.f32.mrb[0].mxu0
      %5974 = vmatprep.mubr.bf16.mxu0 0
      %5975 = vmatmul.mubr.bf16.gmra.mrb[0].mxu0 %v5887
      %v5976 = vpop.f32.mrb[0].mxu0
      %v5977 = vadd.f32 0.0, %v5976
      %v5978 = vpop.f32.mrb[0].mxu0
      %v5979 = vpop.f32.mrb[0].mxu0
      %v5980 = vadd.f32 0.0, %v5979
      %v5981 = vpop.f32.mrb[0].mxu0
      %5982 = vmatprep.mubr.bf16.mxu0 0
      %5983 = vmatmul.mubr.bf16.gmra.mrb[0].mxu0 %v5890
      %v5984 = vpop.f32.mrb[0].mxu0
      %v5985 = vadd.f32 0.0, %v5984
      %v5986 = vpop.f32.mrb[0].mxu0
      %v5987 = vpop.f32.mrb[0].mxu0
      %v5988 = vadd.f32 0.0, %v5987
      %v5989 = vpop.f32.mrb[0].mxu0
      %5990 = vmatprep.mubr.bf16.mxu0 0
      %5991 = vmatmul.mubr.bf16.gmra.mrb[0].mxu0 %v5893
      %v5992 = vpop.f32.mrb[0].mxu0
      %v5993 = vadd.f32 0.0, %v5992
      %v5994 = vpop.f32.mrb[0].mxu0
      %v5995 = vpop.f32.mrb[0].mxu0
      %v5996 = vadd.f32 0.0, %v5995
      %v5997 = vpop.f32.mrb[0].mxu0
      %5998 = vmatprep.mubr.bf16.mxu0 0
      %5999 = vmatmul.mubr.bf16.gmra.mrb[0].mxu0 %v5896
      %v6000 = vpop.f32.mrb[0].mxu0
      %v6001 = vadd.f32 0.0, %v6000
      %v6002 = vpop.f32.mrb[0].mxu0
      %v6003 = vpop.f32.mrb[0].mxu0
      %v6004 = vadd.f32 0.0, %v6003
      %v6005 = vpop.f32.mrb[0].mxu0
      %6006 = vmatprep.mubr.bf16.mxu0 0
      %6007 = vmatmul.mubr.bf16.gmra.mrb[0].mxu0 %v5899
      %v6008 = vpop.f32.mrb[0].mxu0
      %v6009 = vadd.f32 0.0, %v6008
      %v6010 = vpop.f32.mrb[0].mxu0
      %v6011 = vpop.f32.mrb[0].mxu0
      %v6012 = vadd.f32 0.0, %v6011
      %v6013 = vpop.f32.mrb[0].mxu0
      %6014 = vmatprep.mubr.bf16.mxu0 0
      %6015 = vmatmul.mubr.bf16.gmra.mrb[0].mxu0 %v5902
      %v6016 = vpop.f32.mrb[0].mxu0
      %v6017 = vadd.f32 0.0, %v6016
      %v6018 = vpop.f32.mrb[0].mxu0
      %v6019 = vpop.f32.mrb[0].mxu0
      %v6020 = vadd.f32 0.0, %v6019
      %v6021 = vpop.f32.mrb[0].mxu0
      %6022 = vmatprep.mubr.bf16.mxu0 0
      %6023 = vmatmul.mubr.bf16.gmra.mrb[0].mxu0 %v5905
      %v6024 = vpop.f32.mrb[0].mxu0
      %v6025 = vadd.f32 0.0, %v6024
      %v6026 = vpop.f32.mrb[0].mxu0
      %v6027 = vpop.f32.mrb[0].mxu0
      %v6028 = vadd.f32 0.0, %v6027
      %v6029 = vpop.f32.mrb[0].mxu0
      %6030 = vmatprep.mubr.bf16.mxu0 0
      %6031 = vmatmul.mubr.bf16.gmra.mrb[0].mxu0 %v5908
      %v6032 = vpop.f32.mrb[0].mxu0
      %v6033 = vadd.f32 0.0, %v6032
      %v6034 = vpop.f32.mrb[0].mxu0
      %v6035 = vpop.f32.mrb[0].mxu0
      %v6036 = vadd.f32 0.0, %v6035
      %v6037 = vpop.f32.mrb[0].mxu0
      %6038 = vmatprep.mubr.bf16.mxu0 0
      %6039 = vmatmul.mubr.bf16.gmra.mrb[0].mxu0 %v5911
      %v6040 = vpop.f32.mrb[0].mxu0
      %v6041 = vadd.f32 0.0, %v6040
      %v6042 = vpop.f32.mrb[0].mxu0
      %v6043 = vpop.f32.mrb[0].mxu0
      %v6044 = vadd.f32 0.0, %v6043
      %v6045 = vpop.f32.mrb[0].mxu0
      %6046 = vmatprep.mubr.bf16.mxu0 0
      %6047 = vmatmul.mubr.bf16.gmra.mrb[0].mxu0 %v5914
      %v6048 = vpop.f32.mrb[0].mxu0
      %v6049 = vadd.f32 0.0, %v6048
      %v6050 = vpop.f32.mrb[0].mxu0
      %v6051 = vpop.f32.mrb[0].mxu0
      %v6052 = vadd.f32 0.0, %v6051
      %v6053 = vpop.f32.mrb[0].mxu0
      %6054 = vmatprep.mubr.bf16.mxu0 0
      %6055 = vmatmul.mubr.bf16.gmra.mrb[0].mxu0 %v5917
      %v6056 = vpop.f32.mrb[0].mxu0
      %v6057 = vadd.f32 0.0, %v6056
      %v6058 = vpop.f32.mrb[0].mxu0
      %v6059 = vpop.f32.mrb[0].mxu0
      %v6060 = vadd.f32 0.0, %v6059
      %v6061 = vpop.f32.mrb[0].mxu0
      %6062 = vmatprep.mubr.bf16.mxu0 0
      %6063 = vmatmul.mubr.bf16.gmra.mrb[0].mxu0 %v5920
      %v6064 = vpop.f32.mrb[0].mxu0
      %v6065 = vadd.f32 0.0, %v6064
      %v6066 = vpop.f32.mrb[0].mxu0
      %v6067 = vpop.f32.mrb[0].mxu0
      %v6068 = vadd.f32 0.0, %v6067
      %v6069 = vpop.f32.mrb[0].mxu0
      %6070 = vmatprep.mubr.bf16.mxu0 0
      %6071 = vmatmul.mubr.bf16.gmra.mrb[0].mxu0 %v5923
      %v6072 = vpop.f32.mrb[0].mxu0
      %v6073 = vadd.f32 0.0, %v6072
      %v6074 = vpop.f32.mrb[0].mxu0
      %v6075 = vpop.f32.mrb[0].mxu0
      %v6076 = vadd.f32 0.0, %v6075
      %v6077 = vpop.f32.mrb[0].mxu0
      %6078 = vmatprep.mubr.bf16.mxu0 0
      %6079 = vmatmul.mubr.bf16.gmra.mrb[0].mxu0 %v5926
      %v6080 = vpop.f32.mrb[0].mxu0
      %v6081 = vadd.f32 0.0, %v6080
      %v6082 = vpop.f32.mrb[0].mxu0
      %v6083 = vpop.f32.mrb[0].mxu0
      %v6084 = vadd.f32 0.0, %v6083
      %v6085 = vpop.f32.mrb[0].mxu0
      %6086 = vmatprep.mubr.bf16.mxu0 0
      %6087 = vmatmul.mubr.bf16.gmra.mrb[0].mxu0 %v5929
      %v6088 = vpop.f32.mrb[0].mxu0
      %v6089 = vadd.f32 0.0, %v6088
      %v6090 = vpop.f32.mrb[0].mxu0
      %v6091 = vpop.f32.mrb[0].mxu0
      %v6092 = vadd.f32 0.0, %v6091
      %v6093 = vpop.f32.mrb[0].mxu0
      %6094 = vdwg.mxu0
      %v6095 = vld [vmem:[#allocation3] sm:$0xff]
      %v6096 = vld [vmem:[#allocation3 + $0x8] sm:$0xff]
      %v6097 = vld [vmem:[#allocation3 + $0x10] sm:$0xff]
      %v6098 = vld [vmem:[#allocation3 + $0x18] sm:$0xff]
      %v6099 = vld [vmem:[#allocation3 + $0x20] sm:$0xff]
      %v6100 = vld [vmem:[#allocation3 + $0x28] sm:$0xff]
      %v6101 = vld [vmem:[#allocation3 + $0x30] sm:$0xff]
      %v6102 = vld [vmem:[#allocation3 + $0x38] sm:$0xff]
      %v6103 = vld [vmem:[#allocation3 + $0x40] sm:$0xff]
      %v6104 = vld [vmem:[#allocation3 + $0x48] sm:$0xff]
      %v6105 = vld [vmem:[#allocation3 + $0x50] sm:$0xff]
      %v6106 = vld [vmem:[#allocation3 + $0x58] sm:$0xff]
      %v6107 = vld [vmem:[#allocation3 + $0x60] sm:$0xff]
      %v6108 = vld [vmem:[#allocation3 + $0x68] sm:$0xff]
      %v6109 = vld [vmem:[#allocation3 + $0x70] sm:$0xff]
      %v6110 = vld [vmem:[#allocation3 + $0x78] sm:$0xff]
      %v6111 = vld [vmem:[#allocation3 + $0x80] sm:$0xff]
      %v6112 = vld [vmem:[#allocation3 + $0x88] sm:$0xff]
      %v6113 = vld [vmem:[#allocation3 + $0x90] sm:$0xff]
      %v6114 = vld [vmem:[#allocation3 + $0x98] sm:$0xff]
      %v6115 = vld [vmem:[#allocation3 + $0xa0] sm:$0xff]
      %v6116 = vld [vmem:[#allocation3 + $0xa8] sm:$0xff]
      %v6117 = vld [vmem:[#allocation3 + $0xb0] sm:$0xff]
      %v6118 = vld [vmem:[#allocation3 + $0xb8] sm:$0xff]
      %v6119 = vld [vmem:[#allocation3 + $0xc0] sm:$0xff]
      %v6120 = vld [vmem:[#allocation3 + $0xc8] sm:$0xff]
      %v6121 = vld [vmem:[#allocation3 + $0xd0] sm:$0xff]
      %v6122 = vld [vmem:[#allocation3 + $0xd8] sm:$0xff]
      %v6123 = vld [vmem:[#allocation3 + $0xe0] sm:$0xff]
      %v6124 = vld [vmem:[#allocation3 + $0xe8] sm:$0xff]
      %v6125 = vld [vmem:[#allocation3 + $0xf0] sm:$0xff]
      %v6126 = vld [vmem:[#allocation3 + $0xf8] sm:$0xff]
      %v6127 = vadd.f32 %v6095, %v5969
      %v6128 = vadd.f32 %v6096, %v5972
      %v6129 = vadd.f32 %v6097, %v5977
      %v6130 = vadd.f32 %v6098, %v5980
      %v6131 = vadd.f32 %v6099, %v5985
      %v6132 = vadd.f32 %v6100, %v5988
      %v6133 = vadd.f32 %v6101, %v5993
      %v6134 = vadd.f32 %v6102, %v5996
      %v6135 = vadd.f32 %v6103, %v6001
      %v6136 = vadd.f32 %v6104, %v6004
      %v6137 = vadd.f32 %v6105, %v6009
      %v6138 = vadd.f32 %v6106, %v6012
      %v6139 = vadd.f32 %v6107, %v6017
      %v6140 = vadd.f32 %v6108, %v6020
      %v6141 = vadd.f32 %v6109, %v6025
      %v6142 = vadd.f32 %v6110, %v6028
      %v6143 = vadd.f32 %v6111, %v6033
      %v6144 = vadd.f32 %v6112, %v6036
      %v6145 = vadd.f32 %v6113, %v6041
      %v6146 = vadd.f32 %v6114, %v6044
      %v6147 = vadd.f32 %v6115, %v6049
      %v6148 = vadd.f32 %v6116, %v6052
      %v6149 = vadd.f32 %v6117, %v6057
      %v6150 = vadd.f32 %v6118, %v6060
      %v6151 = vadd.f32 %v6119, %v6065
      %v6152 = vadd.f32 %v6120, %v6068
      %v6153 = vadd.f32 %v6121, %v6073
      %v6154 = vadd.f32 %v6122, %v6076
      %v6155 = vadd.f32 %v6123, %v6081
      %v6156 = vadd.f32 %v6124, %v6084
      %v6157 = vadd.f32 %v6125, %v6089
      %v6158 = vadd.f32 %v6126, %v6092
      %6159 = vst.msk [vmem:[#allocation3] sm:$0xff] %vm280, %v6127
      %6160 = vst.msk [vmem:[#allocation3 + $0x8] sm:$0xff] %vm280, %v6128
      %6161 = vst.msk [vmem:[#allocation3 + $0x10] sm:$0xff] %vm280, %v6129
      %6162 = vst.msk [vmem:[#allocation3 + $0x18] sm:$0xff] %vm280, %v6130
      %6163 = vst.msk [vmem:[#allocation3 + $0x20] sm:$0xff] %vm280, %v6131
      %6164 = vst.msk [vmem:[#allocation3 + $0x28] sm:$0xff] %vm280, %v6132
      %6165 = vst.msk [vmem:[#allocation3 + $0x30] sm:$0xff] %vm280, %v6133
      %6166 = vst.msk [vmem:[#allocation3 + $0x38] sm:$0xff] %vm280, %v6134
      %6167 = vst.msk [vmem:[#allocation3 + $0x40] sm:$0xff] %vm280, %v6135
      %6168 = vst.msk [vmem:[#allocation3 + $0x48] sm:$0xff] %vm280, %v6136
      %6169 = vst.msk [vmem:[#allocation3 + $0x50] sm:$0xff] %vm280, %v6137
      %6170 = vst.msk [vmem:[#allocation3 + $0x58] sm:$0xff] %vm280, %v6138
      %6171 = vst.msk [vmem:[#allocation3 + $0x60] sm:$0xff] %vm280, %v6139
      %6172 = vst.msk [vmem:[#allocation3 + $0x68] sm:$0xff] %vm280, %v6140
      %6173 = vst.msk [vmem:[#allocation3 + $0x70] sm:$0xff] %vm280, %v6141
      %6174 = vst.msk [vmem:[#allocation3 + $0x78] sm:$0xff] %vm280, %v6142
      %6175 = vst.msk [vmem:[#allocation3 + $0x80] sm:$0xff] %vm280, %v6143
      %6176 = vst.msk [vmem:[#allocation3 + $0x88] sm:$0xff] %vm280, %v6144
      %6177 = vst.msk [vmem:[#allocation3 + $0x90] sm:$0xff] %vm280, %v6145
      %6178 = vst.msk [vmem:[#allocation3 + $0x98] sm:$0xff] %vm280, %v6146
      %6179 = vst.msk [vmem:[#allocation3 + $0xa0] sm:$0xff] %vm280, %v6147
      %6180 = vst.msk [vmem:[#allocation3 + $0xa8] sm:$0xff] %vm280, %v6148
      %6181 = vst.msk [vmem:[#allocation3 + $0xb0] sm:$0xff] %vm280, %v6149
      %6182 = vst.msk [vmem:[#allocation3 + $0xb8] sm:$0xff] %vm280, %v6150
      %6183 = vst.msk [vmem:[#allocation3 + $0xc0] sm:$0xff] %vm280, %v6151
      %6184 = vst.msk [vmem:[#allocation3 + $0xc8] sm:$0xff] %vm280, %v6152
      %6185 = vst.msk [vmem:[#allocation3 + $0xd0] sm:$0xff] %vm280, %v6153
      %6186 = vst.msk [vmem:[#allocation3 + $0xd8] sm:$0xff] %vm280, %v6154
      %6187 = vst.msk [vmem:[#allocation3 + $0xe0] sm:$0xff] %vm280, %v6155
      %6188 = vst.msk [vmem:[#allocation3 + $0xe8] sm:$0xff] %vm280, %v6156
      %6189 = vst.msk [vmem:[#allocation3 + $0xf0] sm:$0xff] %vm280, %v6157
      %6190 = vst.msk [vmem:[#allocation3 + $0xf8] sm:$0xff] %vm280, %v6158
      %v6191 = vld [vmem:[%s288] sm:$0x80]
      %v6192 = vld [vmem:[%s288 + $0x8] sm:$0xff]
      %v6193 = vld [vmem:[%s288 + $0x18] sm:$0x80]
      %v6194 = vld [vmem:[%s288 + $0x20] sm:$0xff]
      %v6195 = vld [vmem:[%s288 + $0x30] sm:$0x80]
      %v6196 = vld [vmem:[%s288 + $0x38] sm:$0xff]
      %v6197 = vld [vmem:[%s288 + $0x48] sm:$0x80]
      %v6198 = vld [vmem:[%s288 + $0x50] sm:$0xff]
      %v6199 = vld [vmem:[%s288 + $0x60] sm:$0x80]
      %v6200 = vld [vmem:[%s288 + $0x68] sm:$0xff]
      %v6201 = vld [vmem:[%s288 + $0x78] sm:$0x80]
      %v6202 = vld [vmem:[%s288 + $0x80] sm:$0xff]
      %v6203 = vld [vmem:[%s288 + $0x90] sm:$0x80]
      %v6204 = vld [vmem:[%s288 + $0x98] sm:$0xff]
      %v6205 = vld [vmem:[%s288 + $0xa8] sm:$0x80]
      %v6206 = vld [vmem:[%s288 + $0xb0] sm:$0xff]
      %v6207 = vld [vmem:[%s288 + $0xc0] sm:$0x80]
      %v6208 = vld [vmem:[%s288 + $0xc8] sm:$0xff]
      %v6209 = vld [vmem:[%s288 + $0xd8] sm:$0x80]
      %v6210 = vld [vmem:[%s288 + $0xe0] sm:$0xff]
      %v6211 = vld [vmem:[%s288 + $0xf0] sm:$0x80]
      %v6212 = vld [vmem:[%s288 + $0xf8] sm:$0xff]
      %v6213 = vld [vmem:[%s288 + $0x108] sm:$0x80]
      %v6214 = vld [vmem:[%s288 + $0x110] sm:$0xff]
      %v6215 = vld [vmem:[%s288 + $0x120] sm:$0x80]
      %v6216 = vld [vmem:[%s288 + $0x128] sm:$0xff]
      %v6217 = vld [vmem:[%s288 + $0x138] sm:$0x80]
      %v6218 = vld [vmem:[%s288 + $0x140] sm:$0xff]
      %v6219 = vld [vmem:[%s288 + $0x150] sm:$0x80]
      %v6220 = vld [vmem:[%s288 + $0x158] sm:$0xff]
      %v6221 = vld [vmem:[%s288 + $0x168] sm:$0x80]
      %v6222 = vld [vmem:[%s288 + $0x170] sm:$0xff]
      %v6224 = vshrl.u32 %v6191, 16
      %v6226 = vrot.slane %v6224, 7
      %v6228 = vshrl.u32 %v6192, 16
      %v6230 = vrot.slane %v6228, 7
      %v6231 = vshll.u32 %v6192, 16
      %v6233 = vor.u32 %v6230, %v6231
      %v6234 = vsel %vm419, %v6226, %v6233
      %v6236 = vshrl.u32 %v6193, 16
      %v6238 = vrot.slane %v6236, 7
      %v6240 = vshrl.u32 %v6194, 16
      %v6242 = vrot.slane %v6240, 7
      %v6243 = vshll.u32 %v6194, 16
      %v6245 = vor.u32 %v6242, %v6243
      %v6246 = vsel %vm419, %v6238, %v6245
      %v6248 = vshrl.u32 %v6195, 16
      %v6250 = vrot.slane %v6248, 7
      %v6252 = vshrl.u32 %v6196, 16
      %v6254 = vrot.slane %v6252, 7
      %v6255 = vshll.u32 %v6196, 16
      %v6257 = vor.u32 %v6254, %v6255
      %v6258 = vsel %vm419, %v6250, %v6257
      %v6260 = vshrl.u32 %v6197, 16
      %v6262 = vrot.slane %v6260, 7
      %v6264 = vshrl.u32 %v6198, 16
      %v6266 = vrot.slane %v6264, 7
      %v6267 = vshll.u32 %v6198, 16
      %v6269 = vor.u32 %v6266, %v6267
      %v6270 = vsel %vm419, %v6262, %v6269
      %v6272 = vshrl.u32 %v6199, 16
      %v6274 = vrot.slane %v6272, 7
      %v6276 = vshrl.u32 %v6200, 16
      %v6278 = vrot.slane %v6276, 7
      %v6279 = vshll.u32 %v6200, 16
      %v6281 = vor.u32 %v6278, %v6279
      %v6282 = vsel %vm419, %v6274, %v6281
      %v6284 = vshrl.u32 %v6201, 16
      %v6286 = vrot.slane %v6284, 7
      %v6288 = vshrl.u32 %v6202, 16
      %v6290 = vrot.slane %v6288, 7
      %v6291 = vshll.u32 %v6202, 16
      %v6293 = vor.u32 %v6290, %v6291
      %v6294 = vsel %vm419, %v6286, %v6293
      %v6296 = vshrl.u32 %v6203, 16
      %v6298 = vrot.slane %v6296, 7
      %v6300 = vshrl.u32 %v6204, 16
      %v6302 = vrot.slane %v6300, 7
      %v6303 = vshll.u32 %v6204, 16
      %v6305 = vor.u32 %v6302, %v6303
      %v6306 = vsel %vm419, %v6298, %v6305
      %v6308 = vshrl.u32 %v6205, 16
      %v6310 = vrot.slane %v6308, 7
      %v6312 = vshrl.u32 %v6206, 16
      %v6314 = vrot.slane %v6312, 7
      %v6315 = vshll.u32 %v6206, 16
      %v6317 = vor.u32 %v6314, %v6315
      %v6318 = vsel %vm419, %v6310, %v6317
      %v6320 = vshrl.u32 %v6207, 16
      %v6322 = vrot.slane %v6320, 7
      %v6324 = vshrl.u32 %v6208, 16
      %v6326 = vrot.slane %v6324, 7
      %v6327 = vshll.u32 %v6208, 16
      %v6329 = vor.u32 %v6326, %v6327
      %v6330 = vsel %vm419, %v6322, %v6329
      %v6332 = vshrl.u32 %v6209, 16
      %v6334 = vrot.slane %v6332, 7
      %v6336 = vshrl.u32 %v6210, 16
      %v6338 = vrot.slane %v6336, 7
      %v6339 = vshll.u32 %v6210, 16
      %v6341 = vor.u32 %v6338, %v6339
      %v6342 = vsel %vm419, %v6334, %v6341
      %v6344 = vshrl.u32 %v6211, 16
      %v6346 = vrot.slane %v6344, 7
      %v6348 = vshrl.u32 %v6212, 16
      %v6350 = vrot.slane %v6348, 7
      %v6351 = vshll.u32 %v6212, 16
      %v6353 = vor.u32 %v6350, %v6351
      %v6354 = vsel %vm419, %v6346, %v6353
      %v6356 = vshrl.u32 %v6213, 16
      %v6358 = vrot.slane %v6356, 7
      %v6360 = vshrl.u32 %v6214, 16
      %v6362 = vrot.slane %v6360, 7
      %v6363 = vshll.u32 %v6214, 16
      %v6365 = vor.u32 %v6362, %v6363
      %v6366 = vsel %vm419, %v6358, %v6365
      %v6368 = vshrl.u32 %v6215, 16
      %v6370 = vrot.slane %v6368, 7
      %v6372 = vshrl.u32 %v6216, 16
      %v6374 = vrot.slane %v6372, 7
      %v6375 = vshll.u32 %v6216, 16
      %v6377 = vor.u32 %v6374, %v6375
      %v6378 = vsel %vm419, %v6370, %v6377
      %v6380 = vshrl.u32 %v6217, 16
      %v6382 = vrot.slane %v6380, 7
      %v6384 = vshrl.u32 %v6218, 16
      %v6386 = vrot.slane %v6384, 7
      %v6387 = vshll.u32 %v6218, 16
      %v6389 = vor.u32 %v6386, %v6387
      %v6390 = vsel %vm419, %v6382, %v6389
      %v6392 = vshrl.u32 %v6219, 16
      %v6394 = vrot.slane %v6392, 7
      %v6396 = vshrl.u32 %v6220, 16
      %v6398 = vrot.slane %v6396, 7
      %v6399 = vshll.u32 %v6220, 16
      %v6401 = vor.u32 %v6398, %v6399
      %v6402 = vsel %vm419, %v6394, %v6401
      %v6404 = vshrl.u32 %v6221, 16
      %v6406 = vrot.slane %v6404, 7
      %v6408 = vshrl.u32 %v6222, 16
      %v6410 = vrot.slane %v6408, 7
      %v6411 = vshll.u32 %v6222, 16
      %v6413 = vor.u32 %v6410, %v6411
      %v6414 = vsel %vm419, %v6406, %v6413
      %s6415 = scalar_lea.vmem %s4, 6
      %v6416 = vld [vmem:[%s6415] sm:$0x3]
      %v6418 = vsel %vm280, %v6234, 0
      %v6421 = vsel %vm280, %v6246, 0
      %v6424 = vsel %vm280, %v6258, 0
      %v6427 = vsel %vm280, %v6270, 0
      %v6430 = vsel %vm280, %v6282, 0
      %v6433 = vsel %vm280, %v6294, 0
      %v6436 = vsel %vm280, %v6306, 0
      %v6439 = vsel %vm280, %v6318, 0
      %v6442 = vsel %vm280, %v6330, 0
      %v6445 = vsel %vm280, %v6342, 0
      %v6448 = vsel %vm280, %v6354, 0
      %v6451 = vsel %vm280, %v6366, 0
      %v6454 = vsel %vm280, %v6378, 0
      %v6457 = vsel %vm280, %v6390, 0
      %v6460 = vsel %vm280, %v6402, 0
      %v6463 = vsel %vm280, %v6414, 0
      %v6466 = vsel %vm661, %v6416, 0
      %6468 = vmatprep.subr.bf16.mxu0 0
      %6469 = vmatpush1.bf16.msra.mxu0 %v6466
      %6470 = vmatprep.subr.bf16.mxu0 0
      %6471 = vmatpush1.bf16.msra.mxu0 0
      %6472 = vmatprep.subr.bf16.mxu0 0
      %6473 = vmatpush1.bf16.msra.mxu0 0
      %6474 = vmatprep.subr.bf16.mxu0 0
      %6475 = vmatpush1.bf16.msra.mxu0 0
      %6476 = vmatprep.subr.bf16.mxu0 0
      %6477 = vmatpush1.bf16.msra.mxu0 0
      %6478 = vmatprep.subr.bf16.mxu0 0
      %6479 = vmatpush1.bf16.msra.mxu0 0
      %6480 = vmatprep.subr.bf16.mxu0 0
      %6481 = vmatpush1.bf16.msra.mxu0 0
      %6482 = vmatprep.subr.bf16.mxu0 0
      %6483 = vmatpush1.bf16.msra.mxu0 0
      %6484 = vmatprep.subr.bf16.mxu0 0
      %6485 = vmatpush1.bf16.msra.mxu0 0
      %6486 = vmatprep.subr.bf16.mxu0 0
      %6487 = vmatpush1.bf16.msra.mxu0 0
      %6488 = vmatprep.subr.bf16.mxu0 0
      %6489 = vmatpush1.bf16.msra.mxu0 0
      %6490 = vmatprep.subr.bf16.mxu0 0
      %6491 = vmatpush1.bf16.msra.mxu0 0
      %6492 = vmatprep.subr.bf16.mxu0 0
      %6493 = vmatpush1.bf16.msra.mxu0 0
      %6494 = vmatprep.subr.bf16.mxu0 0
      %6495 = vmatpush1.bf16.msra.mxu0 0
      %6496 = vmatprep.subr.bf16.mxu0 0
      %6497 = vmatpush1.bf16.msra.mxu0 0
      %6498 = vmatprep.subr.bf16.mxu0 0
      %6499 = vmatpush1.bf16.msra.mxu0 0
      %6500 = vmatprep.mubr.bf16.mxu0 0
      %6501 = vmatmul.mubr.bf16.gmra.mrb[0].mxu0 %v6418
      %v6502 = vpop.f32.mrb[0].mxu0
      %v6503 = vadd.f32 0.0, %v6502
      %v6504 = vpop.f32.mrb[0].mxu0
      %v6505 = vpop.f32.mrb[0].mxu0
      %v6506 = vadd.f32 0.0, %v6505
      %v6507 = vpop.f32.mrb[0].mxu0
      %6508 = vmatprep.mubr.bf16.mxu0 0
      %6509 = vmatmul.mubr.bf16.gmra.mrb[0].mxu0 %v6421
      %v6510 = vpop.f32.mrb[0].mxu0
      %v6511 = vadd.f32 0.0, %v6510
      %v6512 = vpop.f32.mrb[0].mxu0
      %v6513 = vpop.f32.mrb[0].mxu0
      %v6514 = vadd.f32 0.0, %v6513
      %v6515 = vpop.f32.mrb[0].mxu0
      %6516 = vmatprep.mubr.bf16.mxu0 0
      %6517 = vmatmul.mubr.bf16.gmra.mrb[0].mxu0 %v6424
      %v6518 = vpop.f32.mrb[0].mxu0
      %v6519 = vadd.f32 0.0, %v6518
      %v6520 = vpop.f32.mrb[0].mxu0
      %v6521 = vpop.f32.mrb[0].mxu0
      %v6522 = vadd.f32 0.0, %v6521
      %v6523 = vpop.f32.mrb[0].mxu0
      %6524 = vmatprep.mubr.bf16.mxu0 0
      %6525 = vmatmul.mubr.bf16.gmra.mrb[0].mxu0 %v6427
      %v6526 = vpop.f32.mrb[0].mxu0
      %v6527 = vadd.f32 0.0, %v6526
      %v6528 = vpop.f32.mrb[0].mxu0
      %v6529 = vpop.f32.mrb[0].mxu0
      %v6530 = vadd.f32 0.0, %v6529
      %v6531 = vpop.f32.mrb[0].mxu0
      %6532 = vmatprep.mubr.bf16.mxu0 0
      %6533 = vmatmul.mubr.bf16.gmra.mrb[0].mxu0 %v6430
      %v6534 = vpop.f32.mrb[0].mxu0
      %v6535 = vadd.f32 0.0, %v6534
      %v6536 = vpop.f32.mrb[0].mxu0
      %v6537 = vpop.f32.mrb[0].mxu0
      %v6538 = vadd.f32 0.0, %v6537
      %v6539 = vpop.f32.mrb[0].mxu0
      %6540 = vmatprep.mubr.bf16.mxu0 0
      %6541 = vmatmul.mubr.bf16.gmra.mrb[0].mxu0 %v6433
      %v6542 = vpop.f32.mrb[0].mxu0
      %v6543 = vadd.f32 0.0, %v6542
      %v6544 = vpop.f32.mrb[0].mxu0
      %v6545 = vpop.f32.mrb[0].mxu0
      %v6546 = vadd.f32 0.0, %v6545
      %v6547 = vpop.f32.mrb[0].mxu0
      %6548 = vmatprep.mubr.bf16.mxu0 0
      %6549 = vmatmul.mubr.bf16.gmra.mrb[0].mxu0 %v6436
      %v6550 = vpop.f32.mrb[0].mxu0
      %v6551 = vadd.f32 0.0, %v6550
      %v6552 = vpop.f32.mrb[0].mxu0
      %v6553 = vpop.f32.mrb[0].mxu0
      %v6554 = vadd.f32 0.0, %v6553
      %v6555 = vpop.f32.mrb[0].mxu0
      %6556 = vmatprep.mubr.bf16.mxu0 0
      %6557 = vmatmul.mubr.bf16.gmra.mrb[0].mxu0 %v6439
      %v6558 = vpop.f32.mrb[0].mxu0
      %v6559 = vadd.f32 0.0, %v6558
      %v6560 = vpop.f32.mrb[0].mxu0
      %v6561 = vpop.f32.mrb[0].mxu0
      %v6562 = vadd.f32 0.0, %v6561
      %v6563 = vpop.f32.mrb[0].mxu0
      %6564 = vmatprep.mubr.bf16.mxu0 0
      %6565 = vmatmul.mubr.bf16.gmra.mrb[0].mxu0 %v6442
      %v6566 = vpop.f32.mrb[0].mxu0
      %v6567 = vadd.f32 0.0, %v6566
      %v6568 = vpop.f32.mrb[0].mxu0
      %v6569 = vpop.f32.mrb[0].mxu0
      %v6570 = vadd.f32 0.0, %v6569
      %v6571 = vpop.f32.mrb[0].mxu0
      %6572 = vmatprep.mubr.bf16.mxu0 0
      %6573 = vmatmul.mubr.bf16.gmra.mrb[0].mxu0 %v6445
      %v6574 = vpop.f32.mrb[0].mxu0
      %v6575 = vadd.f32 0.0, %v6574
      %v6576 = vpop.f32.mrb[0].mxu0
      %v6577 = vpop.f32.mrb[0].mxu0
      %v6578 = vadd.f32 0.0, %v6577
      %v6579 = vpop.f32.mrb[0].mxu0
      %6580 = vmatprep.mubr.bf16.mxu0 0
      %6581 = vmatmul.mubr.bf16.gmra.mrb[0].mxu0 %v6448
      %v6582 = vpop.f32.mrb[0].mxu0
      %v6583 = vadd.f32 0.0, %v6582
      %v6584 = vpop.f32.mrb[0].mxu0
      %v6585 = vpop.f32.mrb[0].mxu0
      %v6586 = vadd.f32 0.0, %v6585
      %v6587 = vpop.f32.mrb[0].mxu0
      %6588 = vmatprep.mubr.bf16.mxu0 0
      %6589 = vmatmul.mubr.bf16.gmra.mrb[0].mxu0 %v6451
      %v6590 = vpop.f32.mrb[0].mxu0
      %v6591 = vadd.f32 0.0, %v6590
      %v6592 = vpop.f32.mrb[0].mxu0
      %v6593 = vpop.f32.mrb[0].mxu0
      %v6594 = vadd.f32 0.0, %v6593
      %v6595 = vpop.f32.mrb[0].mxu0
      %6596 = vmatprep.mubr.bf16.mxu0 0
      %6597 = vmatmul.mubr.bf16.gmra.mrb[0].mxu0 %v6454
      %v6598 = vpop.f32.mrb[0].mxu0
      %v6599 = vadd.f32 0.0, %v6598
      %v6600 = vpop.f32.mrb[0].mxu0
      %v6601 = vpop.f32.mrb[0].mxu0
      %v6602 = vadd.f32 0.0, %v6601
      %v6603 = vpop.f32.mrb[0].mxu0
      %6604 = vmatprep.mubr.bf16.mxu0 0
      %6605 = vmatmul.mubr.bf16.gmra.mrb[0].mxu0 %v6457
      %v6606 = vpop.f32.mrb[0].mxu0
      %v6607 = vadd.f32 0.0, %v6606
      %v6608 = vpop.f32.mrb[0].mxu0
      %v6609 = vpop.f32.mrb[0].mxu0
      %v6610 = vadd.f32 0.0, %v6609
      %v6611 = vpop.f32.mrb[0].mxu0
      %6612 = vmatprep.mubr.bf16.mxu0 0
      %6613 = vmatmul.mubr.bf16.gmra.mrb[0].mxu0 %v6460
      %v6614 = vpop.f32.mrb[0].mxu0
      %v6615 = vadd.f32 0.0, %v6614
      %v6616 = vpop.f32.mrb[0].mxu0
      %v6617 = vpop.f32.mrb[0].mxu0
      %v6618 = vadd.f32 0.0, %v6617
      %v6619 = vpop.f32.mrb[0].mxu0
      %6620 = vmatprep.mubr.bf16.mxu0 0
      %6621 = vmatmul.mubr.bf16.gmra.mrb[0].mxu0 %v6463
      %v6622 = vpop.f32.mrb[0].mxu0
      %v6623 = vadd.f32 0.0, %v6622
      %v6624 = vpop.f32.mrb[0].mxu0
      %v6625 = vpop.f32.mrb[0].mxu0
      %v6626 = vadd.f32 0.0, %v6625
      %v6627 = vpop.f32.mrb[0].mxu0
      %6628 = vdwg.mxu0
      %v6629 = vld [vmem:[#allocation3] sm:$0xff]
      %v6630 = vld [vmem:[#allocation3 + $0x8] sm:$0xff]
      %v6631 = vld [vmem:[#allocation3 + $0x10] sm:$0xff]
      %v6632 = vld [vmem:[#allocation3 + $0x18] sm:$0xff]
      %v6633 = vld [vmem:[#allocation3 + $0x20] sm:$0xff]
      %v6634 = vld [vmem:[#allocation3 + $0x28] sm:$0xff]
      %v6635 = vld [vmem:[#allocation3 + $0x30] sm:$0xff]
      %v6636 = vld [vmem:[#allocation3 + $0x38] sm:$0xff]
      %v6637 = vld [vmem:[#allocation3 + $0x40] sm:$0xff]
      %v6638 = vld [vmem:[#allocation3 + $0x48] sm:$0xff]
      %v6639 = vld [vmem:[#allocation3 + $0x50] sm:$0xff]
      %v6640 = vld [vmem:[#allocation3 + $0x58] sm:$0xff]
      %v6641 = vld [vmem:[#allocation3 + $0x60] sm:$0xff]
      %v6642 = vld [vmem:[#allocation3 + $0x68] sm:$0xff]
      %v6643 = vld [vmem:[#allocation3 + $0x70] sm:$0xff]
      %v6644 = vld [vmem:[#allocation3 + $0x78] sm:$0xff]
      %v6645 = vld [vmem:[#allocation3 + $0x80] sm:$0xff]
      %v6646 = vld [vmem:[#allocation3 + $0x88] sm:$0xff]
      %v6647 = vld [vmem:[#allocation3 + $0x90] sm:$0xff]
      %v6648 = vld [vmem:[#allocation3 + $0x98] sm:$0xff]
      %v6649 = vld [vmem:[#allocation3 + $0xa0] sm:$0xff]
      %v6650 = vld [vmem:[#allocation3 + $0xa8] sm:$0xff]
      %v6651 = vld [vmem:[#allocation3 + $0xb0] sm:$0xff]
      %v6652 = vld [vmem:[#allocation3 + $0xb8] sm:$0xff]
      %v6653 = vld [vmem:[#allocation3 + $0xc0] sm:$0xff]
      %v6654 = vld [vmem:[#allocation3 + $0xc8] sm:$0xff]
      %v6655 = vld [vmem:[#allocation3 + $0xd0] sm:$0xff]
      %v6656 = vld [vmem:[#allocation3 + $0xd8] sm:$0xff]
      %v6657 = vld [vmem:[#allocation3 + $0xe0] sm:$0xff]
      %v6658 = vld [vmem:[#allocation3 + $0xe8] sm:$0xff]
      %v6659 = vld [vmem:[#allocation3 + $0xf0] sm:$0xff]
      %v6660 = vld [vmem:[#allocation3 + $0xf8] sm:$0xff]
      %v6661 = vadd.f32 %v6629, %v6503
      %v6662 = vadd.f32 %v6630, %v6506
      %v6663 = vadd.f32 %v6631, %v6511
      %v6664 = vadd.f32 %v6632, %v6514
      %v6665 = vadd.f32 %v6633, %v6519
      %v6666 = vadd.f32 %v6634, %v6522
      %v6667 = vadd.f32 %v6635, %v6527
      %v6668 = vadd.f32 %v6636, %v6530
      %v6669 = vadd.f32 %v6637, %v6535
      %v6670 = vadd.f32 %v6638, %v6538
      %v6671 = vadd.f32 %v6639, %v6543
      %v6672 = vadd.f32 %v6640, %v6546
      %v6673 = vadd.f32 %v6641, %v6551
      %v6674 = vadd.f32 %v6642, %v6554
      %v6675 = vadd.f32 %v6643, %v6559
      %v6676 = vadd.f32 %v6644, %v6562
      %v6677 = vadd.f32 %v6645, %v6567
      %v6678 = vadd.f32 %v6646, %v6570
      %v6679 = vadd.f32 %v6647, %v6575
      %v6680 = vadd.f32 %v6648, %v6578
      %v6681 = vadd.f32 %v6649, %v6583
      %v6682 = vadd.f32 %v6650, %v6586
      %v6683 = vadd.f32 %v6651, %v6591
      %v6684 = vadd.f32 %v6652, %v6594
      %v6685 = vadd.f32 %v6653, %v6599
      %v6686 = vadd.f32 %v6654, %v6602
      %v6687 = vadd.f32 %v6655, %v6607
      %v6688 = vadd.f32 %v6656, %v6610
      %v6689 = vadd.f32 %v6657, %v6615
      %v6690 = vadd.f32 %v6658, %v6618
      %v6691 = vadd.f32 %v6659, %v6623
      %v6692 = vadd.f32 %v6660, %v6626
      %6693 = vst.msk [vmem:[#allocation3] sm:$0xff] %vm280, %v6661
      %6694 = vst.msk [vmem:[#allocation3 + $0x8] sm:$0xff] %vm280, %v6662
      %6695 = vst.msk [vmem:[#allocation3 + $0x10] sm:$0xff] %vm280, %v6663
      %6696 = vst.msk [vmem:[#allocation3 + $0x18] sm:$0xff] %vm280, %v6664
      %6697 = vst.msk [vmem:[#allocation3 + $0x20] sm:$0xff] %vm280, %v6665
      %6698 = vst.msk [vmem:[#allocation3 + $0x28] sm:$0xff] %vm280, %v6666
      %6699 = vst.msk [vmem:[#allocation3 + $0x30] sm:$0xff] %vm280, %v6667
      %6700 = vst.msk [vmem:[#allocation3 + $0x38] sm:$0xff] %vm280, %v6668
      %6701 = vst.msk [vmem:[#allocation3 + $0x40] sm:$0xff] %vm280, %v6669
      %6702 = vst.msk [vmem:[#allocation3 + $0x48] sm:$0xff] %vm280, %v6670
      %6703 = vst.msk [vmem:[#allocation3 + $0x50] sm:$0xff] %vm280, %v6671
      %6704 = vst.msk [vmem:[#allocation3 + $0x58] sm:$0xff] %vm280, %v6672
      %6705 = vst.msk [vmem:[#allocation3 + $0x60] sm:$0xff] %vm280, %v6673
      %6706 = vst.msk [vmem:[#allocation3 + $0x68] sm:$0xff] %vm280, %v6674
      %6707 = vst.msk [vmem:[#allocation3 + $0x70] sm:$0xff] %vm280, %v6675
      %6708 = vst.msk [vmem:[#allocation3 + $0x78] sm:$0xff] %vm280, %v6676
      %6709 = vst.msk [vmem:[#allocation3 + $0x80] sm:$0xff] %vm280, %v6677
      %6710 = vst.msk [vmem:[#allocation3 + $0x88] sm:$0xff] %vm280, %v6678
      %6711 = vst.msk [vmem:[#allocation3 + $0x90] sm:$0xff] %vm280, %v6679
      %6712 = vst.msk [vmem:[#allocation3 + $0x98] sm:$0xff] %vm280, %v6680
      %6713 = vst.msk [vmem:[#allocation3 + $0xa0] sm:$0xff] %vm280, %v6681
      %6714 = vst.msk [vmem:[#allocation3 + $0xa8] sm:$0xff] %vm280, %v6682
      %6715 = vst.msk [vmem:[#allocation3 + $0xb0] sm:$0xff] %vm280, %v6683
      %6716 = vst.msk [vmem:[#allocation3 + $0xb8] sm:$0xff] %vm280, %v6684
      %6717 = vst.msk [vmem:[#allocation3 + $0xc0] sm:$0xff] %vm280, %v6685
      %6718 = vst.msk [vmem:[#allocation3 + $0xc8] sm:$0xff] %vm280, %v6686
      %6719 = vst.msk [vmem:[#allocation3 + $0xd0] sm:$0xff] %vm280, %v6687
      %6720 = vst.msk [vmem:[#allocation3 + $0xd8] sm:$0xff] %vm280, %v6688
      %6721 = vst.msk [vmem:[#allocation3 + $0xe0] sm:$0xff] %vm280, %v6689
      %6722 = vst.msk [vmem:[#allocation3 + $0xe8] sm:$0xff] %vm280, %v6690
      %6723 = vst.msk [vmem:[#allocation3 + $0xf0] sm:$0xff] %vm280, %v6691
      %6724 = vst.msk [vmem:[#allocation3 + $0xf8] sm:$0xff] %vm280, %v6692
      %v6725 = vld [vmem:[%s288 + $0x8] sm:$0xff]
      %v6726 = vld [vmem:[%s288 + $0x20] sm:$0xff]
      %v6727 = vld [vmem:[%s288 + $0x38] sm:$0xff]
      %v6728 = vld [vmem:[%s288 + $0x50] sm:$0xff]
      %v6729 = vld [vmem:[%s288 + $0x68] sm:$0xff]
      %v6730 = vld [vmem:[%s288 + $0x80] sm:$0xff]
      %v6731 = vld [vmem:[%s288 + $0x98] sm:$0xff]
      %v6732 = vld [vmem:[%s288 + $0xb0] sm:$0xff]
      %v6733 = vld [vmem:[%s288 + $0xc8] sm:$0xff]
      %v6734 = vld [vmem:[%s288 + $0xe0] sm:$0xff]
      %v6735 = vld [vmem:[%s288 + $0xf8] sm:$0xff]
      %v6736 = vld [vmem:[%s288 + $0x110] sm:$0xff]
      %v6737 = vld [vmem:[%s288 + $0x128] sm:$0xff]
      %v6738 = vld [vmem:[%s288 + $0x140] sm:$0xff]
      %v6739 = vld [vmem:[%s288 + $0x158] sm:$0xff]
      %v6740 = vld [vmem:[%s288 + $0x170] sm:$0xff]
      %s6741 = scalar_lea.vmem %s4, 8
      %v6742 = vld [vmem:[%s6741] sm:$0x3]
      %v6744 = vsel %vm280, %v6725, 0
      %v6747 = vsel %vm280, %v6726, 0
      %v6750 = vsel %vm280, %v6727, 0
      %v6753 = vsel %vm280, %v6728, 0
      %v6756 = vsel %vm280, %v6729, 0
      %v6759 = vsel %vm280, %v6730, 0
      %v6762 = vsel %vm280, %v6731, 0
      %v6765 = vsel %vm280, %v6732, 0
      %v6768 = vsel %vm280, %v6733, 0
      %v6771 = vsel %vm280, %v6734, 0
      %v6774 = vsel %vm280, %v6735, 0
      %v6777 = vsel %vm280, %v6736, 0
      %v6780 = vsel %vm280, %v6737, 0
      %v6783 = vsel %vm280, %v6738, 0
      %v6786 = vsel %vm280, %v6739, 0
      %v6789 = vsel %vm280, %v6740, 0
      %v6792 = vsel %vm661, %v6742, 0
      %6794 = vmatprep.subr.bf16.mxu0 0
      %6795 = vmatpush1.bf16.msra.mxu0 %v6792
      %6796 = vmatprep.subr.bf16.mxu0 0
      %6797 = vmatpush1.bf16.msra.mxu0 0
      %6798 = vmatprep.subr.bf16.mxu0 0
      %6799 = vmatpush1.bf16.msra.mxu0 0
      %6800 = vmatprep.subr.bf16.mxu0 0
      %6801 = vmatpush1.bf16.msra.mxu0 0
      %6802 = vmatprep.subr.bf16.mxu0 0
      %6803 = vmatpush1.bf16.msra.mxu0 0
      %6804 = vmatprep.subr.bf16.mxu0 0
      %6805 = vmatpush1.bf16.msra.mxu0 0
      %6806 = vmatprep.subr.bf16.mxu0 0
      %6807 = vmatpush1.bf16.msra.mxu0 0
      %6808 = vmatprep.subr.bf16.mxu0 0
      %6809 = vmatpush1.bf16.msra.mxu0 0
      %6810 = vmatprep.subr.bf16.mxu0 0
      %6811 = vmatpush1.bf16.msra.mxu0 0
      %6812 = vmatprep.subr.bf16.mxu0 0
      %6813 = vmatpush1.bf16.msra.mxu0 0
      %6814 = vmatprep.subr.bf16.mxu0 0
      %6815 = vmatpush1.bf16.msra.mxu0 0
      %6816 = vmatprep.subr.bf16.mxu0 0
      %6817 = vmatpush1.bf16.msra.mxu0 0
      %6818 = vmatprep.subr.bf16.mxu0 0
      %6819 = vmatpush1.bf16.msra.mxu0 0
      %6820 = vmatprep.subr.bf16.mxu0 0
      %6821 = vmatpush1.bf16.msra.mxu0 0
      %6822 = vmatprep.subr.bf16.mxu0 0
      %6823 = vmatpush1.bf16.msra.mxu0 0
      %6824 = vmatprep.subr.bf16.mxu0 0
      %6825 = vmatpush1.bf16.msra.mxu0 0
      %6826 = vmatprep.mubr.bf16.mxu0 0
      %6827 = vmatmul.mubr.bf16.gmra.mrb[0].mxu0 %v6744
      %v6828 = vpop.f32.mrb[0].mxu0
      %v6829 = vadd.f32 0.0, %v6828
      %v6830 = vpop.f32.mrb[0].mxu0
      %v6831 = vpop.f32.mrb[0].mxu0
      %v6832 = vadd.f32 0.0, %v6831
      %v6833 = vpop.f32.mrb[0].mxu0
      %6834 = vmatprep.mubr.bf16.mxu0 0
      %6835 = vmatmul.mubr.bf16.gmra.mrb[0].mxu0 %v6747
      %v6836 = vpop.f32.mrb[0].mxu0
      %v6837 = vadd.f32 0.0, %v6836
      %v6838 = vpop.f32.mrb[0].mxu0
      %v6839 = vpop.f32.mrb[0].mxu0
      %v6840 = vadd.f32 0.0, %v6839
      %v6841 = vpop.f32.mrb[0].mxu0
      %6842 = vmatprep.mubr.bf16.mxu0 0
      %6843 = vmatmul.mubr.bf16.gmra.mrb[0].mxu0 %v6750
      %v6844 = vpop.f32.mrb[0].mxu0
      %v6845 = vadd.f32 0.0, %v6844
      %v6846 = vpop.f32.mrb[0].mxu0
      %v6847 = vpop.f32.mrb[0].mxu0
      %v6848 = vadd.f32 0.0, %v6847
      %v6849 = vpop.f32.mrb[0].mxu0
      %6850 = vmatprep.mubr.bf16.mxu0 0
      %6851 = vmatmul.mubr.bf16.gmra.mrb[0].mxu0 %v6753
      %v6852 = vpop.f32.mrb[0].mxu0
      %v6853 = vadd.f32 0.0, %v6852
      %v6854 = vpop.f32.mrb[0].mxu0
      %v6855 = vpop.f32.mrb[0].mxu0
      %v6856 = vadd.f32 0.0, %v6855
      %v6857 = vpop.f32.mrb[0].mxu0
      %6858 = vmatprep.mubr.bf16.mxu0 0
      %6859 = vmatmul.mubr.bf16.gmra.mrb[0].mxu0 %v6756
      %v6860 = vpop.f32.mrb[0].mxu0
      %v6861 = vadd.f32 0.0, %v6860
      %v6862 = vpop.f32.mrb[0].mxu0
      %v6863 = vpop.f32.mrb[0].mxu0
      %v6864 = vadd.f32 0.0, %v6863
      %v6865 = vpop.f32.mrb[0].mxu0
      %6866 = vmatprep.mubr.bf16.mxu0 0
      %6867 = vmatmul.mubr.bf16.gmra.mrb[0].mxu0 %v6759
      %v6868 = vpop.f32.mrb[0].mxu0
      %v6869 = vadd.f32 0.0, %v6868
      %v6870 = vpop.f32.mrb[0].mxu0
      %v6871 = vpop.f32.mrb[0].mxu0
      %v6872 = vadd.f32 0.0, %v6871
      %v6873 = vpop.f32.mrb[0].mxu0
      %6874 = vmatprep.mubr.bf16.mxu0 0
      %6875 = vmatmul.mubr.bf16.gmra.mrb[0].mxu0 %v6762
      %v6876 = vpop.f32.mrb[0].mxu0
      %v6877 = vadd.f32 0.0, %v6876
      %v6878 = vpop.f32.mrb[0].mxu0
      %v6879 = vpop.f32.mrb[0].mxu0
      %v6880 = vadd.f32 0.0, %v6879
      %v6881 = vpop.f32.mrb[0].mxu0
      %6882 = vmatprep.mubr.bf16.mxu0 0
      %6883 = vmatmul.mubr.bf16.gmra.mrb[0].mxu0 %v6765
      %v6884 = vpop.f32.mrb[0].mxu0
      %v6885 = vadd.f32 0.0, %v6884
      %v6886 = vpop.f32.mrb[0].mxu0
      %v6887 = vpop.f32.mrb[0].mxu0
      %v6888 = vadd.f32 0.0, %v6887
      %v6889 = vpop.f32.mrb[0].mxu0
      %6890 = vmatprep.mubr.bf16.mxu0 0
      %6891 = vmatmul.mubr.bf16.gmra.mrb[0].mxu0 %v6768
      %v6892 = vpop.f32.mrb[0].mxu0
      %v6893 = vadd.f32 0.0, %v6892
      %v6894 = vpop.f32.mrb[0].mxu0
      %v6895 = vpop.f32.mrb[0].mxu0
      %v6896 = vadd.f32 0.0, %v6895
      %v6897 = vpop.f32.mrb[0].mxu0
      %6898 = vmatprep.mubr.bf16.mxu0 0
      %6899 = vmatmul.mubr.bf16.gmra.mrb[0].mxu0 %v6771
      %v6900 = vpop.f32.mrb[0].mxu0
      %v6901 = vadd.f32 0.0, %v6900
      %v6902 = vpop.f32.mrb[0].mxu0
      %v6903 = vpop.f32.mrb[0].mxu0
      %v6904 = vadd.f32 0.0, %v6903
      %v6905 = vpop.f32.mrb[0].mxu0
      %6906 = vmatprep.mubr.bf16.mxu0 0
      %6907 = vmatmul.mubr.bf16.gmra.mrb[0].mxu0 %v6774
      %v6908 = vpop.f32.mrb[0].mxu0
      %v6909 = vadd.f32 0.0, %v6908
      %v6910 = vpop.f32.mrb[0].mxu0
      %v6911 = vpop.f32.mrb[0].mxu0
      %v6912 = vadd.f32 0.0, %v6911
      %v6913 = vpop.f32.mrb[0].mxu0
      %6914 = vmatprep.mubr.bf16.mxu0 0
      %6915 = vmatmul.mubr.bf16.gmra.mrb[0].mxu0 %v6777
      %v6916 = vpop.f32.mrb[0].mxu0
      %v6917 = vadd.f32 0.0, %v6916
      %v6918 = vpop.f32.mrb[0].mxu0
      %v6919 = vpop.f32.mrb[0].mxu0
      %v6920 = vadd.f32 0.0, %v6919
      %v6921 = vpop.f32.mrb[0].mxu0
      %6922 = vmatprep.mubr.bf16.mxu0 0
      %6923 = vmatmul.mubr.bf16.gmra.mrb[0].mxu0 %v6780
      %v6924 = vpop.f32.mrb[0].mxu0
      %v6925 = vadd.f32 0.0, %v6924
      %v6926 = vpop.f32.mrb[0].mxu0
      %v6927 = vpop.f32.mrb[0].mxu0
      %v6928 = vadd.f32 0.0, %v6927
      %v6929 = vpop.f32.mrb[0].mxu0
      %6930 = vmatprep.mubr.bf16.mxu0 0
      %6931 = vmatmul.mubr.bf16.gmra.mrb[0].mxu0 %v6783
      %v6932 = vpop.f32.mrb[0].mxu0
      %v6933 = vadd.f32 0.0, %v6932
      %v6934 = vpop.f32.mrb[0].mxu0
      %v6935 = vpop.f32.mrb[0].mxu0
      %v6936 = vadd.f32 0.0, %v6935
      %v6937 = vpop.f32.mrb[0].mxu0
      %6938 = vmatprep.mubr.bf16.mxu0 0
      %6939 = vmatmul.mubr.bf16.gmra.mrb[0].mxu0 %v6786
      %v6940 = vpop.f32.mrb[0].mxu0
      %v6941 = vadd.f32 0.0, %v6940
      %v6942 = vpop.f32.mrb[0].mxu0
      %v6943 = vpop.f32.mrb[0].mxu0
      %v6944 = vadd.f32 0.0, %v6943
      %v6945 = vpop.f32.mrb[0].mxu0
      %6946 = vmatprep.mubr.bf16.mxu0 0
      %6947 = vmatmul.mubr.bf16.gmra.mrb[0].mxu0 %v6789
      %v6948 = vpop.f32.mrb[0].mxu0
      %v6949 = vadd.f32 0.0, %v6948
      %v6950 = vpop.f32.mrb[0].mxu0
      %v6951 = vpop.f32.mrb[0].mxu0
      %v6952 = vadd.f32 0.0, %v6951
      %v6953 = vpop.f32.mrb[0].mxu0
      %6954 = vdwg.mxu0
      %v6955 = vld [vmem:[#allocation3] sm:$0xff]
      %v6956 = vld [vmem:[#allocation3 + $0x8] sm:$0xff]
      %v6957 = vld [vmem:[#allocation3 + $0x10] sm:$0xff]
      %v6958 = vld [vmem:[#allocation3 + $0x18] sm:$0xff]
      %v6959 = vld [vmem:[#allocation3 + $0x20] sm:$0xff]
      %v6960 = vld [vmem:[#allocation3 + $0x28] sm:$0xff]
      %v6961 = vld [vmem:[#allocation3 + $0x30] sm:$0xff]
      %v6962 = vld [vmem:[#allocation3 + $0x38] sm:$0xff]
      %v6963 = vld [vmem:[#allocation3 + $0x40] sm:$0xff]
      %v6964 = vld [vmem:[#allocation3 + $0x48] sm:$0xff]
      %v6965 = vld [vmem:[#allocation3 + $0x50] sm:$0xff]
      %v6966 = vld [vmem:[#allocation3 + $0x58] sm:$0xff]
      %v6967 = vld [vmem:[#allocation3 + $0x60] sm:$0xff]
      %v6968 = vld [vmem:[#allocation3 + $0x68] sm:$0xff]
      %v6969 = vld [vmem:[#allocation3 + $0x70] sm:$0xff]
      %v6970 = vld [vmem:[#allocation3 + $0x78] sm:$0xff]
      %v6971 = vld [vmem:[#allocation3 + $0x80] sm:$0xff]
      %v6972 = vld [vmem:[#allocation3 + $0x88] sm:$0xff]
      %v6973 = vld [vmem:[#allocation3 + $0x90] sm:$0xff]
      %v6974 = vld [vmem:[#allocation3 + $0x98] sm:$0xff]
      %v6975 = vld [vmem:[#allocation3 + $0xa0] sm:$0xff]
      %v6976 = vld [vmem:[#allocation3 + $0xa8] sm:$0xff]
      %v6977 = vld [vmem:[#allocation3 + $0xb0] sm:$0xff]
      %v6978 = vld [vmem:[#allocation3 + $0xb8] sm:$0xff]
      %v6979 = vld [vmem:[#allocation3 + $0xc0] sm:$0xff]
      %v6980 = vld [vmem:[#allocation3 + $0xc8] sm:$0xff]
      %v6981 = vld [vmem:[#allocation3 + $0xd0] sm:$0xff]
      %v6982 = vld [vmem:[#allocation3 + $0xd8] sm:$0xff]
      %v6983 = vld [vmem:[#allocation3 + $0xe0] sm:$0xff]
      %v6984 = vld [vmem:[#allocation3 + $0xe8] sm:$0xff]
      %v6985 = vld [vmem:[#allocation3 + $0xf0] sm:$0xff]
      %v6986 = vld [vmem:[#allocation3 + $0xf8] sm:$0xff]
      %v6987 = vadd.f32 %v6955, %v6829
      %v6988 = vadd.f32 %v6956, %v6832
      %v6989 = vadd.f32 %v6957, %v6837
      %v6990 = vadd.f32 %v6958, %v6840
      %v6991 = vadd.f32 %v6959, %v6845
      %v6992 = vadd.f32 %v6960, %v6848
      %v6993 = vadd.f32 %v6961, %v6853
      %v6994 = vadd.f32 %v6962, %v6856
      %v6995 = vadd.f32 %v6963, %v6861
      %v6996 = vadd.f32 %v6964, %v6864
      %v6997 = vadd.f32 %v6965, %v6869
      %v6998 = vadd.f32 %v6966, %v6872
      %v6999 = vadd.f32 %v6967, %v6877
      %v7000 = vadd.f32 %v6968, %v6880
      %v7001 = vadd.f32 %v6969, %v6885
      %v7002 = vadd.f32 %v6970, %v6888
      %v7003 = vadd.f32 %v6971, %v6893
      %v7004 = vadd.f32 %v6972, %v6896
      %v7005 = vadd.f32 %v6973, %v6901
      %v7006 = vadd.f32 %v6974, %v6904
      %v7007 = vadd.f32 %v6975, %v6909
      %v7008 = vadd.f32 %v6976, %v6912
      %v7009 = vadd.f32 %v6977, %v6917
      %v7010 = vadd.f32 %v6978, %v6920
      %v7011 = vadd.f32 %v6979, %v6925
      %v7012 = vadd.f32 %v6980, %v6928
      %v7013 = vadd.f32 %v6981, %v6933
      %v7014 = vadd.f32 %v6982, %v6936
      %v7015 = vadd.f32 %v6983, %v6941
      %v7016 = vadd.f32 %v6984, %v6944
      %v7017 = vadd.f32 %v6985, %v6949
      %v7018 = vadd.f32 %v6986, %v6952
      %7019 = vst.msk [vmem:[#allocation3] sm:$0xff] %vm280, %v6987
      %7020 = vst.msk [vmem:[#allocation3 + $0x8] sm:$0xff] %vm280, %v6988
      %7021 = vst.msk [vmem:[#allocation3 + $0x10] sm:$0xff] %vm280, %v6989
      %7022 = vst.msk [vmem:[#allocation3 + $0x18] sm:$0xff] %vm280, %v6990
      %7023 = vst.msk [vmem:[#allocation3 + $0x20] sm:$0xff] %vm280, %v6991
      %7024 = vst.msk [vmem:[#allocation3 + $0x28] sm:$0xff] %vm280, %v6992
      %7025 = vst.msk [vmem:[#allocation3 + $0x30] sm:$0xff] %vm280, %v6993
      %7026 = vst.msk [vmem:[#allocation3 + $0x38] sm:$0xff] %vm280, %v6994
      %7027 = vst.msk [vmem:[#allocation3 + $0x40] sm:$0xff] %vm280, %v6995
      %7028 = vst.msk [vmem:[#allocation3 + $0x48] sm:$0xff] %vm280, %v6996
      %7029 = vst.msk [vmem:[#allocation3 + $0x50] sm:$0xff] %vm280, %v6997
      %7030 = vst.msk [vmem:[#allocation3 + $0x58] sm:$0xff] %vm280, %v6998
      %7031 = vst.msk [vmem:[#allocation3 + $0x60] sm:$0xff] %vm280, %v6999
      %7032 = vst.msk [vmem:[#allocation3 + $0x68] sm:$0xff] %vm280, %v7000
      %7033 = vst.msk [vmem:[#allocation3 + $0x70] sm:$0xff] %vm280, %v7001
      %7034 = vst.msk [vmem:[#allocation3 + $0x78] sm:$0xff] %vm280, %v7002
      %7035 = vst.msk [vmem:[#allocation3 + $0x80] sm:$0xff] %vm280, %v7003
      %7036 = vst.msk [vmem:[#allocation3 + $0x88] sm:$0xff] %vm280, %v7004
      %7037 = vst.msk [vmem:[#allocation3 + $0x90] sm:$0xff] %vm280, %v7005
      %7038 = vst.msk [vmem:[#allocation3 + $0x98] sm:$0xff] %vm280, %v7006
      %7039 = vst.msk [vmem:[#allocation3 + $0xa0] sm:$0xff] %vm280, %v7007
      %7040 = vst.msk [vmem:[#allocation3 + $0xa8] sm:$0xff] %vm280, %v7008
      %7041 = vst.msk [vmem:[#allocation3 + $0xb0] sm:$0xff] %vm280, %v7009
      %7042 = vst.msk [vmem:[#allocation3 + $0xb8] sm:$0xff] %vm280, %v7010
      %7043 = vst.msk [vmem:[#allocation3 + $0xc0] sm:$0xff] %vm280, %v7011
      %7044 = vst.msk [vmem:[#allocation3 + $0xc8] sm:$0xff] %vm280, %v7012
      %7045 = vst.msk [vmem:[#allocation3 + $0xd0] sm:$0xff] %vm280, %v7013
      %7046 = vst.msk [vmem:[#allocation3 + $0xd8] sm:$0xff] %vm280, %v7014
      %7047 = vst.msk [vmem:[#allocation3 + $0xe0] sm:$0xff] %vm280, %v7015
      %7048 = vst.msk [vmem:[#allocation3 + $0xe8] sm:$0xff] %vm280, %v7016
      %7049 = vst.msk [vmem:[#allocation3 + $0xf0] sm:$0xff] %vm280, %v7017
      %7050 = vst.msk [vmem:[#allocation3 + $0xf8] sm:$0xff] %vm280, %v7018
      %v7051 = vld [vmem:[%s288 + $0x8] sm:$0xff]
      %v7052 = vld [vmem:[%s288 + $0x10] sm:$0x1]
      %v7053 = vld [vmem:[%s288 + $0x20] sm:$0xff]
      %v7054 = vld [vmem:[%s288 + $0x28] sm:$0x1]
      %v7055 = vld [vmem:[%s288 + $0x38] sm:$0xff]
      %v7056 = vld [vmem:[%s288 + $0x40] sm:$0x1]
      %v7057 = vld [vmem:[%s288 + $0x50] sm:$0xff]
      %v7058 = vld [vmem:[%s288 + $0x58] sm:$0x1]
      %v7059 = vld [vmem:[%s288 + $0x68] sm:$0xff]
      %v7060 = vld [vmem:[%s288 + $0x70] sm:$0x1]
      %v7061 = vld [vmem:[%s288 + $0x80] sm:$0xff]
      %v7062 = vld [vmem:[%s288 + $0x88] sm:$0x1]
      %v7063 = vld [vmem:[%s288 + $0x98] sm:$0xff]
      %v7064 = vld [vmem:[%s288 + $0xa0] sm:$0x1]
      %v7065 = vld [vmem:[%s288 + $0xb0] sm:$0xff]
      %v7066 = vld [vmem:[%s288 + $0xb8] sm:$0x1]
      %v7067 = vld [vmem:[%s288 + $0xc8] sm:$0xff]
      %v7068 = vld [vmem:[%s288 + $0xd0] sm:$0x1]
      %v7069 = vld [vmem:[%s288 + $0xe0] sm:$0xff]
      %v7070 = vld [vmem:[%s288 + $0xe8] sm:$0x1]
      %v7071 = vld [vmem:[%s288 + $0xf8] sm:$0xff]
      %v7072 = vld [vmem:[%s288 + $0x100] sm:$0x1]
      %v7073 = vld [vmem:[%s288 + $0x110] sm:$0xff]
      %v7074 = vld [vmem:[%s288 + $0x118] sm:$0x1]
      %v7075 = vld [vmem:[%s288 + $0x128] sm:$0xff]
      %v7076 = vld [vmem:[%s288 + $0x130] sm:$0x1]
      %v7077 = vld [vmem:[%s288 + $0x140] sm:$0xff]
      %v7078 = vld [vmem:[%s288 + $0x148] sm:$0x1]
      %v7079 = vld [vmem:[%s288 + $0x158] sm:$0xff]
      %v7080 = vld [vmem:[%s288 + $0x160] sm:$0x1]
      %v7081 = vld [vmem:[%s288 + $0x170] sm:$0xff]
      %v7082 = vld [vmem:[%s288 + $0x178] sm:$0x1]
      %v7084 = vshrl.u32 %v7051, 16
      %v7086 = vshll.u32 %v7051, 16
      %v7088 = vrot.slane %v7086, 1
      %v7089 = vor.u32 %v7084, %v7088
      %v7091 = vshll.u32 %v7052, 16
      %v7093 = vrot.slane %v7091, 1
      %v7094 = vsel %vm1216, %v7089, %v7093
      %v7096 = vshrl.u32 %v7053, 16
      %v7098 = vshll.u32 %v7053, 16
      %v7100 = vrot.slane %v7098, 1
      %v7101 = vor.u32 %v7096, %v7100
      %v7103 = vshll.u32 %v7054, 16
      %v7105 = vrot.slane %v7103, 1
      %v7106 = vsel %vm1216, %v7101, %v7105
      %v7108 = vshrl.u32 %v7055, 16
      %v7110 = vshll.u32 %v7055, 16
      %v7112 = vrot.slane %v7110, 1
      %v7113 = vor.u32 %v7108, %v7112
      %v7115 = vshll.u32 %v7056, 16
      %v7117 = vrot.slane %v7115, 1
      %v7118 = vsel %vm1216, %v7113, %v7117
      %v7120 = vshrl.u32 %v7057, 16
      %v7122 = vshll.u32 %v7057, 16
      %v7124 = vrot.slane %v7122, 1
      %v7125 = vor.u32 %v7120, %v7124
      %v7127 = vshll.u32 %v7058, 16
      %v7129 = vrot.slane %v7127, 1
      %v7130 = vsel %vm1216, %v7125, %v7129
      %v7132 = vshrl.u32 %v7059, 16
      %v7134 = vshll.u32 %v7059, 16
      %v7136 = vrot.slane %v7134, 1
      %v7137 = vor.u32 %v7132, %v7136
      %v7139 = vshll.u32 %v7060, 16
      %v7141 = vrot.slane %v7139, 1
      %v7142 = vsel %vm1216, %v7137, %v7141
      %v7144 = vshrl.u32 %v7061, 16
      %v7146 = vshll.u32 %v7061, 16
      %v7148 = vrot.slane %v7146, 1
      %v7149 = vor.u32 %v7144, %v7148
      %v7151 = vshll.u32 %v7062, 16
      %v7153 = vrot.slane %v7151, 1
      %v7154 = vsel %vm1216, %v7149, %v7153
      %v7156 = vshrl.u32 %v7063, 16
      %v7158 = vshll.u32 %v7063, 16
      %v7160 = vrot.slane %v7158, 1
      %v7161 = vor.u32 %v7156, %v7160
      %v7163 = vshll.u32 %v7064, 16
      %v7165 = vrot.slane %v7163, 1
      %v7166 = vsel %vm1216, %v7161, %v7165
      %v7168 = vshrl.u32 %v7065, 16
      %v7170 = vshll.u32 %v7065, 16
      %v7172 = vrot.slane %v7170, 1
      %v7173 = vor.u32 %v7168, %v7172
      %v7175 = vshll.u32 %v7066, 16
      %v7177 = vrot.slane %v7175, 1
      %v7178 = vsel %vm1216, %v7173, %v7177
      %v7180 = vshrl.u32 %v7067, 16
      %v7182 = vshll.u32 %v7067, 16
      %v7184 = vrot.slane %v7182, 1
      %v7185 = vor.u32 %v7180, %v7184
      %v7187 = vshll.u32 %v7068, 16
      %v7189 = vrot.slane %v7187, 1
      %v7190 = vsel %vm1216, %v7185, %v7189
      %v7192 = vshrl.u32 %v7069, 16
      %v7194 = vshll.u32 %v7069, 16
      %v7196 = vrot.slane %v7194, 1
      %v7197 = vor.u32 %v7192, %v7196
      %v7199 = vshll.u32 %v7070, 16
      %v7201 = vrot.slane %v7199, 1
      %v7202 = vsel %vm1216, %v7197, %v7201
      %v7204 = vshrl.u32 %v7071, 16
      %v7206 = vshll.u32 %v7071, 16
      %v7208 = vrot.slane %v7206, 1
      %v7209 = vor.u32 %v7204, %v7208
      %v7211 = vshll.u32 %v7072, 16
      %v7213 = vrot.slane %v7211, 1
      %v7214 = vsel %vm1216, %v7209, %v7213
      %v7216 = vshrl.u32 %v7073, 16
      %v7218 = vshll.u32 %v7073, 16
      %v7220 = vrot.slane %v7218, 1
      %v7221 = vor.u32 %v7216, %v7220
      %v7223 = vshll.u32 %v7074, 16
      %v7225 = vrot.slane %v7223, 1
      %v7226 = vsel %vm1216, %v7221, %v7225
      %v7228 = vshrl.u32 %v7075, 16
      %v7230 = vshll.u32 %v7075, 16
      %v7232 = vrot.slane %v7230, 1
      %v7233 = vor.u32 %v7228, %v7232
      %v7235 = vshll.u32 %v7076, 16
      %v7237 = vrot.slane %v7235, 1
      %v7238 = vsel %vm1216, %v7233, %v7237
      %v7240 = vshrl.u32 %v7077, 16
      %v7242 = vshll.u32 %v7077, 16
      %v7244 = vrot.slane %v7242, 1
      %v7245 = vor.u32 %v7240, %v7244
      %v7247 = vshll.u32 %v7078, 16
      %v7249 = vrot.slane %v7247, 1
      %v7250 = vsel %vm1216, %v7245, %v7249
      %v7252 = vshrl.u32 %v7079, 16
      %v7254 = vshll.u32 %v7079, 16
      %v7256 = vrot.slane %v7254, 1
      %v7257 = vor.u32 %v7252, %v7256
      %v7259 = vshll.u32 %v7080, 16
      %v7261 = vrot.slane %v7259, 1
      %v7262 = vsel %vm1216, %v7257, %v7261
      %v7264 = vshrl.u32 %v7081, 16
      %v7266 = vshll.u32 %v7081, 16
      %v7268 = vrot.slane %v7266, 1
      %v7269 = vor.u32 %v7264, %v7268
      %v7271 = vshll.u32 %v7082, 16
      %v7273 = vrot.slane %v7271, 1
      %v7274 = vsel %vm1216, %v7269, %v7273
      %s7275 = scalar_lea.vmem %s4, 10
      %v7276 = vld [vmem:[%s7275] sm:$0x3]
      %v7278 = vsel %vm280, %v7094, 0
      %v7281 = vsel %vm280, %v7106, 0
      %v7284 = vsel %vm280, %v7118, 0
      %v7287 = vsel %vm280, %v7130, 0
      %v7290 = vsel %vm280, %v7142, 0
      %v7293 = vsel %vm280, %v7154, 0
      %v7296 = vsel %vm280, %v7166, 0
      %v7299 = vsel %vm280, %v7178, 0
      %v7302 = vsel %vm280, %v7190, 0
      %v7305 = vsel %vm280, %v7202, 0
      %v7308 = vsel %vm280, %v7214, 0
      %v7311 = vsel %vm280, %v7226, 0
      %v7314 = vsel %vm280, %v7238, 0
      %v7317 = vsel %vm280, %v7250, 0
      %v7320 = vsel %vm280, %v7262, 0
      %v7323 = vsel %vm280, %v7274, 0
      %v7326 = vsel %vm661, %v7276, 0
      %7328 = vmatprep.subr.bf16.mxu0 0
      %7329 = vmatpush1.bf16.msra.mxu0 %v7326
      %7330 = vmatprep.subr.bf16.mxu0 0
      %7331 = vmatpush1.bf16.msra.mxu0 0
      %7332 = vmatprep.subr.bf16.mxu0 0
      %7333 = vmatpush1.bf16.msra.mxu0 0
      %7334 = vmatprep.subr.bf16.mxu0 0
      %7335 = vmatpush1.bf16.msra.mxu0 0
      %7336 = vmatprep.subr.bf16.mxu0 0
      %7337 = vmatpush1.bf16.msra.mxu0 0
      %7338 = vmatprep.subr.bf16.mxu0 0
      %7339 = vmatpush1.bf16.msra.mxu0 0
      %7340 = vmatprep.subr.bf16.mxu0 0
      %7341 = vmatpush1.bf16.msra.mxu0 0
      %7342 = vmatprep.subr.bf16.mxu0 0
      %7343 = vmatpush1.bf16.msra.mxu0 0
      %7344 = vmatprep.subr.bf16.mxu0 0
      %7345 = vmatpush1.bf16.msra.mxu0 0
      %7346 = vmatprep.subr.bf16.mxu0 0
      %7347 = vmatpush1.bf16.msra.mxu0 0
      %7348 = vmatprep.subr.bf16.mxu0 0
      %7349 = vmatpush1.bf16.msra.mxu0 0
      %7350 = vmatprep.subr.bf16.mxu0 0
      %7351 = vmatpush1.bf16.msra.mxu0 0
      %7352 = vmatprep.subr.bf16.mxu0 0
      %7353 = vmatpush1.bf16.msra.mxu0 0
      %7354 = vmatprep.subr.bf16.mxu0 0
      %7355 = vmatpush1.bf16.msra.mxu0 0
      %7356 = vmatprep.subr.bf16.mxu0 0
      %7357 = vmatpush1.bf16.msra.mxu0 0
      %7358 = vmatprep.subr.bf16.mxu0 0
      %7359 = vmatpush1.bf16.msra.mxu0 0
      %7360 = vmatprep.mubr.bf16.mxu0 0
      %7361 = vmatmul.mubr.bf16.gmra.mrb[0].mxu0 %v7278
      %v7362 = vpop.f32.mrb[0].mxu0
      %v7363 = vadd.f32 0.0, %v7362
      %v7364 = vpop.f32.mrb[0].mxu0
      %v7365 = vpop.f32.mrb[0].mxu0
      %v7366 = vadd.f32 0.0, %v7365
      %v7367 = vpop.f32.mrb[0].mxu0
      %7368 = vmatprep.mubr.bf16.mxu0 0
      %7369 = vmatmul.mubr.bf16.gmra.mrb[0].mxu0 %v7281
      %v7370 = vpop.f32.mrb[0].mxu0
      %v7371 = vadd.f32 0.0, %v7370
      %v7372 = vpop.f32.mrb[0].mxu0
      %v7373 = vpop.f32.mrb[0].mxu0
      %v7374 = vadd.f32 0.0, %v7373
      %v7375 = vpop.f32.mrb[0].mxu0
      %7376 = vmatprep.mubr.bf16.mxu0 0
      %7377 = vmatmul.mubr.bf16.gmra.mrb[0].mxu0 %v7284
      %v7378 = vpop.f32.mrb[0].mxu0
      %v7379 = vadd.f32 0.0, %v7378
      %v7380 = vpop.f32.mrb[0].mxu0
      %v7381 = vpop.f32.mrb[0].mxu0
      %v7382 = vadd.f32 0.0, %v7381
      %v7383 = vpop.f32.mrb[0].mxu0
      %7384 = vmatprep.mubr.bf16.mxu0 0
      %7385 = vmatmul.mubr.bf16.gmra.mrb[0].mxu0 %v7287
      %v7386 = vpop.f32.mrb[0].mxu0
      %v7387 = vadd.f32 0.0, %v7386
      %v7388 = vpop.f32.mrb[0].mxu0
      %v7389 = vpop.f32.mrb[0].mxu0
      %v7390 = vadd.f32 0.0, %v7389
      %v7391 = vpop.f32.mrb[0].mxu0
      %7392 = vmatprep.mubr.bf16.mxu0 0
      %7393 = vmatmul.mubr.bf16.gmra.mrb[0].mxu0 %v7290
      %v7394 = vpop.f32.mrb[0].mxu0
      %v7395 = vadd.f32 0.0, %v7394
      %v7396 = vpop.f32.mrb[0].mxu0
      %v7397 = vpop.f32.mrb[0].mxu0
      %v7398 = vadd.f32 0.0, %v7397
      %v7399 = vpop.f32.mrb[0].mxu0
      %7400 = vmatprep.mubr.bf16.mxu0 0
      %7401 = vmatmul.mubr.bf16.gmra.mrb[0].mxu0 %v7293
      %v7402 = vpop.f32.mrb[0].mxu0
      %v7403 = vadd.f32 0.0, %v7402
      %v7404 = vpop.f32.mrb[0].mxu0
      %v7405 = vpop.f32.mrb[0].mxu0
      %v7406 = vadd.f32 0.0, %v7405
      %v7407 = vpop.f32.mrb[0].mxu0
      %7408 = vmatprep.mubr.bf16.mxu0 0
      %7409 = vmatmul.mubr.bf16.gmra.mrb[0].mxu0 %v7296
      %v7410 = vpop.f32.mrb[0].mxu0
      %v7411 = vadd.f32 0.0, %v7410
      %v7412 = vpop.f32.mrb[0].mxu0
      %v7413 = vpop.f32.mrb[0].mxu0
      %v7414 = vadd.f32 0.0, %v7413
      %v7415 = vpop.f32.mrb[0].mxu0
      %7416 = vmatprep.mubr.bf16.mxu0 0
      %7417 = vmatmul.mubr.bf16.gmra.mrb[0].mxu0 %v7299
      %v7418 = vpop.f32.mrb[0].mxu0
      %v7419 = vadd.f32 0.0, %v7418
      %v7420 = vpop.f32.mrb[0].mxu0
      %v7421 = vpop.f32.mrb[0].mxu0
      %v7422 = vadd.f32 0.0, %v7421
      %v7423 = vpop.f32.mrb[0].mxu0
      %7424 = vmatprep.mubr.bf16.mxu0 0
      %7425 = vmatmul.mubr.bf16.gmra.mrb[0].mxu0 %v7302
      %v7426 = vpop.f32.mrb[0].mxu0
      %v7427 = vadd.f32 0.0, %v7426
      %v7428 = vpop.f32.mrb[0].mxu0
      %v7429 = vpop.f32.mrb[0].mxu0
      %v7430 = vadd.f32 0.0, %v7429
      %v7431 = vpop.f32.mrb[0].mxu0
      %7432 = vmatprep.mubr.bf16.mxu0 0
      %7433 = vmatmul.mubr.bf16.gmra.mrb[0].mxu0 %v7305
      %v7434 = vpop.f32.mrb[0].mxu0
      %v7435 = vadd.f32 0.0, %v7434
      %v7436 = vpop.f32.mrb[0].mxu0
      %v7437 = vpop.f32.mrb[0].mxu0
      %v7438 = vadd.f32 0.0, %v7437
      %v7439 = vpop.f32.mrb[0].mxu0
      %7440 = vmatprep.mubr.bf16.mxu0 0
      %7441 = vmatmul.mubr.bf16.gmra.mrb[0].mxu0 %v7308
      %v7442 = vpop.f32.mrb[0].mxu0
      %v7443 = vadd.f32 0.0, %v7442
      %v7444 = vpop.f32.mrb[0].mxu0
      %v7445 = vpop.f32.mrb[0].mxu0
      %v7446 = vadd.f32 0.0, %v7445
      %v7447 = vpop.f32.mrb[0].mxu0
      %7448 = vmatprep.mubr.bf16.mxu0 0
      %7449 = vmatmul.mubr.bf16.gmra.mrb[0].mxu0 %v7311
      %v7450 = vpop.f32.mrb[0].mxu0
      %v7451 = vadd.f32 0.0, %v7450
      %v7452 = vpop.f32.mrb[0].mxu0
      %v7453 = vpop.f32.mrb[0].mxu0
      %v7454 = vadd.f32 0.0, %v7453
      %v7455 = vpop.f32.mrb[0].mxu0
      %7456 = vmatprep.mubr.bf16.mxu0 0
      %7457 = vmatmul.mubr.bf16.gmra.mrb[0].mxu0 %v7314
      %v7458 = vpop.f32.mrb[0].mxu0
      %v7459 = vadd.f32 0.0, %v7458
      %v7460 = vpop.f32.mrb[0].mxu0
      %v7461 = vpop.f32.mrb[0].mxu0
      %v7462 = vadd.f32 0.0, %v7461
      %v7463 = vpop.f32.mrb[0].mxu0
      %7464 = vmatprep.mubr.bf16.mxu0 0
      %7465 = vmatmul.mubr.bf16.gmra.mrb[0].mxu0 %v7317
      %v7466 = vpop.f32.mrb[0].mxu0
      %v7467 = vadd.f32 0.0, %v7466
      %v7468 = vpop.f32.mrb[0].mxu0
      %v7469 = vpop.f32.mrb[0].mxu0
      %v7470 = vadd.f32 0.0, %v7469
      %v7471 = vpop.f32.mrb[0].mxu0
      %7472 = vmatprep.mubr.bf16.mxu0 0
      %7473 = vmatmul.mubr.bf16.gmra.mrb[0].mxu0 %v7320
      %v7474 = vpop.f32.mrb[0].mxu0
      %v7475 = vadd.f32 0.0, %v7474
      %v7476 = vpop.f32.mrb[0].mxu0
      %v7477 = vpop.f32.mrb[0].mxu0
      %v7478 = vadd.f32 0.0, %v7477
      %v7479 = vpop.f32.mrb[0].mxu0
      %7480 = vmatprep.mubr.bf16.mxu0 0
      %7481 = vmatmul.mubr.bf16.gmra.mrb[0].mxu0 %v7323
      %v7482 = vpop.f32.mrb[0].mxu0
      %v7483 = vadd.f32 0.0, %v7482
      %v7484 = vpop.f32.mrb[0].mxu0
      %v7485 = vpop.f32.mrb[0].mxu0
      %v7486 = vadd.f32 0.0, %v7485
      %v7487 = vpop.f32.mrb[0].mxu0
      %7488 = vdwg.mxu0
      %v7489 = vld [vmem:[#allocation3] sm:$0xff]
      %v7490 = vld [vmem:[#allocation3 + $0x8] sm:$0xff]
      %v7491 = vld [vmem:[#allocation3 + $0x10] sm:$0xff]
      %v7492 = vld [vmem:[#allocation3 + $0x18] sm:$0xff]
      %v7493 = vld [vmem:[#allocation3 + $0x20] sm:$0xff]
      %v7494 = vld [vmem:[#allocation3 + $0x28] sm:$0xff]
      %v7495 = vld [vmem:[#allocation3 + $0x30] sm:$0xff]
      %v7496 = vld [vmem:[#allocation3 + $0x38] sm:$0xff]
      %v7497 = vld [vmem:[#allocation3 + $0x40] sm:$0xff]
      %v7498 = vld [vmem:[#allocation3 + $0x48] sm:$0xff]
      %v7499 = vld [vmem:[#allocation3 + $0x50] sm:$0xff]
      %v7500 = vld [vmem:[#allocation3 + $0x58] sm:$0xff]
      %v7501 = vld [vmem:[#allocation3 + $0x60] sm:$0xff]
      %v7502 = vld [vmem:[#allocation3 + $0x68] sm:$0xff]
      %v7503 = vld [vmem:[#allocation3 + $0x70] sm:$0xff]
      %v7504 = vld [vmem:[#allocation3 + $0x78] sm:$0xff]
      %v7505 = vld [vmem:[#allocation3 + $0x80] sm:$0xff]
      %v7506 = vld [vmem:[#allocation3 + $0x88] sm:$0xff]
      %v7507 = vld [vmem:[#allocation3 + $0x90] sm:$0xff]
      %v7508 = vld [vmem:[#allocation3 + $0x98] sm:$0xff]
      %v7509 = vld [vmem:[#allocation3 + $0xa0] sm:$0xff]
      %v7510 = vld [vmem:[#allocation3 + $0xa8] sm:$0xff]
      %v7511 = vld [vmem:[#allocation3 + $0xb0] sm:$0xff]
      %v7512 = vld [vmem:[#allocation3 + $0xb8] sm:$0xff]
      %v7513 = vld [vmem:[#allocation3 + $0xc0] sm:$0xff]
      %v7514 = vld [vmem:[#allocation3 + $0xc8] sm:$0xff]
      %v7515 = vld [vmem:[#allocation3 + $0xd0] sm:$0xff]
      %v7516 = vld [vmem:[#allocation3 + $0xd8] sm:$0xff]
      %v7517 = vld [vmem:[#allocation3 + $0xe0] sm:$0xff]
      %v7518 = vld [vmem:[#allocation3 + $0xe8] sm:$0xff]
      %v7519 = vld [vmem:[#allocation3 + $0xf0] sm:$0xff]
      %v7520 = vld [vmem:[#allocation3 + $0xf8] sm:$0xff]
      %v7521 = vadd.f32 %v7489, %v7363
      %v7522 = vadd.f32 %v7490, %v7366
      %v7523 = vadd.f32 %v7491, %v7371
      %v7524 = vadd.f32 %v7492, %v7374
      %v7525 = vadd.f32 %v7493, %v7379
      %v7526 = vadd.f32 %v7494, %v7382
      %v7527 = vadd.f32 %v7495, %v7387
      %v7528 = vadd.f32 %v7496, %v7390
      %v7529 = vadd.f32 %v7497, %v7395
      %v7530 = vadd.f32 %v7498, %v7398
      %v7531 = vadd.f32 %v7499, %v7403
      %v7532 = vadd.f32 %v7500, %v7406
      %v7533 = vadd.f32 %v7501, %v7411
      %v7534 = vadd.f32 %v7502, %v7414
      %v7535 = vadd.f32 %v7503, %v7419
      %v7536 = vadd.f32 %v7504, %v7422
      %v7537 = vadd.f32 %v7505, %v7427
      %v7538 = vadd.f32 %v7506, %v7430
      %v7539 = vadd.f32 %v7507, %v7435
      %v7540 = vadd.f32 %v7508, %v7438
      %v7541 = vadd.f32 %v7509, %v7443
      %v7542 = vadd.f32 %v7510, %v7446
      %v7543 = vadd.f32 %v7511, %v7451
      %v7544 = vadd.f32 %v7512, %v7454
      %v7545 = vadd.f32 %v7513, %v7459
      %v7546 = vadd.f32 %v7514, %v7462
      %v7547 = vadd.f32 %v7515, %v7467
      %v7548 = vadd.f32 %v7516, %v7470
      %v7549 = vadd.f32 %v7517, %v7475
      %v7550 = vadd.f32 %v7518, %v7478
      %v7551 = vadd.f32 %v7519, %v7483
      %v7552 = vadd.f32 %v7520, %v7486
      %7553 = vst.msk [vmem:[#allocation3] sm:$0xff] %vm280, %v7521
      %7554 = vst.msk [vmem:[#allocation3 + $0x8] sm:$0xff] %vm280, %v7522
      %7555 = vst.msk [vmem:[#allocation3 + $0x10] sm:$0xff] %vm280, %v7523
      %7556 = vst.msk [vmem:[#allocation3 + $0x18] sm:$0xff] %vm280, %v7524
      %7557 = vst.msk [vmem:[#allocation3 + $0x20] sm:$0xff] %vm280, %v7525
      %7558 = vst.msk [vmem:[#allocation3 + $0x28] sm:$0xff] %vm280, %v7526
      %7559 = vst.msk [vmem:[#allocation3 + $0x30] sm:$0xff] %vm280, %v7527
      %7560 = vst.msk [vmem:[#allocation3 + $0x38] sm:$0xff] %vm280, %v7528
      %7561 = vst.msk [vmem:[#allocation3 + $0x40] sm:$0xff] %vm280, %v7529
      %7562 = vst.msk [vmem:[#allocation3 + $0x48] sm:$0xff] %vm280, %v7530
      %7563 = vst.msk [vmem:[#allocation3 + $0x50] sm:$0xff] %vm280, %v7531
      %7564 = vst.msk [vmem:[#allocation3 + $0x58] sm:$0xff] %vm280, %v7532
      %7565 = vst.msk [vmem:[#allocation3 + $0x60] sm:$0xff] %vm280, %v7533
      %7566 = vst.msk [vmem:[#allocation3 + $0x68] sm:$0xff] %vm280, %v7534
      %7567 = vst.msk [vmem:[#allocation3 + $0x70] sm:$0xff] %vm280, %v7535
      %7568 = vst.msk [vmem:[#allocation3 + $0x78] sm:$0xff] %vm280, %v7536
      %7569 = vst.msk [vmem:[#allocation3 + $0x80] sm:$0xff] %vm280, %v7537
      %7570 = vst.msk [vmem:[#allocation3 + $0x88] sm:$0xff] %vm280, %v7538
      %7571 = vst.msk [vmem:[#allocation3 + $0x90] sm:$0xff] %vm280, %v7539
      %7572 = vst.msk [vmem:[#allocation3 + $0x98] sm:$0xff] %vm280, %v7540
      %7573 = vst.msk [vmem:[#allocation3 + $0xa0] sm:$0xff] %vm280, %v7541
      %7574 = vst.msk [vmem:[#allocation3 + $0xa8] sm:$0xff] %vm280, %v7542
      %7575 = vst.msk [vmem:[#allocation3 + $0xb0] sm:$0xff] %vm280, %v7543
      %7576 = vst.msk [vmem:[#allocation3 + $0xb8] sm:$0xff] %vm280, %v7544
      %7577 = vst.msk [vmem:[#allocation3 + $0xc0] sm:$0xff] %vm280, %v7545
      %7578 = vst.msk [vmem:[#allocation3 + $0xc8] sm:$0xff] %vm280, %v7546
      %7579 = vst.msk [vmem:[#allocation3 + $0xd0] sm:$0xff] %vm280, %v7547
      %7580 = vst.msk [vmem:[#allocation3 + $0xd8] sm:$0xff] %vm280, %v7548
      %7581 = vst.msk [vmem:[#allocation3 + $0xe0] sm:$0xff] %vm280, %v7549
      %7582 = vst.msk [vmem:[#allocation3 + $0xe8] sm:$0xff] %vm280, %v7550
      %7583 = vst.msk [vmem:[#allocation3 + $0xf0] sm:$0xff] %vm280, %v7551
      %7584 = vst.msk [vmem:[#allocation3 + $0xf8] sm:$0xff] %vm280, %v7552
      %v7585 = vld [vmem:[%s3113] sm:$0x80]
      %v7586 = vld [vmem:[%s3113 + $0x8] sm:$0xff]
      %v7587 = vld [vmem:[%s3113 + $0x18] sm:$0x80]
      %v7588 = vld [vmem:[%s3113 + $0x20] sm:$0xff]
      %v7589 = vld [vmem:[%s3113 + $0x30] sm:$0x80]
      %v7590 = vld [vmem:[%s3113 + $0x38] sm:$0xff]
      %v7591 = vld [vmem:[%s3113 + $0x48] sm:$0x80]
      %v7592 = vld [vmem:[%s3113 + $0x50] sm:$0xff]
      %v7593 = vld [vmem:[%s3113 + $0x60] sm:$0x80]
      %v7594 = vld [vmem:[%s3113 + $0x68] sm:$0xff]
      %v7595 = vld [vmem:[%s3113 + $0x78] sm:$0x80]
      %v7596 = vld [vmem:[%s3113 + $0x80] sm:$0xff]
      %v7597 = vld [vmem:[%s3113 + $0x90] sm:$0x80]
      %v7598 = vld [vmem:[%s3113 + $0x98] sm:$0xff]
      %v7599 = vld [vmem:[%s3113 + $0xa8] sm:$0x80]
      %v7600 = vld [vmem:[%s3113 + $0xb0] sm:$0xff]
      %v7601 = vld [vmem:[%s3113 + $0xc0] sm:$0x80]
      %v7602 = vld [vmem:[%s3113 + $0xc8] sm:$0xff]
      %v7603 = vld [vmem:[%s3113 + $0xd8] sm:$0x80]
      %v7604 = vld [vmem:[%s3113 + $0xe0] sm:$0xff]
      %v7605 = vld [vmem:[%s3113 + $0xf0] sm:$0x80]
      %v7606 = vld [vmem:[%s3113 + $0xf8] sm:$0xff]
      %v7607 = vld [vmem:[%s3113 + $0x108] sm:$0x80]
      %v7608 = vld [vmem:[%s3113 + $0x110] sm:$0xff]
      %v7609 = vld [vmem:[%s3113 + $0x120] sm:$0x80]
      %v7610 = vld [vmem:[%s3113 + $0x128] sm:$0xff]
      %v7611 = vld [vmem:[%s3113 + $0x138] sm:$0x80]
      %v7612 = vld [vmem:[%s3113 + $0x140] sm:$0xff]
      %v7613 = vld [vmem:[%s3113 + $0x150] sm:$0x80]
      %v7614 = vld [vmem:[%s3113 + $0x158] sm:$0xff]
      %v7615 = vld [vmem:[%s3113 + $0x168] sm:$0x80]
      %v7616 = vld [vmem:[%s3113 + $0x170] sm:$0xff]
      %v7618 = vshrl.u32 %v7585, 16
      %v7620 = vrot.slane %v7618, 7
      %v7622 = vshrl.u32 %v7586, 16
      %v7624 = vrot.slane %v7622, 7
      %v7625 = vshll.u32 %v7586, 16
      %v7627 = vor.u32 %v7624, %v7625
      %v7628 = vsel %vm419, %v7620, %v7627
      %v7630 = vshrl.u32 %v7587, 16
      %v7632 = vrot.slane %v7630, 7
      %v7634 = vshrl.u32 %v7588, 16
      %v7636 = vrot.slane %v7634, 7
      %v7637 = vshll.u32 %v7588, 16
      %v7639 = vor.u32 %v7636, %v7637
      %v7640 = vsel %vm419, %v7632, %v7639
      %v7642 = vshrl.u32 %v7589, 16
      %v7644 = vrot.slane %v7642, 7
      %v7646 = vshrl.u32 %v7590, 16
      %v7648 = vrot.slane %v7646, 7
      %v7649 = vshll.u32 %v7590, 16
      %v7651 = vor.u32 %v7648, %v7649
      %v7652 = vsel %vm419, %v7644, %v7651
      %v7654 = vshrl.u32 %v7591, 16
      %v7656 = vrot.slane %v7654, 7
      %v7658 = vshrl.u32 %v7592, 16
      %v7660 = vrot.slane %v7658, 7
      %v7661 = vshll.u32 %v7592, 16
      %v7663 = vor.u32 %v7660, %v7661
      %v7664 = vsel %vm419, %v7656, %v7663
      %v7666 = vshrl.u32 %v7593, 16
      %v7668 = vrot.slane %v7666, 7
      %v7670 = vshrl.u32 %v7594, 16
      %v7672 = vrot.slane %v7670, 7
      %v7673 = vshll.u32 %v7594, 16
      %v7675 = vor.u32 %v7672, %v7673
      %v7676 = vsel %vm419, %v7668, %v7675
      %v7678 = vshrl.u32 %v7595, 16
      %v7680 = vrot.slane %v7678, 7
      %v7682 = vshrl.u32 %v7596, 16
      %v7684 = vrot.slane %v7682, 7
      %v7685 = vshll.u32 %v7596, 16
      %v7687 = vor.u32 %v7684, %v7685
      %v7688 = vsel %vm419, %v7680, %v7687
      %v7690 = vshrl.u32 %v7597, 16
      %v7692 = vrot.slane %v7690, 7
      %v7694 = vshrl.u32 %v7598, 16
      %v7696 = vrot.slane %v7694, 7
      %v7697 = vshll.u32 %v7598, 16
      %v7699 = vor.u32 %v7696, %v7697
      %v7700 = vsel %vm419, %v7692, %v7699
      %v7702 = vshrl.u32 %v7599, 16
      %v7704 = vrot.slane %v7702, 7
      %v7706 = vshrl.u32 %v7600, 16
      %v7708 = vrot.slane %v7706, 7
      %v7709 = vshll.u32 %v7600, 16
      %v7711 = vor.u32 %v7708, %v7709
      %v7712 = vsel %vm419, %v7704, %v7711
      %v7714 = vshrl.u32 %v7601, 16
      %v7716 = vrot.slane %v7714, 7
      %v7718 = vshrl.u32 %v7602, 16
      %v7720 = vrot.slane %v7718, 7
      %v7721 = vshll.u32 %v7602, 16
      %v7723 = vor.u32 %v7720, %v7721
      %v7724 = vsel %vm419, %v7716, %v7723
      %v7726 = vshrl.u32 %v7603, 16
      %v7728 = vrot.slane %v7726, 7
      %v7730 = vshrl.u32 %v7604, 16
      %v7732 = vrot.slane %v7730, 7
      %v7733 = vshll.u32 %v7604, 16
      %v7735 = vor.u32 %v7732, %v7733
      %v7736 = vsel %vm419, %v7728, %v7735
      %v7738 = vshrl.u32 %v7605, 16
      %v7740 = vrot.slane %v7738, 7
      %v7742 = vshrl.u32 %v7606, 16
      %v7744 = vrot.slane %v7742, 7
      %v7745 = vshll.u32 %v7606, 16
      %v7747 = vor.u32 %v7744, %v7745
      %v7748 = vsel %vm419, %v7740, %v7747
      %v7750 = vshrl.u32 %v7607, 16
      %v7752 = vrot.slane %v7750, 7
      %v7754 = vshrl.u32 %v7608, 16
      %v7756 = vrot.slane %v7754, 7
      %v7757 = vshll.u32 %v7608, 16
      %v7759 = vor.u32 %v7756, %v7757
      %v7760 = vsel %vm419, %v7752, %v7759
      %v7762 = vshrl.u32 %v7609, 16
      %v7764 = vrot.slane %v7762, 7
      %v7766 = vshrl.u32 %v7610, 16
      %v7768 = vrot.slane %v7766, 7
      %v7769 = vshll.u32 %v7610, 16
      %v7771 = vor.u32 %v7768, %v7769
      %v7772 = vsel %vm419, %v7764, %v7771
      %v7774 = vshrl.u32 %v7611, 16
      %v7776 = vrot.slane %v7774, 7
      %v7778 = vshrl.u32 %v7612, 16
      %v7780 = vrot.slane %v7778, 7
      %v7781 = vshll.u32 %v7612, 16
      %v7783 = vor.u32 %v7780, %v7781
      %v7784 = vsel %vm419, %v7776, %v7783
      %v7786 = vshrl.u32 %v7613, 16
      %v7788 = vrot.slane %v7786, 7
      %v7790 = vshrl.u32 %v7614, 16
      %v7792 = vrot.slane %v7790, 7
      %v7793 = vshll.u32 %v7614, 16
      %v7795 = vor.u32 %v7792, %v7793
      %v7796 = vsel %vm419, %v7788, %v7795
      %v7798 = vshrl.u32 %v7615, 16
      %v7800 = vrot.slane %v7798, 7
      %v7802 = vshrl.u32 %v7616, 16
      %v7804 = vrot.slane %v7802, 7
      %v7805 = vshll.u32 %v7616, 16
      %v7807 = vor.u32 %v7804, %v7805
      %v7808 = vsel %vm419, %v7800, %v7807
      %s7809 = scalar_lea.vmem %s4, 12
      %v7810 = vld [vmem:[%s7809] sm:$0x3]
      %v7812 = vsel %vm280, %v7628, 0
      %v7815 = vsel %vm280, %v7640, 0
      %v7818 = vsel %vm280, %v7652, 0
      %v7821 = vsel %vm280, %v7664, 0
      %v7824 = vsel %vm280, %v7676, 0
      %v7827 = vsel %vm280, %v7688, 0
      %v7830 = vsel %vm280, %v7700, 0
      %v7833 = vsel %vm280, %v7712, 0
      %v7836 = vsel %vm280, %v7724, 0
      %v7839 = vsel %vm280, %v7736, 0
      %v7842 = vsel %vm280, %v7748, 0
      %v7845 = vsel %vm280, %v7760, 0
      %v7848 = vsel %vm280, %v7772, 0
      %v7851 = vsel %vm280, %v7784, 0
      %v7854 = vsel %vm280, %v7796, 0
      %v7857 = vsel %vm280, %v7808, 0
      %v7860 = vsel %vm661, %v7810, 0
      %7862 = vmatprep.subr.bf16.mxu0 0
      %7863 = vmatpush1.bf16.msra.mxu0 %v7860
      %7864 = vmatprep.subr.bf16.mxu0 0
      %7865 = vmatpush1.bf16.msra.mxu0 0
      %7866 = vmatprep.subr.bf16.mxu0 0
      %7867 = vmatpush1.bf16.msra.mxu0 0
      %7868 = vmatprep.subr.bf16.mxu0 0
      %7869 = vmatpush1.bf16.msra.mxu0 0
      %7870 = vmatprep.subr.bf16.mxu0 0
      %7871 = vmatpush1.bf16.msra.mxu0 0
      %7872 = vmatprep.subr.bf16.mxu0 0
      %7873 = vmatpush1.bf16.msra.mxu0 0
      %7874 = vmatprep.subr.bf16.mxu0 0
      %7875 = vmatpush1.bf16.msra.mxu0 0
      %7876 = vmatprep.subr.bf16.mxu0 0
      %7877 = vmatpush1.bf16.msra.mxu0 0
      %7878 = vmatprep.subr.bf16.mxu0 0
      %7879 = vmatpush1.bf16.msra.mxu0 0
      %7880 = vmatprep.subr.bf16.mxu0 0
      %7881 = vmatpush1.bf16.msra.mxu0 0
      %7882 = vmatprep.subr.bf16.mxu0 0
      %7883 = vmatpush1.bf16.msra.mxu0 0
      %7884 = vmatprep.subr.bf16.mxu0 0
      %7885 = vmatpush1.bf16.msra.mxu0 0
      %7886 = vmatprep.subr.bf16.mxu0 0
      %7887 = vmatpush1.bf16.msra.mxu0 0
      %7888 = vmatprep.subr.bf16.mxu0 0
      %7889 = vmatpush1.bf16.msra.mxu0 0
      %7890 = vmatprep.subr.bf16.mxu0 0
      %7891 = vmatpush1.bf16.msra.mxu0 0
      %7892 = vmatprep.subr.bf16.mxu0 0
      %7893 = vmatpush1.bf16.msra.mxu0 0
      %7894 = vmatprep.mubr.bf16.mxu0 0
      %7895 = vmatmul.mubr.bf16.gmra.mrb[0].mxu0 %v7812
      %v7896 = vpop.f32.mrb[0].mxu0
      %v7897 = vadd.f32 0.0, %v7896
      %v7898 = vpop.f32.mrb[0].mxu0
      %v7899 = vpop.f32.mrb[0].mxu0
      %v7900 = vadd.f32 0.0, %v7899
      %v7901 = vpop.f32.mrb[0].mxu0
      %7902 = vmatprep.mubr.bf16.mxu0 0
      %7903 = vmatmul.mubr.bf16.gmra.mrb[0].mxu0 %v7815
      %v7904 = vpop.f32.mrb[0].mxu0
      %v7905 = vadd.f32 0.0, %v7904
      %v7906 = vpop.f32.mrb[0].mxu0
      %v7907 = vpop.f32.mrb[0].mxu0
      %v7908 = vadd.f32 0.0, %v7907
      %v7909 = vpop.f32.mrb[0].mxu0
      %7910 = vmatprep.mubr.bf16.mxu0 0
      %7911 = vmatmul.mubr.bf16.gmra.mrb[0].mxu0 %v7818
      %v7912 = vpop.f32.mrb[0].mxu0
      %v7913 = vadd.f32 0.0, %v7912
      %v7914 = vpop.f32.mrb[0].mxu0
      %v7915 = vpop.f32.mrb[0].mxu0
      %v7916 = vadd.f32 0.0, %v7915
      %v7917 = vpop.f32.mrb[0].mxu0
      %7918 = vmatprep.mubr.bf16.mxu0 0
      %7919 = vmatmul.mubr.bf16.gmra.mrb[0].mxu0 %v7821
      %v7920 = vpop.f32.mrb[0].mxu0
      %v7921 = vadd.f32 0.0, %v7920
      %v7922 = vpop.f32.mrb[0].mxu0
      %v7923 = vpop.f32.mrb[0].mxu0
      %v7924 = vadd.f32 0.0, %v7923
      %v7925 = vpop.f32.mrb[0].mxu0
      %7926 = vmatprep.mubr.bf16.mxu0 0
      %7927 = vmatmul.mubr.bf16.gmra.mrb[0].mxu0 %v7824
      %v7928 = vpop.f32.mrb[0].mxu0
      %v7929 = vadd.f32 0.0, %v7928
      %v7930 = vpop.f32.mrb[0].mxu0
      %v7931 = vpop.f32.mrb[0].mxu0
      %v7932 = vadd.f32 0.0, %v7931
      %v7933 = vpop.f32.mrb[0].mxu0
      %7934 = vmatprep.mubr.bf16.mxu0 0
      %7935 = vmatmul.mubr.bf16.gmra.mrb[0].mxu0 %v7827
      %v7936 = vpop.f32.mrb[0].mxu0
      %v7937 = vadd.f32 0.0, %v7936
      %v7938 = vpop.f32.mrb[0].mxu0
      %v7939 = vpop.f32.mrb[0].mxu0
      %v7940 = vadd.f32 0.0, %v7939
      %v7941 = vpop.f32.mrb[0].mxu0
      %7942 = vmatprep.mubr.bf16.mxu0 0
      %7943 = vmatmul.mubr.bf16.gmra.mrb[0].mxu0 %v7830
      %v7944 = vpop.f32.mrb[0].mxu0
      %v7945 = vadd.f32 0.0, %v7944
      %v7946 = vpop.f32.mrb[0].mxu0
      %v7947 = vpop.f32.mrb[0].mxu0
      %v7948 = vadd.f32 0.0, %v7947
      %v7949 = vpop.f32.mrb[0].mxu0
      %7950 = vmatprep.mubr.bf16.mxu0 0
      %7951 = vmatmul.mubr.bf16.gmra.mrb[0].mxu0 %v7833
      %v7952 = vpop.f32.mrb[0].mxu0
      %v7953 = vadd.f32 0.0, %v7952
      %v7954 = vpop.f32.mrb[0].mxu0
      %v7955 = vpop.f32.mrb[0].mxu0
      %v7956 = vadd.f32 0.0, %v7955
      %v7957 = vpop.f32.mrb[0].mxu0
      %7958 = vmatprep.mubr.bf16.mxu0 0
      %7959 = vmatmul.mubr.bf16.gmra.mrb[0].mxu0 %v7836
      %v7960 = vpop.f32.mrb[0].mxu0
      %v7961 = vadd.f32 0.0, %v7960
      %v7962 = vpop.f32.mrb[0].mxu0
      %v7963 = vpop.f32.mrb[0].mxu0
      %v7964 = vadd.f32 0.0, %v7963
      %v7965 = vpop.f32.mrb[0].mxu0
      %7966 = vmatprep.mubr.bf16.mxu0 0
      %7967 = vmatmul.mubr.bf16.gmra.mrb[0].mxu0 %v7839
      %v7968 = vpop.f32.mrb[0].mxu0
      %v7969 = vadd.f32 0.0, %v7968
      %v7970 = vpop.f32.mrb[0].mxu0
      %v7971 = vpop.f32.mrb[0].mxu0
      %v7972 = vadd.f32 0.0, %v7971
      %v7973 = vpop.f32.mrb[0].mxu0
      %7974 = vmatprep.mubr.bf16.mxu0 0
      %7975 = vmatmul.mubr.bf16.gmra.mrb[0].mxu0 %v7842
      %v7976 = vpop.f32.mrb[0].mxu0
      %v7977 = vadd.f32 0.0, %v7976
      %v7978 = vpop.f32.mrb[0].mxu0
      %v7979 = vpop.f32.mrb[0].mxu0
      %v7980 = vadd.f32 0.0, %v7979
      %v7981 = vpop.f32.mrb[0].mxu0
      %7982 = vmatprep.mubr.bf16.mxu0 0
      %7983 = vmatmul.mubr.bf16.gmra.mrb[0].mxu0 %v7845
      %v7984 = vpop.f32.mrb[0].mxu0
      %v7985 = vadd.f32 0.0, %v7984
      %v7986 = vpop.f32.mrb[0].mxu0
      %v7987 = vpop.f32.mrb[0].mxu0
      %v7988 = vadd.f32 0.0, %v7987
      %v7989 = vpop.f32.mrb[0].mxu0
      %7990 = vmatprep.mubr.bf16.mxu0 0
      %7991 = vmatmul.mubr.bf16.gmra.mrb[0].mxu0 %v7848
      %v7992 = vpop.f32.mrb[0].mxu0
      %v7993 = vadd.f32 0.0, %v7992
      %v7994 = vpop.f32.mrb[0].mxu0
      %v7995 = vpop.f32.mrb[0].mxu0
      %v7996 = vadd.f32 0.0, %v7995
      %v7997 = vpop.f32.mrb[0].mxu0
      %7998 = vmatprep.mubr.bf16.mxu0 0
      %7999 = vmatmul.mubr.bf16.gmra.mrb[0].mxu0 %v7851
      %v8000 = vpop.f32.mrb[0].mxu0
      %v8001 = vadd.f32 0.0, %v8000
      %v8002 = vpop.f32.mrb[0].mxu0
      %v8003 = vpop.f32.mrb[0].mxu0
      %v8004 = vadd.f32 0.0, %v8003
      %v8005 = vpop.f32.mrb[0].mxu0
      %8006 = vmatprep.mubr.bf16.mxu0 0
      %8007 = vmatmul.mubr.bf16.gmra.mrb[0].mxu0 %v7854
      %v8008 = vpop.f32.mrb[0].mxu0
      %v8009 = vadd.f32 0.0, %v8008
      %v8010 = vpop.f32.mrb[0].mxu0
      %v8011 = vpop.f32.mrb[0].mxu0
      %v8012 = vadd.f32 0.0, %v8011
      %v8013 = vpop.f32.mrb[0].mxu0
      %8014 = vmatprep.mubr.bf16.mxu0 0
      %8015 = vmatmul.mubr.bf16.gmra.mrb[0].mxu0 %v7857
      %v8016 = vpop.f32.mrb[0].mxu0
      %v8017 = vadd.f32 0.0, %v8016
      %v8018 = vpop.f32.mrb[0].mxu0
      %v8019 = vpop.f32.mrb[0].mxu0
      %v8020 = vadd.f32 0.0, %v8019
      %v8021 = vpop.f32.mrb[0].mxu0
      %8022 = vdwg.mxu0
      %v8023 = vld [vmem:[#allocation3] sm:$0xff]
      %v8024 = vld [vmem:[#allocation3 + $0x8] sm:$0xff]
      %v8025 = vld [vmem:[#allocation3 + $0x10] sm:$0xff]
      %v8026 = vld [vmem:[#allocation3 + $0x18] sm:$0xff]
      %v8027 = vld [vmem:[#allocation3 + $0x20] sm:$0xff]
      %v8028 = vld [vmem:[#allocation3 + $0x28] sm:$0xff]
      %v8029 = vld [vmem:[#allocation3 + $0x30] sm:$0xff]
      %v8030 = vld [vmem:[#allocation3 + $0x38] sm:$0xff]
      %v8031 = vld [vmem:[#allocation3 + $0x40] sm:$0xff]
      %v8032 = vld [vmem:[#allocation3 + $0x48] sm:$0xff]
      %v8033 = vld [vmem:[#allocation3 + $0x50] sm:$0xff]
      %v8034 = vld [vmem:[#allocation3 + $0x58] sm:$0xff]
      %v8035 = vld [vmem:[#allocation3 + $0x60] sm:$0xff]
      %v8036 = vld [vmem:[#allocation3 + $0x68] sm:$0xff]
      %v8037 = vld [vmem:[#allocation3 + $0x70] sm:$0xff]
      %v8038 = vld [vmem:[#allocation3 + $0x78] sm:$0xff]
      %v8039 = vld [vmem:[#allocation3 + $0x80] sm:$0xff]
      %v8040 = vld [vmem:[#allocation3 + $0x88] sm:$0xff]
      %v8041 = vld [vmem:[#allocation3 + $0x90] sm:$0xff]
      %v8042 = vld [vmem:[#allocation3 + $0x98] sm:$0xff]
      %v8043 = vld [vmem:[#allocation3 + $0xa0] sm:$0xff]
      %v8044 = vld [vmem:[#allocation3 + $0xa8] sm:$0xff]
      %v8045 = vld [vmem:[#allocation3 + $0xb0] sm:$0xff]
      %v8046 = vld [vmem:[#allocation3 + $0xb8] sm:$0xff]
      %v8047 = vld [vmem:[#allocation3 + $0xc0] sm:$0xff]
      %v8048 = vld [vmem:[#allocation3 + $0xc8] sm:$0xff]
      %v8049 = vld [vmem:[#allocation3 + $0xd0] sm:$0xff]
      %v8050 = vld [vmem:[#allocation3 + $0xd8] sm:$0xff]
      %v8051 = vld [vmem:[#allocation3 + $0xe0] sm:$0xff]
      %v8052 = vld [vmem:[#allocation3 + $0xe8] sm:$0xff]
      %v8053 = vld [vmem:[#allocation3 + $0xf0] sm:$0xff]
      %v8054 = vld [vmem:[#allocation3 + $0xf8] sm:$0xff]
      %v8055 = vadd.f32 %v8023, %v7897
      %v8056 = vadd.f32 %v8024, %v7900
      %v8057 = vadd.f32 %v8025, %v7905
      %v8058 = vadd.f32 %v8026, %v7908
      %v8059 = vadd.f32 %v8027, %v7913
      %v8060 = vadd.f32 %v8028, %v7916
      %v8061 = vadd.f32 %v8029, %v7921
      %v8062 = vadd.f32 %v8030, %v7924
      %v8063 = vadd.f32 %v8031, %v7929
      %v8064 = vadd.f32 %v8032, %v7932
      %v8065 = vadd.f32 %v8033, %v7937
      %v8066 = vadd.f32 %v8034, %v7940
      %v8067 = vadd.f32 %v8035, %v7945
      %v8068 = vadd.f32 %v8036, %v7948
      %v8069 = vadd.f32 %v8037, %v7953
      %v8070 = vadd.f32 %v8038, %v7956
      %v8071 = vadd.f32 %v8039, %v7961
      %v8072 = vadd.f32 %v8040, %v7964
      %v8073 = vadd.f32 %v8041, %v7969
      %v8074 = vadd.f32 %v8042, %v7972
      %v8075 = vadd.f32 %v8043, %v7977
      %v8076 = vadd.f32 %v8044, %v7980
      %v8077 = vadd.f32 %v8045, %v7985
      %v8078 = vadd.f32 %v8046, %v7988
      %v8079 = vadd.f32 %v8047, %v7993
      %v8080 = vadd.f32 %v8048, %v7996
      %v8081 = vadd.f32 %v8049, %v8001
      %v8082 = vadd.f32 %v8050, %v8004
      %v8083 = vadd.f32 %v8051, %v8009
      %v8084 = vadd.f32 %v8052, %v8012
      %v8085 = vadd.f32 %v8053, %v8017
      %v8086 = vadd.f32 %v8054, %v8020
      %8087 = vst.msk [vmem:[#allocation3] sm:$0xff] %vm280, %v8055
      %8088 = vst.msk [vmem:[#allocation3 + $0x8] sm:$0xff] %vm280, %v8056
      %8089 = vst.msk [vmem:[#allocation3 + $0x10] sm:$0xff] %vm280, %v8057
      %8090 = vst.msk [vmem:[#allocation3 + $0x18] sm:$0xff] %vm280, %v8058
      %8091 = vst.msk [vmem:[#allocation3 + $0x20] sm:$0xff] %vm280, %v8059
      %8092 = vst.msk [vmem:[#allocation3 + $0x28] sm:$0xff] %vm280, %v8060
      %8093 = vst.msk [vmem:[#allocation3 + $0x30] sm:$0xff] %vm280, %v8061
      %8094 = vst.msk [vmem:[#allocation3 + $0x38] sm:$0xff] %vm280, %v8062
      %8095 = vst.msk [vmem:[#allocation3 + $0x40] sm:$0xff] %vm280, %v8063
      %8096 = vst.msk [vmem:[#allocation3 + $0x48] sm:$0xff] %vm280, %v8064
      %8097 = vst.msk [vmem:[#allocation3 + $0x50] sm:$0xff] %vm280, %v8065
      %8098 = vst.msk [vmem:[#allocation3 + $0x58] sm:$0xff] %vm280, %v8066
      %8099 = vst.msk [vmem:[#allocation3 + $0x60] sm:$0xff] %vm280, %v8067
      %8100 = vst.msk [vmem:[#allocation3 + $0x68] sm:$0xff] %vm280, %v8068
      %8101 = vst.msk [vmem:[#allocation3 + $0x70] sm:$0xff] %vm280, %v8069
      %8102 = vst.msk [vmem:[#allocation3 + $0x78] sm:$0xff] %vm280, %v8070
      %8103 = vst.msk [vmem:[#allocation3 + $0x80] sm:$0xff] %vm280, %v8071
      %8104 = vst.msk [vmem:[#allocation3 + $0x88] sm:$0xff] %vm280, %v8072
      %8105 = vst.msk [vmem:[#allocation3 + $0x90] sm:$0xff] %vm280, %v8073
      %8106 = vst.msk [vmem:[#allocation3 + $0x98] sm:$0xff] %vm280, %v8074
      %8107 = vst.msk [vmem:[#allocation3 + $0xa0] sm:$0xff] %vm280, %v8075
      %8108 = vst.msk [vmem:[#allocation3 + $0xa8] sm:$0xff] %vm280, %v8076
      %8109 = vst.msk [vmem:[#allocation3 + $0xb0] sm:$0xff] %vm280, %v8077
      %8110 = vst.msk [vmem:[#allocation3 + $0xb8] sm:$0xff] %vm280, %v8078
      %8111 = vst.msk [vmem:[#allocation3 + $0xc0] sm:$0xff] %vm280, %v8079
      %8112 = vst.msk [vmem:[#allocation3 + $0xc8] sm:$0xff] %vm280, %v8080
      %8113 = vst.msk [vmem:[#allocation3 + $0xd0] sm:$0xff] %vm280, %v8081
      %8114 = vst.msk [vmem:[#allocation3 + $0xd8] sm:$0xff] %vm280, %v8082
      %8115 = vst.msk [vmem:[#allocation3 + $0xe0] sm:$0xff] %vm280, %v8083
      %8116 = vst.msk [vmem:[#allocation3 + $0xe8] sm:$0xff] %vm280, %v8084
      %8117 = vst.msk [vmem:[#allocation3 + $0xf0] sm:$0xff] %vm280, %v8085
      %8118 = vst.msk [vmem:[#allocation3 + $0xf8] sm:$0xff] %vm280, %v8086
      %v8119 = vld [vmem:[%s3113 + $0x8] sm:$0xff]
      %v8120 = vld [vmem:[%s3113 + $0x20] sm:$0xff]
      %v8121 = vld [vmem:[%s3113 + $0x38] sm:$0xff]
      %v8122 = vld [vmem:[%s3113 + $0x50] sm:$0xff]
      %v8123 = vld [vmem:[%s3113 + $0x68] sm:$0xff]
      %v8124 = vld [vmem:[%s3113 + $0x80] sm:$0xff]
      %v8125 = vld [vmem:[%s3113 + $0x98] sm:$0xff]
      %v8126 = vld [vmem:[%s3113 + $0xb0] sm:$0xff]
      %v8127 = vld [vmem:[%s3113 + $0xc8] sm:$0xff]
      %v8128 = vld [vmem:[%s3113 + $0xe0] sm:$0xff]
      %v8129 = vld [vmem:[%s3113 + $0xf8] sm:$0xff]
      %v8130 = vld [vmem:[%s3113 + $0x110] sm:$0xff]
      %v8131 = vld [vmem:[%s3113 + $0x128] sm:$0xff]
      %v8132 = vld [vmem:[%s3113 + $0x140] sm:$0xff]
      %v8133 = vld [vmem:[%s3113 + $0x158] sm:$0xff]
      %v8134 = vld [vmem:[%s3113 + $0x170] sm:$0xff]
      %s8135 = scalar_lea.vmem %s4, 14
      %v8136 = vld [vmem:[%s8135] sm:$0x3]
      %v8138 = vsel %vm280, %v8119, 0
      %v8141 = vsel %vm280, %v8120, 0
      %v8144 = vsel %vm280, %v8121, 0
      %v8147 = vsel %vm280, %v8122, 0
      %v8150 = vsel %vm280, %v8123, 0
      %v8153 = vsel %vm280, %v8124, 0
      %v8156 = vsel %vm280, %v8125, 0
      %v8159 = vsel %vm280, %v8126, 0
      %v8162 = vsel %vm280, %v8127, 0
      %v8165 = vsel %vm280, %v8128, 0
      %v8168 = vsel %vm280, %v8129, 0
      %v8171 = vsel %vm280, %v8130, 0
      %v8174 = vsel %vm280, %v8131, 0
      %v8177 = vsel %vm280, %v8132, 0
      %v8180 = vsel %vm280, %v8133, 0
      %v8183 = vsel %vm280, %v8134, 0
      %v8186 = vsel %vm661, %v8136, 0
      %8188 = vmatprep.subr.bf16.mxu0 0
      %8189 = vmatpush1.bf16.msra.mxu0 %v8186
      %8190 = vmatprep.subr.bf16.mxu0 0
      %8191 = vmatpush1.bf16.msra.mxu0 0
      %8192 = vmatprep.subr.bf16.mxu0 0
      %8193 = vmatpush1.bf16.msra.mxu0 0
      %8194 = vmatprep.subr.bf16.mxu0 0
      %8195 = vmatpush1.bf16.msra.mxu0 0
      %8196 = vmatprep.subr.bf16.mxu0 0
      %8197 = vmatpush1.bf16.msra.mxu0 0
      %8198 = vmatprep.subr.bf16.mxu0 0
      %8199 = vmatpush1.bf16.msra.mxu0 0
      %8200 = vmatprep.subr.bf16.mxu0 0
      %8201 = vmatpush1.bf16.msra.mxu0 0
      %8202 = vmatprep.subr.bf16.mxu0 0
      %8203 = vmatpush1.bf16.msra.mxu0 0
      %8204 = vmatprep.subr.bf16.mxu0 0
      %8205 = vmatpush1.bf16.msra.mxu0 0
      %8206 = vmatprep.subr.bf16.mxu0 0
      %8207 = vmatpush1.bf16.msra.mxu0 0
      %8208 = vmatprep.subr.bf16.mxu0 0
      %8209 = vmatpush1.bf16.msra.mxu0 0
      %8210 = vmatprep.subr.bf16.mxu0 0
      %8211 = vmatpush1.bf16.msra.mxu0 0
      %8212 = vmatprep.subr.bf16.mxu0 0
      %8213 = vmatpush1.bf16.msra.mxu0 0
      %8214 = vmatprep.subr.bf16.mxu0 0
      %8215 = vmatpush1.bf16.msra.mxu0 0
      %8216 = vmatprep.subr.bf16.mxu0 0
      %8217 = vmatpush1.bf16.msra.mxu0 0
      %8218 = vmatprep.subr.bf16.mxu0 0
      %8219 = vmatpush1.bf16.msra.mxu0 0
      %8220 = vmatprep.mubr.bf16.mxu0 0
      %8221 = vmatmul.mubr.bf16.gmra.mrb[0].mxu0 %v8138
      %v8222 = vpop.f32.mrb[0].mxu0
      %v8223 = vadd.f32 0.0, %v8222
      %v8224 = vpop.f32.mrb[0].mxu0
      %v8225 = vpop.f32.mrb[0].mxu0
      %v8226 = vadd.f32 0.0, %v8225
      %v8227 = vpop.f32.mrb[0].mxu0
      %8228 = vmatprep.mubr.bf16.mxu0 0
      %8229 = vmatmul.mubr.bf16.gmra.mrb[0].mxu0 %v8141
      %v8230 = vpop.f32.mrb[0].mxu0
      %v8231 = vadd.f32 0.0, %v8230
      %v8232 = vpop.f32.mrb[0].mxu0
      %v8233 = vpop.f32.mrb[0].mxu0
      %v8234 = vadd.f32 0.0, %v8233
      %v8235 = vpop.f32.mrb[0].mxu0
      %8236 = vmatprep.mubr.bf16.mxu0 0
      %8237 = vmatmul.mubr.bf16.gmra.mrb[0].mxu0 %v8144
      %v8238 = vpop.f32.mrb[0].mxu0
      %v8239 = vadd.f32 0.0, %v8238
      %v8240 = vpop.f32.mrb[0].mxu0
      %v8241 = vpop.f32.mrb[0].mxu0
      %v8242 = vadd.f32 0.0, %v8241
      %v8243 = vpop.f32.mrb[0].mxu0
      %8244 = vmatprep.mubr.bf16.mxu0 0
      %8245 = vmatmul.mubr.bf16.gmra.mrb[0].mxu0 %v8147
      %v8246 = vpop.f32.mrb[0].mxu0
      %v8247 = vadd.f32 0.0, %v8246
      %v8248 = vpop.f32.mrb[0].mxu0
      %v8249 = vpop.f32.mrb[0].mxu0
      %v8250 = vadd.f32 0.0, %v8249
      %v8251 = vpop.f32.mrb[0].mxu0
      %8252 = vmatprep.mubr.bf16.mxu0 0
      %8253 = vmatmul.mubr.bf16.gmra.mrb[0].mxu0 %v8150
      %v8254 = vpop.f32.mrb[0].mxu0
      %v8255 = vadd.f32 0.0, %v8254
      %v8256 = vpop.f32.mrb[0].mxu0
      %v8257 = vpop.f32.mrb[0].mxu0
      %v8258 = vadd.f32 0.0, %v8257
      %v8259 = vpop.f32.mrb[0].mxu0
      %8260 = vmatprep.mubr.bf16.mxu0 0
      %8261 = vmatmul.mubr.bf16.gmra.mrb[0].mxu0 %v8153
      %v8262 = vpop.f32.mrb[0].mxu0
      %v8263 = vadd.f32 0.0, %v8262
      %v8264 = vpop.f32.mrb[0].mxu0
      %v8265 = vpop.f32.mrb[0].mxu0
      %v8266 = vadd.f32 0.0, %v8265
      %v8267 = vpop.f32.mrb[0].mxu0
      %8268 = vmatprep.mubr.bf16.mxu0 0
      %8269 = vmatmul.mubr.bf16.gmra.mrb[0].mxu0 %v8156
      %v8270 = vpop.f32.mrb[0].mxu0
      %v8271 = vadd.f32 0.0, %v8270
      %v8272 = vpop.f32.mrb[0].mxu0
      %v8273 = vpop.f32.mrb[0].mxu0
      %v8274 = vadd.f32 0.0, %v8273
      %v8275 = vpop.f32.mrb[0].mxu0
      %8276 = vmatprep.mubr.bf16.mxu0 0
      %8277 = vmatmul.mubr.bf16.gmra.mrb[0].mxu0 %v8159
      %v8278 = vpop.f32.mrb[0].mxu0
      %v8279 = vadd.f32 0.0, %v8278
      %v8280 = vpop.f32.mrb[0].mxu0
      %v8281 = vpop.f32.mrb[0].mxu0
      %v8282 = vadd.f32 0.0, %v8281
      %v8283 = vpop.f32.mrb[0].mxu0
      %8284 = vmatprep.mubr.bf16.mxu0 0
      %8285 = vmatmul.mubr.bf16.gmra.mrb[0].mxu0 %v8162
      %v8286 = vpop.f32.mrb[0].mxu0
      %v8287 = vadd.f32 0.0, %v8286
      %v8288 = vpop.f32.mrb[0].mxu0
      %v8289 = vpop.f32.mrb[0].mxu0
      %v8290 = vadd.f32 0.0, %v8289
      %v8291 = vpop.f32.mrb[0].mxu0
      %8292 = vmatprep.mubr.bf16.mxu0 0
      %8293 = vmatmul.mubr.bf16.gmra.mrb[0].mxu0 %v8165
      %v8294 = vpop.f32.mrb[0].mxu0
      %v8295 = vadd.f32 0.0, %v8294
      %v8296 = vpop.f32.mrb[0].mxu0
      %v8297 = vpop.f32.mrb[0].mxu0
      %v8298 = vadd.f32 0.0, %v8297
      %v8299 = vpop.f32.mrb[0].mxu0
      %8300 = vmatprep.mubr.bf16.mxu0 0
      %8301 = vmatmul.mubr.bf16.gmra.mrb[0].mxu0 %v8168
      %v8302 = vpop.f32.mrb[0].mxu0
      %v8303 = vadd.f32 0.0, %v8302
      %v8304 = vpop.f32.mrb[0].mxu0
      %v8305 = vpop.f32.mrb[0].mxu0
      %v8306 = vadd.f32 0.0, %v8305
      %v8307 = vpop.f32.mrb[0].mxu0
      %8308 = vmatprep.mubr.bf16.mxu0 0
      %8309 = vmatmul.mubr.bf16.gmra.mrb[0].mxu0 %v8171
      %v8310 = vpop.f32.mrb[0].mxu0
      %v8311 = vadd.f32 0.0, %v8310
      %v8312 = vpop.f32.mrb[0].mxu0
      %v8313 = vpop.f32.mrb[0].mxu0
      %v8314 = vadd.f32 0.0, %v8313
      %v8315 = vpop.f32.mrb[0].mxu0
      %8316 = vmatprep.mubr.bf16.mxu0 0
      %8317 = vmatmul.mubr.bf16.gmra.mrb[0].mxu0 %v8174
      %v8318 = vpop.f32.mrb[0].mxu0
      %v8319 = vadd.f32 0.0, %v8318
      %v8320 = vpop.f32.mrb[0].mxu0
      %v8321 = vpop.f32.mrb[0].mxu0
      %v8322 = vadd.f32 0.0, %v8321
      %v8323 = vpop.f32.mrb[0].mxu0
      %8324 = vmatprep.mubr.bf16.mxu0 0
      %8325 = vmatmul.mubr.bf16.gmra.mrb[0].mxu0 %v8177
      %v8326 = vpop.f32.mrb[0].mxu0
      %v8327 = vadd.f32 0.0, %v8326
      %v8328 = vpop.f32.mrb[0].mxu0
      %v8329 = vpop.f32.mrb[0].mxu0
      %v8330 = vadd.f32 0.0, %v8329
      %v8331 = vpop.f32.mrb[0].mxu0
      %8332 = vmatprep.mubr.bf16.mxu0 0
      %8333 = vmatmul.mubr.bf16.gmra.mrb[0].mxu0 %v8180
      %v8334 = vpop.f32.mrb[0].mxu0
      %v8335 = vadd.f32 0.0, %v8334
      %v8336 = vpop.f32.mrb[0].mxu0
      %v8337 = vpop.f32.mrb[0].mxu0
      %v8338 = vadd.f32 0.0, %v8337
      %v8339 = vpop.f32.mrb[0].mxu0
      %8340 = vmatprep.mubr.bf16.mxu0 0
      %8341 = vmatmul.mubr.bf16.gmra.mrb[0].mxu0 %v8183
      %v8342 = vpop.f32.mrb[0].mxu0
      %v8343 = vadd.f32 0.0, %v8342
      %v8344 = vpop.f32.mrb[0].mxu0
      %v8345 = vpop.f32.mrb[0].mxu0
      %v8346 = vadd.f32 0.0, %v8345
      %v8347 = vpop.f32.mrb[0].mxu0
      %8348 = vdwg.mxu0
      %v8349 = vld [vmem:[#allocation3] sm:$0xff]
      %v8350 = vld [vmem:[#allocation3 + $0x8] sm:$0xff]
      %v8351 = vld [vmem:[#allocation3 + $0x10] sm:$0xff]
      %v8352 = vld [vmem:[#allocation3 + $0x18] sm:$0xff]
      %v8353 = vld [vmem:[#allocation3 + $0x20] sm:$0xff]
      %v8354 = vld [vmem:[#allocation3 + $0x28] sm:$0xff]
      %v8355 = vld [vmem:[#allocation3 + $0x30] sm:$0xff]
      %v8356 = vld [vmem:[#allocation3 + $0x38] sm:$0xff]
      %v8357 = vld [vmem:[#allocation3 + $0x40] sm:$0xff]
      %v8358 = vld [vmem:[#allocation3 + $0x48] sm:$0xff]
      %v8359 = vld [vmem:[#allocation3 + $0x50] sm:$0xff]
      %v8360 = vld [vmem:[#allocation3 + $0x58] sm:$0xff]
      %v8361 = vld [vmem:[#allocation3 + $0x60] sm:$0xff]
      %v8362 = vld [vmem:[#allocation3 + $0x68] sm:$0xff]
      %v8363 = vld [vmem:[#allocation3 + $0x70] sm:$0xff]
      %v8364 = vld [vmem:[#allocation3 + $0x78] sm:$0xff]
      %v8365 = vld [vmem:[#allocation3 + $0x80] sm:$0xff]
      %v8366 = vld [vmem:[#allocation3 + $0x88] sm:$0xff]
      %v8367 = vld [vmem:[#allocation3 + $0x90] sm:$0xff]
      %v8368 = vld [vmem:[#allocation3 + $0x98] sm:$0xff]
      %v8369 = vld [vmem:[#allocation3 + $0xa0] sm:$0xff]
      %v8370 = vld [vmem:[#allocation3 + $0xa8] sm:$0xff]
      %v8371 = vld [vmem:[#allocation3 + $0xb0] sm:$0xff]
      %v8372 = vld [vmem:[#allocation3 + $0xb8] sm:$0xff]
      %v8373 = vld [vmem:[#allocation3 + $0xc0] sm:$0xff]
      %v8374 = vld [vmem:[#allocation3 + $0xc8] sm:$0xff]
      %v8375 = vld [vmem:[#allocation3 + $0xd0] sm:$0xff]
      %v8376 = vld [vmem:[#allocation3 + $0xd8] sm:$0xff]
      %v8377 = vld [vmem:[#allocation3 + $0xe0] sm:$0xff]
      %v8378 = vld [vmem:[#allocation3 + $0xe8] sm:$0xff]
      %v8379 = vld [vmem:[#allocation3 + $0xf0] sm:$0xff]
      %v8380 = vld [vmem:[#allocation3 + $0xf8] sm:$0xff]
      %v8381 = vadd.f32 %v8349, %v8223
      %v8382 = vadd.f32 %v8350, %v8226
      %v8383 = vadd.f32 %v8351, %v8231
      %v8384 = vadd.f32 %v8352, %v8234
      %v8385 = vadd.f32 %v8353, %v8239
      %v8386 = vadd.f32 %v8354, %v8242
      %v8387 = vadd.f32 %v8355, %v8247
      %v8388 = vadd.f32 %v8356, %v8250
      %v8389 = vadd.f32 %v8357, %v8255
      %v8390 = vadd.f32 %v8358, %v8258
      %v8391 = vadd.f32 %v8359, %v8263
      %v8392 = vadd.f32 %v8360, %v8266
      %v8393 = vadd.f32 %v8361, %v8271
      %v8394 = vadd.f32 %v8362, %v8274
      %v8395 = vadd.f32 %v8363, %v8279
      %v8396 = vadd.f32 %v8364, %v8282
      %v8397 = vadd.f32 %v8365, %v8287
      %v8398 = vadd.f32 %v8366, %v8290
      %v8399 = vadd.f32 %v8367, %v8295
      %v8400 = vadd.f32 %v8368, %v8298
      %v8401 = vadd.f32 %v8369, %v8303
      %v8402 = vadd.f32 %v8370, %v8306
      %v8403 = vadd.f32 %v8371, %v8311
      %v8404 = vadd.f32 %v8372, %v8314
      %v8405 = vadd.f32 %v8373, %v8319
      %v8406 = vadd.f32 %v8374, %v8322
      %v8407 = vadd.f32 %v8375, %v8327
      %v8408 = vadd.f32 %v8376, %v8330
      %v8409 = vadd.f32 %v8377, %v8335
      %v8410 = vadd.f32 %v8378, %v8338
      %v8411 = vadd.f32 %v8379, %v8343
      %v8412 = vadd.f32 %v8380, %v8346
      %8413 = vst.msk [vmem:[#allocation3] sm:$0xff] %vm280, %v8381
      %8414 = vst.msk [vmem:[#allocation3 + $0x8] sm:$0xff] %vm280, %v8382
      %8415 = vst.msk [vmem:[#allocation3 + $0x10] sm:$0xff] %vm280, %v8383
      %8416 = vst.msk [vmem:[#allocation3 + $0x18] sm:$0xff] %vm280, %v8384
      %8417 = vst.msk [vmem:[#allocation3 + $0x20] sm:$0xff] %vm280, %v8385
      %8418 = vst.msk [vmem:[#allocation3 + $0x28] sm:$0xff] %vm280, %v8386
      %8419 = vst.msk [vmem:[#allocation3 + $0x30] sm:$0xff] %vm280, %v8387
      %8420 = vst.msk [vmem:[#allocation3 + $0x38] sm:$0xff] %vm280, %v8388
      %8421 = vst.msk [vmem:[#allocation3 + $0x40] sm:$0xff] %vm280, %v8389
      %8422 = vst.msk [vmem:[#allocation3 + $0x48] sm:$0xff] %vm280, %v8390
      %8423 = vst.msk [vmem:[#allocation3 + $0x50] sm:$0xff] %vm280, %v8391
      %8424 = vst.msk [vmem:[#allocation3 + $0x58] sm:$0xff] %vm280, %v8392
      %8425 = vst.msk [vmem:[#allocation3 + $0x60] sm:$0xff] %vm280, %v8393
      %8426 = vst.msk [vmem:[#allocation3 + $0x68] sm:$0xff] %vm280, %v8394
      %8427 = vst.msk [vmem:[#allocation3 + $0x70] sm:$0xff] %vm280, %v8395
      %8428 = vst.msk [vmem:[#allocation3 + $0x78] sm:$0xff] %vm280, %v8396
      %8429 = vst.msk [vmem:[#allocation3 + $0x80] sm:$0xff] %vm280, %v8397
      %8430 = vst.msk [vmem:[#allocation3 + $0x88] sm:$0xff] %vm280, %v8398
      %8431 = vst.msk [vmem:[#allocation3 + $0x90] sm:$0xff] %vm280, %v8399
      %8432 = vst.msk [vmem:[#allocation3 + $0x98] sm:$0xff] %vm280, %v8400
      %8433 = vst.msk [vmem:[#allocation3 + $0xa0] sm:$0xff] %vm280, %v8401
      %8434 = vst.msk [vmem:[#allocation3 + $0xa8] sm:$0xff] %vm280, %v8402
      %8435 = vst.msk [vmem:[#allocation3 + $0xb0] sm:$0xff] %vm280, %v8403
      %8436 = vst.msk [vmem:[#allocation3 + $0xb8] sm:$0xff] %vm280, %v8404
      %8437 = vst.msk [vmem:[#allocation3 + $0xc0] sm:$0xff] %vm280, %v8405
      %8438 = vst.msk [vmem:[#allocation3 + $0xc8] sm:$0xff] %vm280, %v8406
      %8439 = vst.msk [vmem:[#allocation3 + $0xd0] sm:$0xff] %vm280, %v8407
      %8440 = vst.msk [vmem:[#allocation3 + $0xd8] sm:$0xff] %vm280, %v8408
      %8441 = vst.msk [vmem:[#allocation3 + $0xe0] sm:$0xff] %vm280, %v8409
      %8442 = vst.msk [vmem:[#allocation3 + $0xe8] sm:$0xff] %vm280, %v8410
      %8443 = vst.msk [vmem:[#allocation3 + $0xf0] sm:$0xff] %vm280, %v8411
      %8444 = vst.msk [vmem:[#allocation3 + $0xf8] sm:$0xff] %vm280, %v8412
      %v8445 = vld [vmem:[%s3113 + $0x8] sm:$0xff]
      %v8446 = vld [vmem:[%s3113 + $0x10] sm:$0x1]
      %v8447 = vld [vmem:[%s3113 + $0x20] sm:$0xff]
      %v8448 = vld [vmem:[%s3113 + $0x28] sm:$0x1]
      %v8449 = vld [vmem:[%s3113 + $0x38] sm:$0xff]
      %v8450 = vld [vmem:[%s3113 + $0x40] sm:$0x1]
      %v8451 = vld [vmem:[%s3113 + $0x50] sm:$0xff]
      %v8452 = vld [vmem:[%s3113 + $0x58] sm:$0x1]
      %v8453 = vld [vmem:[%s3113 + $0x68] sm:$0xff]
      %v8454 = vld [vmem:[%s3113 + $0x70] sm:$0x1]
      %v8455 = vld [vmem:[%s3113 + $0x80] sm:$0xff]
      %v8456 = vld [vmem:[%s3113 + $0x88] sm:$0x1]
      %v8457 = vld [vmem:[%s3113 + $0x98] sm:$0xff]
      %v8458 = vld [vmem:[%s3113 + $0xa0] sm:$0x1]
      %v8459 = vld [vmem:[%s3113 + $0xb0] sm:$0xff]
      %v8460 = vld [vmem:[%s3113 + $0xb8] sm:$0x1]
      %v8461 = vld [vmem:[%s3113 + $0xc8] sm:$0xff]
      %v8462 = vld [vmem:[%s3113 + $0xd0] sm:$0x1]
      %v8463 = vld [vmem:[%s3113 + $0xe0] sm:$0xff]
      %v8464 = vld [vmem:[%s3113 + $0xe8] sm:$0x1]
      %v8465 = vld [vmem:[%s3113 + $0xf8] sm:$0xff]
      %v8466 = vld [vmem:[%s3113 + $0x100] sm:$0x1]
      %v8467 = vld [vmem:[%s3113 + $0x110] sm:$0xff]
      %v8468 = vld [vmem:[%s3113 + $0x118] sm:$0x1]
      %v8469 = vld [vmem:[%s3113 + $0x128] sm:$0xff]
      %v8470 = vld [vmem:[%s3113 + $0x130] sm:$0x1]
      %v8471 = vld [vmem:[%s3113 + $0x140] sm:$0xff]
      %v8472 = vld [vmem:[%s3113 + $0x148] sm:$0x1]
      %v8473 = vld [vmem:[%s3113 + $0x158] sm:$0xff]
      %v8474 = vld [vmem:[%s3113 + $0x160] sm:$0x1]
      %v8475 = vld [vmem:[%s3113 + $0x170] sm:$0xff]
      %v8476 = vld [vmem:[%s3113 + $0x178] sm:$0x1]
      %v8478 = vshrl.u32 %v8445, 16
      %v8480 = vshll.u32 %v8445, 16
      %v8482 = vrot.slane %v8480, 1
      %v8483 = vor.u32 %v8478, %v8482
      %v8485 = vshll.u32 %v8446, 16
      %v8487 = vrot.slane %v8485, 1
      %v8488 = vsel %vm1216, %v8483, %v8487
      %v8490 = vshrl.u32 %v8447, 16
      %v8492 = vshll.u32 %v8447, 16
      %v8494 = vrot.slane %v8492, 1
      %v8495 = vor.u32 %v8490, %v8494
      %v8497 = vshll.u32 %v8448, 16
      %v8499 = vrot.slane %v8497, 1
      %v8500 = vsel %vm1216, %v8495, %v8499
      %v8502 = vshrl.u32 %v8449, 16
      %v8504 = vshll.u32 %v8449, 16
      %v8506 = vrot.slane %v8504, 1
      %v8507 = vor.u32 %v8502, %v8506
      %v8509 = vshll.u32 %v8450, 16
      %v8511 = vrot.slane %v8509, 1
      %v8512 = vsel %vm1216, %v8507, %v8511
      %v8514 = vshrl.u32 %v8451, 16
      %v8516 = vshll.u32 %v8451, 16
      %v8518 = vrot.slane %v8516, 1
      %v8519 = vor.u32 %v8514, %v8518
      %v8521 = vshll.u32 %v8452, 16
      %v8523 = vrot.slane %v8521, 1
      %v8524 = vsel %vm1216, %v8519, %v8523
      %v8526 = vshrl.u32 %v8453, 16
      %v8528 = vshll.u32 %v8453, 16
      %v8530 = vrot.slane %v8528, 1
      %v8531 = vor.u32 %v8526, %v8530
      %v8533 = vshll.u32 %v8454, 16
      %v8535 = vrot.slane %v8533, 1
      %v8536 = vsel %vm1216, %v8531, %v8535
      %v8538 = vshrl.u32 %v8455, 16
      %v8540 = vshll.u32 %v8455, 16
      %v8542 = vrot.slane %v8540, 1
      %v8543 = vor.u32 %v8538, %v8542
      %v8545 = vshll.u32 %v8456, 16
      %v8547 = vrot.slane %v8545, 1
      %v8548 = vsel %vm1216, %v8543, %v8547
      %v8550 = vshrl.u32 %v8457, 16
      %v8552 = vshll.u32 %v8457, 16
      %v8554 = vrot.slane %v8552, 1
      %v8555 = vor.u32 %v8550, %v8554
      %v8557 = vshll.u32 %v8458, 16
      %v8559 = vrot.slane %v8557, 1
      %v8560 = vsel %vm1216, %v8555, %v8559
      %v8562 = vshrl.u32 %v8459, 16
      %v8564 = vshll.u32 %v8459, 16
      %v8566 = vrot.slane %v8564, 1
      %v8567 = vor.u32 %v8562, %v8566
      %v8569 = vshll.u32 %v8460, 16
      %v8571 = vrot.slane %v8569, 1
      %v8572 = vsel %vm1216, %v8567, %v8571
      %v8574 = vshrl.u32 %v8461, 16
      %v8576 = vshll.u32 %v8461, 16
      %v8578 = vrot.slane %v8576, 1
      %v8579 = vor.u32 %v8574, %v8578
      %v8581 = vshll.u32 %v8462, 16
      %v8583 = vrot.slane %v8581, 1
      %v8584 = vsel %vm1216, %v8579, %v8583
      %v8586 = vshrl.u32 %v8463, 16
      %v8588 = vshll.u32 %v8463, 16
      %v8590 = vrot.slane %v8588, 1
      %v8591 = vor.u32 %v8586, %v8590
      %v8593 = vshll.u32 %v8464, 16
      %v8595 = vrot.slane %v8593, 1
      %v8596 = vsel %vm1216, %v8591, %v8595
      %v8598 = vshrl.u32 %v8465, 16
      %v8600 = vshll.u32 %v8465, 16
      %v8602 = vrot.slane %v8600, 1
      %v8603 = vor.u32 %v8598, %v8602
      %v8605 = vshll.u32 %v8466, 16
      %v8607 = vrot.slane %v8605, 1
      %v8608 = vsel %vm1216, %v8603, %v8607
      %v8610 = vshrl.u32 %v8467, 16
      %v8612 = vshll.u32 %v8467, 16
      %v8614 = vrot.slane %v8612, 1
      %v8615 = vor.u32 %v8610, %v8614
      %v8617 = vshll.u32 %v8468, 16
      %v8619 = vrot.slane %v8617, 1
      %v8620 = vsel %vm1216, %v8615, %v8619
      %v8622 = vshrl.u32 %v8469, 16
      %v8624 = vshll.u32 %v8469, 16
      %v8626 = vrot.slane %v8624, 1
      %v8627 = vor.u32 %v8622, %v8626
      %v8629 = vshll.u32 %v8470, 16
      %v8631 = vrot.slane %v8629, 1
      %v8632 = vsel %vm1216, %v8627, %v8631
      %v8634 = vshrl.u32 %v8471, 16
      %v8636 = vshll.u32 %v8471, 16
      %v8638 = vrot.slane %v8636, 1
      %v8639 = vor.u32 %v8634, %v8638
      %v8641 = vshll.u32 %v8472, 16
      %v8643 = vrot.slane %v8641, 1
      %v8644 = vsel %vm1216, %v8639, %v8643
      %v8646 = vshrl.u32 %v8473, 16
      %v8648 = vshll.u32 %v8473, 16
      %v8650 = vrot.slane %v8648, 1
      %v8651 = vor.u32 %v8646, %v8650
      %v8653 = vshll.u32 %v8474, 16
      %v8655 = vrot.slane %v8653, 1
      %v8656 = vsel %vm1216, %v8651, %v8655
      %v8658 = vshrl.u32 %v8475, 16
      %v8660 = vshll.u32 %v8475, 16
      %v8662 = vrot.slane %v8660, 1
      %v8663 = vor.u32 %v8658, %v8662
      %v8665 = vshll.u32 %v8476, 16
      %v8667 = vrot.slane %v8665, 1
      %v8668 = vsel %vm1216, %v8663, %v8667
      %s8669 = scalar_lea.vmem %s4, 16
      %v8670 = vld [vmem:[%s8669] sm:$0x3]
      %v8672 = vsel %vm280, %v8488, 0
      %v8675 = vsel %vm280, %v8500, 0
      %v8678 = vsel %vm280, %v8512, 0
      %v8681 = vsel %vm280, %v8524, 0
      %v8684 = vsel %vm280, %v8536, 0
      %v8687 = vsel %vm280, %v8548, 0
      %v8690 = vsel %vm280, %v8560, 0
      %v8693 = vsel %vm280, %v8572, 0
      %v8696 = vsel %vm280, %v8584, 0
      %v8699 = vsel %vm280, %v8596, 0
      %v8702 = vsel %vm280, %v8608, 0
      %v8705 = vsel %vm280, %v8620, 0
      %v8708 = vsel %vm280, %v8632, 0
      %v8711 = vsel %vm280, %v8644, 0
      %v8714 = vsel %vm280, %v8656, 0
      %v8717 = vsel %vm280, %v8668, 0
      %v8720 = vsel %vm661, %v8670, 0
      %8722 = vmatprep.subr.bf16.mxu0 0
      %8723 = vmatpush1.bf16.msra.mxu0 %v8720
      %8724 = vmatprep.subr.bf16.mxu0 0
      %8725 = vmatpush1.bf16.msra.mxu0 0
      %8726 = vmatprep.subr.bf16.mxu0 0
      %8727 = vmatpush1.bf16.msra.mxu0 0
      %8728 = vmatprep.subr.bf16.mxu0 0
      %8729 = vmatpush1.bf16.msra.mxu0 0
      %8730 = vmatprep.subr.bf16.mxu0 0
      %8731 = vmatpush1.bf16.msra.mxu0 0
      %8732 = vmatprep.subr.bf16.mxu0 0
      %8733 = vmatpush1.bf16.msra.mxu0 0
      %8734 = vmatprep.subr.bf16.mxu0 0
      %8735 = vmatpush1.bf16.msra.mxu0 0
      %8736 = vmatprep.subr.bf16.mxu0 0
      %8737 = vmatpush1.bf16.msra.mxu0 0
      %8738 = vmatprep.subr.bf16.mxu0 0
      %8739 = vmatpush1.bf16.msra.mxu0 0
      %8740 = vmatprep.subr.bf16.mxu0 0
      %8741 = vmatpush1.bf16.msra.mxu0 0
      %8742 = vmatprep.subr.bf16.mxu0 0
      %8743 = vmatpush1.bf16.msra.mxu0 0
      %8744 = vmatprep.subr.bf16.mxu0 0
      %8745 = vmatpush1.bf16.msra.mxu0 0
      %8746 = vmatprep.subr.bf16.mxu0 0
      %8747 = vmatpush1.bf16.msra.mxu0 0
      %8748 = vmatprep.subr.bf16.mxu0 0
      %8749 = vmatpush1.bf16.msra.mxu0 0
      %8750 = vmatprep.subr.bf16.mxu0 0
      %8751 = vmatpush1.bf16.msra.mxu0 0
      %8752 = vmatprep.subr.bf16.mxu0 0
      %8753 = vmatpush1.bf16.msra.mxu0 0
      %8754 = vmatprep.mubr.bf16.mxu0 0
      %8755 = vmatmul.mubr.bf16.gmra.mrb[0].mxu0 %v8672
      %v8756 = vpop.f32.mrb[0].mxu0
      %v8757 = vadd.f32 0.0, %v8756
      %v8758 = vpop.f32.mrb[0].mxu0
      %v8759 = vpop.f32.mrb[0].mxu0
      %v8760 = vadd.f32 0.0, %v8759
      %v8761 = vpop.f32.mrb[0].mxu0
      %8762 = vmatprep.mubr.bf16.mxu0 0
      %8763 = vmatmul.mubr.bf16.gmra.mrb[0].mxu0 %v8675
      %v8764 = vpop.f32.mrb[0].mxu0
      %v8765 = vadd.f32 0.0, %v8764
      %v8766 = vpop.f32.mrb[0].mxu0
      %v8767 = vpop.f32.mrb[0].mxu0
      %v8768 = vadd.f32 0.0, %v8767
      %v8769 = vpop.f32.mrb[0].mxu0
      %8770 = vmatprep.mubr.bf16.mxu0 0
      %8771 = vmatmul.mubr.bf16.gmra.mrb[0].mxu0 %v8678
      %v8772 = vpop.f32.mrb[0].mxu0
      %v8773 = vadd.f32 0.0, %v8772
      %v8774 = vpop.f32.mrb[0].mxu0
      %v8775 = vpop.f32.mrb[0].mxu0
      %v8776 = vadd.f32 0.0, %v8775
      %v8777 = vpop.f32.mrb[0].mxu0
      %8778 = vmatprep.mubr.bf16.mxu0 0
      %8779 = vmatmul.mubr.bf16.gmra.mrb[0].mxu0 %v8681
      %v8780 = vpop.f32.mrb[0].mxu0
      %v8781 = vadd.f32 0.0, %v8780
      %v8782 = vpop.f32.mrb[0].mxu0
      %v8783 = vpop.f32.mrb[0].mxu0
      %v8784 = vadd.f32 0.0, %v8783
      %v8785 = vpop.f32.mrb[0].mxu0
      %8786 = vmatprep.mubr.bf16.mxu0 0
      %8787 = vmatmul.mubr.bf16.gmra.mrb[0].mxu0 %v8684
      %v8788 = vpop.f32.mrb[0].mxu0
      %v8789 = vadd.f32 0.0, %v8788
      %v8790 = vpop.f32.mrb[0].mxu0
      %v8791 = vpop.f32.mrb[0].mxu0
      %v8792 = vadd.f32 0.0, %v8791
      %v8793 = vpop.f32.mrb[0].mxu0
      %8794 = vmatprep.mubr.bf16.mxu0 0
      %8795 = vmatmul.mubr.bf16.gmra.mrb[0].mxu0 %v8687
      %v8796 = vpop.f32.mrb[0].mxu0
      %v8797 = vadd.f32 0.0, %v8796
      %v8798 = vpop.f32.mrb[0].mxu0
      %v8799 = vpop.f32.mrb[0].mxu0
      %v8800 = vadd.f32 0.0, %v8799
      %v8801 = vpop.f32.mrb[0].mxu0
      %8802 = vmatprep.mubr.bf16.mxu0 0
      %8803 = vmatmul.mubr.bf16.gmra.mrb[0].mxu0 %v8690
      %v8804 = vpop.f32.mrb[0].mxu0
      %v8805 = vadd.f32 0.0, %v8804
      %v8806 = vpop.f32.mrb[0].mxu0
      %v8807 = vpop.f32.mrb[0].mxu0
      %v8808 = vadd.f32 0.0, %v8807
      %v8809 = vpop.f32.mrb[0].mxu0
      %8810 = vmatprep.mubr.bf16.mxu0 0
      %8811 = vmatmul.mubr.bf16.gmra.mrb[0].mxu0 %v8693
      %v8812 = vpop.f32.mrb[0].mxu0
      %v8813 = vadd.f32 0.0, %v8812
      %v8814 = vpop.f32.mrb[0].mxu0
      %v8815 = vpop.f32.mrb[0].mxu0
      %v8816 = vadd.f32 0.0, %v8815
      %v8817 = vpop.f32.mrb[0].mxu0
      %8818 = vmatprep.mubr.bf16.mxu0 0
      %8819 = vmatmul.mubr.bf16.gmra.mrb[0].mxu0 %v8696
      %v8820 = vpop.f32.mrb[0].mxu0
      %v8821 = vadd.f32 0.0, %v8820
      %v8822 = vpop.f32.mrb[0].mxu0
      %v8823 = vpop.f32.mrb[0].mxu0
      %v8824 = vadd.f32 0.0, %v8823
      %v8825 = vpop.f32.mrb[0].mxu0
      %8826 = vmatprep.mubr.bf16.mxu0 0
      %8827 = vmatmul.mubr.bf16.gmra.mrb[0].mxu0 %v8699
      %v8828 = vpop.f32.mrb[0].mxu0
      %v8829 = vadd.f32 0.0, %v8828
      %v8830 = vpop.f32.mrb[0].mxu0
      %v8831 = vpop.f32.mrb[0].mxu0
      %v8832 = vadd.f32 0.0, %v8831
      %v8833 = vpop.f32.mrb[0].mxu0
      %8834 = vmatprep.mubr.bf16.mxu0 0
      %8835 = vmatmul.mubr.bf16.gmra.mrb[0].mxu0 %v8702
      %v8836 = vpop.f32.mrb[0].mxu0
      %v8837 = vadd.f32 0.0, %v8836
      %v8838 = vpop.f32.mrb[0].mxu0
      %v8839 = vpop.f32.mrb[0].mxu0
      %v8840 = vadd.f32 0.0, %v8839
      %v8841 = vpop.f32.mrb[0].mxu0
      %8842 = vmatprep.mubr.bf16.mxu0 0
      %8843 = vmatmul.mubr.bf16.gmra.mrb[0].mxu0 %v8705
      %v8844 = vpop.f32.mrb[0].mxu0
      %v8845 = vadd.f32 0.0, %v8844
      %v8846 = vpop.f32.mrb[0].mxu0
      %v8847 = vpop.f32.mrb[0].mxu0
      %v8848 = vadd.f32 0.0, %v8847
      %v8849 = vpop.f32.mrb[0].mxu0
      %8850 = vmatprep.mubr.bf16.mxu0 0
      %8851 = vmatmul.mubr.bf16.gmra.mrb[0].mxu0 %v8708
      %v8852 = vpop.f32.mrb[0].mxu0
      %v8853 = vadd.f32 0.0, %v8852
      %v8854 = vpop.f32.mrb[0].mxu0
      %v8855 = vpop.f32.mrb[0].mxu0
      %v8856 = vadd.f32 0.0, %v8855
      %v8857 = vpop.f32.mrb[0].mxu0
      %8858 = vmatprep.mubr.bf16.mxu0 0
      %8859 = vmatmul.mubr.bf16.gmra.mrb[0].mxu0 %v8711
      %v8860 = vpop.f32.mrb[0].mxu0
      %v8861 = vadd.f32 0.0, %v8860
      %v8862 = vpop.f32.mrb[0].mxu0
      %v8863 = vpop.f32.mrb[0].mxu0
      %v8864 = vadd.f32 0.0, %v8863
      %v8865 = vpop.f32.mrb[0].mxu0
      %8866 = vmatprep.mubr.bf16.mxu0 0
      %8867 = vmatmul.mubr.bf16.gmra.mrb[0].mxu0 %v8714
      %v8868 = vpop.f32.mrb[0].mxu0
      %v8869 = vadd.f32 0.0, %v8868
      %v8870 = vpop.f32.mrb[0].mxu0
      %v8871 = vpop.f32.mrb[0].mxu0
      %v8872 = vadd.f32 0.0, %v8871
      %v8873 = vpop.f32.mrb[0].mxu0
      %8874 = vmatprep.mubr.bf16.mxu0 0
      %8875 = vmatmul.mubr.bf16.gmra.mrb[0].mxu0 %v8717
      %v8876 = vpop.f32.mrb[0].mxu0
      %v8877 = vadd.f32 0.0, %v8876
      %v8878 = vpop.f32.mrb[0].mxu0
      %v8879 = vpop.f32.mrb[0].mxu0
      %v8880 = vadd.f32 0.0, %v8879
      %v8881 = vpop.f32.mrb[0].mxu0
      %8882 = vdwg.mxu0
      %v8883 = vld [vmem:[#allocation3] sm:$0xff]
      %v8884 = vld [vmem:[#allocation3 + $0x8] sm:$0xff]
      %v8885 = vld [vmem:[#allocation3 + $0x10] sm:$0xff]
      %v8886 = vld [vmem:[#allocation3 + $0x18] sm:$0xff]
      %v8887 = vld [vmem:[#allocation3 + $0x20] sm:$0xff]
      %v8888 = vld [vmem:[#allocation3 + $0x28] sm:$0xff]
      %v8889 = vld [vmem:[#allocation3 + $0x30] sm:$0xff]
      %v8890 = vld [vmem:[#allocation3 + $0x38] sm:$0xff]
      %v8891 = vld [vmem:[#allocation3 + $0x40] sm:$0xff]
      %v8892 = vld [vmem:[#allocation3 + $0x48] sm:$0xff]
      %v8893 = vld [vmem:[#allocation3 + $0x50] sm:$0xff]
      %v8894 = vld [vmem:[#allocation3 + $0x58] sm:$0xff]
      %v8895 = vld [vmem:[#allocation3 + $0x60] sm:$0xff]
      %v8896 = vld [vmem:[#allocation3 + $0x68] sm:$0xff]
      %v8897 = vld [vmem:[#allocation3 + $0x70] sm:$0xff]
      %v8898 = vld [vmem:[#allocation3 + $0x78] sm:$0xff]
      %v8899 = vld [vmem:[#allocation3 + $0x80] sm:$0xff]
      %v8900 = vld [vmem:[#allocation3 + $0x88] sm:$0xff]
      %v8901 = vld [vmem:[#allocation3 + $0x90] sm:$0xff]
      %v8902 = vld [vmem:[#allocation3 + $0x98] sm:$0xff]
      %v8903 = vld [vmem:[#allocation3 + $0xa0] sm:$0xff]
      %v8904 = vld [vmem:[#allocation3 + $0xa8] sm:$0xff]
      %v8905 = vld [vmem:[#allocation3 + $0xb0] sm:$0xff]
      %v8906 = vld [vmem:[#allocation3 + $0xb8] sm:$0xff]
      %v8907 = vld [vmem:[#allocation3 + $0xc0] sm:$0xff]
      %v8908 = vld [vmem:[#allocation3 + $0xc8] sm:$0xff]
      %v8909 = vld [vmem:[#allocation3 + $0xd0] sm:$0xff]
      %v8910 = vld [vmem:[#allocation3 + $0xd8] sm:$0xff]
      %v8911 = vld [vmem:[#allocation3 + $0xe0] sm:$0xff]
      %v8912 = vld [vmem:[#allocation3 + $0xe8] sm:$0xff]
      %v8913 = vld [vmem:[#allocation3 + $0xf0] sm:$0xff]
      %v8914 = vld [vmem:[#allocation3 + $0xf8] sm:$0xff]
      %v8915 = vadd.f32 %v8883, %v8757
      %v8916 = vadd.f32 %v8884, %v8760
      %v8917 = vadd.f32 %v8885, %v8765
      %v8918 = vadd.f32 %v8886, %v8768
      %v8919 = vadd.f32 %v8887, %v8773
      %v8920 = vadd.f32 %v8888, %v8776
      %v8921 = vadd.f32 %v8889, %v8781
      %v8922 = vadd.f32 %v8890, %v8784
      %v8923 = vadd.f32 %v8891, %v8789
      %v8924 = vadd.f32 %v8892, %v8792
      %v8925 = vadd.f32 %v8893, %v8797
      %v8926 = vadd.f32 %v8894, %v8800
      %v8927 = vadd.f32 %v8895, %v8805
      %v8928 = vadd.f32 %v8896, %v8808
      %v8929 = vadd.f32 %v8897, %v8813
      %v8930 = vadd.f32 %v8898, %v8816
      %v8931 = vadd.f32 %v8899, %v8821
      %v8932 = vadd.f32 %v8900, %v8824
      %v8933 = vadd.f32 %v8901, %v8829
      %v8934 = vadd.f32 %v8902, %v8832
      %v8935 = vadd.f32 %v8903, %v8837
      %v8936 = vadd.f32 %v8904, %v8840
      %v8937 = vadd.f32 %v8905, %v8845
      %v8938 = vadd.f32 %v8906, %v8848
      %v8939 = vadd.f32 %v8907, %v8853
      %v8940 = vadd.f32 %v8908, %v8856
      %v8941 = vadd.f32 %v8909, %v8861
      %v8942 = vadd.f32 %v8910, %v8864
      %v8943 = vadd.f32 %v8911, %v8869
      %v8944 = vadd.f32 %v8912, %v8872
      %v8945 = vadd.f32 %v8913, %v8877
      %v8946 = vadd.f32 %v8914, %v8880
      %8947 = vst.msk [vmem:[#allocation3] sm:$0xff] %vm280, %v8915
      %8948 = vst.msk [vmem:[#allocation3 + $0x8] sm:$0xff] %vm280, %v8916
      %8949 = vst.msk [vmem:[#allocation3 + $0x10] sm:$0xff] %vm280, %v8917
      %8950 = vst.msk [vmem:[#allocation3 + $0x18] sm:$0xff] %vm280, %v8918
      %8951 = vst.msk [vmem:[#allocation3 + $0x20] sm:$0xff] %vm280, %v8919
      %8952 = vst.msk [vmem:[#allocation3 + $0x28] sm:$0xff] %vm280, %v8920
      %8953 = vst.msk [vmem:[#allocation3 + $0x30] sm:$0xff] %vm280, %v8921
      %8954 = vst.msk [vmem:[#allocation3 + $0x38] sm:$0xff] %vm280, %v8922
      %8955 = vst.msk [vmem:[#allocation3 + $0x40] sm:$0xff] %vm280, %v8923
      %8956 = vst.msk [vmem:[#allocation3 + $0x48] sm:$0xff] %vm280, %v8924
      %8957 = vst.msk [vmem:[#allocation3 + $0x50] sm:$0xff] %vm280, %v8925
      %8958 = vst.msk [vmem:[#allocation3 + $0x58] sm:$0xff] %vm280, %v8926
      %8959 = vst.msk [vmem:[#allocation3 + $0x60] sm:$0xff] %vm280, %v8927
      %8960 = vst.msk [vmem:[#allocation3 + $0x68] sm:$0xff] %vm280, %v8928
      %8961 = vst.msk [vmem:[#allocation3 + $0x70] sm:$0xff] %vm280, %v8929
      %8962 = vst.msk [vmem:[#allocation3 + $0x78] sm:$0xff] %vm280, %v8930
      %8963 = vst.msk [vmem:[#allocation3 + $0x80] sm:$0xff] %vm280, %v8931
      %8964 = vst.msk [vmem:[#allocation3 + $0x88] sm:$0xff] %vm280, %v8932
      %8965 = vst.msk [vmem:[#allocation3 + $0x90] sm:$0xff] %vm280, %v8933
      %8966 = vst.msk [vmem:[#allocation3 + $0x98] sm:$0xff] %vm280, %v8934
      %8967 = vst.msk [vmem:[#allocation3 + $0xa0] sm:$0xff] %vm280, %v8935
      %8968 = vst.msk [vmem:[#allocation3 + $0xa8] sm:$0xff] %vm280, %v8936
      %8969 = vst.msk [vmem:[#allocation3 + $0xb0] sm:$0xff] %vm280, %v8937
      %8970 = vst.msk [vmem:[#allocation3 + $0xb8] sm:$0xff] %vm280, %v8938
      %8971 = vst.msk [vmem:[#allocation3 + $0xc0] sm:$0xff] %vm280, %v8939
      %8972 = vst.msk [vmem:[#allocation3 + $0xc8] sm:$0xff] %vm280, %v8940
      %8973 = vst.msk [vmem:[#allocation3 + $0xd0] sm:$0xff] %vm280, %v8941
      %8974 = vst.msk [vmem:[#allocation3 + $0xd8] sm:$0xff] %vm280, %v8942
      %8975 = vst.msk [vmem:[#allocation3 + $0xe0] sm:$0xff] %vm280, %v8943
      %8976 = vst.msk [vmem:[#allocation3 + $0xe8] sm:$0xff] %vm280, %v8944
      %8977 = vst.msk [vmem:[#allocation3 + $0xf0] sm:$0xff] %vm280, %v8945
      %8978 = vst.msk [vmem:[#allocation3 + $0xf8] sm:$0xff] %vm280, %v8946
      %v8979 = vld [vmem:[#allocation3] sm:$0xff]
      %v8980 = vld [vmem:[#allocation3 + $0x8] sm:$0xff]
      %v8981 = vld [vmem:[#allocation3 + $0x10] sm:$0xff]
      %v8982 = vld [vmem:[#allocation3 + $0x18] sm:$0xff]
      %v8983 = vld [vmem:[#allocation3 + $0x20] sm:$0xff]
      %v8984 = vld [vmem:[#allocation3 + $0x28] sm:$0xff]
      %v8985 = vld [vmem:[#allocation3 + $0x30] sm:$0xff]
      %v8986 = vld [vmem:[#allocation3 + $0x38] sm:$0xff]
      %v8987 = vld [vmem:[#allocation3 + $0x40] sm:$0xff]
      %v8988 = vld [vmem:[#allocation3 + $0x48] sm:$0xff]
      %v8989 = vld [vmem:[#allocation3 + $0x50] sm:$0xff]
      %v8990 = vld [vmem:[#allocation3 + $0x58] sm:$0xff]
      %v8991 = vld [vmem:[#allocation3 + $0x60] sm:$0xff]
      %v8992 = vld [vmem:[#allocation3 + $0x68] sm:$0xff]
      %v8993 = vld [vmem:[#allocation3 + $0x70] sm:$0xff]
      %v8994 = vld [vmem:[#allocation3 + $0x78] sm:$0xff]
      %v8995 = vld [vmem:[#allocation3 + $0x80] sm:$0xff]
      %v8996 = vld [vmem:[#allocation3 + $0x88] sm:$0xff]
      %v8997 = vld [vmem:[#allocation3 + $0x90] sm:$0xff]
      %v8998 = vld [vmem:[#allocation3 + $0x98] sm:$0xff]
      %v8999 = vld [vmem:[#allocation3 + $0xa0] sm:$0xff]
      %v9000 = vld [vmem:[#allocation3 + $0xa8] sm:$0xff]
      %v9001 = vld [vmem:[#allocation3 + $0xb0] sm:$0xff]
      %v9002 = vld [vmem:[#allocation3 + $0xb8] sm:$0xff]
      %v9003 = vld [vmem:[#allocation3 + $0xc0] sm:$0xff]
      %v9004 = vld [vmem:[#allocation3 + $0xc8] sm:$0xff]
      %v9005 = vld [vmem:[#allocation3 + $0xd0] sm:$0xff]
      %v9006 = vld [vmem:[#allocation3 + $0xd8] sm:$0xff]
      %v9007 = vld [vmem:[#allocation3 + $0xe0] sm:$0xff]
      %v9008 = vld [vmem:[#allocation3 + $0xe8] sm:$0xff]
      %v9009 = vld [vmem:[#allocation3 + $0xf0] sm:$0xff]
      %v9010 = vld [vmem:[#allocation3 + $0xf8] sm:$0xff]
      %v9011 = vsel %vm280, %v8979, 0.0
      %v9012 = vsel %vm280, %v8980, 0.0
      %v9013 = vadd.f32 %v9011, %v9012
      %v9014 = vsel %vm280, %v8981, 0.0
      %v9015 = vadd.f32 %v9013, %v9014
      %v9016 = vsel %vm280, %v8982, 0.0
      %v9017 = vadd.f32 %v9015, %v9016
      %v9018 = vsel %vm280, %v8983, 0.0
      %v9019 = vadd.f32 %v9017, %v9018
      %v9020 = vsel %vm280, %v8984, 0.0
      %v9021 = vadd.f32 %v9019, %v9020
      %v9022 = vsel %vm280, %v8985, 0.0
      %v9023 = vadd.f32 %v9021, %v9022
      %v9024 = vsel %vm280, %v8986, 0.0
      %v9025 = vadd.f32 %v9023, %v9024
      %v9026 = vsel %vm280, %v8987, 0.0
      %v9027 = vadd.f32 %v9025, %v9026
      %v9028 = vsel %vm280, %v8988, 0.0
      %v9029 = vadd.f32 %v9027, %v9028
      %v9030 = vsel %vm280, %v8989, 0.0
      %v9031 = vadd.f32 %v9029, %v9030
      %v9032 = vsel %vm280, %v8990, 0.0
      %v9033 = vadd.f32 %v9031, %v9032
      %v9034 = vsel %vm280, %v8991, 0.0
      %v9035 = vadd.f32 %v9033, %v9034
      %v9036 = vsel %vm280, %v8992, 0.0
      %v9037 = vadd.f32 %v9035, %v9036
      %v9038 = vsel %vm280, %v8993, 0.0
      %v9039 = vadd.f32 %v9037, %v9038
      %v9040 = vsel %vm280, %v8994, 0.0
      %v9041 = vadd.f32 %v9039, %v9040
      %v9042 = vsel %vm280, %v8995, 0.0
      %v9043 = vadd.f32 %v9041, %v9042
      %v9044 = vsel %vm280, %v8996, 0.0
      %v9045 = vadd.f32 %v9043, %v9044
      %v9046 = vsel %vm280, %v8997, 0.0
      %v9047 = vadd.f32 %v9045, %v9046
      %v9048 = vsel %vm280, %v8998, 0.0
      %v9049 = vadd.f32 %v9047, %v9048
      %v9050 = vsel %vm280, %v8999, 0.0
      %v9051 = vadd.f32 %v9049, %v9050
      %v9052 = vsel %vm280, %v9000, 0.0
      %v9053 = vadd.f32 %v9051, %v9052
      %v9054 = vsel %vm280, %v9001, 0.0
      %v9055 = vadd.f32 %v9053, %v9054
      %v9056 = vsel %vm280, %v9002, 0.0
      %v9057 = vadd.f32 %v9055, %v9056
      %v9058 = vsel %vm280, %v9003, 0.0
      %v9059 = vadd.f32 %v9057, %v9058
      %v9060 = vsel %vm280, %v9004, 0.0
      %v9061 = vadd.f32 %v9059, %v9060
      %v9062 = vsel %vm280, %v9005, 0.0
      %v9063 = vadd.f32 %v9061, %v9062
      %v9064 = vsel %vm280, %v9006, 0.0
      %v9065 = vadd.f32 %v9063, %v9064
      %v9066 = vsel %vm280, %v9007, 0.0
      %v9067 = vadd.f32 %v9065, %v9066
      %v9068 = vsel %vm280, %v9008, 0.0
      %v9069 = vadd.f32 %v9067, %v9068
      %v9070 = vsel %vm280, %v9009, 0.0
      %v9071 = vadd.f32 %v9069, %v9070
      %v9072 = vsel %vm280, %v9010, 0.0
      %v9073 = vadd.f32 %v9071, %v9072
      %v9074 = vrot.slane %v9073, 4
      %v9075 = vadd.f32 %v9073, %v9074
      %v9076 = vrot.slane %v9075, 2
      %v9077 = vadd.f32 %v9075, %v9076
      %v9078 = vrot.slane %v9077, 1
      %v9079 = vadd.f32 %v9077, %v9078
      %v9080 = vmul.f32 %v8979, %v8979
      %v9081 = vmul.f32 %v8980, %v8980
      %v9082 = vmul.f32 %v8981, %v8981
      %v9083 = vmul.f32 %v8982, %v8982
      %v9084 = vmul.f32 %v8983, %v8983
      %v9085 = vmul.f32 %v8984, %v8984
      %v9086 = vmul.f32 %v8985, %v8985
      %v9087 = vmul.f32 %v8986, %v8986
      %v9088 = vmul.f32 %v8987, %v8987
      %v9089 = vmul.f32 %v8988, %v8988
      %v9090 = vmul.f32 %v8989, %v8989
      %v9091 = vmul.f32 %v8990, %v8990
      %v9092 = vmul.f32 %v8991, %v8991
      %v9093 = vmul.f32 %v8992, %v8992
      %v9094 = vmul.f32 %v8993, %v8993
      %v9095 = vmul.f32 %v8994, %v8994
      %v9096 = vmul.f32 %v8995, %v8995
      %v9097 = vmul.f32 %v8996, %v8996
      %v9098 = vmul.f32 %v8997, %v8997
      %v9099 = vmul.f32 %v8998, %v8998
      %v9100 = vmul.f32 %v8999, %v8999
      %v9101 = vmul.f32 %v9000, %v9000
      %v9102 = vmul.f32 %v9001, %v9001
      %v9103 = vmul.f32 %v9002, %v9002
      %v9104 = vmul.f32 %v9003, %v9003
      %v9105 = vmul.f32 %v9004, %v9004
      %v9106 = vmul.f32 %v9005, %v9005
      %v9107 = vmul.f32 %v9006, %v9006
      %v9108 = vmul.f32 %v9007, %v9007
      %v9109 = vmul.f32 %v9008, %v9008
      %v9110 = vmul.f32 %v9009, %v9009
      %v9111 = vmul.f32 %v9010, %v9010
      %v9112 = vsel %vm280, %v9080, 0.0
      %v9113 = vsel %vm280, %v9081, 0.0
      %v9114 = vadd.f32 %v9112, %v9113
      %v9115 = vsel %vm280, %v9082, 0.0
      %v9116 = vadd.f32 %v9114, %v9115
      %v9117 = vsel %vm280, %v9083, 0.0
      %v9118 = vadd.f32 %v9116, %v9117
      %v9119 = vsel %vm280, %v9084, 0.0
      %v9120 = vadd.f32 %v9118, %v9119
      %v9121 = vsel %vm280, %v9085, 0.0
      %v9122 = vadd.f32 %v9120, %v9121
      %v9123 = vsel %vm280, %v9086, 0.0
      %v9124 = vadd.f32 %v9122, %v9123
      %v9125 = vsel %vm280, %v9087, 0.0
      %v9126 = vadd.f32 %v9124, %v9125
      %v9127 = vsel %vm280, %v9088, 0.0
      %v9128 = vadd.f32 %v9126, %v9127
      %v9129 = vsel %vm280, %v9089, 0.0
      %v9130 = vadd.f32 %v9128, %v9129
      %v9131 = vsel %vm280, %v9090, 0.0
      %v9132 = vadd.f32 %v9130, %v9131
      %v9133 = vsel %vm280, %v9091, 0.0
      %v9134 = vadd.f32 %v9132, %v9133
      %v9135 = vsel %vm280, %v9092, 0.0
      %v9136 = vadd.f32 %v9134, %v9135
      %v9137 = vsel %vm280, %v9093, 0.0
      %v9138 = vadd.f32 %v9136, %v9137
      %v9139 = vsel %vm280, %v9094, 0.0
      %v9140 = vadd.f32 %v9138, %v9139
      %v9141 = vsel %vm280, %v9095, 0.0
      %v9142 = vadd.f32 %v9140, %v9141
      %v9143 = vsel %vm280, %v9096, 0.0
      %v9144 = vadd.f32 %v9142, %v9143
      %v9145 = vsel %vm280, %v9097, 0.0
      %v9146 = vadd.f32 %v9144, %v9145
      %v9147 = vsel %vm280, %v9098, 0.0
      %v9148 = vadd.f32 %v9146, %v9147
      %v9149 = vsel %vm280, %v9099, 0.0
      %v9150 = vadd.f32 %v9148, %v9149
      %v9151 = vsel %vm280, %v9100, 0.0
      %v9152 = vadd.f32 %v9150, %v9151
      %v9153 = vsel %vm280, %v9101, 0.0
      %v9154 = vadd.f32 %v9152, %v9153
      %v9155 = vsel %vm280, %v9102, 0.0
      %v9156 = vadd.f32 %v9154, %v9155
      %v9157 = vsel %vm280, %v9103, 0.0
      %v9158 = vadd.f32 %v9156, %v9157
      %v9159 = vsel %vm280, %v9104, 0.0
      %v9160 = vadd.f32 %v9158, %v9159
      %v9161 = vsel %vm280, %v9105, 0.0
      %v9162 = vadd.f32 %v9160, %v9161
      %v9163 = vsel %vm280, %v9106, 0.0
      %v9164 = vadd.f32 %v9162, %v9163
      %v9165 = vsel %vm280, %v9107, 0.0
      %v9166 = vadd.f32 %v9164, %v9165
      %v9167 = vsel %vm280, %v9108, 0.0
      %v9168 = vadd.f32 %v9166, %v9167
      %v9169 = vsel %vm280, %v9109, 0.0
      %v9170 = vadd.f32 %v9168, %v9169
      %v9171 = vsel %vm280, %v9110, 0.0
      %v9172 = vadd.f32 %v9170, %v9171
      %v9173 = vsel %vm280, %v9111, 0.0
      %v9174 = vadd.f32 %v9172, %v9173
      %v9175 = vrot.slane %v9174, 4
      %v9176 = vadd.f32 %v9174, %v9175
      %v9177 = vrot.slane %v9176, 2
      %v9178 = vadd.f32 %v9176, %v9177
      %v9179 = vrot.slane %v9178, 1
      %v9180 = vadd.f32 %v9178, %v9179
      %v9181 = vmul.f32 %v9079, 0.00390625
      %v9182 = vmul.f32 %v9180, 0.00390625
      %v9183 = vmul.f32 %v9181, %v9181
      %v9184 = vsub.f32 %v9182, %v9183
      %v9185 = vmax.f32 %v9184, 0.0
      %v9186 = vld [vmem:[%s5] sm:$0x1]
      %v9187 = vadd.f32 %v9185, 1e-05
      %v9188 = vrsqrt.pop %v9187
      %v9189 = vmul.f32 %v9186, %v9188
      %v9190 = vld [vmem:[%s6] sm:$0x1]
      %v9191 = vmul.f32 %v9181, %v9189
      %v9192 = vsub.f32 %v9190, %v9191
      %v9194 = vlaneseq
      %v9195 = vshrl.u32 %v9194, 7
      %v9196 = vsub.s32 0, %v9195
      %v9197 = vrot.slane %v9189, %v9196
      %v9199 = vmul.f32 %v8979, %v9197
      %v9200 = vmul.f32 %v8980, %v9197
      %v9201 = vmul.f32 %v8981, %v9197
      %v9202 = vmul.f32 %v8982, %v9197
      %v9203 = vmul.f32 %v8983, %v9197
      %v9204 = vmul.f32 %v8984, %v9197
      %v9205 = vmul.f32 %v8985, %v9197
      %v9206 = vmul.f32 %v8986, %v9197
      %v9207 = vmul.f32 %v8987, %v9197
      %v9208 = vmul.f32 %v8988, %v9197
      %v9209 = vmul.f32 %v8989, %v9197
      %v9210 = vmul.f32 %v8990, %v9197
      %v9211 = vmul.f32 %v8991, %v9197
      %v9212 = vmul.f32 %v8992, %v9197
      %v9213 = vmul.f32 %v8993, %v9197
      %v9214 = vmul.f32 %v8994, %v9197
      %v9215 = vmul.f32 %v8995, %v9197
      %v9216 = vmul.f32 %v8996, %v9197
      %v9217 = vmul.f32 %v8997, %v9197
      %v9218 = vmul.f32 %v8998, %v9197
      %v9219 = vmul.f32 %v8999, %v9197
      %v9220 = vmul.f32 %v9000, %v9197
      %v9221 = vmul.f32 %v9001, %v9197
      %v9222 = vmul.f32 %v9002, %v9197
      %v9223 = vmul.f32 %v9003, %v9197
      %v9224 = vmul.f32 %v9004, %v9197
      %v9225 = vmul.f32 %v9005, %v9197
      %v9226 = vmul.f32 %v9006, %v9197
      %v9227 = vmul.f32 %v9007, %v9197
      %v9228 = vmul.f32 %v9008, %v9197
      %v9229 = vmul.f32 %v9009, %v9197
      %v9230 = vmul.f32 %v9010, %v9197
      %v9232 = vlaneseq
      %v9233 = vshrl.u32 %v9232, 7
      %v9234 = vsub.s32 0, %v9233
      %v9235 = vrot.slane %v9192, %v9234
      %v9237 = vadd.f32 %v9199, %v9235
      %v9238 = vadd.f32 %v9200, %v9235
      %v9239 = vadd.f32 %v9201, %v9235
      %v9240 = vadd.f32 %v9202, %v9235
      %v9241 = vadd.f32 %v9203, %v9235
      %v9242 = vadd.f32 %v9204, %v9235
      %v9243 = vadd.f32 %v9205, %v9235
      %v9244 = vadd.f32 %v9206, %v9235
      %v9245 = vadd.f32 %v9207, %v9235
      %v9246 = vadd.f32 %v9208, %v9235
      %v9247 = vadd.f32 %v9209, %v9235
      %v9248 = vadd.f32 %v9210, %v9235
      %v9249 = vadd.f32 %v9211, %v9235
      %v9250 = vadd.f32 %v9212, %v9235
      %v9251 = vadd.f32 %v9213, %v9235
      %v9252 = vadd.f32 %v9214, %v9235
      %v9253 = vadd.f32 %v9215, %v9235
      %v9254 = vadd.f32 %v9216, %v9235
      %v9255 = vadd.f32 %v9217, %v9235
      %v9256 = vadd.f32 %v9218, %v9235
      %v9257 = vadd.f32 %v9219, %v9235
      %v9258 = vadd.f32 %v9220, %v9235
      %v9259 = vadd.f32 %v9221, %v9235
      %v9260 = vadd.f32 %v9222, %v9235
      %v9261 = vadd.f32 %v9223, %v9235
      %v9262 = vadd.f32 %v9224, %v9235
      %v9263 = vadd.f32 %v9225, %v9235
      %v9264 = vadd.f32 %v9226, %v9235
      %v9265 = vadd.f32 %v9227, %v9235
      %v9266 = vadd.f32 %v9228, %v9235
      %v9267 = vadd.f32 %v9229, %v9235
      %v9268 = vadd.f32 %v9230, %v9235
      %v9269 = vld [vmem:[%s273] sm:$0xff]
      %v9270 = vld [vmem:[%s273 + $0x8] sm:$0xff]
      %v9271 = vld [vmem:[%s273 + $0x10] sm:$0xff]
      %v9272 = vld [vmem:[%s273 + $0x18] sm:$0xff]
      %v9273 = vld [vmem:[%s273 + $0x20] sm:$0xff]
      %v9274 = vld [vmem:[%s273 + $0x28] sm:$0xff]
      %v9275 = vld [vmem:[%s273 + $0x30] sm:$0xff]
      %v9276 = vld [vmem:[%s273 + $0x38] sm:$0xff]
      %v9277 = vld [vmem:[%s273 + $0x40] sm:$0xff]
      %v9278 = vld [vmem:[%s273 + $0x48] sm:$0xff]
      %v9279 = vld [vmem:[%s273 + $0x50] sm:$0xff]
      %v9280 = vld [vmem:[%s273 + $0x58] sm:$0xff]
      %v9281 = vld [vmem:[%s273 + $0x60] sm:$0xff]
      %v9282 = vld [vmem:[%s273 + $0x68] sm:$0xff]
      %v9283 = vld [vmem:[%s273 + $0x70] sm:$0xff]
      %v9284 = vld [vmem:[%s273 + $0x78] sm:$0xff]
      %v9285 = vld [vmem:[%s273 + $0x80] sm:$0xff]
      %v9286 = vld [vmem:[%s273 + $0x88] sm:$0xff]
      %v9287 = vld [vmem:[%s273 + $0x90] sm:$0xff]
      %v9288 = vld [vmem:[%s273 + $0x98] sm:$0xff]
      %v9289 = vld [vmem:[%s273 + $0xa0] sm:$0xff]
      %v9290 = vld [vmem:[%s273 + $0xa8] sm:$0xff]
      %v9291 = vld [vmem:[%s273 + $0xb0] sm:$0xff]
      %v9292 = vld [vmem:[%s273 + $0xb8] sm:$0xff]
      %v9293 = vld [vmem:[%s273 + $0xc0] sm:$0xff]
      %v9294 = vld [vmem:[%s273 + $0xc8] sm:$0xff]
      %v9295 = vld [vmem:[%s273 + $0xd0] sm:$0xff]
      %v9296 = vld [vmem:[%s273 + $0xd8] sm:$0xff]
      %v9297 = vld [vmem:[%s273 + $0xe0] sm:$0xff]
      %v9298 = vld [vmem:[%s273 + $0xe8] sm:$0xff]
      %v9299 = vld [vmem:[%s273 + $0xf0] sm:$0xff]
      %v9300 = vld [vmem:[%s273 + $0xf8] sm:$0xff]
      %v9301 = vadd.f32 %v9269, %v9237
      %v9302 = vadd.f32 %v9270, %v9238
      %v9303 = vadd.f32 %v9271, %v9239
      %v9304 = vadd.f32 %v9272, %v9240
      %v9305 = vadd.f32 %v9273, %v9241
      %v9306 = vadd.f32 %v9274, %v9242
      %v9307 = vadd.f32 %v9275, %v9243
      %v9308 = vadd.f32 %v9276, %v9244
      %v9309 = vadd.f32 %v9277, %v9245
      %v9310 = vadd.f32 %v9278, %v9246
      %v9311 = vadd.f32 %v9279, %v9247
      %v9312 = vadd.f32 %v9280, %v9248
      %v9313 = vadd.f32 %v9281, %v9249
      %v9314 = vadd.f32 %v9282, %v9250
      %v9315 = vadd.f32 %v9283, %v9251
      %v9316 = vadd.f32 %v9284, %v9252
      %v9317 = vadd.f32 %v9285, %v9253
      %v9318 = vadd.f32 %v9286, %v9254
      %v9319 = vadd.f32 %v9287, %v9255
      %v9320 = vadd.f32 %v9288, %v9256
      %v9321 = vadd.f32 %v9289, %v9257
      %v9322 = vadd.f32 %v9290, %v9258
      %v9323 = vadd.f32 %v9291, %v9259
      %v9324 = vadd.f32 %v9292, %v9260
      %v9325 = vadd.f32 %v9293, %v9261
      %v9326 = vadd.f32 %v9294, %v9262
      %v9327 = vadd.f32 %v9295, %v9263
      %v9328 = vadd.f32 %v9296, %v9264
      %v9329 = vadd.f32 %v9297, %v9265
      %v9330 = vadd.f32 %v9298, %v9266
      %v9331 = vadd.f32 %v9299, %v9267
      %v9332 = vadd.f32 %v9300, %v9268
      %9333 = vst.msk [vmem:[%s278] sm:$0xff] %vm280, %v9301
      %9334 = vst.msk [vmem:[%s278 + $0x8] sm:$0xff] %vm280, %v9302
      %9335 = vst.msk [vmem:[%s278 + $0x10] sm:$0xff] %vm280, %v9303
      %9336 = vst.msk [vmem:[%s278 + $0x18] sm:$0xff] %vm280, %v9304
      %9337 = vst.msk [vmem:[%s278 + $0x20] sm:$0xff] %vm280, %v9305
      %9338 = vst.msk [vmem:[%s278 + $0x28] sm:$0xff] %vm280, %v9306
      %9339 = vst.msk [vmem:[%s278 + $0x30] sm:$0xff] %vm280, %v9307
      %9340 = vst.msk [vmem:[%s278 + $0x38] sm:$0xff] %vm280, %v9308
      %9341 = vst.msk [vmem:[%s278 + $0x40] sm:$0xff] %vm280, %v9309
      %9342 = vst.msk [vmem:[%s278 + $0x48] sm:$0xff] %vm280, %v9310
      %9343 = vst.msk [vmem:[%s278 + $0x50] sm:$0xff] %vm280, %v9311
      %9344 = vst.msk [vmem:[%s278 + $0x58] sm:$0xff] %vm280, %v9312
      %9345 = vst.msk [vmem:[%s278 + $0x60] sm:$0xff] %vm280, %v9313
      %9346 = vst.msk [vmem:[%s278 + $0x68] sm:$0xff] %vm280, %v9314
      %9347 = vst.msk [vmem:[%s278 + $0x70] sm:$0xff] %vm280, %v9315
      %9348 = vst.msk [vmem:[%s278 + $0x78] sm:$0xff] %vm280, %v9316
      %9349 = vst.msk [vmem:[%s278 + $0x80] sm:$0xff] %vm280, %v9317
      %9350 = vst.msk [vmem:[%s278 + $0x88] sm:$0xff] %vm280, %v9318
      %9351 = vst.msk [vmem:[%s278 + $0x90] sm:$0xff] %vm280, %v9319
      %9352 = vst.msk [vmem:[%s278 + $0x98] sm:$0xff] %vm280, %v9320
      %9353 = vst.msk [vmem:[%s278 + $0xa0] sm:$0xff] %vm280, %v9321
      %9354 = vst.msk [vmem:[%s278 + $0xa8] sm:$0xff] %vm280, %v9322
      %9355 = vst.msk [vmem:[%s278 + $0xb0] sm:$0xff] %vm280, %v9323
      %9356 = vst.msk [vmem:[%s278 + $0xb8] sm:$0xff] %vm280, %v9324
      %9357 = vst.msk [vmem:[%s278 + $0xc0] sm:$0xff] %vm280, %v9325
      %9358 = vst.msk [vmem:[%s278 + $0xc8] sm:$0xff] %vm280, %v9326
      %9359 = vst.msk [vmem:[%s278 + $0xd0] sm:$0xff] %vm280, %v9327
      %9360 = vst.msk [vmem:[%s278 + $0xd8] sm:$0xff] %vm280, %v9328
      %9361 = vst.msk [vmem:[%s278 + $0xe0] sm:$0xff] %vm280, %v9329
      %9362 = vst.msk [vmem:[%s278 + $0xe8] sm:$0xff] %vm280, %v9330
      %9363 = vst.msk [vmem:[%s278 + $0xf0] sm:$0xff] %vm280, %v9331
      %9364 = vst.msk [vmem:[%s278 + $0xf8] sm:$0xff] %vm280, %v9332
      %p9365 = scmp.lt.s32.totalorder %s18, 1
      %s9366 = scalar_select %p9365, %s18, 1
      %s9367 = smul.addr %s9366, 32
      %s9368 = smul.addr %s9367, 8
      %s9369 = scalar_lea.vmem %s7, %s9368
      // Predicated region
      $region49: #{resnet_block_forward.1} parent=47 // pred_check
        %p9370 = pneg %p188
      $region50: #{resnet_block_forward.1} parent=47 // pred_check_branch
        %9372 = sbr.rel (%p9370) target = $region52
      $region51: #{resnet_block_forward.1} parent=47 // pred_region
        _
      $region52: #{resnet_block_forward.1} parent=47 // pred_fallthru
        _
    $region48: #{resnet_block_forward.1} parent=5 // pred_fallthru
      _
    %p9373 = scmp.le.s32.totalorder 2, %s13
    // Predicated region
    $region53: #{resnet_block_forward.1} parent=5 // pred_check
      %p9374 = pneg %p9373
    $region54: #{resnet_block_forward.1} parent=5 // pred_check_branch
      %9376 = sbr.rel (%p9374) target = $region56
    $region55: #{resnet_block_forward.1} parent=5 // pred_region
      %s9377 = ssub.s32 %s13, 2
      // Predicated region
      $region57: #{resnet_block_forward.1} parent=55 // pred_check
        %p9378 = pneg %p194
      $region58: #{resnet_block_forward.1} parent=55 // pred_check_branch
        %9380 = sbr.rel (%p9378) target = $region60
      $region59: #{resnet_block_forward.1} parent=55 // pred_region
        %p9381 = scmp.lt.s32.totalorder %s19, 1
        %s9382 = scalar_select %p9381, %s19, 1
        %s9383 = smul.addr %s9382, 32
        %s9384 = smul.addr %s9383, 8
        %s9385 = scalar_lea.vmem %s7, %s9384
      $region60: #{resnet_block_forward.1} parent=55 // pred_fallthru
        _
    $region56: #{resnet_block_forward.1} parent=5 // pred_fallthru
      _
  $region6: #{resnet_block_forward.1} parent=0 // loop_footer
    %s17 = sadd.s32 1, %s13
  $region7: #{resnet_block_forward.1} parent=0 // loop_footer_branch
    %12 = sbr.rel target = $region3
  $region8: #{resnet_block_forward.1} parent=0 // loop_exit
    _

</llo_original>
